<compile_context>
chip_gen: v5e
topology: v5e:2x2
jax: 0.10.0
libtpu: 0.0.40
codegen_flags: <defaults>
</compile_context>

<pallas_src>
import functools

import jax
import jax.numpy as jnp
from jax import lax
from jax.experimental import pallas as pl
from jax.experimental.pallas import tpu as pltpu

_LANES = 128


def _bn_kernel(x_ref, p_ref, o_ref, pcol_ref, *, eps, inv_count):
    # x_ref: (N, C, HW) f32 in VMEM -- channels on sublanes, spatial on lanes.
    # p_ref: (2, C) f32 [gamma; beta], lane-dense.
    # pcol_ref: (C, 2) f32 scratch holding the column-oriented params.
    n_batch, n_chan, _ = x_ref.shape

    # --- (1) Relayout params (2, C) -> (C, 2) on the MXU -------------------
    # lane->sublane moves are the only relayout NCHW forces on us; do them as
    # tiny NT matmuls against an identity (always lowers, otherwise-idle MXU).
    rows = lax.broadcasted_iota(jnp.int32, (_LANES, _LANES), 0)
    cols = lax.broadcasted_iota(jnp.int32, (_LANES, _LANES), 1)
    eye = (rows == cols).astype(jnp.float32)
    params = p_ref[...]                                     # (2, C)
    for i in range(pl.cdiv(n_chan, _LANES)):
        i0 = i * _LANES
        w = min(_LANES, n_chan - i0)
        chunk = params[:, i0:i0 + w]                        # (2, w)
        colchunk = lax.dot_general(                         # (w, 2) = chunk^T
            eye[:w, :w], chunk,
            dimension_numbers=(((1,), (1,)), ((), ())),
            preferred_element_type=jnp.float32)
        pcol_ref[i0:i0 + w, :] = colchunk
    gamma_col = pcol_ref[:, 0:1]                            # (C, 1)
    beta_col = pcol_ref[:, 1:2]                             # (C, 1)

    # --- (2) Per-channel batch statistics on the MXU -----------------------
    n_sp = x_ref.shape[2]
    ones_col = jnp.ones((n_sp, 1), jnp.float32)
    s1 = jnp.zeros((n_chan, 1), jnp.float32)
    s2 = jnp.zeros((n_chan, 1), jnp.float32)
    for n in range(n_batch):                                # static unroll (N=1)
        xn = x_ref[n]                                       # (C, HW)
        s1 = s1 + jnp.dot(xn, ones_col, preferred_element_type=jnp.float32)
        s2 = s2 + jnp.dot(xn * xn, ones_col, preferred_element_type=jnp.float32)

    mean = s1 * inv_count                                   # (C, 1)
    # One-pass variance can go slightly negative from f32 cancellation; clamp
    # so rsqrt never sees a negative argument.  Biased variance (training BN).
    var = jnp.maximum(s2 * inv_count - mean * mean, 0.0)
    inv_std = lax.rsqrt(var + eps)                          # (C, 1)

    # Fold the affine: exactly one multiply + one add per element below.
    a = inv_std * gamma_col                                 # (C, 1)
    b = beta_col - mean * a                                 # (C, 1)

    # --- (3) Normalize + affine --------------------------------------------
    for n in range(n_batch):
        o_ref[n] = x_ref[n] * a + b


@functools.partial(jax.jit, static_argnames=("eps",))
def batchnorm2d_pallas(x_nchw, gamma, beta, eps=1e-3):
    """Training-mode BatchNorm2d over an NCHW float32 input."""
    N, C, H, W = x_nchw.shape
    HW = H * W
    count = N * HW

    # Free, copy-less view of the contiguous NCHW buffer.
    x3 = x_nchw.reshape(N, C, HW).astype(jnp.float32)
    # Stack gamma/beta into one lane-dense (2, C) slab: a single contiguous
    # 2*C*4-byte DMA instead of 2*C four-byte strided rows.
    params = jnp.stack(
        [gamma.astype(jnp.float32), beta.astype(jnp.float32)], axis=0)

    cost = pl.CostEstimate(
        flops=8 * N * C * HW,            # x*x, two MXU reduces, mul+add
        transcendentals=C,               # per-channel rsqrt
        bytes_accessed=(2 * N * C * HW + 2 * C) * 4,
    )

    out3 = pl.pallas_call(
        functools.partial(_bn_kernel, eps=float(eps), inv_count=1.0 / count),
        out_shape=jax.ShapeDtypeStruct((N, C, HW), jnp.float32),
        in_specs=[
            pl.BlockSpec((N, C, HW), lambda: (0, 0, 0)),
            pl.BlockSpec((2, C), lambda: (0, 0)),
        ],
        out_specs=pl.BlockSpec((N, C, HW), lambda: (0, 0, 0)),
        scratch_shapes=[pltpu.VMEM((C, 2), jnp.float32)],
        cost_estimate=cost,
    )(x3, params)

    # Free view back to NCHW (same memory order, no transpose).
    return out3.reshape(N, C, H, W)


def batchnorm2d_ref(x_nchw, gamma, beta, eps=1e-3):
    mean = jnp.mean(x_nchw, axis=(0, 2, 3), keepdims=True)
    var = jnp.mean((x_nchw - mean) ** 2, axis=(0, 2, 3), keepdims=True)
    g = gamma.reshape(1, -1, 1, 1)
    b = beta.reshape(1, -1, 1, 1)
    return (x_nchw - mean) * lax.rsqrt(var + eps) * g + b


if __name__ == "__main__":
    key = jax.random.PRNGKey(0)
    k_x, k_g, k_b = jax.random.split(key, 3)

    # Shape implied by the module: x399 = torch.randn([1, 1536, 7, 7])
    N, C, H, W = 1, 1536, 7, 7
    x = jax.random.normal(k_x, (N, C, H, W), dtype=jnp.float32)

    # Non-trivial affine params so the gamma/beta path is actually exercised
    # (PyTorch default init would be ones/zeros).
    gamma = 1.0 + 0.1 * jax.random.normal(k_g, (C,), dtype=jnp.float32)
    beta = 0.1 * jax.random.normal(k_b, (C,), dtype=jnp.float32)

    ref = batchnorm2d_ref(x, gamma, beta, eps=1e-3)

    out = batchnorm2d_pallas(x, gamma, beta, eps=1e-3)
    out = jax.block_until_ready(out)

    assert out.shape == (N, C, H, W)
    assert jnp.allclose(out, ref, atol=1e-4, rtol=1e-4)

    print("KERNEL_OK")
</pallas_src>

<mosaic_0001>
module attributes {stable_mosaic.version = 11 : i64} {
  func.func @_bn_kernel(%arg0: memref<1x1536x49xf32, #tpu.memory_space<vmem>>, %arg1: memref<2x1536xf32, #tpu.memory_space<vmem>>, %arg2: memref<1x1536x49xf32, #tpu.memory_space<vmem>>, %arg3: memref<1536x2xf32, #tpu.memory_space<vmem>>) attributes {dimension_semantics = [], scalar_prefetch = 0 : i64, scratch_operands = 1 : i64, tpu.core_type = #tpu.core_type<tc>} {
    %0 = tpu.iota {dimensions = array<i32: 0>} : vector<128x128xi32>
    %1 = tpu.iota {dimensions = array<i32: 1>} : vector<128x128xi32>
    %2 = arith.cmpi eq, %0, %1 : vector<128x128xi32>
    %3 = arith.extui %2 : vector<128x128xi1> to vector<128x128xi32>
    %4 = arith.sitofp %3 : vector<128x128xi32> to vector<128x128xf32>
    %c0 = arith.constant 0 : index
    %c0_0 = arith.constant 0 : index
    %5 = vector.load %arg1[%c0, %c0_0] : memref<2x1536xf32, #tpu.memory_space<vmem>>, vector<2x1536xf32>
    %6 = vector.extract_strided_slice %5 {offsets = [0, 0], sizes = [2, 128], strides = [1, 1]} : vector<2x1536xf32> to vector<2x128xf32>
    %cst = arith.constant dense<0.000000e+00> : vector<128x2xf32>
    %7 = tpu.matmul %4, %6, %cst {dimension_numbers = #tpu.dot_dimension_numbers<[1], [1], [0], [0], [0, 0, 1, 0], [], []>} : vector<128x128xf32>, vector<2x128xf32>, vector<128x2xf32> -> vector<128x2xf32>
    %c0_1 = arith.constant 0 : index
    %c0_2 = arith.constant 0 : index
    %8 = vector.load %arg3[%c0_1, %c0_2] : memref<1536x2xf32, #tpu.memory_space<vmem>>, vector<128x2xf32>
    tpu.vector_store %arg3[%c0_1, %c0_2], %7 {strides = array<i32>} : memref<1536x2xf32, #tpu.memory_space<vmem>>, vector<128x2xf32>,
    %9 = vector.extract_strided_slice %5 {offsets = [0, 128], sizes = [2, 128], strides = [1, 1]} : vector<2x1536xf32> to vector<2x128xf32>
    %cst_3 = arith.constant dense<0.000000e+00> : vector<128x2xf32>
    %10 = tpu.matmul %4, %9, %cst_3 {dimension_numbers = #tpu.dot_dimension_numbers<[1], [1], [0], [0], [0, 0, 1, 0], [], []>} : vector<128x128xf32>, vector<2x128xf32>, vector<128x2xf32> -> vector<128x2xf32>
    %c128 = arith.constant 128 : index
    %c0_4 = arith.constant 0 : index
    %11 = vector.load %arg3[%c128, %c0_4] : memref<1536x2xf32, #tpu.memory_space<vmem>>, vector<128x2xf32>
    tpu.vector_store %arg3[%c128, %c0_4], %10 {strides = array<i32>} : memref<1536x2xf32, #tpu.memory_space<vmem>>, vector<128x2xf32>,
    %12 = vector.extract_strided_slice %5 {offsets = [0, 256], sizes = [2, 128], strides = [1, 1]} : vector<2x1536xf32> to vector<2x128xf32>
    %cst_5 = arith.constant dense<0.000000e+00> : vector<128x2xf32>
    %13 = tpu.matmul %4, %12, %cst_5 {dimension_numbers = #tpu.dot_dimension_numbers<[1], [1], [0], [0], [0, 0, 1, 0], [], []>} : vector<128x128xf32>, vector<2x128xf32>, vector<128x2xf32> -> vector<128x2xf32>
    %c256 = arith.constant 256 : index
    %c0_6 = arith.constant 0 : index
    %14 = vector.load %arg3[%c256, %c0_6] : memref<1536x2xf32, #tpu.memory_space<vmem>>, vector<128x2xf32>
    tpu.vector_store %arg3[%c256, %c0_6], %13 {strides = array<i32>} : memref<1536x2xf32, #tpu.memory_space<vmem>>, vector<128x2xf32>,
    %15 = vector.extract_strided_slice %5 {offsets = [0, 384], sizes = [2, 128], strides = [1, 1]} : vector<2x1536xf32> to vector<2x128xf32>
    %cst_7 = arith.constant dense<0.000000e+00> : vector<128x2xf32>
    %16 = tpu.matmul %4, %15, %cst_7 {dimension_numbers = #tpu.dot_dimension_numbers<[1], [1], [0], [0], [0, 0, 1, 0], [], []>} : vector<128x128xf32>, vector<2x128xf32>, vector<128x2xf32> -> vector<128x2xf32>
    %c384 = arith.constant 384 : index
    %c0_8 = arith.constant 0 : index
    %17 = vector.load %arg3[%c384, %c0_8] : memref<1536x2xf32, #tpu.memory_space<vmem>>, vector<128x2xf32>
    tpu.vector_store %arg3[%c384, %c0_8], %16 {strides = array<i32>} : memref<1536x2xf32, #tpu.memory_space<vmem>>, vector<128x2xf32>,
    %18 = vector.extract_strided_slice %5 {offsets = [0, 512], sizes = [2, 128], strides = [1, 1]} : vector<2x1536xf32> to vector<2x128xf32>
    %cst_9 = arith.constant dense<0.000000e+00> : vector<128x2xf32>
    %19 = tpu.matmul %4, %18, %cst_9 {dimension_numbers = #tpu.dot_dimension_numbers<[1], [1], [0], [0], [0, 0, 1, 0], [], []>} : vector<128x128xf32>, vector<2x128xf32>, vector<128x2xf32> -> vector<128x2xf32>
    %c512 = arith.constant 512 : index
    %c0_10 = arith.constant 0 : index
    %20 = vector.load %arg3[%c512, %c0_10] : memref<1536x2xf32, #tpu.memory_space<vmem>>, vector<128x2xf32>
    tpu.vector_store %arg3[%c512, %c0_10], %19 {strides = array<i32>} : memref<1536x2xf32, #tpu.memory_space<vmem>>, vector<128x2xf32>,
    %21 = vector.extract_strided_slice %5 {offsets = [0, 640], sizes = [2, 128], strides = [1, 1]} : vector<2x1536xf32> to vector<2x128xf32>
    %cst_11 = arith.constant dense<0.000000e+00> : vector<128x2xf32>
    %22 = tpu.matmul %4, %21, %cst_11 {dimension_numbers = #tpu.dot_dimension_numbers<[1], [1], [0], [0], [0, 0, 1, 0], [], []>} : vector<128x128xf32>, vector<2x128xf32>, vector<128x2xf32> -> vector<128x2xf32>
    %c640 = arith.constant 640 : index
    %c0_12 = arith.constant 0 : index
    %23 = vector.load %arg3[%c640, %c0_12] : memref<1536x2xf32, #tpu.memory_space<vmem>>, vector<128x2xf32>
    tpu.vector_store %arg3[%c640, %c0_12], %22 {strides = array<i32>} : memref<1536x2xf32, #tpu.memory_space<vmem>>, vector<128x2xf32>,
    %24 = vector.extract_strided_slice %5 {offsets = [0, 768], sizes = [2, 128], strides = [1, 1]} : vector<2x1536xf32> to vector<2x128xf32>
    %cst_13 = arith.constant dense<0.000000e+00> : vector<128x2xf32>
    %25 = tpu.matmul %4, %24, %cst_13 {dimension_numbers = #tpu.dot_dimension_numbers<[1], [1], [0], [0], [0, 0, 1, 0], [], []>} : vector<128x128xf32>, vector<2x128xf32>, vector<128x2xf32> -> vector<128x2xf32>
    %c768 = arith.constant 768 : index
    %c0_14 = arith.constant 0 : index
    %26 = vector.load %arg3[%c768, %c0_14] : memref<1536x2xf32, #tpu.memory_space<vmem>>, vector<128x2xf32>
    tpu.vector_store %arg3[%c768, %c0_14], %25 {strides = array<i32>} : memref<1536x2xf32, #tpu.memory_space<vmem>>, vector<128x2xf32>,
    %27 = vector.extract_strided_slice %5 {offsets = [0, 896], sizes = [2, 128], strides = [1, 1]} : vector<2x1536xf32> to vector<2x128xf32>
    %cst_15 = arith.constant dense<0.000000e+00> : vector<128x2xf32>
    %28 = tpu.matmul %4, %27, %cst_15 {dimension_numbers = #tpu.dot_dimension_numbers<[1], [1], [0], [0], [0, 0, 1, 0], [], []>} : vector<128x128xf32>, vector<2x128xf32>, vector<128x2xf32> -> vector<128x2xf32>
    %c896 = arith.constant 896 : index
    %c0_16 = arith.constant 0 : index
    %29 = vector.load %arg3[%c896, %c0_16] : memref<1536x2xf32, #tpu.memory_space<vmem>>, vector<128x2xf32>
    tpu.vector_store %arg3[%c896, %c0_16], %28 {strides = array<i32>} : memref<1536x2xf32, #tpu.memory_space<vmem>>, vector<128x2xf32>,
    %30 = vector.extract_strided_slice %5 {offsets = [0, 1024], sizes = [2, 128], strides = [1, 1]} : vector<2x1536xf32> to vector<2x128xf32>
    %cst_17 = arith.constant dense<0.000000e+00> : vector<128x2xf32>
    %31 = tpu.matmul %4, %30, %cst_17 {dimension_numbers = #tpu.dot_dimension_numbers<[1], [1], [0], [0], [0, 0, 1, 0], [], []>} : vector<128x128xf32>, vector<2x128xf32>, vector<128x2xf32> -> vector<128x2xf32>
    %c1024 = arith.constant 1024 : index
    %c0_18 = arith.constant 0 : index
    %32 = vector.load %arg3[%c1024, %c0_18] : memref<1536x2xf32, #tpu.memory_space<vmem>>, vector<128x2xf32>
    tpu.vector_store %arg3[%c1024, %c0_18], %31 {strides = array<i32>} : memref<1536x2xf32, #tpu.memory_space<vmem>>, vector<128x2xf32>,
    %33 = vector.extract_strided_slice %5 {offsets = [0, 1152], sizes = [2, 128], strides = [1, 1]} : vector<2x1536xf32> to vector<2x128xf32>
    %cst_19 = arith.constant dense<0.000000e+00> : vector<128x2xf32>
    %34 = tpu.matmul %4, %33, %cst_19 {dimension_numbers = #tpu.dot_dimension_numbers<[1], [1], [0], [0], [0, 0, 1, 0], [], []>} : vector<128x128xf32>, vector<2x128xf32>, vector<128x2xf32> -> vector<128x2xf32>
    %c1152 = arith.constant 1152 : index
    %c0_20 = arith.constant 0 : index
    %35 = vector.load %arg3[%c1152, %c0_20] : memref<1536x2xf32, #tpu.memory_space<vmem>>, vector<128x2xf32>
    tpu.vector_store %arg3[%c1152, %c0_20], %34 {strides = array<i32>} : memref<1536x2xf32, #tpu.memory_space<vmem>>, vector<128x2xf32>,
    %36 = vector.extract_strided_slice %5 {offsets = [0, 1280], sizes = [2, 128], strides = [1, 1]} : vector<2x1536xf32> to vector<2x128xf32>
    %cst_21 = arith.constant dense<0.000000e+00> : vector<128x2xf32>
    %37 = tpu.matmul %4, %36, %cst_21 {dimension_numbers = #tpu.dot_dimension_numbers<[1], [1], [0], [0], [0, 0, 1, 0], [], []>} : vector<128x128xf32>, vector<2x128xf32>, vector<128x2xf32> -> vector<128x2xf32>
    %c1280 = arith.constant 1280 : index
    %c0_22 = arith.constant 0 : index
    %38 = vector.load %arg3[%c1280, %c0_22] : memref<1536x2xf32, #tpu.memory_space<vmem>>, vector<128x2xf32>
    tpu.vector_store %arg3[%c1280, %c0_22], %37 {strides = array<i32>} : memref<1536x2xf32, #tpu.memory_space<vmem>>, vector<128x2xf32>,
    %39 = vector.extract_strided_slice %5 {offsets = [0, 1408], sizes = [2, 128], strides = [1, 1]} : vector<2x1536xf32> to vector<2x128xf32>
    %cst_23 = arith.constant dense<0.000000e+00> : vector<128x2xf32>
    %40 = tpu.matmul %4, %39, %cst_23 {dimension_numbers = #tpu.dot_dimension_numbers<[1], [1], [0], [0], [0, 0, 1, 0], [], []>} : vector<128x128xf32>, vector<2x128xf32>, vector<128x2xf32> -> vector<128x2xf32>
    %c1408 = arith.constant 1408 : index
    %c0_24 = arith.constant 0 : index
    %41 = vector.load %arg3[%c1408, %c0_24] : memref<1536x2xf32, #tpu.memory_space<vmem>>, vector<128x2xf32>
    tpu.vector_store %arg3[%c1408, %c0_24], %40 {strides = array<i32>} : memref<1536x2xf32, #tpu.memory_space<vmem>>, vector<128x2xf32>,
    %c0_25 = arith.constant 0 : index
    %c0_26 = arith.constant 0 : index
    %42 = vector.load %arg3[%c0_25, %c0_26] : memref<1536x2xf32, #tpu.memory_space<vmem>>, vector<1536x1xf32>
    %c0_27 = arith.constant 0 : index
    %c1 = arith.constant 1 : index
    %43 = vector.load %arg3[%c0_27, %c1] : memref<1536x2xf32, #tpu.memory_space<vmem>>, vector<1536x1xf32>
    %cst_28 = arith.constant 1.000000e+00 : f32
    %44 = vector.broadcast %cst_28 : f32 to vector<49x1xf32>
    %cst_29 = arith.constant 0.000000e+00 : f32
    %45 = vector.broadcast %cst_29 : f32 to vector<1536x1xf32>
    %cst_30 = arith.constant 0.000000e+00 : f32
    %46 = vector.broadcast %cst_30 : f32 to vector<1536x1xf32>
    %c0_31 = arith.constant 0 : index
    %c0_32 = arith.constant 0 : index
    %c0_33 = arith.constant 0 : index
    %47 = vector.load %arg0[%c0_31, %c0_32, %c0_33] : memref<1x1536x49xf32, #tpu.memory_space<vmem>>, vector<1x1536x49xf32>
    %48 = vector.shape_cast %47 : vector<1x1536x49xf32> to vector<1536x49xf32>
    %cst_34 = arith.constant dense<0.000000e+00> : vector<1536x1xf32>
    %49 = tpu.matmul %48, %44, %cst_34 {dimension_numbers = #tpu.dot_dimension_numbers<[1], [0], [0], [1], [0, 0, 1, 1], [], []>} : vector<1536x49xf32>, vector<49x1xf32>, vector<1536x1xf32> -> vector<1536x1xf32>
    %50 = arith.addf %45, %49 : vector<1536x1xf32>
    %51 = arith.mulf %48, %48 : vector<1536x49xf32>
    %cst_35 = arith.constant dense<0.000000e+00> : vector<1536x1xf32>
    %52 = tpu.matmul %51, %44, %cst_35 {dimension_numbers = #tpu.dot_dimension_numbers<[1], [0], [0], [1], [0, 0, 1, 1], [], []>} : vector<1536x49xf32>, vector<49x1xf32>, vector<1536x1xf32> -> vector<1536x1xf32>
    %53 = arith.addf %46, %52 : vector<1536x1xf32>
    %cst_36 = arith.constant 0.0204081628 : f32
    %54 = vector.broadcast %cst_36 : f32 to vector<1536x1xf32>
    %55 = arith.mulf %50, %54 : vector<1536x1xf32>
    %cst_37 = arith.constant 0.0204081628 : f32
    %56 = vector.broadcast %cst_37 : f32 to vector<1536x1xf32>
    %57 = arith.mulf %53, %56 : vector<1536x1xf32>
    %58 = arith.mulf %55, %55 : vector<1536x1xf32>
    %59 = arith.subf %57, %58 : vector<1536x1xf32>
    %cst_38 = arith.constant 0.000000e+00 : f32
    %60 = vector.broadcast %cst_38 : f32 to vector<1536x1xf32>
    %61 = arith.maximumf %59, %60 : vector<1536x1xf32>
    %cst_39 = arith.constant 1.000000e-03 : f32
    %62 = vector.broadcast %cst_39 : f32 to vector<1536x1xf32>
    %63 = arith.addf %61, %62 : vector<1536x1xf32>
    %64 = math.rsqrt %63 : vector<1536x1xf32>
    %65 = arith.mulf %64, %42 : vector<1536x1xf32>
    %66 = arith.mulf %55, %65 : vector<1536x1xf32>
    %67 = arith.subf %43, %66 : vector<1536x1xf32>
    %c0_40 = arith.constant 0 : index
    %c0_41 = arith.constant 0 : index
    %c0_42 = arith.constant 0 : index
    %68 = vector.load %arg0[%c0_40, %c0_41, %c0_42] : memref<1x1536x49xf32, #tpu.memory_space<vmem>>, vector<1x1536x49xf32>
    %69 = vector.shape_cast %68 : vector<1x1536x49xf32> to vector<1536x49xf32>
    %70 = vector.broadcast %65 : vector<1536x1xf32> to vector<1536x49xf32>
    %71 = arith.mulf %69, %70 : vector<1536x49xf32>
    %72 = vector.broadcast %67 : vector<1536x1xf32> to vector<1536x49xf32>
    %73 = arith.addf %71, %72 : vector<1536x49xf32>
    %c0_43 = arith.constant 0 : index
    %c0_44 = arith.constant 0 : index
    %c0_45 = arith.constant 0 : index
    %74 = vector.load %arg2[%c0_43, %c0_44, %c0_45] : memref<1x1536x49xf32, #tpu.memory_space<vmem>>, vector<1x1536x49xf32>
    %75 = vector.shape_cast %74 : vector<1x1536x49xf32> to vector<1536x49xf32>
    %76 = vector.shape_cast %73 : vector<1536x49xf32> to vector<1x1536x49xf32>
    tpu.vector_store %arg2[%c0_43, %c0_44, %c0_45], %76 {strides = array<i32>} : memref<1x1536x49xf32, #tpu.memory_space<vmem>>, vector<1x1536x49xf32>,
    return
  }
}

</mosaic_0001>

<llo_original>
// kernel: batchnorm2d_pallas.1
$region0: #{batchnorm2d_pallas.1}
  #allocation0 [shape = 'u32[]', space=smem, size = 0x4, offset = 0x4, fixed_abs, tag = 'smem constant byte address 0x4 - core index']
  #allocation1 [shape = 'u32[72,128]{1,0:T(1,128)}', space=vmem, size = 0x9000, scoped, tag = 'internal scratch']
  #allocation2 [shape = 'f32[1536,2]{1,0:T(8,128)}', space=vmem, size = 0xc0000, scoped, tag = 'scratch operand']
  %s0 = inlined_call_operand.vmem [shape: f32[1,1536,49], index: 0, kind: input, shape index: {}]
  %s1 = inlined_call_operand.vmem [shape: f32[2,1536], index: 1, kind: input, shape index: {}]
  %s2 = inlined_call_operand.vmem [shape: f32[1,1536,49], index: 2, kind: output, shape index: {}]
  %s3 = sld [smem:[#allocation0]]
  $region18: #{batchnorm2d_pallas.1} parent=0
    _
  %s5 = ssub.s32 1, %s3
  %s6 = scalar_select 0, %s5, %s3
  // Predicated region
  $region2: #{batchnorm2d_pallas.1} parent=0 // pred_check
    _
  $region3: #{batchnorm2d_pallas.1} parent=0 // pred_check_branch
    %8 = sbr.rel (0) target = $region5
  $region4: #{batchnorm2d_pallas.1} parent=0 // pred_region
    _
  $region5: #{batchnorm2d_pallas.1} parent=0 // pred_fallthru
    _
  // Predicated region
  $region6: #{batchnorm2d_pallas.1} parent=0 // pred_check
    _
  $region7: #{batchnorm2d_pallas.1} parent=0 // pred_check_branch
    %10 = sbr.rel (0) target = $region9
  $region8: #{batchnorm2d_pallas.1} parent=0 // pred_region
    _
  $region9: #{batchnorm2d_pallas.1} parent=0 // pred_fallthru
    _
  %v11 = vlaneseq
  %v12 = vshrl.u32 %v11, 7
  %v13 = vadd.s32 %v12, 8
  %v14 = vadd.s32 %v12, 16
  %v15 = vadd.s32 %v12, 24
  %v16 = vadd.s32 %v12, 32
  %v17 = vadd.s32 %v12, 40
  %v18 = vadd.s32 %v12, 48
  %v19 = vadd.s32 %v12, 56
  %v20 = vadd.s32 %v12, 64
  %v21 = vadd.s32 %v12, 72
  %v22 = vadd.s32 %v12, 80
  %v23 = vadd.s32 %v12, 88
  %v24 = vadd.s32 %v12, 96
  %v25 = vadd.s32 %v12, 104
  %v26 = vadd.s32 %v12, 112
  %v27 = vadd.s32 %v12, 120
  %v28 = vlaneseq
  %v29 = vand.u32 %v28, 127
  %vm30 = vcmp.eq.s32.totalorder %v12, %v29
  %vm31 = vcmp.eq.s32.totalorder %v13, %v29
  %vm32 = vcmp.eq.s32.totalorder %v14, %v29
  %vm33 = vcmp.eq.s32.totalorder %v15, %v29
  %vm34 = vcmp.eq.s32.totalorder %v16, %v29
  %vm35 = vcmp.eq.s32.totalorder %v17, %v29
  %vm36 = vcmp.eq.s32.totalorder %v18, %v29
  %vm37 = vcmp.eq.s32.totalorder %v19, %v29
  %vm38 = vcmp.eq.s32.totalorder %v20, %v29
  %vm39 = vcmp.eq.s32.totalorder %v21, %v29
  %vm40 = vcmp.eq.s32.totalorder %v22, %v29
  %vm41 = vcmp.eq.s32.totalorder %v23, %v29
  %vm42 = vcmp.eq.s32.totalorder %v24, %v29
  %vm43 = vcmp.eq.s32.totalorder %v25, %v29
  %vm44 = vcmp.eq.s32.totalorder %v26, %v29
  %vm45 = vcmp.eq.s32.totalorder %v27, %v29
  %v46 = vsel %vm30, 1, 0
  %v47 = vsel %vm31, 1, 0
  %v48 = vsel %vm32, 1, 0
  %v49 = vsel %vm33, 1, 0
  %v50 = vsel %vm34, 1, 0
  %v51 = vsel %vm35, 1, 0
  %v52 = vsel %vm36, 1, 0
  %v53 = vsel %vm37, 1, 0
  %v54 = vsel %vm38, 1, 0
  %v55 = vsel %vm39, 1, 0
  %v56 = vsel %vm40, 1, 0
  %v57 = vsel %vm41, 1, 0
  %v58 = vsel %vm42, 1, 0
  %v59 = vsel %vm43, 1, 0
  %v60 = vsel %vm44, 1, 0
  %v61 = vsel %vm45, 1, 0
  %v62 = vcvt.s32.f32 %v46
  %v63 = vcvt.s32.f32 %v47
  %v64 = vcvt.s32.f32 %v48
  %v65 = vcvt.s32.f32 %v49
  %v66 = vcvt.s32.f32 %v50
  %v67 = vcvt.s32.f32 %v51
  %v68 = vcvt.s32.f32 %v52
  %v69 = vcvt.s32.f32 %v53
  %v70 = vcvt.s32.f32 %v54
  %v71 = vcvt.s32.f32 %v55
  %v72 = vcvt.s32.f32 %v56
  %v73 = vcvt.s32.f32 %v57
  %v74 = vcvt.s32.f32 %v58
  %v75 = vcvt.s32.f32 %v59
  %v76 = vcvt.s32.f32 %v60
  %v77 = vcvt.s32.f32 %v61
  %v78 = vld [vmem:[%s1] sm:$0xff]
  %v79 = vld [vmem:[%s1 + $0x8] sm:$0xff]
  %v80 = vld [vmem:[%s1 + $0x10] sm:$0xff]
  %81 = vmatpush.xpose.msra.mxu0 0.0
  %82 = vmatpush.xpose.msra.mxu0 0.0
  %83 = vmatpush.xpose.msra.mxu0 0.0
  %84 = vmatpush.xpose.msra.mxu0 0.0
  %85 = vmatpush.xpose.msra.mxu0 0.0
  %86 = vmatpush.xpose.msra.mxu0 0.0
  %87 = vmatpush.xpose.msra.mxu0 0.0
  %88 = vmatpush.xpose.msra.mxu0 0.0
  %89 = vmatpush.xpose.msra.mxu0 0.0
  %90 = vmatpush.xpose.msra.mxu0 0.0
  %91 = vmatpush.xpose.msra.mxu0 0.0
  %92 = vmatpush.xpose.msra.mxu0 0.0
  %93 = vmatpush.xpose.msra.mxu0 0.0
  %94 = vmatpush.xpose.msra.mxu0 0.0
  %95 = vmatpush.xpose.msra.mxu0 0.0
  %96 = vmatpush.xpose.msra.mxu0 %v78
  %97 = vmatmul.f32.gmra.mxu0 %v62
  %v98 = vpop.f32.mrf.mxu0
  %v99 = vadd.f32 0.0, %v98
  %100 = vmatmul.f32.gmra.mxu0 %v63
  %v101 = vpop.f32.mrf.mxu0
  %v102 = vadd.f32 0.0, %v101
  %103 = vmatmul.f32.gmra.mxu0 %v64
  %v104 = vpop.f32.mrf.mxu0
  %v105 = vadd.f32 0.0, %v104
  %106 = vmatmul.f32.gmra.mxu0 %v65
  %v107 = vpop.f32.mrf.mxu0
  %v108 = vadd.f32 0.0, %v107
  %109 = vmatmul.f32.gmra.mxu0 %v66
  %v110 = vpop.f32.mrf.mxu0
  %v111 = vadd.f32 0.0, %v110
  %112 = vmatmul.f32.gmra.mxu0 %v67
  %v113 = vpop.f32.mrf.mxu0
  %v114 = vadd.f32 0.0, %v113
  %115 = vmatmul.f32.gmra.mxu0 %v68
  %v116 = vpop.f32.mrf.mxu0
  %v117 = vadd.f32 0.0, %v116
  %118 = vmatmul.f32.gmra.mxu0 %v69
  %v119 = vpop.f32.mrf.mxu0
  %v120 = vadd.f32 0.0, %v119
  %121 = vmatmul.f32.gmra.mxu0 %v70
  %v122 = vpop.f32.mrf.mxu0
  %v123 = vadd.f32 0.0, %v122
  %124 = vmatmul.f32.gmra.mxu0 %v71
  %v125 = vpop.f32.mrf.mxu0
  %v126 = vadd.f32 0.0, %v125
  %127 = vmatmul.f32.gmra.mxu0 %v72
  %v128 = vpop.f32.mrf.mxu0
  %v129 = vadd.f32 0.0, %v128
  %130 = vmatmul.f32.gmra.mxu0 %v73
  %v131 = vpop.f32.mrf.mxu0
  %v132 = vadd.f32 0.0, %v131
  %133 = vmatmul.f32.gmra.mxu0 %v74
  %v134 = vpop.f32.mrf.mxu0
  %v135 = vadd.f32 0.0, %v134
  %136 = vmatmul.f32.gmra.mxu0 %v75
  %v137 = vpop.f32.mrf.mxu0
  %v138 = vadd.f32 0.0, %v137
  %139 = vmatmul.f32.gmra.mxu0 %v76
  %v140 = vpop.f32.mrf.mxu0
  %v141 = vadd.f32 0.0, %v140
  %142 = vmatmul.f32.gmra.mxu0 %v77
  %v143 = vpop.f32.mrf.mxu0
  %v144 = vadd.f32 0.0, %v143
  %145 = vdwg.mxu0
  %vm146 = vcmask 15360
  %147 = vst.msk [vmem:[#allocation2] sm:$0xff] %vm146, %v99
  %148 = vst.msk [vmem:[#allocation2 + $0x8] sm:$0xff] %vm146, %v102
  %149 = vst.msk [vmem:[#allocation2 + $0x10] sm:$0xff] %vm146, %v105
  %150 = vst.msk [vmem:[#allocation2 + $0x18] sm:$0xff] %vm146, %v108
  %151 = vst.msk [vmem:[#allocation2 + $0x20] sm:$0xff] %vm146, %v111
  %152 = vst.msk [vmem:[#allocation2 + $0x28] sm:$0xff] %vm146, %v114
  %153 = vst.msk [vmem:[#allocation2 + $0x30] sm:$0xff] %vm146, %v117
  %154 = vst.msk [vmem:[#allocation2 + $0x38] sm:$0xff] %vm146, %v120
  %155 = vst.msk [vmem:[#allocation2 + $0x40] sm:$0xff] %vm146, %v123
  %156 = vst.msk [vmem:[#allocation2 + $0x48] sm:$0xff] %vm146, %v126
  %157 = vst.msk [vmem:[#allocation2 + $0x50] sm:$0xff] %vm146, %v129
  %158 = vst.msk [vmem:[#allocation2 + $0x58] sm:$0xff] %vm146, %v132
  %159 = vst.msk [vmem:[#allocation2 + $0x60] sm:$0xff] %vm146, %v135
  %160 = vst.msk [vmem:[#allocation2 + $0x68] sm:$0xff] %vm146, %v138
  %161 = vst.msk [vmem:[#allocation2 + $0x70] sm:$0xff] %vm146, %v141
  %162 = vst.msk [vmem:[#allocation2 + $0x78] sm:$0xff] %vm146, %v144
  %164 = vst [vmem:[#allocation1] ss:$4 sm:$0xff] %v78
  %v165 = vld.sshfl [vmem:[#allocation1 + $0x8] sm:$0xff pattern:$0x73625140]
  %167 = vmatpush.xpose.msra.mxu0 0.0
  %168 = vmatpush.xpose.msra.mxu0 0.0
  %169 = vmatpush.xpose.msra.mxu0 0.0
  %170 = vmatpush.xpose.msra.mxu0 0.0
  %171 = vmatpush.xpose.msra.mxu0 0.0
  %172 = vmatpush.xpose.msra.mxu0 0.0
  %173 = vmatpush.xpose.msra.mxu0 0.0
  %174 = vmatpush.xpose.msra.mxu0 0.0
  %175 = vmatpush.xpose.msra.mxu0 0.0
  %176 = vmatpush.xpose.msra.mxu0 0.0
  %177 = vmatpush.xpose.msra.mxu0 0.0
  %178 = vmatpush.xpose.msra.mxu0 0.0
  %179 = vmatpush.xpose.msra.mxu0 0.0
  %180 = vmatpush.xpose.msra.mxu0 0.0
  %181 = vmatpush.xpose.msra.mxu0 0.0
  %182 = vmatpush.xpose.msra.mxu0 %v165
  %183 = vmatmul.f32.gmra.mxu0 %v62
  %v184 = vpop.f32.mrf.mxu0
  %v185 = vadd.f32 0.0, %v184
  %186 = vmatmul.f32.gmra.mxu0 %v63
  %v187 = vpop.f32.mrf.mxu0
  %v188 = vadd.f32 0.0, %v187
  %189 = vmatmul.f32.gmra.mxu0 %v64
  %v190 = vpop.f32.mrf.mxu0
  %v191 = vadd.f32 0.0, %v190
  %192 = vmatmul.f32.gmra.mxu0 %v65
  %v193 = vpop.f32.mrf.mxu0
  %v194 = vadd.f32 0.0, %v193
  %195 = vmatmul.f32.gmra.mxu0 %v66
  %v196 = vpop.f32.mrf.mxu0
  %v197 = vadd.f32 0.0, %v196
  %198 = vmatmul.f32.gmra.mxu0 %v67
  %v199 = vpop.f32.mrf.mxu0
  %v200 = vadd.f32 0.0, %v199
  %201 = vmatmul.f32.gmra.mxu0 %v68
  %v202 = vpop.f32.mrf.mxu0
  %v203 = vadd.f32 0.0, %v202
  %204 = vmatmul.f32.gmra.mxu0 %v69
  %v205 = vpop.f32.mrf.mxu0
  %v206 = vadd.f32 0.0, %v205
  %207 = vmatmul.f32.gmra.mxu0 %v70
  %v208 = vpop.f32.mrf.mxu0
  %v209 = vadd.f32 0.0, %v208
  %210 = vmatmul.f32.gmra.mxu0 %v71
  %v211 = vpop.f32.mrf.mxu0
  %v212 = vadd.f32 0.0, %v211
  %213 = vmatmul.f32.gmra.mxu0 %v72
  %v214 = vpop.f32.mrf.mxu0
  %v215 = vadd.f32 0.0, %v214
  %216 = vmatmul.f32.gmra.mxu0 %v73
  %v217 = vpop.f32.mrf.mxu0
  %v218 = vadd.f32 0.0, %v217
  %219 = vmatmul.f32.gmra.mxu0 %v74
  %v220 = vpop.f32.mrf.mxu0
  %v221 = vadd.f32 0.0, %v220
  %222 = vmatmul.f32.gmra.mxu0 %v75
  %v223 = vpop.f32.mrf.mxu0
  %v224 = vadd.f32 0.0, %v223
  %225 = vmatmul.f32.gmra.mxu0 %v76
  %v226 = vpop.f32.mrf.mxu0
  %v227 = vadd.f32 0.0, %v226
  %228 = vmatmul.f32.gmra.mxu0 %v77
  %v229 = vpop.f32.mrf.mxu0
  %v230 = vadd.f32 0.0, %v229
  %231 = vdwg.mxu0
  %232 = vst.msk [vmem:[#allocation2 + $0x80] sm:$0xff] %vm146, %v185
  %233 = vst.msk [vmem:[#allocation2 + $0x88] sm:$0xff] %vm146, %v188
  %234 = vst.msk [vmem:[#allocation2 + $0x90] sm:$0xff] %vm146, %v191
  %235 = vst.msk [vmem:[#allocation2 + $0x98] sm:$0xff] %vm146, %v194
  %236 = vst.msk [vmem:[#allocation2 + $0xa0] sm:$0xff] %vm146, %v197
  %237 = vst.msk [vmem:[#allocation2 + $0xa8] sm:$0xff] %vm146, %v200
  %238 = vst.msk [vmem:[#allocation2 + $0xb0] sm:$0xff] %vm146, %v203
  %239 = vst.msk [vmem:[#allocation2 + $0xb8] sm:$0xff] %vm146, %v206
  %240 = vst.msk [vmem:[#allocation2 + $0xc0] sm:$0xff] %vm146, %v209
  %241 = vst.msk [vmem:[#allocation2 + $0xc8] sm:$0xff] %vm146, %v212
  %242 = vst.msk [vmem:[#allocation2 + $0xd0] sm:$0xff] %vm146, %v215
  %243 = vst.msk [vmem:[#allocation2 + $0xd8] sm:$0xff] %vm146, %v218
  %244 = vst.msk [vmem:[#allocation2 + $0xe0] sm:$0xff] %vm146, %v221
  %245 = vst.msk [vmem:[#allocation2 + $0xe8] sm:$0xff] %vm146, %v224
  %246 = vst.msk [vmem:[#allocation2 + $0xf0] sm:$0xff] %vm146, %v227
  %247 = vst.msk [vmem:[#allocation2 + $0xf8] sm:$0xff] %vm146, %v230
  %248 = vst [vmem:[#allocation1] ss:$4 sm:$0xff] %v78
  %v249 = vld.sshfl [vmem:[#allocation1 + $0x10] sm:$0xff pattern:$0x73625140]
  %251 = vmatpush.xpose.msra.mxu0 0.0
  %252 = vmatpush.xpose.msra.mxu0 0.0
  %253 = vmatpush.xpose.msra.mxu0 0.0
  %254 = vmatpush.xpose.msra.mxu0 0.0
  %255 = vmatpush.xpose.msra.mxu0 0.0
  %256 = vmatpush.xpose.msra.mxu0 0.0
  %257 = vmatpush.xpose.msra.mxu0 0.0
  %258 = vmatpush.xpose.msra.mxu0 0.0
  %259 = vmatpush.xpose.msra.mxu0 0.0
  %260 = vmatpush.xpose.msra.mxu0 0.0
  %261 = vmatpush.xpose.msra.mxu0 0.0
  %262 = vmatpush.xpose.msra.mxu0 0.0
  %263 = vmatpush.xpose.msra.mxu0 0.0
  %264 = vmatpush.xpose.msra.mxu0 0.0
  %265 = vmatpush.xpose.msra.mxu0 0.0
  %266 = vmatpush.xpose.msra.mxu0 %v249
  %267 = vmatmul.f32.gmra.mxu0 %v62
  %v268 = vpop.f32.mrf.mxu0
  %v269 = vadd.f32 0.0, %v268
  %270 = vmatmul.f32.gmra.mxu0 %v63
  %v271 = vpop.f32.mrf.mxu0
  %v272 = vadd.f32 0.0, %v271
  %273 = vmatmul.f32.gmra.mxu0 %v64
  %v274 = vpop.f32.mrf.mxu0
  %v275 = vadd.f32 0.0, %v274
  %276 = vmatmul.f32.gmra.mxu0 %v65
  %v277 = vpop.f32.mrf.mxu0
  %v278 = vadd.f32 0.0, %v277
  %279 = vmatmul.f32.gmra.mxu0 %v66
  %v280 = vpop.f32.mrf.mxu0
  %v281 = vadd.f32 0.0, %v280
  %282 = vmatmul.f32.gmra.mxu0 %v67
  %v283 = vpop.f32.mrf.mxu0
  %v284 = vadd.f32 0.0, %v283
  %285 = vmatmul.f32.gmra.mxu0 %v68
  %v286 = vpop.f32.mrf.mxu0
  %v287 = vadd.f32 0.0, %v286
  %288 = vmatmul.f32.gmra.mxu0 %v69
  %v289 = vpop.f32.mrf.mxu0
  %v290 = vadd.f32 0.0, %v289
  %291 = vmatmul.f32.gmra.mxu0 %v70
  %v292 = vpop.f32.mrf.mxu0
  %v293 = vadd.f32 0.0, %v292
  %294 = vmatmul.f32.gmra.mxu0 %v71
  %v295 = vpop.f32.mrf.mxu0
  %v296 = vadd.f32 0.0, %v295
  %297 = vmatmul.f32.gmra.mxu0 %v72
  %v298 = vpop.f32.mrf.mxu0
  %v299 = vadd.f32 0.0, %v298
  %300 = vmatmul.f32.gmra.mxu0 %v73
  %v301 = vpop.f32.mrf.mxu0
  %v302 = vadd.f32 0.0, %v301
  %303 = vmatmul.f32.gmra.mxu0 %v74
  %v304 = vpop.f32.mrf.mxu0
  %v305 = vadd.f32 0.0, %v304
  %306 = vmatmul.f32.gmra.mxu0 %v75
  %v307 = vpop.f32.mrf.mxu0
  %v308 = vadd.f32 0.0, %v307
  %309 = vmatmul.f32.gmra.mxu0 %v76
  %v310 = vpop.f32.mrf.mxu0
  %v311 = vadd.f32 0.0, %v310
  %312 = vmatmul.f32.gmra.mxu0 %v77
  %v313 = vpop.f32.mrf.mxu0
  %v314 = vadd.f32 0.0, %v313
  %315 = vdwg.mxu0
  %316 = vst.msk [vmem:[#allocation2 + $0x100] sm:$0xff] %vm146, %v269
  %317 = vst.msk [vmem:[#allocation2 + $0x108] sm:$0xff] %vm146, %v272
  %318 = vst.msk [vmem:[#allocation2 + $0x110] sm:$0xff] %vm146, %v275
  %319 = vst.msk [vmem:[#allocation2 + $0x118] sm:$0xff] %vm146, %v278
  %320 = vst.msk [vmem:[#allocation2 + $0x120] sm:$0xff] %vm146, %v281
  %321 = vst.msk [vmem:[#allocation2 + $0x128] sm:$0xff] %vm146, %v284
  %322 = vst.msk [vmem:[#allocation2 + $0x130] sm:$0xff] %vm146, %v287
  %323 = vst.msk [vmem:[#allocation2 + $0x138] sm:$0xff] %vm146, %v290
  %324 = vst.msk [vmem:[#allocation2 + $0x140] sm:$0xff] %vm146, %v293
  %325 = vst.msk [vmem:[#allocation2 + $0x148] sm:$0xff] %vm146, %v296
  %326 = vst.msk [vmem:[#allocation2 + $0x150] sm:$0xff] %vm146, %v299
  %327 = vst.msk [vmem:[#allocation2 + $0x158] sm:$0xff] %vm146, %v302
  %328 = vst.msk [vmem:[#allocation2 + $0x160] sm:$0xff] %vm146, %v305
  %329 = vst.msk [vmem:[#allocation2 + $0x168] sm:$0xff] %vm146, %v308
  %330 = vst.msk [vmem:[#allocation2 + $0x170] sm:$0xff] %vm146, %v311
  %331 = vst.msk [vmem:[#allocation2 + $0x178] sm:$0xff] %vm146, %v314
  %332 = vst [vmem:[#allocation1] ss:$4 sm:$0xff] %v78
  %v333 = vld.sshfl [vmem:[#allocation1 + $0x18] sm:$0xff pattern:$0x73625140]
  %335 = vmatpush.xpose.msra.mxu0 0.0
  %336 = vmatpush.xpose.msra.mxu0 0.0
  %337 = vmatpush.xpose.msra.mxu0 0.0
  %338 = vmatpush.xpose.msra.mxu0 0.0
  %339 = vmatpush.xpose.msra.mxu0 0.0
  %340 = vmatpush.xpose.msra.mxu0 0.0
  %341 = vmatpush.xpose.msra.mxu0 0.0
  %342 = vmatpush.xpose.msra.mxu0 0.0
  %343 = vmatpush.xpose.msra.mxu0 0.0
  %344 = vmatpush.xpose.msra.mxu0 0.0
  %345 = vmatpush.xpose.msra.mxu0 0.0
  %346 = vmatpush.xpose.msra.mxu0 0.0
  %347 = vmatpush.xpose.msra.mxu0 0.0
  %348 = vmatpush.xpose.msra.mxu0 0.0
  %349 = vmatpush.xpose.msra.mxu0 0.0
  %350 = vmatpush.xpose.msra.mxu0 %v333
  %351 = vmatmul.f32.gmra.mxu0 %v62
  %v352 = vpop.f32.mrf.mxu0
  %v353 = vadd.f32 0.0, %v352
  %354 = vmatmul.f32.gmra.mxu0 %v63
  %v355 = vpop.f32.mrf.mxu0
  %v356 = vadd.f32 0.0, %v355
  %357 = vmatmul.f32.gmra.mxu0 %v64
  %v358 = vpop.f32.mrf.mxu0
  %v359 = vadd.f32 0.0, %v358
  %360 = vmatmul.f32.gmra.mxu0 %v65
  %v361 = vpop.f32.mrf.mxu0
  %v362 = vadd.f32 0.0, %v361
  %363 = vmatmul.f32.gmra.mxu0 %v66
  %v364 = vpop.f32.mrf.mxu0
  %v365 = vadd.f32 0.0, %v364
  %366 = vmatmul.f32.gmra.mxu0 %v67
  %v367 = vpop.f32.mrf.mxu0
  %v368 = vadd.f32 0.0, %v367
  %369 = vmatmul.f32.gmra.mxu0 %v68
  %v370 = vpop.f32.mrf.mxu0
  %v371 = vadd.f32 0.0, %v370
  %372 = vmatmul.f32.gmra.mxu0 %v69
  %v373 = vpop.f32.mrf.mxu0
  %v374 = vadd.f32 0.0, %v373
  %375 = vmatmul.f32.gmra.mxu0 %v70
  %v376 = vpop.f32.mrf.mxu0
  %v377 = vadd.f32 0.0, %v376
  %378 = vmatmul.f32.gmra.mxu0 %v71
  %v379 = vpop.f32.mrf.mxu0
  %v380 = vadd.f32 0.0, %v379
  %381 = vmatmul.f32.gmra.mxu0 %v72
  %v382 = vpop.f32.mrf.mxu0
  %v383 = vadd.f32 0.0, %v382
  %384 = vmatmul.f32.gmra.mxu0 %v73
  %v385 = vpop.f32.mrf.mxu0
  %v386 = vadd.f32 0.0, %v385
  %387 = vmatmul.f32.gmra.mxu0 %v74
  %v388 = vpop.f32.mrf.mxu0
  %v389 = vadd.f32 0.0, %v388
  %390 = vmatmul.f32.gmra.mxu0 %v75
  %v391 = vpop.f32.mrf.mxu0
  %v392 = vadd.f32 0.0, %v391
  %393 = vmatmul.f32.gmra.mxu0 %v76
  %v394 = vpop.f32.mrf.mxu0
  %v395 = vadd.f32 0.0, %v394
  %396 = vmatmul.f32.gmra.mxu0 %v77
  %v397 = vpop.f32.mrf.mxu0
  %v398 = vadd.f32 0.0, %v397
  %399 = vdwg.mxu0
  %400 = vst.msk [vmem:[#allocation2 + $0x180] sm:$0xff] %vm146, %v353
  %401 = vst.msk [vmem:[#allocation2 + $0x188] sm:$0xff] %vm146, %v356
  %402 = vst.msk [vmem:[#allocation2 + $0x190] sm:$0xff] %vm146, %v359
  %403 = vst.msk [vmem:[#allocation2 + $0x198] sm:$0xff] %vm146, %v362
  %404 = vst.msk [vmem:[#allocation2 + $0x1a0] sm:$0xff] %vm146, %v365
  %405 = vst.msk [vmem:[#allocation2 + $0x1a8] sm:$0xff] %vm146, %v368
  %406 = vst.msk [vmem:[#allocation2 + $0x1b0] sm:$0xff] %vm146, %v371
  %407 = vst.msk [vmem:[#allocation2 + $0x1b8] sm:$0xff] %vm146, %v374
  %408 = vst.msk [vmem:[#allocation2 + $0x1c0] sm:$0xff] %vm146, %v377
  %409 = vst.msk [vmem:[#allocation2 + $0x1c8] sm:$0xff] %vm146, %v380
  %410 = vst.msk [vmem:[#allocation2 + $0x1d0] sm:$0xff] %vm146, %v383
  %411 = vst.msk [vmem:[#allocation2 + $0x1d8] sm:$0xff] %vm146, %v386
  %412 = vst.msk [vmem:[#allocation2 + $0x1e0] sm:$0xff] %vm146, %v389
  %413 = vst.msk [vmem:[#allocation2 + $0x1e8] sm:$0xff] %vm146, %v392
  %414 = vst.msk [vmem:[#allocation2 + $0x1f0] sm:$0xff] %vm146, %v395
  %415 = vst.msk [vmem:[#allocation2 + $0x1f8] sm:$0xff] %vm146, %v398
  %416 = vmatpush.xpose.msra.mxu0 0.0
  %417 = vmatpush.xpose.msra.mxu0 0.0
  %418 = vmatpush.xpose.msra.mxu0 0.0
  %419 = vmatpush.xpose.msra.mxu0 0.0
  %420 = vmatpush.xpose.msra.mxu0 0.0
  %421 = vmatpush.xpose.msra.mxu0 0.0
  %422 = vmatpush.xpose.msra.mxu0 0.0
  %423 = vmatpush.xpose.msra.mxu0 0.0
  %424 = vmatpush.xpose.msra.mxu0 0.0
  %425 = vmatpush.xpose.msra.mxu0 0.0
  %426 = vmatpush.xpose.msra.mxu0 0.0
  %427 = vmatpush.xpose.msra.mxu0 0.0
  %428 = vmatpush.xpose.msra.mxu0 0.0
  %429 = vmatpush.xpose.msra.mxu0 0.0
  %430 = vmatpush.xpose.msra.mxu0 0.0
  %431 = vmatpush.xpose.msra.mxu0 %v79
  %432 = vmatmul.f32.gmra.mxu0 %v62
  %v433 = vpop.f32.mrf.mxu0
  %v434 = vadd.f32 0.0, %v433
  %435 = vmatmul.f32.gmra.mxu0 %v63
  %v436 = vpop.f32.mrf.mxu0
  %v437 = vadd.f32 0.0, %v436
  %438 = vmatmul.f32.gmra.mxu0 %v64
  %v439 = vpop.f32.mrf.mxu0
  %v440 = vadd.f32 0.0, %v439
  %441 = vmatmul.f32.gmra.mxu0 %v65
  %v442 = vpop.f32.mrf.mxu0
  %v443 = vadd.f32 0.0, %v442
  %444 = vmatmul.f32.gmra.mxu0 %v66
  %v445 = vpop.f32.mrf.mxu0
  %v446 = vadd.f32 0.0, %v445
  %447 = vmatmul.f32.gmra.mxu0 %v67
  %v448 = vpop.f32.mrf.mxu0
  %v449 = vadd.f32 0.0, %v448
  %450 = vmatmul.f32.gmra.mxu0 %v68
  %v451 = vpop.f32.mrf.mxu0
  %v452 = vadd.f32 0.0, %v451
  %453 = vmatmul.f32.gmra.mxu0 %v69
  %v454 = vpop.f32.mrf.mxu0
  %v455 = vadd.f32 0.0, %v454
  %456 = vmatmul.f32.gmra.mxu0 %v70
  %v457 = vpop.f32.mrf.mxu0
  %v458 = vadd.f32 0.0, %v457
  %459 = vmatmul.f32.gmra.mxu0 %v71
  %v460 = vpop.f32.mrf.mxu0
  %v461 = vadd.f32 0.0, %v460
  %462 = vmatmul.f32.gmra.mxu0 %v72
  %v463 = vpop.f32.mrf.mxu0
  %v464 = vadd.f32 0.0, %v463
  %465 = vmatmul.f32.gmra.mxu0 %v73
  %v466 = vpop.f32.mrf.mxu0
  %v467 = vadd.f32 0.0, %v466
  %468 = vmatmul.f32.gmra.mxu0 %v74
  %v469 = vpop.f32.mrf.mxu0
  %v470 = vadd.f32 0.0, %v469
  %471 = vmatmul.f32.gmra.mxu0 %v75
  %v472 = vpop.f32.mrf.mxu0
  %v473 = vadd.f32 0.0, %v472
  %474 = vmatmul.f32.gmra.mxu0 %v76
  %v475 = vpop.f32.mrf.mxu0
  %v476 = vadd.f32 0.0, %v475
  %477 = vmatmul.f32.gmra.mxu0 %v77
  %v478 = vpop.f32.mrf.mxu0
  %v479 = vadd.f32 0.0, %v478
  %480 = vdwg.mxu0
  %481 = vst.msk [vmem:[#allocation2 + $0x200] sm:$0xff] %vm146, %v434
  %482 = vst.msk [vmem:[#allocation2 + $0x208] sm:$0xff] %vm146, %v437
  %483 = vst.msk [vmem:[#allocation2 + $0x210] sm:$0xff] %vm146, %v440
  %484 = vst.msk [vmem:[#allocation2 + $0x218] sm:$0xff] %vm146, %v443
  %485 = vst.msk [vmem:[#allocation2 + $0x220] sm:$0xff] %vm146, %v446
  %486 = vst.msk [vmem:[#allocation2 + $0x228] sm:$0xff] %vm146, %v449
  %487 = vst.msk [vmem:[#allocation2 + $0x230] sm:$0xff] %vm146, %v452
  %488 = vst.msk [vmem:[#allocation2 + $0x238] sm:$0xff] %vm146, %v455
  %489 = vst.msk [vmem:[#allocation2 + $0x240] sm:$0xff] %vm146, %v458
  %490 = vst.msk [vmem:[#allocation2 + $0x248] sm:$0xff] %vm146, %v461
  %491 = vst.msk [vmem:[#allocation2 + $0x250] sm:$0xff] %vm146, %v464
  %492 = vst.msk [vmem:[#allocation2 + $0x258] sm:$0xff] %vm146, %v467
  %493 = vst.msk [vmem:[#allocation2 + $0x260] sm:$0xff] %vm146, %v470
  %494 = vst.msk [vmem:[#allocation2 + $0x268] sm:$0xff] %vm146, %v473
  %495 = vst.msk [vmem:[#allocation2 + $0x270] sm:$0xff] %vm146, %v476
  %496 = vst.msk [vmem:[#allocation2 + $0x278] sm:$0xff] %vm146, %v479
  %498 = vst [vmem:[#allocation1] ss:$4 sm:$0xff] %v79
  %v499 = vld.sshfl [vmem:[#allocation1 + $0x8] sm:$0xff pattern:$0x73625140]
  %501 = vmatpush.xpose.msra.mxu0 0.0
  %502 = vmatpush.xpose.msra.mxu0 0.0
  %503 = vmatpush.xpose.msra.mxu0 0.0
  %504 = vmatpush.xpose.msra.mxu0 0.0
  %505 = vmatpush.xpose.msra.mxu0 0.0
  %506 = vmatpush.xpose.msra.mxu0 0.0
  %507 = vmatpush.xpose.msra.mxu0 0.0
  %508 = vmatpush.xpose.msra.mxu0 0.0
  %509 = vmatpush.xpose.msra.mxu0 0.0
  %510 = vmatpush.xpose.msra.mxu0 0.0
  %511 = vmatpush.xpose.msra.mxu0 0.0
  %512 = vmatpush.xpose.msra.mxu0 0.0
  %513 = vmatpush.xpose.msra.mxu0 0.0
  %514 = vmatpush.xpose.msra.mxu0 0.0
  %515 = vmatpush.xpose.msra.mxu0 0.0
  %516 = vmatpush.xpose.msra.mxu0 %v499
  %517 = vmatmul.f32.gmra.mxu0 %v62
  %v518 = vpop.f32.mrf.mxu0
  %v519 = vadd.f32 0.0, %v518
  %520 = vmatmul.f32.gmra.mxu0 %v63
  %v521 = vpop.f32.mrf.mxu0
  %v522 = vadd.f32 0.0, %v521
  %523 = vmatmul.f32.gmra.mxu0 %v64
  %v524 = vpop.f32.mrf.mxu0
  %v525 = vadd.f32 0.0, %v524
  %526 = vmatmul.f32.gmra.mxu0 %v65
  %v527 = vpop.f32.mrf.mxu0
  %v528 = vadd.f32 0.0, %v527
  %529 = vmatmul.f32.gmra.mxu0 %v66
  %v530 = vpop.f32.mrf.mxu0
  %v531 = vadd.f32 0.0, %v530
  %532 = vmatmul.f32.gmra.mxu0 %v67
  %v533 = vpop.f32.mrf.mxu0
  %v534 = vadd.f32 0.0, %v533
  %535 = vmatmul.f32.gmra.mxu0 %v68
  %v536 = vpop.f32.mrf.mxu0
  %v537 = vadd.f32 0.0, %v536
  %538 = vmatmul.f32.gmra.mxu0 %v69
  %v539 = vpop.f32.mrf.mxu0
  %v540 = vadd.f32 0.0, %v539
  %541 = vmatmul.f32.gmra.mxu0 %v70
  %v542 = vpop.f32.mrf.mxu0
  %v543 = vadd.f32 0.0, %v542
  %544 = vmatmul.f32.gmra.mxu0 %v71
  %v545 = vpop.f32.mrf.mxu0
  %v546 = vadd.f32 0.0, %v545
  %547 = vmatmul.f32.gmra.mxu0 %v72
  %v548 = vpop.f32.mrf.mxu0
  %v549 = vadd.f32 0.0, %v548
  %550 = vmatmul.f32.gmra.mxu0 %v73
  %v551 = vpop.f32.mrf.mxu0
  %v552 = vadd.f32 0.0, %v551
  %553 = vmatmul.f32.gmra.mxu0 %v74
  %v554 = vpop.f32.mrf.mxu0
  %v555 = vadd.f32 0.0, %v554
  %556 = vmatmul.f32.gmra.mxu0 %v75
  %v557 = vpop.f32.mrf.mxu0
  %v558 = vadd.f32 0.0, %v557
  %559 = vmatmul.f32.gmra.mxu0 %v76
  %v560 = vpop.f32.mrf.mxu0
  %v561 = vadd.f32 0.0, %v560
  %562 = vmatmul.f32.gmra.mxu0 %v77
  %v563 = vpop.f32.mrf.mxu0
  %v564 = vadd.f32 0.0, %v563
  %565 = vdwg.mxu0
  %566 = vst.msk [vmem:[#allocation2 + $0x280] sm:$0xff] %vm146, %v519
  %567 = vst.msk [vmem:[#allocation2 + $0x288] sm:$0xff] %vm146, %v522
  %568 = vst.msk [vmem:[#allocation2 + $0x290] sm:$0xff] %vm146, %v525
  %569 = vst.msk [vmem:[#allocation2 + $0x298] sm:$0xff] %vm146, %v528
  %570 = vst.msk [vmem:[#allocation2 + $0x2a0] sm:$0xff] %vm146, %v531
  %571 = vst.msk [vmem:[#allocation2 + $0x2a8] sm:$0xff] %vm146, %v534
  %572 = vst.msk [vmem:[#allocation2 + $0x2b0] sm:$0xff] %vm146, %v537
  %573 = vst.msk [vmem:[#allocation2 + $0x2b8] sm:$0xff] %vm146, %v540
  %574 = vst.msk [vmem:[#allocation2 + $0x2c0] sm:$0xff] %vm146, %v543
  %575 = vst.msk [vmem:[#allocation2 + $0x2c8] sm:$0xff] %vm146, %v546
  %576 = vst.msk [vmem:[#allocation2 + $0x2d0] sm:$0xff] %vm146, %v549
  %577 = vst.msk [vmem:[#allocation2 + $0x2d8] sm:$0xff] %vm146, %v552
  %578 = vst.msk [vmem:[#allocation2 + $0x2e0] sm:$0xff] %vm146, %v555
  %579 = vst.msk [vmem:[#allocation2 + $0x2e8] sm:$0xff] %vm146, %v558
  %580 = vst.msk [vmem:[#allocation2 + $0x2f0] sm:$0xff] %vm146, %v561
  %581 = vst.msk [vmem:[#allocation2 + $0x2f8] sm:$0xff] %vm146, %v564
  %582 = vst [vmem:[#allocation1] ss:$4 sm:$0xff] %v79
  %v583 = vld.sshfl [vmem:[#allocation1 + $0x10] sm:$0xff pattern:$0x73625140]
  %585 = vmatpush.xpose.msra.mxu0 0.0
  %586 = vmatpush.xpose.msra.mxu0 0.0
  %587 = vmatpush.xpose.msra.mxu0 0.0
  %588 = vmatpush.xpose.msra.mxu0 0.0
  %589 = vmatpush.xpose.msra.mxu0 0.0
  %590 = vmatpush.xpose.msra.mxu0 0.0
  %591 = vmatpush.xpose.msra.mxu0 0.0
  %592 = vmatpush.xpose.msra.mxu0 0.0
  %593 = vmatpush.xpose.msra.mxu0 0.0
  %594 = vmatpush.xpose.msra.mxu0 0.0
  %595 = vmatpush.xpose.msra.mxu0 0.0
  %596 = vmatpush.xpose.msra.mxu0 0.0
  %597 = vmatpush.xpose.msra.mxu0 0.0
  %598 = vmatpush.xpose.msra.mxu0 0.0
  %599 = vmatpush.xpose.msra.mxu0 0.0
  %600 = vmatpush.xpose.msra.mxu0 %v583
  %601 = vmatmul.f32.gmra.mxu0 %v62
  %v602 = vpop.f32.mrf.mxu0
  %v603 = vadd.f32 0.0, %v602
  %604 = vmatmul.f32.gmra.mxu0 %v63
  %v605 = vpop.f32.mrf.mxu0
  %v606 = vadd.f32 0.0, %v605
  %607 = vmatmul.f32.gmra.mxu0 %v64
  %v608 = vpop.f32.mrf.mxu0
  %v609 = vadd.f32 0.0, %v608
  %610 = vmatmul.f32.gmra.mxu0 %v65
  %v611 = vpop.f32.mrf.mxu0
  %v612 = vadd.f32 0.0, %v611
  %613 = vmatmul.f32.gmra.mxu0 %v66
  %v614 = vpop.f32.mrf.mxu0
  %v615 = vadd.f32 0.0, %v614
  %616 = vmatmul.f32.gmra.mxu0 %v67
  %v617 = vpop.f32.mrf.mxu0
  %v618 = vadd.f32 0.0, %v617
  %619 = vmatmul.f32.gmra.mxu0 %v68
  %v620 = vpop.f32.mrf.mxu0
  %v621 = vadd.f32 0.0, %v620
  %622 = vmatmul.f32.gmra.mxu0 %v69
  %v623 = vpop.f32.mrf.mxu0
  %v624 = vadd.f32 0.0, %v623
  %625 = vmatmul.f32.gmra.mxu0 %v70
  %v626 = vpop.f32.mrf.mxu0
  %v627 = vadd.f32 0.0, %v626
  %628 = vmatmul.f32.gmra.mxu0 %v71
  %v629 = vpop.f32.mrf.mxu0
  %v630 = vadd.f32 0.0, %v629
  %631 = vmatmul.f32.gmra.mxu0 %v72
  %v632 = vpop.f32.mrf.mxu0
  %v633 = vadd.f32 0.0, %v632
  %634 = vmatmul.f32.gmra.mxu0 %v73
  %v635 = vpop.f32.mrf.mxu0
  %v636 = vadd.f32 0.0, %v635
  %637 = vmatmul.f32.gmra.mxu0 %v74
  %v638 = vpop.f32.mrf.mxu0
  %v639 = vadd.f32 0.0, %v638
  %640 = vmatmul.f32.gmra.mxu0 %v75
  %v641 = vpop.f32.mrf.mxu0
  %v642 = vadd.f32 0.0, %v641
  %643 = vmatmul.f32.gmra.mxu0 %v76
  %v644 = vpop.f32.mrf.mxu0
  %v645 = vadd.f32 0.0, %v644
  %646 = vmatmul.f32.gmra.mxu0 %v77
  %v647 = vpop.f32.mrf.mxu0
  %v648 = vadd.f32 0.0, %v647
  %649 = vdwg.mxu0
  %650 = vst.msk [vmem:[#allocation2 + $0x300] sm:$0xff] %vm146, %v603
  %651 = vst.msk [vmem:[#allocation2 + $0x308] sm:$0xff] %vm146, %v606
  %652 = vst.msk [vmem:[#allocation2 + $0x310] sm:$0xff] %vm146, %v609
  %653 = vst.msk [vmem:[#allocation2 + $0x318] sm:$0xff] %vm146, %v612
  %654 = vst.msk [vmem:[#allocation2 + $0x320] sm:$0xff] %vm146, %v615
  %655 = vst.msk [vmem:[#allocation2 + $0x328] sm:$0xff] %vm146, %v618
  %656 = vst.msk [vmem:[#allocation2 + $0x330] sm:$0xff] %vm146, %v621
  %657 = vst.msk [vmem:[#allocation2 + $0x338] sm:$0xff] %vm146, %v624
  %658 = vst.msk [vmem:[#allocation2 + $0x340] sm:$0xff] %vm146, %v627
  %659 = vst.msk [vmem:[#allocation2 + $0x348] sm:$0xff] %vm146, %v630
  %660 = vst.msk [vmem:[#allocation2 + $0x350] sm:$0xff] %vm146, %v633
  %661 = vst.msk [vmem:[#allocation2 + $0x358] sm:$0xff] %vm146, %v636
  %662 = vst.msk [vmem:[#allocation2 + $0x360] sm:$0xff] %vm146, %v639
  %663 = vst.msk [vmem:[#allocation2 + $0x368] sm:$0xff] %vm146, %v642
  %664 = vst.msk [vmem:[#allocation2 + $0x370] sm:$0xff] %vm146, %v645
  %665 = vst.msk [vmem:[#allocation2 + $0x378] sm:$0xff] %vm146, %v648
  %666 = vst [vmem:[#allocation1] ss:$4 sm:$0xff] %v79
  %v667 = vld.sshfl [vmem:[#allocation1 + $0x18] sm:$0xff pattern:$0x73625140]
  %669 = vmatpush.xpose.msra.mxu0 0.0
  %670 = vmatpush.xpose.msra.mxu0 0.0
  %671 = vmatpush.xpose.msra.mxu0 0.0
  %672 = vmatpush.xpose.msra.mxu0 0.0
  %673 = vmatpush.xpose.msra.mxu0 0.0
  %674 = vmatpush.xpose.msra.mxu0 0.0
  %675 = vmatpush.xpose.msra.mxu0 0.0
  %676 = vmatpush.xpose.msra.mxu0 0.0
  %677 = vmatpush.xpose.msra.mxu0 0.0
  %678 = vmatpush.xpose.msra.mxu0 0.0
  %679 = vmatpush.xpose.msra.mxu0 0.0
  %680 = vmatpush.xpose.msra.mxu0 0.0
  %681 = vmatpush.xpose.msra.mxu0 0.0
  %682 = vmatpush.xpose.msra.mxu0 0.0
  %683 = vmatpush.xpose.msra.mxu0 0.0
  %684 = vmatpush.xpose.msra.mxu0 %v667
  %685 = vmatmul.f32.gmra.mxu0 %v62
  %v686 = vpop.f32.mrf.mxu0
  %v687 = vadd.f32 0.0, %v686
  %688 = vmatmul.f32.gmra.mxu0 %v63
  %v689 = vpop.f32.mrf.mxu0
  %v690 = vadd.f32 0.0, %v689
  %691 = vmatmul.f32.gmra.mxu0 %v64
  %v692 = vpop.f32.mrf.mxu0
  %v693 = vadd.f32 0.0, %v692
  %694 = vmatmul.f32.gmra.mxu0 %v65
  %v695 = vpop.f32.mrf.mxu0
  %v696 = vadd.f32 0.0, %v695
  %697 = vmatmul.f32.gmra.mxu0 %v66
  %v698 = vpop.f32.mrf.mxu0
  %v699 = vadd.f32 0.0, %v698
  %700 = vmatmul.f32.gmra.mxu0 %v67
  %v701 = vpop.f32.mrf.mxu0
  %v702 = vadd.f32 0.0, %v701
  %703 = vmatmul.f32.gmra.mxu0 %v68
  %v704 = vpop.f32.mrf.mxu0
  %v705 = vadd.f32 0.0, %v704
  %706 = vmatmul.f32.gmra.mxu0 %v69
  %v707 = vpop.f32.mrf.mxu0
  %v708 = vadd.f32 0.0, %v707
  %709 = vmatmul.f32.gmra.mxu0 %v70
  %v710 = vpop.f32.mrf.mxu0
  %v711 = vadd.f32 0.0, %v710
  %712 = vmatmul.f32.gmra.mxu0 %v71
  %v713 = vpop.f32.mrf.mxu0
  %v714 = vadd.f32 0.0, %v713
  %715 = vmatmul.f32.gmra.mxu0 %v72
  %v716 = vpop.f32.mrf.mxu0
  %v717 = vadd.f32 0.0, %v716
  %718 = vmatmul.f32.gmra.mxu0 %v73
  %v719 = vpop.f32.mrf.mxu0
  %v720 = vadd.f32 0.0, %v719
  %721 = vmatmul.f32.gmra.mxu0 %v74
  %v722 = vpop.f32.mrf.mxu0
  %v723 = vadd.f32 0.0, %v722
  %724 = vmatmul.f32.gmra.mxu0 %v75
  %v725 = vpop.f32.mrf.mxu0
  %v726 = vadd.f32 0.0, %v725
  %727 = vmatmul.f32.gmra.mxu0 %v76
  %v728 = vpop.f32.mrf.mxu0
  %v729 = vadd.f32 0.0, %v728
  %730 = vmatmul.f32.gmra.mxu0 %v77
  %v731 = vpop.f32.mrf.mxu0
  %v732 = vadd.f32 0.0, %v731
  %733 = vdwg.mxu0
  %734 = vst.msk [vmem:[#allocation2 + $0x380] sm:$0xff] %vm146, %v687
  %735 = vst.msk [vmem:[#allocation2 + $0x388] sm:$0xff] %vm146, %v690
  %736 = vst.msk [vmem:[#allocation2 + $0x390] sm:$0xff] %vm146, %v693
  %737 = vst.msk [vmem:[#allocation2 + $0x398] sm:$0xff] %vm146, %v696
  %738 = vst.msk [vmem:[#allocation2 + $0x3a0] sm:$0xff] %vm146, %v699
  %739 = vst.msk [vmem:[#allocation2 + $0x3a8] sm:$0xff] %vm146, %v702
  %740 = vst.msk [vmem:[#allocation2 + $0x3b0] sm:$0xff] %vm146, %v705
  %741 = vst.msk [vmem:[#allocation2 + $0x3b8] sm:$0xff] %vm146, %v708
  %742 = vst.msk [vmem:[#allocation2 + $0x3c0] sm:$0xff] %vm146, %v711
  %743 = vst.msk [vmem:[#allocation2 + $0x3c8] sm:$0xff] %vm146, %v714
  %744 = vst.msk [vmem:[#allocation2 + $0x3d0] sm:$0xff] %vm146, %v717
  %745 = vst.msk [vmem:[#allocation2 + $0x3d8] sm:$0xff] %vm146, %v720
  %746 = vst.msk [vmem:[#allocation2 + $0x3e0] sm:$0xff] %vm146, %v723
  %747 = vst.msk [vmem:[#allocation2 + $0x3e8] sm:$0xff] %vm146, %v726
  %748 = vst.msk [vmem:[#allocation2 + $0x3f0] sm:$0xff] %vm146, %v729
  %749 = vst.msk [vmem:[#allocation2 + $0x3f8] sm:$0xff] %vm146, %v732
  %750 = vmatpush.xpose.msra.mxu0 0.0
  %751 = vmatpush.xpose.msra.mxu0 0.0
  %752 = vmatpush.xpose.msra.mxu0 0.0
  %753 = vmatpush.xpose.msra.mxu0 0.0
  %754 = vmatpush.xpose.msra.mxu0 0.0
  %755 = vmatpush.xpose.msra.mxu0 0.0
  %756 = vmatpush.xpose.msra.mxu0 0.0
  %757 = vmatpush.xpose.msra.mxu0 0.0
  %758 = vmatpush.xpose.msra.mxu0 0.0
  %759 = vmatpush.xpose.msra.mxu0 0.0
  %760 = vmatpush.xpose.msra.mxu0 0.0
  %761 = vmatpush.xpose.msra.mxu0 0.0
  %762 = vmatpush.xpose.msra.mxu0 0.0
  %763 = vmatpush.xpose.msra.mxu0 0.0
  %764 = vmatpush.xpose.msra.mxu0 0.0
  %765 = vmatpush.xpose.msra.mxu0 %v80
  %766 = vmatmul.f32.gmra.mxu0 %v62
  %v767 = vpop.f32.mrf.mxu0
  %v768 = vadd.f32 0.0, %v767
  %769 = vmatmul.f32.gmra.mxu0 %v63
  %v770 = vpop.f32.mrf.mxu0
  %v771 = vadd.f32 0.0, %v770
  %772 = vmatmul.f32.gmra.mxu0 %v64
  %v773 = vpop.f32.mrf.mxu0
  %v774 = vadd.f32 0.0, %v773
  %775 = vmatmul.f32.gmra.mxu0 %v65
  %v776 = vpop.f32.mrf.mxu0
  %v777 = vadd.f32 0.0, %v776
  %778 = vmatmul.f32.gmra.mxu0 %v66
  %v779 = vpop.f32.mrf.mxu0
  %v780 = vadd.f32 0.0, %v779
  %781 = vmatmul.f32.gmra.mxu0 %v67
  %v782 = vpop.f32.mrf.mxu0
  %v783 = vadd.f32 0.0, %v782
  %784 = vmatmul.f32.gmra.mxu0 %v68
  %v785 = vpop.f32.mrf.mxu0
  %v786 = vadd.f32 0.0, %v785
  %787 = vmatmul.f32.gmra.mxu0 %v69
  %v788 = vpop.f32.mrf.mxu0
  %v789 = vadd.f32 0.0, %v788
  %790 = vmatmul.f32.gmra.mxu0 %v70
  %v791 = vpop.f32.mrf.mxu0
  %v792 = vadd.f32 0.0, %v791
  %793 = vmatmul.f32.gmra.mxu0 %v71
  %v794 = vpop.f32.mrf.mxu0
  %v795 = vadd.f32 0.0, %v794
  %796 = vmatmul.f32.gmra.mxu0 %v72
  %v797 = vpop.f32.mrf.mxu0
  %v798 = vadd.f32 0.0, %v797
  %799 = vmatmul.f32.gmra.mxu0 %v73
  %v800 = vpop.f32.mrf.mxu0
  %v801 = vadd.f32 0.0, %v800
  %802 = vmatmul.f32.gmra.mxu0 %v74
  %v803 = vpop.f32.mrf.mxu0
  %v804 = vadd.f32 0.0, %v803
  %805 = vmatmul.f32.gmra.mxu0 %v75
  %v806 = vpop.f32.mrf.mxu0
  %v807 = vadd.f32 0.0, %v806
  %808 = vmatmul.f32.gmra.mxu0 %v76
  %v809 = vpop.f32.mrf.mxu0
  %v810 = vadd.f32 0.0, %v809
  %811 = vmatmul.f32.gmra.mxu0 %v77
  %v812 = vpop.f32.mrf.mxu0
  %v813 = vadd.f32 0.0, %v812
  %814 = vdwg.mxu0
  %815 = vst.msk [vmem:[#allocation2 + $0x400] sm:$0xff] %vm146, %v768
  %816 = vst.msk [vmem:[#allocation2 + $0x408] sm:$0xff] %vm146, %v771
  %817 = vst.msk [vmem:[#allocation2 + $0x410] sm:$0xff] %vm146, %v774
  %818 = vst.msk [vmem:[#allocation2 + $0x418] sm:$0xff] %vm146, %v777
  %819 = vst.msk [vmem:[#allocation2 + $0x420] sm:$0xff] %vm146, %v780
  %820 = vst.msk [vmem:[#allocation2 + $0x428] sm:$0xff] %vm146, %v783
  %821 = vst.msk [vmem:[#allocation2 + $0x430] sm:$0xff] %vm146, %v786
  %822 = vst.msk [vmem:[#allocation2 + $0x438] sm:$0xff] %vm146, %v789
  %823 = vst.msk [vmem:[#allocation2 + $0x440] sm:$0xff] %vm146, %v792
  %824 = vst.msk [vmem:[#allocation2 + $0x448] sm:$0xff] %vm146, %v795
  %825 = vst.msk [vmem:[#allocation2 + $0x450] sm:$0xff] %vm146, %v798
  %826 = vst.msk [vmem:[#allocation2 + $0x458] sm:$0xff] %vm146, %v801
  %827 = vst.msk [vmem:[#allocation2 + $0x460] sm:$0xff] %vm146, %v804
  %828 = vst.msk [vmem:[#allocation2 + $0x468] sm:$0xff] %vm146, %v807
  %829 = vst.msk [vmem:[#allocation2 + $0x470] sm:$0xff] %vm146, %v810
  %830 = vst.msk [vmem:[#allocation2 + $0x478] sm:$0xff] %vm146, %v813
  %832 = vst [vmem:[#allocation1] ss:$4 sm:$0xff] %v80
  %v833 = vld.sshfl [vmem:[#allocation1 + $0x8] sm:$0xff pattern:$0x73625140]
  %835 = vmatpush.xpose.msra.mxu0 0.0
  %836 = vmatpush.xpose.msra.mxu0 0.0
  %837 = vmatpush.xpose.msra.mxu0 0.0
  %838 = vmatpush.xpose.msra.mxu0 0.0
  %839 = vmatpush.xpose.msra.mxu0 0.0
  %840 = vmatpush.xpose.msra.mxu0 0.0
  %841 = vmatpush.xpose.msra.mxu0 0.0
  %842 = vmatpush.xpose.msra.mxu0 0.0
  %843 = vmatpush.xpose.msra.mxu0 0.0
  %844 = vmatpush.xpose.msra.mxu0 0.0
  %845 = vmatpush.xpose.msra.mxu0 0.0
  %846 = vmatpush.xpose.msra.mxu0 0.0
  %847 = vmatpush.xpose.msra.mxu0 0.0
  %848 = vmatpush.xpose.msra.mxu0 0.0
  %849 = vmatpush.xpose.msra.mxu0 0.0
  %850 = vmatpush.xpose.msra.mxu0 %v833
  %851 = vmatmul.f32.gmra.mxu0 %v62
  %v852 = vpop.f32.mrf.mxu0
  %v853 = vadd.f32 0.0, %v852
  %854 = vmatmul.f32.gmra.mxu0 %v63
  %v855 = vpop.f32.mrf.mxu0
  %v856 = vadd.f32 0.0, %v855
  %857 = vmatmul.f32.gmra.mxu0 %v64
  %v858 = vpop.f32.mrf.mxu0
  %v859 = vadd.f32 0.0, %v858
  %860 = vmatmul.f32.gmra.mxu0 %v65
  %v861 = vpop.f32.mrf.mxu0
  %v862 = vadd.f32 0.0, %v861
  %863 = vmatmul.f32.gmra.mxu0 %v66
  %v864 = vpop.f32.mrf.mxu0
  %v865 = vadd.f32 0.0, %v864
  %866 = vmatmul.f32.gmra.mxu0 %v67
  %v867 = vpop.f32.mrf.mxu0
  %v868 = vadd.f32 0.0, %v867
  %869 = vmatmul.f32.gmra.mxu0 %v68
  %v870 = vpop.f32.mrf.mxu0
  %v871 = vadd.f32 0.0, %v870
  %872 = vmatmul.f32.gmra.mxu0 %v69
  %v873 = vpop.f32.mrf.mxu0
  %v874 = vadd.f32 0.0, %v873
  %875 = vmatmul.f32.gmra.mxu0 %v70
  %v876 = vpop.f32.mrf.mxu0
  %v877 = vadd.f32 0.0, %v876
  %878 = vmatmul.f32.gmra.mxu0 %v71
  %v879 = vpop.f32.mrf.mxu0
  %v880 = vadd.f32 0.0, %v879
  %881 = vmatmul.f32.gmra.mxu0 %v72
  %v882 = vpop.f32.mrf.mxu0
  %v883 = vadd.f32 0.0, %v882
  %884 = vmatmul.f32.gmra.mxu0 %v73
  %v885 = vpop.f32.mrf.mxu0
  %v886 = vadd.f32 0.0, %v885
  %887 = vmatmul.f32.gmra.mxu0 %v74
  %v888 = vpop.f32.mrf.mxu0
  %v889 = vadd.f32 0.0, %v888
  %890 = vmatmul.f32.gmra.mxu0 %v75
  %v891 = vpop.f32.mrf.mxu0
  %v892 = vadd.f32 0.0, %v891
  %893 = vmatmul.f32.gmra.mxu0 %v76
  %v894 = vpop.f32.mrf.mxu0
  %v895 = vadd.f32 0.0, %v894
  %896 = vmatmul.f32.gmra.mxu0 %v77
  %v897 = vpop.f32.mrf.mxu0
  %v898 = vadd.f32 0.0, %v897
  %899 = vdwg.mxu0
  %900 = vst.msk [vmem:[#allocation2 + $0x480] sm:$0xff] %vm146, %v853
  %901 = vst.msk [vmem:[#allocation2 + $0x488] sm:$0xff] %vm146, %v856
  %902 = vst.msk [vmem:[#allocation2 + $0x490] sm:$0xff] %vm146, %v859
  %903 = vst.msk [vmem:[#allocation2 + $0x498] sm:$0xff] %vm146, %v862
  %904 = vst.msk [vmem:[#allocation2 + $0x4a0] sm:$0xff] %vm146, %v865
  %905 = vst.msk [vmem:[#allocation2 + $0x4a8] sm:$0xff] %vm146, %v868
  %906 = vst.msk [vmem:[#allocation2 + $0x4b0] sm:$0xff] %vm146, %v871
  %907 = vst.msk [vmem:[#allocation2 + $0x4b8] sm:$0xff] %vm146, %v874
  %908 = vst.msk [vmem:[#allocation2 + $0x4c0] sm:$0xff] %vm146, %v877
  %909 = vst.msk [vmem:[#allocation2 + $0x4c8] sm:$0xff] %vm146, %v880
  %910 = vst.msk [vmem:[#allocation2 + $0x4d0] sm:$0xff] %vm146, %v883
  %911 = vst.msk [vmem:[#allocation2 + $0x4d8] sm:$0xff] %vm146, %v886
  %912 = vst.msk [vmem:[#allocation2 + $0x4e0] sm:$0xff] %vm146, %v889
  %913 = vst.msk [vmem:[#allocation2 + $0x4e8] sm:$0xff] %vm146, %v892
  %914 = vst.msk [vmem:[#allocation2 + $0x4f0] sm:$0xff] %vm146, %v895
  %915 = vst.msk [vmem:[#allocation2 + $0x4f8] sm:$0xff] %vm146, %v898
  %916 = vst [vmem:[#allocation1] ss:$4 sm:$0xff] %v80
  %v917 = vld.sshfl [vmem:[#allocation1 + $0x10] sm:$0xff pattern:$0x73625140]
  %919 = vmatpush.xpose.msra.mxu0 0.0
  %920 = vmatpush.xpose.msra.mxu0 0.0
  %921 = vmatpush.xpose.msra.mxu0 0.0
  %922 = vmatpush.xpose.msra.mxu0 0.0
  %923 = vmatpush.xpose.msra.mxu0 0.0
  %924 = vmatpush.xpose.msra.mxu0 0.0
  %925 = vmatpush.xpose.msra.mxu0 0.0
  %926 = vmatpush.xpose.msra.mxu0 0.0
  %927 = vmatpush.xpose.msra.mxu0 0.0
  %928 = vmatpush.xpose.msra.mxu0 0.0
  %929 = vmatpush.xpose.msra.mxu0 0.0
  %930 = vmatpush.xpose.msra.mxu0 0.0
  %931 = vmatpush.xpose.msra.mxu0 0.0
  %932 = vmatpush.xpose.msra.mxu0 0.0
  %933 = vmatpush.xpose.msra.mxu0 0.0
  %934 = vmatpush.xpose.msra.mxu0 %v917
  %935 = vmatmul.f32.gmra.mxu0 %v62
  %v936 = vpop.f32.mrf.mxu0
  %v937 = vadd.f32 0.0, %v936
  %938 = vmatmul.f32.gmra.mxu0 %v63
  %v939 = vpop.f32.mrf.mxu0
  %v940 = vadd.f32 0.0, %v939
  %941 = vmatmul.f32.gmra.mxu0 %v64
  %v942 = vpop.f32.mrf.mxu0
  %v943 = vadd.f32 0.0, %v942
  %944 = vmatmul.f32.gmra.mxu0 %v65
  %v945 = vpop.f32.mrf.mxu0
  %v946 = vadd.f32 0.0, %v945
  %947 = vmatmul.f32.gmra.mxu0 %v66
  %v948 = vpop.f32.mrf.mxu0
  %v949 = vadd.f32 0.0, %v948
  %950 = vmatmul.f32.gmra.mxu0 %v67
  %v951 = vpop.f32.mrf.mxu0
  %v952 = vadd.f32 0.0, %v951
  %953 = vmatmul.f32.gmra.mxu0 %v68
  %v954 = vpop.f32.mrf.mxu0
  %v955 = vadd.f32 0.0, %v954
  %956 = vmatmul.f32.gmra.mxu0 %v69
  %v957 = vpop.f32.mrf.mxu0
  %v958 = vadd.f32 0.0, %v957
  %959 = vmatmul.f32.gmra.mxu0 %v70
  %v960 = vpop.f32.mrf.mxu0
  %v961 = vadd.f32 0.0, %v960
  %962 = vmatmul.f32.gmra.mxu0 %v71
  %v963 = vpop.f32.mrf.mxu0
  %v964 = vadd.f32 0.0, %v963
  %965 = vmatmul.f32.gmra.mxu0 %v72
  %v966 = vpop.f32.mrf.mxu0
  %v967 = vadd.f32 0.0, %v966
  %968 = vmatmul.f32.gmra.mxu0 %v73
  %v969 = vpop.f32.mrf.mxu0
  %v970 = vadd.f32 0.0, %v969
  %971 = vmatmul.f32.gmra.mxu0 %v74
  %v972 = vpop.f32.mrf.mxu0
  %v973 = vadd.f32 0.0, %v972
  %974 = vmatmul.f32.gmra.mxu0 %v75
  %v975 = vpop.f32.mrf.mxu0
  %v976 = vadd.f32 0.0, %v975
  %977 = vmatmul.f32.gmra.mxu0 %v76
  %v978 = vpop.f32.mrf.mxu0
  %v979 = vadd.f32 0.0, %v978
  %980 = vmatmul.f32.gmra.mxu0 %v77
  %v981 = vpop.f32.mrf.mxu0
  %v982 = vadd.f32 0.0, %v981
  %983 = vdwg.mxu0
  %984 = vst.msk [vmem:[#allocation2 + $0x500] sm:$0xff] %vm146, %v937
  %985 = vst.msk [vmem:[#allocation2 + $0x508] sm:$0xff] %vm146, %v940
  %986 = vst.msk [vmem:[#allocation2 + $0x510] sm:$0xff] %vm146, %v943
  %987 = vst.msk [vmem:[#allocation2 + $0x518] sm:$0xff] %vm146, %v946
  %988 = vst.msk [vmem:[#allocation2 + $0x520] sm:$0xff] %vm146, %v949
  %989 = vst.msk [vmem:[#allocation2 + $0x528] sm:$0xff] %vm146, %v952
  %990 = vst.msk [vmem:[#allocation2 + $0x530] sm:$0xff] %vm146, %v955
  %991 = vst.msk [vmem:[#allocation2 + $0x538] sm:$0xff] %vm146, %v958
  %992 = vst.msk [vmem:[#allocation2 + $0x540] sm:$0xff] %vm146, %v961
  %993 = vst.msk [vmem:[#allocation2 + $0x548] sm:$0xff] %vm146, %v964
  %994 = vst.msk [vmem:[#allocation2 + $0x550] sm:$0xff] %vm146, %v967
  %995 = vst.msk [vmem:[#allocation2 + $0x558] sm:$0xff] %vm146, %v970
  %996 = vst.msk [vmem:[#allocation2 + $0x560] sm:$0xff] %vm146, %v973
  %997 = vst.msk [vmem:[#allocation2 + $0x568] sm:$0xff] %vm146, %v976
  %998 = vst.msk [vmem:[#allocation2 + $0x570] sm:$0xff] %vm146, %v979
  %999 = vst.msk [vmem:[#allocation2 + $0x578] sm:$0xff] %vm146, %v982
  %1000 = vst [vmem:[#allocation1] ss:$4 sm:$0xff] %v80
  %v1001 = vld.sshfl [vmem:[#allocation1 + $0x18] sm:$0xff pattern:$0x73625140]
  %1003 = vmatpush.xpose.msra.mxu0 0.0
  %1004 = vmatpush.xpose.msra.mxu0 0.0
  %1005 = vmatpush.xpose.msra.mxu0 0.0
  %1006 = vmatpush.xpose.msra.mxu0 0.0
  %1007 = vmatpush.xpose.msra.mxu0 0.0
  %1008 = vmatpush.xpose.msra.mxu0 0.0
  %1009 = vmatpush.xpose.msra.mxu0 0.0
  %1010 = vmatpush.xpose.msra.mxu0 0.0
  %1011 = vmatpush.xpose.msra.mxu0 0.0
  %1012 = vmatpush.xpose.msra.mxu0 0.0
  %1013 = vmatpush.xpose.msra.mxu0 0.0
  %1014 = vmatpush.xpose.msra.mxu0 0.0
  %1015 = vmatpush.xpose.msra.mxu0 0.0
  %1016 = vmatpush.xpose.msra.mxu0 0.0
  %1017 = vmatpush.xpose.msra.mxu0 0.0
  %1018 = vmatpush.xpose.msra.mxu0 %v1001
  %1019 = vmatmul.f32.gmra.mxu0 %v62
  %v1020 = vpop.f32.mrf.mxu0
  %v1021 = vadd.f32 0.0, %v1020
  %1022 = vmatmul.f32.gmra.mxu0 %v63
  %v1023 = vpop.f32.mrf.mxu0
  %v1024 = vadd.f32 0.0, %v1023
  %1025 = vmatmul.f32.gmra.mxu0 %v64
  %v1026 = vpop.f32.mrf.mxu0
  %v1027 = vadd.f32 0.0, %v1026
  %1028 = vmatmul.f32.gmra.mxu0 %v65
  %v1029 = vpop.f32.mrf.mxu0
  %v1030 = vadd.f32 0.0, %v1029
  %1031 = vmatmul.f32.gmra.mxu0 %v66
  %v1032 = vpop.f32.mrf.mxu0
  %v1033 = vadd.f32 0.0, %v1032
  %1034 = vmatmul.f32.gmra.mxu0 %v67
  %v1035 = vpop.f32.mrf.mxu0
  %v1036 = vadd.f32 0.0, %v1035
  %1037 = vmatmul.f32.gmra.mxu0 %v68
  %v1038 = vpop.f32.mrf.mxu0
  %v1039 = vadd.f32 0.0, %v1038
  %1040 = vmatmul.f32.gmra.mxu0 %v69
  %v1041 = vpop.f32.mrf.mxu0
  %v1042 = vadd.f32 0.0, %v1041
  %1043 = vmatmul.f32.gmra.mxu0 %v70
  %v1044 = vpop.f32.mrf.mxu0
  %v1045 = vadd.f32 0.0, %v1044
  %1046 = vmatmul.f32.gmra.mxu0 %v71
  %v1047 = vpop.f32.mrf.mxu0
  %v1048 = vadd.f32 0.0, %v1047
  %1049 = vmatmul.f32.gmra.mxu0 %v72
  %v1050 = vpop.f32.mrf.mxu0
  %v1051 = vadd.f32 0.0, %v1050
  %1052 = vmatmul.f32.gmra.mxu0 %v73
  %v1053 = vpop.f32.mrf.mxu0
  %v1054 = vadd.f32 0.0, %v1053
  %1055 = vmatmul.f32.gmra.mxu0 %v74
  %v1056 = vpop.f32.mrf.mxu0
  %v1057 = vadd.f32 0.0, %v1056
  %1058 = vmatmul.f32.gmra.mxu0 %v75
  %v1059 = vpop.f32.mrf.mxu0
  %v1060 = vadd.f32 0.0, %v1059
  %1061 = vmatmul.f32.gmra.mxu0 %v76
  %v1062 = vpop.f32.mrf.mxu0
  %v1063 = vadd.f32 0.0, %v1062
  %1064 = vmatmul.f32.gmra.mxu0 %v77
  %v1065 = vpop.f32.mrf.mxu0
  %v1066 = vadd.f32 0.0, %v1065
  %1067 = vdwg.mxu0
  %1068 = vst.msk [vmem:[#allocation2 + $0x580] sm:$0xff] %vm146, %v1021
  %1069 = vst.msk [vmem:[#allocation2 + $0x588] sm:$0xff] %vm146, %v1024
  %1070 = vst.msk [vmem:[#allocation2 + $0x590] sm:$0xff] %vm146, %v1027
  %1071 = vst.msk [vmem:[#allocation2 + $0x598] sm:$0xff] %vm146, %v1030
  %1072 = vst.msk [vmem:[#allocation2 + $0x5a0] sm:$0xff] %vm146, %v1033
  %1073 = vst.msk [vmem:[#allocation2 + $0x5a8] sm:$0xff] %vm146, %v1036
  %1074 = vst.msk [vmem:[#allocation2 + $0x5b0] sm:$0xff] %vm146, %v1039
  %1075 = vst.msk [vmem:[#allocation2 + $0x5b8] sm:$0xff] %vm146, %v1042
  %1076 = vst.msk [vmem:[#allocation2 + $0x5c0] sm:$0xff] %vm146, %v1045
  %1077 = vst.msk [vmem:[#allocation2 + $0x5c8] sm:$0xff] %vm146, %v1048
  %1078 = vst.msk [vmem:[#allocation2 + $0x5d0] sm:$0xff] %vm146, %v1051
  %1079 = vst.msk [vmem:[#allocation2 + $0x5d8] sm:$0xff] %vm146, %v1054
  %1080 = vst.msk [vmem:[#allocation2 + $0x5e0] sm:$0xff] %vm146, %v1057
  %1081 = vst.msk [vmem:[#allocation2 + $0x5e8] sm:$0xff] %vm146, %v1060
  %1082 = vst.msk [vmem:[#allocation2 + $0x5f0] sm:$0xff] %vm146, %v1063
  %1083 = vst.msk [vmem:[#allocation2 + $0x5f8] sm:$0xff] %vm146, %v1066
  %v1084 = vld [vmem:[#allocation2] sm:$0xff]
  %v1085 = vld [vmem:[#allocation2 + $0x8] sm:$0xff]
  %v1086 = vld [vmem:[#allocation2 + $0x10] sm:$0xff]
  %v1087 = vld [vmem:[#allocation2 + $0x18] sm:$0xff]
  %v1088 = vld [vmem:[#allocation2 + $0x20] sm:$0xff]
  %v1089 = vld [vmem:[#allocation2 + $0x28] sm:$0xff]
  %v1090 = vld [vmem:[#allocation2 + $0x30] sm:$0xff]
  %v1091 = vld [vmem:[#allocation2 + $0x38] sm:$0xff]
  %v1092 = vld [vmem:[#allocation2 + $0x40] sm:$0xff]
  %v1093 = vld [vmem:[#allocation2 + $0x48] sm:$0xff]
  %v1094 = vld [vmem:[#allocation2 + $0x50] sm:$0xff]
  %v1095 = vld [vmem:[#allocation2 + $0x58] sm:$0xff]
  %v1096 = vld [vmem:[#allocation2 + $0x60] sm:$0xff]
  %v1097 = vld [vmem:[#allocation2 + $0x68] sm:$0xff]
  %v1098 = vld [vmem:[#allocation2 + $0x70] sm:$0xff]
  %v1099 = vld [vmem:[#allocation2 + $0x78] sm:$0xff]
  %v1100 = vld [vmem:[#allocation2 + $0x80] sm:$0xff]
  %v1101 = vld [vmem:[#allocation2 + $0x88] sm:$0xff]
  %v1102 = vld [vmem:[#allocation2 + $0x90] sm:$0xff]
  %v1103 = vld [vmem:[#allocation2 + $0x98] sm:$0xff]
  %v1104 = vld [vmem:[#allocation2 + $0xa0] sm:$0xff]
  %v1105 = vld [vmem:[#allocation2 + $0xa8] sm:$0xff]
  %v1106 = vld [vmem:[#allocation2 + $0xb0] sm:$0xff]
  %v1107 = vld [vmem:[#allocation2 + $0xb8] sm:$0xff]
  %v1108 = vld [vmem:[#allocation2 + $0xc0] sm:$0xff]
  %v1109 = vld [vmem:[#allocation2 + $0xc8] sm:$0xff]
  %v1110 = vld [vmem:[#allocation2 + $0xd0] sm:$0xff]
  %v1111 = vld [vmem:[#allocation2 + $0xd8] sm:$0xff]
  %v1112 = vld [vmem:[#allocation2 + $0xe0] sm:$0xff]
  %v1113 = vld [vmem:[#allocation2 + $0xe8] sm:$0xff]
  %v1114 = vld [vmem:[#allocation2 + $0xf0] sm:$0xff]
  %v1115 = vld [vmem:[#allocation2 + $0xf8] sm:$0xff]
  %v1116 = vld [vmem:[#allocation2 + $0x100] sm:$0xff]
  %v1117 = vld [vmem:[#allocation2 + $0x108] sm:$0xff]
  %v1118 = vld [vmem:[#allocation2 + $0x110] sm:$0xff]
  %v1119 = vld [vmem:[#allocation2 + $0x118] sm:$0xff]
  %v1120 = vld [vmem:[#allocation2 + $0x120] sm:$0xff]
  %v1121 = vld [vmem:[#allocation2 + $0x128] sm:$0xff]
  %v1122 = vld [vmem:[#allocation2 + $0x130] sm:$0xff]
  %v1123 = vld [vmem:[#allocation2 + $0x138] sm:$0xff]
  %v1124 = vld [vmem:[#allocation2 + $0x140] sm:$0xff]
  %v1125 = vld [vmem:[#allocation2 + $0x148] sm:$0xff]
  %v1126 = vld [vmem:[#allocation2 + $0x150] sm:$0xff]
  %v1127 = vld [vmem:[#allocation2 + $0x158] sm:$0xff]
  %v1128 = vld [vmem:[#allocation2 + $0x160] sm:$0xff]
  %v1129 = vld [vmem:[#allocation2 + $0x168] sm:$0xff]
  %v1130 = vld [vmem:[#allocation2 + $0x170] sm:$0xff]
  %v1131 = vld [vmem:[#allocation2 + $0x178] sm:$0xff]
  %v1132 = vld [vmem:[#allocation2 + $0x180] sm:$0xff]
  %v1133 = vld [vmem:[#allocation2 + $0x188] sm:$0xff]
  %v1134 = vld [vmem:[#allocation2 + $0x190] sm:$0xff]
  %v1135 = vld [vmem:[#allocation2 + $0x198] sm:$0xff]
  %v1136 = vld [vmem:[#allocation2 + $0x1a0] sm:$0xff]
  %v1137 = vld [vmem:[#allocation2 + $0x1a8] sm:$0xff]
  %v1138 = vld [vmem:[#allocation2 + $0x1b0] sm:$0xff]
  %v1139 = vld [vmem:[#allocation2 + $0x1b8] sm:$0xff]
  %v1140 = vld [vmem:[#allocation2 + $0x1c0] sm:$0xff]
  %v1141 = vld [vmem:[#allocation2 + $0x1c8] sm:$0xff]
  %v1142 = vld [vmem:[#allocation2 + $0x1d0] sm:$0xff]
  %v1143 = vld [vmem:[#allocation2 + $0x1d8] sm:$0xff]
  %v1144 = vld [vmem:[#allocation2 + $0x1e0] sm:$0xff]
  %v1145 = vld [vmem:[#allocation2 + $0x1e8] sm:$0xff]
  %v1146 = vld [vmem:[#allocation2 + $0x1f0] sm:$0xff]
  %v1147 = vld [vmem:[#allocation2 + $0x1f8] sm:$0xff]
  %v1148 = vld [vmem:[#allocation2 + $0x200] sm:$0xff]
  %v1149 = vld [vmem:[#allocation2 + $0x208] sm:$0xff]
  %v1150 = vld [vmem:[#allocation2 + $0x210] sm:$0xff]
  %v1151 = vld [vmem:[#allocation2 + $0x218] sm:$0xff]
  %v1152 = vld [vmem:[#allocation2 + $0x220] sm:$0xff]
  %v1153 = vld [vmem:[#allocation2 + $0x228] sm:$0xff]
  %v1154 = vld [vmem:[#allocation2 + $0x230] sm:$0xff]
  %v1155 = vld [vmem:[#allocation2 + $0x238] sm:$0xff]
  %v1156 = vld [vmem:[#allocation2 + $0x240] sm:$0xff]
  %v1157 = vld [vmem:[#allocation2 + $0x248] sm:$0xff]
  %v1158 = vld [vmem:[#allocation2 + $0x250] sm:$0xff]
  %v1159 = vld [vmem:[#allocation2 + $0x258] sm:$0xff]
  %v1160 = vld [vmem:[#allocation2 + $0x260] sm:$0xff]
  %v1161 = vld [vmem:[#allocation2 + $0x268] sm:$0xff]
  %v1162 = vld [vmem:[#allocation2 + $0x270] sm:$0xff]
  %v1163 = vld [vmem:[#allocation2 + $0x278] sm:$0xff]
  %v1164 = vld [vmem:[#allocation2 + $0x280] sm:$0xff]
  %v1165 = vld [vmem:[#allocation2 + $0x288] sm:$0xff]
  %v1166 = vld [vmem:[#allocation2 + $0x290] sm:$0xff]
  %v1167 = vld [vmem:[#allocation2 + $0x298] sm:$0xff]
  %v1168 = vld [vmem:[#allocation2 + $0x2a0] sm:$0xff]
  %v1169 = vld [vmem:[#allocation2 + $0x2a8] sm:$0xff]
  %v1170 = vld [vmem:[#allocation2 + $0x2b0] sm:$0xff]
  %v1171 = vld [vmem:[#allocation2 + $0x2b8] sm:$0xff]
  %v1172 = vld [vmem:[#allocation2 + $0x2c0] sm:$0xff]
  %v1173 = vld [vmem:[#allocation2 + $0x2c8] sm:$0xff]
  %v1174 = vld [vmem:[#allocation2 + $0x2d0] sm:$0xff]
  %v1175 = vld [vmem:[#allocation2 + $0x2d8] sm:$0xff]
  %v1176 = vld [vmem:[#allocation2 + $0x2e0] sm:$0xff]
  %v1177 = vld [vmem:[#allocation2 + $0x2e8] sm:$0xff]
  %v1178 = vld [vmem:[#allocation2 + $0x2f0] sm:$0xff]
  %v1179 = vld [vmem:[#allocation2 + $0x2f8] sm:$0xff]
  %v1180 = vld [vmem:[#allocation2 + $0x300] sm:$0xff]
  %v1181 = vld [vmem:[#allocation2 + $0x308] sm:$0xff]
  %v1182 = vld [vmem:[#allocation2 + $0x310] sm:$0xff]
  %v1183 = vld [vmem:[#allocation2 + $0x318] sm:$0xff]
  %v1184 = vld [vmem:[#allocation2 + $0x320] sm:$0xff]
  %v1185 = vld [vmem:[#allocation2 + $0x328] sm:$0xff]
  %v1186 = vld [vmem:[#allocation2 + $0x330] sm:$0xff]
  %v1187 = vld [vmem:[#allocation2 + $0x338] sm:$0xff]
  %v1188 = vld [vmem:[#allocation2 + $0x340] sm:$0xff]
  %v1189 = vld [vmem:[#allocation2 + $0x348] sm:$0xff]
  %v1190 = vld [vmem:[#allocation2 + $0x350] sm:$0xff]
  %v1191 = vld [vmem:[#allocation2 + $0x358] sm:$0xff]
  %v1192 = vld [vmem:[#allocation2 + $0x360] sm:$0xff]
  %v1193 = vld [vmem:[#allocation2 + $0x368] sm:$0xff]
  %v1194 = vld [vmem:[#allocation2 + $0x370] sm:$0xff]
  %v1195 = vld [vmem:[#allocation2 + $0x378] sm:$0xff]
  %v1196 = vld [vmem:[#allocation2 + $0x380] sm:$0xff]
  %v1197 = vld [vmem:[#allocation2 + $0x388] sm:$0xff]
  %v1198 = vld [vmem:[#allocation2 + $0x390] sm:$0xff]
  %v1199 = vld [vmem:[#allocation2 + $0x398] sm:$0xff]
  %v1200 = vld [vmem:[#allocation2 + $0x3a0] sm:$0xff]
  %v1201 = vld [vmem:[#allocation2 + $0x3a8] sm:$0xff]
  %v1202 = vld [vmem:[#allocation2 + $0x3b0] sm:$0xff]
  %v1203 = vld [vmem:[#allocation2 + $0x3b8] sm:$0xff]
  %v1204 = vld [vmem:[#allocation2 + $0x3c0] sm:$0xff]
  %v1205 = vld [vmem:[#allocation2 + $0x3c8] sm:$0xff]
  %v1206 = vld [vmem:[#allocation2 + $0x3d0] sm:$0xff]
  %v1207 = vld [vmem:[#allocation2 + $0x3d8] sm:$0xff]
  %v1208 = vld [vmem:[#allocation2 + $0x3e0] sm:$0xff]
  %v1209 = vld [vmem:[#allocation2 + $0x3e8] sm:$0xff]
  %v1210 = vld [vmem:[#allocation2 + $0x3f0] sm:$0xff]
  %v1211 = vld [vmem:[#allocation2 + $0x3f8] sm:$0xff]
  %v1212 = vld [vmem:[#allocation2 + $0x400] sm:$0xff]
  %v1213 = vld [vmem:[#allocation2 + $0x408] sm:$0xff]
  %v1214 = vld [vmem:[#allocation2 + $0x410] sm:$0xff]
  %v1215 = vld [vmem:[#allocation2 + $0x418] sm:$0xff]
  %v1216 = vld [vmem:[#allocation2 + $0x420] sm:$0xff]
  %v1217 = vld [vmem:[#allocation2 + $0x428] sm:$0xff]
  %v1218 = vld [vmem:[#allocation2 + $0x430] sm:$0xff]
  %v1219 = vld [vmem:[#allocation2 + $0x438] sm:$0xff]
  %v1220 = vld [vmem:[#allocation2 + $0x440] sm:$0xff]
  %v1221 = vld [vmem:[#allocation2 + $0x448] sm:$0xff]
  %v1222 = vld [vmem:[#allocation2 + $0x450] sm:$0xff]
  %v1223 = vld [vmem:[#allocation2 + $0x458] sm:$0xff]
  %v1224 = vld [vmem:[#allocation2 + $0x460] sm:$0xff]
  %v1225 = vld [vmem:[#allocation2 + $0x468] sm:$0xff]
  %v1226 = vld [vmem:[#allocation2 + $0x470] sm:$0xff]
  %v1227 = vld [vmem:[#allocation2 + $0x478] sm:$0xff]
  %v1228 = vld [vmem:[#allocation2 + $0x480] sm:$0xff]
  %v1229 = vld [vmem:[#allocation2 + $0x488] sm:$0xff]
  %v1230 = vld [vmem:[#allocation2 + $0x490] sm:$0xff]
  %v1231 = vld [vmem:[#allocation2 + $0x498] sm:$0xff]
  %v1232 = vld [vmem:[#allocation2 + $0x4a0] sm:$0xff]
  %v1233 = vld [vmem:[#allocation2 + $0x4a8] sm:$0xff]
  %v1234 = vld [vmem:[#allocation2 + $0x4b0] sm:$0xff]
  %v1235 = vld [vmem:[#allocation2 + $0x4b8] sm:$0xff]
  %v1236 = vld [vmem:[#allocation2 + $0x4c0] sm:$0xff]
  %v1237 = vld [vmem:[#allocation2 + $0x4c8] sm:$0xff]
  %v1238 = vld [vmem:[#allocation2 + $0x4d0] sm:$0xff]
  %v1239 = vld [vmem:[#allocation2 + $0x4d8] sm:$0xff]
  %v1240 = vld [vmem:[#allocation2 + $0x4e0] sm:$0xff]
  %v1241 = vld [vmem:[#allocation2 + $0x4e8] sm:$0xff]
  %v1242 = vld [vmem:[#allocation2 + $0x4f0] sm:$0xff]
  %v1243 = vld [vmem:[#allocation2 + $0x4f8] sm:$0xff]
  %v1244 = vld [vmem:[#allocation2 + $0x500] sm:$0xff]
  %v1245 = vld [vmem:[#allocation2 + $0x508] sm:$0xff]
  %v1246 = vld [vmem:[#allocation2 + $0x510] sm:$0xff]
  %v1247 = vld [vmem:[#allocation2 + $0x518] sm:$0xff]
  %v1248 = vld [vmem:[#allocation2 + $0x520] sm:$0xff]
  %v1249 = vld [vmem:[#allocation2 + $0x528] sm:$0xff]
  %v1250 = vld [vmem:[#allocation2 + $0x530] sm:$0xff]
  %v1251 = vld [vmem:[#allocation2 + $0x538] sm:$0xff]
  %v1252 = vld [vmem:[#allocation2 + $0x540] sm:$0xff]
  %v1253 = vld [vmem:[#allocation2 + $0x548] sm:$0xff]
  %v1254 = vld [vmem:[#allocation2 + $0x550] sm:$0xff]
  %v1255 = vld [vmem:[#allocation2 + $0x558] sm:$0xff]
  %v1256 = vld [vmem:[#allocation2 + $0x560] sm:$0xff]
  %v1257 = vld [vmem:[#allocation2 + $0x568] sm:$0xff]
  %v1258 = vld [vmem:[#allocation2 + $0x570] sm:$0xff]
  %v1259 = vld [vmem:[#allocation2 + $0x578] sm:$0xff]
  %v1260 = vld [vmem:[#allocation2 + $0x580] sm:$0xff]
  %v1261 = vld [vmem:[#allocation2 + $0x588] sm:$0xff]
  %v1262 = vld [vmem:[#allocation2 + $0x590] sm:$0xff]
  %v1263 = vld [vmem:[#allocation2 + $0x598] sm:$0xff]
  %v1264 = vld [vmem:[#allocation2 + $0x5a0] sm:$0xff]
  %v1265 = vld [vmem:[#allocation2 + $0x5a8] sm:$0xff]
  %v1266 = vld [vmem:[#allocation2 + $0x5b0] sm:$0xff]
  %v1267 = vld [vmem:[#allocation2 + $0x5b8] sm:$0xff]
  %v1268 = vld [vmem:[#allocation2 + $0x5c0] sm:$0xff]
  %v1269 = vld [vmem:[#allocation2 + $0x5c8] sm:$0xff]
  %v1270 = vld [vmem:[#allocation2 + $0x5d0] sm:$0xff]
  %v1271 = vld [vmem:[#allocation2 + $0x5d8] sm:$0xff]
  %v1272 = vld [vmem:[#allocation2 + $0x5e0] sm:$0xff]
  %v1273 = vld [vmem:[#allocation2 + $0x5e8] sm:$0xff]
  %v1274 = vld [vmem:[#allocation2 + $0x5f0] sm:$0xff]
  %v1275 = vld [vmem:[#allocation2 + $0x5f8] sm:$0xff]
  %v1276 = vld [vmem:[%s0] sm:$0xff]
  %v1277 = vld [vmem:[%s0 + $0x8] sm:$0xff]
  %v1278 = vld [vmem:[%s0 + $0x10] sm:$0xff]
  %v1279 = vld [vmem:[%s0 + $0x18] sm:$0xff]
  %v1280 = vld [vmem:[%s0 + $0x20] sm:$0xff]
  %v1281 = vld [vmem:[%s0 + $0x28] sm:$0xff]
  %v1282 = vld [vmem:[%s0 + $0x30] sm:$0xff]
  %v1283 = vld [vmem:[%s0 + $0x38] sm:$0xff]
  %v1284 = vld [vmem:[%s0 + $0x40] sm:$0xff]
  %v1285 = vld [vmem:[%s0 + $0x48] sm:$0xff]
  %v1286 = vld [vmem:[%s0 + $0x50] sm:$0xff]
  %v1287 = vld [vmem:[%s0 + $0x58] sm:$0xff]
  %v1288 = vld [vmem:[%s0 + $0x60] sm:$0xff]
  %v1289 = vld [vmem:[%s0 + $0x68] sm:$0xff]
  %v1290 = vld [vmem:[%s0 + $0x70] sm:$0xff]
  %v1291 = vld [vmem:[%s0 + $0x78] sm:$0xff]
  %v1292 = vld [vmem:[%s0 + $0x80] sm:$0xff]
  %v1293 = vld [vmem:[%s0 + $0x88] sm:$0xff]
  %v1294 = vld [vmem:[%s0 + $0x90] sm:$0xff]
  %v1295 = vld [vmem:[%s0 + $0x98] sm:$0xff]
  %v1296 = vld [vmem:[%s0 + $0xa0] sm:$0xff]
  %v1297 = vld [vmem:[%s0 + $0xa8] sm:$0xff]
  %v1298 = vld [vmem:[%s0 + $0xb0] sm:$0xff]
  %v1299 = vld [vmem:[%s0 + $0xb8] sm:$0xff]
  %v1300 = vld [vmem:[%s0 + $0xc0] sm:$0xff]
  %v1301 = vld [vmem:[%s0 + $0xc8] sm:$0xff]
  %v1302 = vld [vmem:[%s0 + $0xd0] sm:$0xff]
  %v1303 = vld [vmem:[%s0 + $0xd8] sm:$0xff]
  %v1304 = vld [vmem:[%s0 + $0xe0] sm:$0xff]
  %v1305 = vld [vmem:[%s0 + $0xe8] sm:$0xff]
  %v1306 = vld [vmem:[%s0 + $0xf0] sm:$0xff]
  %v1307 = vld [vmem:[%s0 + $0xf8] sm:$0xff]
  %v1308 = vld [vmem:[%s0 + $0x100] sm:$0xff]
  %v1309 = vld [vmem:[%s0 + $0x108] sm:$0xff]
  %v1310 = vld [vmem:[%s0 + $0x110] sm:$0xff]
  %v1311 = vld [vmem:[%s0 + $0x118] sm:$0xff]
  %v1312 = vld [vmem:[%s0 + $0x120] sm:$0xff]
  %v1313 = vld [vmem:[%s0 + $0x128] sm:$0xff]
  %v1314 = vld [vmem:[%s0 + $0x130] sm:$0xff]
  %v1315 = vld [vmem:[%s0 + $0x138] sm:$0xff]
  %v1316 = vld [vmem:[%s0 + $0x140] sm:$0xff]
  %v1317 = vld [vmem:[%s0 + $0x148] sm:$0xff]
  %v1318 = vld [vmem:[%s0 + $0x150] sm:$0xff]
  %v1319 = vld [vmem:[%s0 + $0x158] sm:$0xff]
  %v1320 = vld [vmem:[%s0 + $0x160] sm:$0xff]
  %v1321 = vld [vmem:[%s0 + $0x168] sm:$0xff]
  %v1322 = vld [vmem:[%s0 + $0x170] sm:$0xff]
  %v1323 = vld [vmem:[%s0 + $0x178] sm:$0xff]
  %v1324 = vld [vmem:[%s0 + $0x180] sm:$0xff]
  %v1325 = vld [vmem:[%s0 + $0x188] sm:$0xff]
  %v1326 = vld [vmem:[%s0 + $0x190] sm:$0xff]
  %v1327 = vld [vmem:[%s0 + $0x198] sm:$0xff]
  %v1328 = vld [vmem:[%s0 + $0x1a0] sm:$0xff]
  %v1329 = vld [vmem:[%s0 + $0x1a8] sm:$0xff]
  %v1330 = vld [vmem:[%s0 + $0x1b0] sm:$0xff]
  %v1331 = vld [vmem:[%s0 + $0x1b8] sm:$0xff]
  %v1332 = vld [vmem:[%s0 + $0x1c0] sm:$0xff]
  %v1333 = vld [vmem:[%s0 + $0x1c8] sm:$0xff]
  %v1334 = vld [vmem:[%s0 + $0x1d0] sm:$0xff]
  %v1335 = vld [vmem:[%s0 + $0x1d8] sm:$0xff]
  %v1336 = vld [vmem:[%s0 + $0x1e0] sm:$0xff]
  %v1337 = vld [vmem:[%s0 + $0x1e8] sm:$0xff]
  %v1338 = vld [vmem:[%s0 + $0x1f0] sm:$0xff]
  %v1339 = vld [vmem:[%s0 + $0x1f8] sm:$0xff]
  %v1340 = vld [vmem:[%s0 + $0x200] sm:$0xff]
  %v1341 = vld [vmem:[%s0 + $0x208] sm:$0xff]
  %v1342 = vld [vmem:[%s0 + $0x210] sm:$0xff]
  %v1343 = vld [vmem:[%s0 + $0x218] sm:$0xff]
  %v1344 = vld [vmem:[%s0 + $0x220] sm:$0xff]
  %v1345 = vld [vmem:[%s0 + $0x228] sm:$0xff]
  %v1346 = vld [vmem:[%s0 + $0x230] sm:$0xff]
  %v1347 = vld [vmem:[%s0 + $0x238] sm:$0xff]
  %v1348 = vld [vmem:[%s0 + $0x240] sm:$0xff]
  %v1349 = vld [vmem:[%s0 + $0x248] sm:$0xff]
  %v1350 = vld [vmem:[%s0 + $0x250] sm:$0xff]
  %v1351 = vld [vmem:[%s0 + $0x258] sm:$0xff]
  %v1352 = vld [vmem:[%s0 + $0x260] sm:$0xff]
  %v1353 = vld [vmem:[%s0 + $0x268] sm:$0xff]
  %v1354 = vld [vmem:[%s0 + $0x270] sm:$0xff]
  %v1355 = vld [vmem:[%s0 + $0x278] sm:$0xff]
  %v1356 = vld [vmem:[%s0 + $0x280] sm:$0xff]
  %v1357 = vld [vmem:[%s0 + $0x288] sm:$0xff]
  %v1358 = vld [vmem:[%s0 + $0x290] sm:$0xff]
  %v1359 = vld [vmem:[%s0 + $0x298] sm:$0xff]
  %v1360 = vld [vmem:[%s0 + $0x2a0] sm:$0xff]
  %v1361 = vld [vmem:[%s0 + $0x2a8] sm:$0xff]
  %v1362 = vld [vmem:[%s0 + $0x2b0] sm:$0xff]
  %v1363 = vld [vmem:[%s0 + $0x2b8] sm:$0xff]
  %v1364 = vld [vmem:[%s0 + $0x2c0] sm:$0xff]
  %v1365 = vld [vmem:[%s0 + $0x2c8] sm:$0xff]
  %v1366 = vld [vmem:[%s0 + $0x2d0] sm:$0xff]
  %v1367 = vld [vmem:[%s0 + $0x2d8] sm:$0xff]
  %v1368 = vld [vmem:[%s0 + $0x2e0] sm:$0xff]
  %v1369 = vld [vmem:[%s0 + $0x2e8] sm:$0xff]
  %v1370 = vld [vmem:[%s0 + $0x2f0] sm:$0xff]
  %v1371 = vld [vmem:[%s0 + $0x2f8] sm:$0xff]
  %v1372 = vld [vmem:[%s0 + $0x300] sm:$0xff]
  %v1373 = vld [vmem:[%s0 + $0x308] sm:$0xff]
  %v1374 = vld [vmem:[%s0 + $0x310] sm:$0xff]
  %v1375 = vld [vmem:[%s0 + $0x318] sm:$0xff]
  %v1376 = vld [vmem:[%s0 + $0x320] sm:$0xff]
  %v1377 = vld [vmem:[%s0 + $0x328] sm:$0xff]
  %v1378 = vld [vmem:[%s0 + $0x330] sm:$0xff]
  %v1379 = vld [vmem:[%s0 + $0x338] sm:$0xff]
  %v1380 = vld [vmem:[%s0 + $0x340] sm:$0xff]
  %v1381 = vld [vmem:[%s0 + $0x348] sm:$0xff]
  %v1382 = vld [vmem:[%s0 + $0x350] sm:$0xff]
  %v1383 = vld [vmem:[%s0 + $0x358] sm:$0xff]
  %v1384 = vld [vmem:[%s0 + $0x360] sm:$0xff]
  %v1385 = vld [vmem:[%s0 + $0x368] sm:$0xff]
  %v1386 = vld [vmem:[%s0 + $0x370] sm:$0xff]
  %v1387 = vld [vmem:[%s0 + $0x378] sm:$0xff]
  %v1388 = vld [vmem:[%s0 + $0x380] sm:$0xff]
  %v1389 = vld [vmem:[%s0 + $0x388] sm:$0xff]
  %v1390 = vld [vmem:[%s0 + $0x390] sm:$0xff]
  %v1391 = vld [vmem:[%s0 + $0x398] sm:$0xff]
  %v1392 = vld [vmem:[%s0 + $0x3a0] sm:$0xff]
  %v1393 = vld [vmem:[%s0 + $0x3a8] sm:$0xff]
  %v1394 = vld [vmem:[%s0 + $0x3b0] sm:$0xff]
  %v1395 = vld [vmem:[%s0 + $0x3b8] sm:$0xff]
  %v1396 = vld [vmem:[%s0 + $0x3c0] sm:$0xff]
  %v1397 = vld [vmem:[%s0 + $0x3c8] sm:$0xff]
  %v1398 = vld [vmem:[%s0 + $0x3d0] sm:$0xff]
  %v1399 = vld [vmem:[%s0 + $0x3d8] sm:$0xff]
  %v1400 = vld [vmem:[%s0 + $0x3e0] sm:$0xff]
  %v1401 = vld [vmem:[%s0 + $0x3e8] sm:$0xff]
  %v1402 = vld [vmem:[%s0 + $0x3f0] sm:$0xff]
  %v1403 = vld [vmem:[%s0 + $0x3f8] sm:$0xff]
  %v1404 = vld [vmem:[%s0 + $0x400] sm:$0xff]
  %v1405 = vld [vmem:[%s0 + $0x408] sm:$0xff]
  %v1406 = vld [vmem:[%s0 + $0x410] sm:$0xff]
  %v1407 = vld [vmem:[%s0 + $0x418] sm:$0xff]
  %v1408 = vld [vmem:[%s0 + $0x420] sm:$0xff]
  %v1409 = vld [vmem:[%s0 + $0x428] sm:$0xff]
  %v1410 = vld [vmem:[%s0 + $0x430] sm:$0xff]
  %v1411 = vld [vmem:[%s0 + $0x438] sm:$0xff]
  %v1412 = vld [vmem:[%s0 + $0x440] sm:$0xff]
  %v1413 = vld [vmem:[%s0 + $0x448] sm:$0xff]
  %v1414 = vld [vmem:[%s0 + $0x450] sm:$0xff]
  %v1415 = vld [vmem:[%s0 + $0x458] sm:$0xff]
  %v1416 = vld [vmem:[%s0 + $0x460] sm:$0xff]
  %v1417 = vld [vmem:[%s0 + $0x468] sm:$0xff]
  %v1418 = vld [vmem:[%s0 + $0x470] sm:$0xff]
  %v1419 = vld [vmem:[%s0 + $0x478] sm:$0xff]
  %v1420 = vld [vmem:[%s0 + $0x480] sm:$0xff]
  %v1421 = vld [vmem:[%s0 + $0x488] sm:$0xff]
  %v1422 = vld [vmem:[%s0 + $0x490] sm:$0xff]
  %v1423 = vld [vmem:[%s0 + $0x498] sm:$0xff]
  %v1424 = vld [vmem:[%s0 + $0x4a0] sm:$0xff]
  %v1425 = vld [vmem:[%s0 + $0x4a8] sm:$0xff]
  %v1426 = vld [vmem:[%s0 + $0x4b0] sm:$0xff]
  %v1427 = vld [vmem:[%s0 + $0x4b8] sm:$0xff]
  %v1428 = vld [vmem:[%s0 + $0x4c0] sm:$0xff]
  %v1429 = vld [vmem:[%s0 + $0x4c8] sm:$0xff]
  %v1430 = vld [vmem:[%s0 + $0x4d0] sm:$0xff]
  %v1431 = vld [vmem:[%s0 + $0x4d8] sm:$0xff]
  %v1432 = vld [vmem:[%s0 + $0x4e0] sm:$0xff]
  %v1433 = vld [vmem:[%s0 + $0x4e8] sm:$0xff]
  %v1434 = vld [vmem:[%s0 + $0x4f0] sm:$0xff]
  %v1435 = vld [vmem:[%s0 + $0x4f8] sm:$0xff]
  %v1436 = vld [vmem:[%s0 + $0x500] sm:$0xff]
  %v1437 = vld [vmem:[%s0 + $0x508] sm:$0xff]
  %v1438 = vld [vmem:[%s0 + $0x510] sm:$0xff]
  %v1439 = vld [vmem:[%s0 + $0x518] sm:$0xff]
  %v1440 = vld [vmem:[%s0 + $0x520] sm:$0xff]
  %v1441 = vld [vmem:[%s0 + $0x528] sm:$0xff]
  %v1442 = vld [vmem:[%s0 + $0x530] sm:$0xff]
  %v1443 = vld [vmem:[%s0 + $0x538] sm:$0xff]
  %v1444 = vld [vmem:[%s0 + $0x540] sm:$0xff]
  %v1445 = vld [vmem:[%s0 + $0x548] sm:$0xff]
  %v1446 = vld [vmem:[%s0 + $0x550] sm:$0xff]
  %v1447 = vld [vmem:[%s0 + $0x558] sm:$0xff]
  %v1448 = vld [vmem:[%s0 + $0x560] sm:$0xff]
  %v1449 = vld [vmem:[%s0 + $0x568] sm:$0xff]
  %v1450 = vld [vmem:[%s0 + $0x570] sm:$0xff]
  %v1451 = vld [vmem:[%s0 + $0x578] sm:$0xff]
  %v1452 = vld [vmem:[%s0 + $0x580] sm:$0xff]
  %v1453 = vld [vmem:[%s0 + $0x588] sm:$0xff]
  %v1454 = vld [vmem:[%s0 + $0x590] sm:$0xff]
  %v1455 = vld [vmem:[%s0 + $0x598] sm:$0xff]
  %v1456 = vld [vmem:[%s0 + $0x5a0] sm:$0xff]
  %v1457 = vld [vmem:[%s0 + $0x5a8] sm:$0xff]
  %v1458 = vld [vmem:[%s0 + $0x5b0] sm:$0xff]
  %v1459 = vld [vmem:[%s0 + $0x5b8] sm:$0xff]
  %v1460 = vld [vmem:[%s0 + $0x5c0] sm:$0xff]
  %v1461 = vld [vmem:[%s0 + $0x5c8] sm:$0xff]
  %v1462 = vld [vmem:[%s0 + $0x5d0] sm:$0xff]
  %v1463 = vld [vmem:[%s0 + $0x5d8] sm:$0xff]
  %v1464 = vld [vmem:[%s0 + $0x5e0] sm:$0xff]
  %v1465 = vld [vmem:[%s0 + $0x5e8] sm:$0xff]
  %v1466 = vld [vmem:[%s0 + $0x5f0] sm:$0xff]
  %v1467 = vld [vmem:[%s0 + $0x5f8] sm:$0xff]
  %vm1468 = vcmask 400384
  %v1470 = vsel %vm1468, %v1276, 0
  %v1473 = vsel %vm1468, %v1277, 0
  %v1476 = vsel %vm1468, %v1278, 0
  %v1479 = vsel %vm1468, %v1279, 0
  %v1482 = vsel %vm1468, %v1280, 0
  %v1485 = vsel %vm1468, %v1281, 0
  %v1488 = vsel %vm1468, %v1282, 0
  %v1491 = vsel %vm1468, %v1283, 0
  %v1494 = vsel %vm1468, %v1284, 0
  %v1497 = vsel %vm1468, %v1285, 0
  %v1500 = vsel %vm1468, %v1286, 0
  %v1503 = vsel %vm1468, %v1287, 0
  %v1506 = vsel %vm1468, %v1288, 0
  %v1509 = vsel %vm1468, %v1289, 0
  %v1512 = vsel %vm1468, %v1290, 0
  %v1515 = vsel %vm1468, %v1291, 0
  %v1518 = vsel %vm1468, %v1292, 0
  %v1521 = vsel %vm1468, %v1293, 0
  %v1524 = vsel %vm1468, %v1294, 0
  %v1527 = vsel %vm1468, %v1295, 0
  %v1530 = vsel %vm1468, %v1296, 0
  %v1533 = vsel %vm1468, %v1297, 0
  %v1536 = vsel %vm1468, %v1298, 0
  %v1539 = vsel %vm1468, %v1299, 0
  %v1542 = vsel %vm1468, %v1300, 0
  %v1545 = vsel %vm1468, %v1301, 0
  %v1548 = vsel %vm1468, %v1302, 0
  %v1551 = vsel %vm1468, %v1303, 0
  %v1554 = vsel %vm1468, %v1304, 0
  %v1557 = vsel %vm1468, %v1305, 0
  %v1560 = vsel %vm1468, %v1306, 0
  %v1563 = vsel %vm1468, %v1307, 0
  %v1566 = vsel %vm1468, %v1308, 0
  %v1569 = vsel %vm1468, %v1309, 0
  %v1572 = vsel %vm1468, %v1310, 0
  %v1575 = vsel %vm1468, %v1311, 0
  %v1578 = vsel %vm1468, %v1312, 0
  %v1581 = vsel %vm1468, %v1313, 0
  %v1584 = vsel %vm1468, %v1314, 0
  %v1587 = vsel %vm1468, %v1315, 0
  %v1590 = vsel %vm1468, %v1316, 0
  %v1593 = vsel %vm1468, %v1317, 0
  %v1596 = vsel %vm1468, %v1318, 0
  %v1599 = vsel %vm1468, %v1319, 0
  %v1602 = vsel %vm1468, %v1320, 0
  %v1605 = vsel %vm1468, %v1321, 0
  %v1608 = vsel %vm1468, %v1322, 0
  %v1611 = vsel %vm1468, %v1323, 0
  %v1614 = vsel %vm1468, %v1324, 0
  %v1617 = vsel %vm1468, %v1325, 0
  %v1620 = vsel %vm1468, %v1326, 0
  %v1623 = vsel %vm1468, %v1327, 0
  %v1626 = vsel %vm1468, %v1328, 0
  %v1629 = vsel %vm1468, %v1329, 0
  %v1632 = vsel %vm1468, %v1330, 0
  %v1635 = vsel %vm1468, %v1331, 0
  %v1638 = vsel %vm1468, %v1332, 0
  %v1641 = vsel %vm1468, %v1333, 0
  %v1644 = vsel %vm1468, %v1334, 0
  %v1647 = vsel %vm1468, %v1335, 0
  %v1650 = vsel %vm1468, %v1336, 0
  %v1653 = vsel %vm1468, %v1337, 0
  %v1656 = vsel %vm1468, %v1338, 0
  %v1659 = vsel %vm1468, %v1339, 0
  %v1662 = vsel %vm1468, %v1340, 0
  %v1665 = vsel %vm1468, %v1341, 0
  %v1668 = vsel %vm1468, %v1342, 0
  %v1671 = vsel %vm1468, %v1343, 0
  %v1674 = vsel %vm1468, %v1344, 0
  %v1677 = vsel %vm1468, %v1345, 0
  %v1680 = vsel %vm1468, %v1346, 0
  %v1683 = vsel %vm1468, %v1347, 0
  %v1686 = vsel %vm1468, %v1348, 0
  %v1689 = vsel %vm1468, %v1349, 0
  %v1692 = vsel %vm1468, %v1350, 0
  %v1695 = vsel %vm1468, %v1351, 0
  %v1698 = vsel %vm1468, %v1352, 0
  %v1701 = vsel %vm1468, %v1353, 0
  %v1704 = vsel %vm1468, %v1354, 0
  %v1707 = vsel %vm1468, %v1355, 0
  %v1710 = vsel %vm1468, %v1356, 0
  %v1713 = vsel %vm1468, %v1357, 0
  %v1716 = vsel %vm1468, %v1358, 0
  %v1719 = vsel %vm1468, %v1359, 0
  %v1722 = vsel %vm1468, %v1360, 0
  %v1725 = vsel %vm1468, %v1361, 0
  %v1728 = vsel %vm1468, %v1362, 0
  %v1731 = vsel %vm1468, %v1363, 0
  %v1734 = vsel %vm1468, %v1364, 0
  %v1737 = vsel %vm1468, %v1365, 0
  %v1740 = vsel %vm1468, %v1366, 0
  %v1743 = vsel %vm1468, %v1367, 0
  %v1746 = vsel %vm1468, %v1368, 0
  %v1749 = vsel %vm1468, %v1369, 0
  %v1752 = vsel %vm1468, %v1370, 0
  %v1755 = vsel %vm1468, %v1371, 0
  %v1758 = vsel %vm1468, %v1372, 0
  %v1761 = vsel %vm1468, %v1373, 0
  %v1764 = vsel %vm1468, %v1374, 0
  %v1767 = vsel %vm1468, %v1375, 0
  %v1770 = vsel %vm1468, %v1376, 0
  %v1773 = vsel %vm1468, %v1377, 0
  %v1776 = vsel %vm1468, %v1378, 0
  %v1779 = vsel %vm1468, %v1379, 0
  %v1782 = vsel %vm1468, %v1380, 0
  %v1785 = vsel %vm1468, %v1381, 0
  %v1788 = vsel %vm1468, %v1382, 0
  %v1791 = vsel %vm1468, %v1383, 0
  %v1794 = vsel %vm1468, %v1384, 0
  %v1797 = vsel %vm1468, %v1385, 0
  %v1800 = vsel %vm1468, %v1386, 0
  %v1803 = vsel %vm1468, %v1387, 0
  %v1806 = vsel %vm1468, %v1388, 0
  %v1809 = vsel %vm1468, %v1389, 0
  %v1812 = vsel %vm1468, %v1390, 0
  %v1815 = vsel %vm1468, %v1391, 0
  %v1818 = vsel %vm1468, %v1392, 0
  %v1821 = vsel %vm1468, %v1393, 0
  %v1824 = vsel %vm1468, %v1394, 0
  %v1827 = vsel %vm1468, %v1395, 0
  %v1830 = vsel %vm1468, %v1396, 0
  %v1833 = vsel %vm1468, %v1397, 0
  %v1836 = vsel %vm1468, %v1398, 0
  %v1839 = vsel %vm1468, %v1399, 0
  %v1842 = vsel %vm1468, %v1400, 0
  %v1845 = vsel %vm1468, %v1401, 0
  %v1848 = vsel %vm1468, %v1402, 0
  %v1851 = vsel %vm1468, %v1403, 0
  %v1854 = vsel %vm1468, %v1404, 0
  %v1857 = vsel %vm1468, %v1405, 0
  %v1860 = vsel %vm1468, %v1406, 0
  %v1863 = vsel %vm1468, %v1407, 0
  %v1866 = vsel %vm1468, %v1408, 0
  %v1869 = vsel %vm1468, %v1409, 0
  %v1872 = vsel %vm1468, %v1410, 0
  %v1875 = vsel %vm1468, %v1411, 0
  %v1878 = vsel %vm1468, %v1412, 0
  %v1881 = vsel %vm1468, %v1413, 0
  %v1884 = vsel %vm1468, %v1414, 0
  %v1887 = vsel %vm1468, %v1415, 0
  %v1890 = vsel %vm1468, %v1416, 0
  %v1893 = vsel %vm1468, %v1417, 0
  %v1896 = vsel %vm1468, %v1418, 0
  %v1899 = vsel %vm1468, %v1419, 0
  %v1902 = vsel %vm1468, %v1420, 0
  %v1905 = vsel %vm1468, %v1421, 0
  %v1908 = vsel %vm1468, %v1422, 0
  %v1911 = vsel %vm1468, %v1423, 0
  %v1914 = vsel %vm1468, %v1424, 0
  %v1917 = vsel %vm1468, %v1425, 0
  %v1920 = vsel %vm1468, %v1426, 0
  %v1923 = vsel %vm1468, %v1427, 0
  %v1926 = vsel %vm1468, %v1428, 0
  %v1929 = vsel %vm1468, %v1429, 0
  %v1932 = vsel %vm1468, %v1430, 0
  %v1935 = vsel %vm1468, %v1431, 0
  %v1938 = vsel %vm1468, %v1432, 0
  %v1941 = vsel %vm1468, %v1433, 0
  %v1944 = vsel %vm1468, %v1434, 0
  %v1947 = vsel %vm1468, %v1435, 0
  %v1950 = vsel %vm1468, %v1436, 0
  %v1953 = vsel %vm1468, %v1437, 0
  %v1956 = vsel %vm1468, %v1438, 0
  %v1959 = vsel %vm1468, %v1439, 0
  %v1962 = vsel %vm1468, %v1440, 0
  %v1965 = vsel %vm1468, %v1441, 0
  %v1968 = vsel %vm1468, %v1442, 0
  %v1971 = vsel %vm1468, %v1443, 0
  %v1974 = vsel %vm1468, %v1444, 0
  %v1977 = vsel %vm1468, %v1445, 0
  %v1980 = vsel %vm1468, %v1446, 0
  %v1983 = vsel %vm1468, %v1447, 0
  %v1986 = vsel %vm1468, %v1448, 0
  %v1989 = vsel %vm1468, %v1449, 0
  %v1992 = vsel %vm1468, %v1450, 0
  %v1995 = vsel %vm1468, %v1451, 0
  %v1998 = vsel %vm1468, %v1452, 0
  %v2001 = vsel %vm1468, %v1453, 0
  %v2004 = vsel %vm1468, %v1454, 0
  %v2007 = vsel %vm1468, %v1455, 0
  %v2010 = vsel %vm1468, %v1456, 0
  %v2013 = vsel %vm1468, %v1457, 0
  %v2016 = vsel %vm1468, %v1458, 0
  %v2019 = vsel %vm1468, %v1459, 0
  %v2022 = vsel %vm1468, %v1460, 0
  %v2025 = vsel %vm1468, %v1461, 0
  %v2028 = vsel %vm1468, %v1462, 0
  %v2031 = vsel %vm1468, %v1463, 0
  %v2034 = vsel %vm1468, %v1464, 0
  %v2037 = vsel %vm1468, %v1465, 0
  %v2040 = vsel %vm1468, %v1466, 0
  %v2043 = vsel %vm1468, %v1467, 0
  %vm2045 = vcmask 1040384
  %v2047 = vsel %vm2045, 1.0, 0
  %2049 = vmatpush.msra.mxu0 0.0
  %2050 = vmatpush.msra.mxu0 0.0
  %2051 = vmatpush.msra.mxu0 0.0
  %2052 = vmatpush.msra.mxu0 0.0
  %2053 = vmatpush.msra.mxu0 0.0
  %2054 = vmatpush.msra.mxu0 0.0
  %2055 = vmatpush.msra.mxu0 0.0
  %2056 = vmatpush.msra.mxu0 0.0
  %2057 = vmatpush.msra.mxu0 0.0
  %2058 = vmatpush.msra.mxu0 %v2047
  %2059 = vmatpush.msra.mxu0 1.0
  %2060 = vmatpush.msra.mxu0 1.0
  %2061 = vmatpush.msra.mxu0 1.0
  %2062 = vmatpush.msra.mxu0 1.0
  %2063 = vmatpush.msra.mxu0 1.0
  %2064 = vmatpush.msra.mxu0 1.0
  %2065 = vmatmul.f32.gmra.mxu0 %v1470
  %v2066 = vpop.f32.mrf.mxu0
  %v2067 = vadd.f32 0.0, %v2066
  %2068 = vmatmul.f32.gmra.mxu0 %v1473
  %v2069 = vpop.f32.mrf.mxu0
  %v2070 = vadd.f32 0.0, %v2069
  %2071 = vmatmul.f32.gmra.mxu0 %v1476
  %v2072 = vpop.f32.mrf.mxu0
  %v2073 = vadd.f32 0.0, %v2072
  %2074 = vmatmul.f32.gmra.mxu0 %v1479
  %v2075 = vpop.f32.mrf.mxu0
  %v2076 = vadd.f32 0.0, %v2075
  %2077 = vmatmul.f32.gmra.mxu0 %v1482
  %v2078 = vpop.f32.mrf.mxu0
  %v2079 = vadd.f32 0.0, %v2078
  %2080 = vmatmul.f32.gmra.mxu0 %v1485
  %v2081 = vpop.f32.mrf.mxu0
  %v2082 = vadd.f32 0.0, %v2081
  %2083 = vmatmul.f32.gmra.mxu0 %v1488
  %v2084 = vpop.f32.mrf.mxu0
  %v2085 = vadd.f32 0.0, %v2084
  %2086 = vmatmul.f32.gmra.mxu0 %v1491
  %v2087 = vpop.f32.mrf.mxu0
  %v2088 = vadd.f32 0.0, %v2087
  %2089 = vmatmul.f32.gmra.mxu0 %v1494
  %v2090 = vpop.f32.mrf.mxu0
  %v2091 = vadd.f32 0.0, %v2090
  %2092 = vmatmul.f32.gmra.mxu0 %v1497
  %v2093 = vpop.f32.mrf.mxu0
  %v2094 = vadd.f32 0.0, %v2093
  %2095 = vmatmul.f32.gmra.mxu0 %v1500
  %v2096 = vpop.f32.mrf.mxu0
  %v2097 = vadd.f32 0.0, %v2096
  %2098 = vmatmul.f32.gmra.mxu0 %v1503
  %v2099 = vpop.f32.mrf.mxu0
  %v2100 = vadd.f32 0.0, %v2099
  %2101 = vmatmul.f32.gmra.mxu0 %v1506
  %v2102 = vpop.f32.mrf.mxu0
  %v2103 = vadd.f32 0.0, %v2102
  %2104 = vmatmul.f32.gmra.mxu0 %v1509
  %v2105 = vpop.f32.mrf.mxu0
  %v2106 = vadd.f32 0.0, %v2105
  %2107 = vmatmul.f32.gmra.mxu0 %v1512
  %v2108 = vpop.f32.mrf.mxu0
  %v2109 = vadd.f32 0.0, %v2108
  %2110 = vmatmul.f32.gmra.mxu0 %v1515
  %v2111 = vpop.f32.mrf.mxu0
  %v2112 = vadd.f32 0.0, %v2111
  %2113 = vmatmul.f32.gmra.mxu0 %v1518
  %v2114 = vpop.f32.mrf.mxu0
  %v2115 = vadd.f32 0.0, %v2114
  %2116 = vmatmul.f32.gmra.mxu0 %v1521
  %v2117 = vpop.f32.mrf.mxu0
  %v2118 = vadd.f32 0.0, %v2117
  %2119 = vmatmul.f32.gmra.mxu0 %v1524
  %v2120 = vpop.f32.mrf.mxu0
  %v2121 = vadd.f32 0.0, %v2120
  %2122 = vmatmul.f32.gmra.mxu0 %v1527
  %v2123 = vpop.f32.mrf.mxu0
  %v2124 = vadd.f32 0.0, %v2123
  %2125 = vmatmul.f32.gmra.mxu0 %v1530
  %v2126 = vpop.f32.mrf.mxu0
  %v2127 = vadd.f32 0.0, %v2126
  %2128 = vmatmul.f32.gmra.mxu0 %v1533
  %v2129 = vpop.f32.mrf.mxu0
  %v2130 = vadd.f32 0.0, %v2129
  %2131 = vmatmul.f32.gmra.mxu0 %v1536
  %v2132 = vpop.f32.mrf.mxu0
  %v2133 = vadd.f32 0.0, %v2132
  %2134 = vmatmul.f32.gmra.mxu0 %v1539
  %v2135 = vpop.f32.mrf.mxu0
  %v2136 = vadd.f32 0.0, %v2135
  %2137 = vmatmul.f32.gmra.mxu0 %v1542
  %v2138 = vpop.f32.mrf.mxu0
  %v2139 = vadd.f32 0.0, %v2138
  %2140 = vmatmul.f32.gmra.mxu0 %v1545
  %v2141 = vpop.f32.mrf.mxu0
  %v2142 = vadd.f32 0.0, %v2141
  %2143 = vmatmul.f32.gmra.mxu0 %v1548
  %v2144 = vpop.f32.mrf.mxu0
  %v2145 = vadd.f32 0.0, %v2144
  %2146 = vmatmul.f32.gmra.mxu0 %v1551
  %v2147 = vpop.f32.mrf.mxu0
  %v2148 = vadd.f32 0.0, %v2147
  %2149 = vmatmul.f32.gmra.mxu0 %v1554
  %v2150 = vpop.f32.mrf.mxu0
  %v2151 = vadd.f32 0.0, %v2150
  %2152 = vmatmul.f32.gmra.mxu0 %v1557
  %v2153 = vpop.f32.mrf.mxu0
  %v2154 = vadd.f32 0.0, %v2153
  %2155 = vmatmul.f32.gmra.mxu0 %v1560
  %v2156 = vpop.f32.mrf.mxu0
  %v2157 = vadd.f32 0.0, %v2156
  %2158 = vmatmul.f32.gmra.mxu0 %v1563
  %v2159 = vpop.f32.mrf.mxu0
  %v2160 = vadd.f32 0.0, %v2159
  %2161 = vmatmul.f32.gmra.mxu0 %v1566
  %v2162 = vpop.f32.mrf.mxu0
  %v2163 = vadd.f32 0.0, %v2162
  %2164 = vmatmul.f32.gmra.mxu0 %v1569
  %v2165 = vpop.f32.mrf.mxu0
  %v2166 = vadd.f32 0.0, %v2165
  %2167 = vmatmul.f32.gmra.mxu0 %v1572
  %v2168 = vpop.f32.mrf.mxu0
  %v2169 = vadd.f32 0.0, %v2168
  %2170 = vmatmul.f32.gmra.mxu0 %v1575
  %v2171 = vpop.f32.mrf.mxu0
  %v2172 = vadd.f32 0.0, %v2171
  %2173 = vmatmul.f32.gmra.mxu0 %v1578
  %v2174 = vpop.f32.mrf.mxu0
  %v2175 = vadd.f32 0.0, %v2174
  %2176 = vmatmul.f32.gmra.mxu0 %v1581
  %v2177 = vpop.f32.mrf.mxu0
  %v2178 = vadd.f32 0.0, %v2177
  %2179 = vmatmul.f32.gmra.mxu0 %v1584
  %v2180 = vpop.f32.mrf.mxu0
  %v2181 = vadd.f32 0.0, %v2180
  %2182 = vmatmul.f32.gmra.mxu0 %v1587
  %v2183 = vpop.f32.mrf.mxu0
  %v2184 = vadd.f32 0.0, %v2183
  %2185 = vmatmul.f32.gmra.mxu0 %v1590
  %v2186 = vpop.f32.mrf.mxu0
  %v2187 = vadd.f32 0.0, %v2186
  %2188 = vmatmul.f32.gmra.mxu0 %v1593
  %v2189 = vpop.f32.mrf.mxu0
  %v2190 = vadd.f32 0.0, %v2189
  %2191 = vmatmul.f32.gmra.mxu0 %v1596
  %v2192 = vpop.f32.mrf.mxu0
  %v2193 = vadd.f32 0.0, %v2192
  %2194 = vmatmul.f32.gmra.mxu0 %v1599
  %v2195 = vpop.f32.mrf.mxu0
  %v2196 = vadd.f32 0.0, %v2195
  %2197 = vmatmul.f32.gmra.mxu0 %v1602
  %v2198 = vpop.f32.mrf.mxu0
  %v2199 = vadd.f32 0.0, %v2198
  %2200 = vmatmul.f32.gmra.mxu0 %v1605
  %v2201 = vpop.f32.mrf.mxu0
  %v2202 = vadd.f32 0.0, %v2201
  %2203 = vmatmul.f32.gmra.mxu0 %v1608
  %v2204 = vpop.f32.mrf.mxu0
  %v2205 = vadd.f32 0.0, %v2204
  %2206 = vmatmul.f32.gmra.mxu0 %v1611
  %v2207 = vpop.f32.mrf.mxu0
  %v2208 = vadd.f32 0.0, %v2207
  %2209 = vmatmul.f32.gmra.mxu0 %v1614
  %v2210 = vpop.f32.mrf.mxu0
  %v2211 = vadd.f32 0.0, %v2210
  %2212 = vmatmul.f32.gmra.mxu0 %v1617
  %v2213 = vpop.f32.mrf.mxu0
  %v2214 = vadd.f32 0.0, %v2213
  %2215 = vmatmul.f32.gmra.mxu0 %v1620
  %v2216 = vpop.f32.mrf.mxu0
  %v2217 = vadd.f32 0.0, %v2216
  %2218 = vmatmul.f32.gmra.mxu0 %v1623
  %v2219 = vpop.f32.mrf.mxu0
  %v2220 = vadd.f32 0.0, %v2219
  %2221 = vmatmul.f32.gmra.mxu0 %v1626
  %v2222 = vpop.f32.mrf.mxu0
  %v2223 = vadd.f32 0.0, %v2222
  %2224 = vmatmul.f32.gmra.mxu0 %v1629
  %v2225 = vpop.f32.mrf.mxu0
  %v2226 = vadd.f32 0.0, %v2225
  %2227 = vmatmul.f32.gmra.mxu0 %v1632
  %v2228 = vpop.f32.mrf.mxu0
  %v2229 = vadd.f32 0.0, %v2228
  %2230 = vmatmul.f32.gmra.mxu0 %v1635
  %v2231 = vpop.f32.mrf.mxu0
  %v2232 = vadd.f32 0.0, %v2231
  %2233 = vmatmul.f32.gmra.mxu0 %v1638
  %v2234 = vpop.f32.mrf.mxu0
  %v2235 = vadd.f32 0.0, %v2234
  %2236 = vmatmul.f32.gmra.mxu0 %v1641
  %v2237 = vpop.f32.mrf.mxu0
  %v2238 = vadd.f32 0.0, %v2237
  %2239 = vmatmul.f32.gmra.mxu0 %v1644
  %v2240 = vpop.f32.mrf.mxu0
  %v2241 = vadd.f32 0.0, %v2240
  %2242 = vmatmul.f32.gmra.mxu0 %v1647
  %v2243 = vpop.f32.mrf.mxu0
  %v2244 = vadd.f32 0.0, %v2243
  %2245 = vmatmul.f32.gmra.mxu0 %v1650
  %v2246 = vpop.f32.mrf.mxu0
  %v2247 = vadd.f32 0.0, %v2246
  %2248 = vmatmul.f32.gmra.mxu0 %v1653
  %v2249 = vpop.f32.mrf.mxu0
  %v2250 = vadd.f32 0.0, %v2249
  %2251 = vmatmul.f32.gmra.mxu0 %v1656
  %v2252 = vpop.f32.mrf.mxu0
  %v2253 = vadd.f32 0.0, %v2252
  %2254 = vmatmul.f32.gmra.mxu0 %v1659
  %v2255 = vpop.f32.mrf.mxu0
  %v2256 = vadd.f32 0.0, %v2255
  %2257 = vmatmul.f32.gmra.mxu0 %v1662
  %v2258 = vpop.f32.mrf.mxu0
  %v2259 = vadd.f32 0.0, %v2258
  %2260 = vmatmul.f32.gmra.mxu0 %v1665
  %v2261 = vpop.f32.mrf.mxu0
  %v2262 = vadd.f32 0.0, %v2261
  %2263 = vmatmul.f32.gmra.mxu0 %v1668
  %v2264 = vpop.f32.mrf.mxu0
  %v2265 = vadd.f32 0.0, %v2264
  %2266 = vmatmul.f32.gmra.mxu0 %v1671
  %v2267 = vpop.f32.mrf.mxu0
  %v2268 = vadd.f32 0.0, %v2267
  %2269 = vmatmul.f32.gmra.mxu0 %v1674
  %v2270 = vpop.f32.mrf.mxu0
  %v2271 = vadd.f32 0.0, %v2270
  %2272 = vmatmul.f32.gmra.mxu0 %v1677
  %v2273 = vpop.f32.mrf.mxu0
  %v2274 = vadd.f32 0.0, %v2273
  %2275 = vmatmul.f32.gmra.mxu0 %v1680
  %v2276 = vpop.f32.mrf.mxu0
  %v2277 = vadd.f32 0.0, %v2276
  %2278 = vmatmul.f32.gmra.mxu0 %v1683
  %v2279 = vpop.f32.mrf.mxu0
  %v2280 = vadd.f32 0.0, %v2279
  %2281 = vmatmul.f32.gmra.mxu0 %v1686
  %v2282 = vpop.f32.mrf.mxu0
  %v2283 = vadd.f32 0.0, %v2282
  %2284 = vmatmul.f32.gmra.mxu0 %v1689
  %v2285 = vpop.f32.mrf.mxu0
  %v2286 = vadd.f32 0.0, %v2285
  %2287 = vmatmul.f32.gmra.mxu0 %v1692
  %v2288 = vpop.f32.mrf.mxu0
  %v2289 = vadd.f32 0.0, %v2288
  %2290 = vmatmul.f32.gmra.mxu0 %v1695
  %v2291 = vpop.f32.mrf.mxu0
  %v2292 = vadd.f32 0.0, %v2291
  %2293 = vmatmul.f32.gmra.mxu0 %v1698
  %v2294 = vpop.f32.mrf.mxu0
  %v2295 = vadd.f32 0.0, %v2294
  %2296 = vmatmul.f32.gmra.mxu0 %v1701
  %v2297 = vpop.f32.mrf.mxu0
  %v2298 = vadd.f32 0.0, %v2297
  %2299 = vmatmul.f32.gmra.mxu0 %v1704
  %v2300 = vpop.f32.mrf.mxu0
  %v2301 = vadd.f32 0.0, %v2300
  %2302 = vmatmul.f32.gmra.mxu0 %v1707
  %v2303 = vpop.f32.mrf.mxu0
  %v2304 = vadd.f32 0.0, %v2303
  %2305 = vmatmul.f32.gmra.mxu0 %v1710
  %v2306 = vpop.f32.mrf.mxu0
  %v2307 = vadd.f32 0.0, %v2306
  %2308 = vmatmul.f32.gmra.mxu0 %v1713
  %v2309 = vpop.f32.mrf.mxu0
  %v2310 = vadd.f32 0.0, %v2309
  %2311 = vmatmul.f32.gmra.mxu0 %v1716
  %v2312 = vpop.f32.mrf.mxu0
  %v2313 = vadd.f32 0.0, %v2312
  %2314 = vmatmul.f32.gmra.mxu0 %v1719
  %v2315 = vpop.f32.mrf.mxu0
  %v2316 = vadd.f32 0.0, %v2315
  %2317 = vmatmul.f32.gmra.mxu0 %v1722
  %v2318 = vpop.f32.mrf.mxu0
  %v2319 = vadd.f32 0.0, %v2318
  %2320 = vmatmul.f32.gmra.mxu0 %v1725
  %v2321 = vpop.f32.mrf.mxu0
  %v2322 = vadd.f32 0.0, %v2321
  %2323 = vmatmul.f32.gmra.mxu0 %v1728
  %v2324 = vpop.f32.mrf.mxu0
  %v2325 = vadd.f32 0.0, %v2324
  %2326 = vmatmul.f32.gmra.mxu0 %v1731
  %v2327 = vpop.f32.mrf.mxu0
  %v2328 = vadd.f32 0.0, %v2327
  %2329 = vmatmul.f32.gmra.mxu0 %v1734
  %v2330 = vpop.f32.mrf.mxu0
  %v2331 = vadd.f32 0.0, %v2330
  %2332 = vmatmul.f32.gmra.mxu0 %v1737
  %v2333 = vpop.f32.mrf.mxu0
  %v2334 = vadd.f32 0.0, %v2333
  %2335 = vmatmul.f32.gmra.mxu0 %v1740
  %v2336 = vpop.f32.mrf.mxu0
  %v2337 = vadd.f32 0.0, %v2336
  %2338 = vmatmul.f32.gmra.mxu0 %v1743
  %v2339 = vpop.f32.mrf.mxu0
  %v2340 = vadd.f32 0.0, %v2339
  %2341 = vmatmul.f32.gmra.mxu0 %v1746
  %v2342 = vpop.f32.mrf.mxu0
  %v2343 = vadd.f32 0.0, %v2342
  %2344 = vmatmul.f32.gmra.mxu0 %v1749
  %v2345 = vpop.f32.mrf.mxu0
  %v2346 = vadd.f32 0.0, %v2345
  %2347 = vmatmul.f32.gmra.mxu0 %v1752
  %v2348 = vpop.f32.mrf.mxu0
  %v2349 = vadd.f32 0.0, %v2348
  %2350 = vmatmul.f32.gmra.mxu0 %v1755
  %v2351 = vpop.f32.mrf.mxu0
  %v2352 = vadd.f32 0.0, %v2351
  %2353 = vmatmul.f32.gmra.mxu0 %v1758
  %v2354 = vpop.f32.mrf.mxu0
  %v2355 = vadd.f32 0.0, %v2354
  %2356 = vmatmul.f32.gmra.mxu0 %v1761
  %v2357 = vpop.f32.mrf.mxu0
  %v2358 = vadd.f32 0.0, %v2357
  %2359 = vmatmul.f32.gmra.mxu0 %v1764
  %v2360 = vpop.f32.mrf.mxu0
  %v2361 = vadd.f32 0.0, %v2360
  %2362 = vmatmul.f32.gmra.mxu0 %v1767
  %v2363 = vpop.f32.mrf.mxu0
  %v2364 = vadd.f32 0.0, %v2363
  %2365 = vmatmul.f32.gmra.mxu0 %v1770
  %v2366 = vpop.f32.mrf.mxu0
  %v2367 = vadd.f32 0.0, %v2366
  %2368 = vmatmul.f32.gmra.mxu0 %v1773
  %v2369 = vpop.f32.mrf.mxu0
  %v2370 = vadd.f32 0.0, %v2369
  %2371 = vmatmul.f32.gmra.mxu0 %v1776
  %v2372 = vpop.f32.mrf.mxu0
  %v2373 = vadd.f32 0.0, %v2372
  %2374 = vmatmul.f32.gmra.mxu0 %v1779
  %v2375 = vpop.f32.mrf.mxu0
  %v2376 = vadd.f32 0.0, %v2375
  %2377 = vmatmul.f32.gmra.mxu0 %v1782
  %v2378 = vpop.f32.mrf.mxu0
  %v2379 = vadd.f32 0.0, %v2378
  %2380 = vmatmul.f32.gmra.mxu0 %v1785
  %v2381 = vpop.f32.mrf.mxu0
  %v2382 = vadd.f32 0.0, %v2381
  %2383 = vmatmul.f32.gmra.mxu0 %v1788
  %v2384 = vpop.f32.mrf.mxu0
  %v2385 = vadd.f32 0.0, %v2384
  %2386 = vmatmul.f32.gmra.mxu0 %v1791
  %v2387 = vpop.f32.mrf.mxu0
  %v2388 = vadd.f32 0.0, %v2387
  %2389 = vmatmul.f32.gmra.mxu0 %v1794
  %v2390 = vpop.f32.mrf.mxu0
  %v2391 = vadd.f32 0.0, %v2390
  %2392 = vmatmul.f32.gmra.mxu0 %v1797
  %v2393 = vpop.f32.mrf.mxu0
  %v2394 = vadd.f32 0.0, %v2393
  %2395 = vmatmul.f32.gmra.mxu0 %v1800
  %v2396 = vpop.f32.mrf.mxu0
  %v2397 = vadd.f32 0.0, %v2396
  %2398 = vmatmul.f32.gmra.mxu0 %v1803
  %v2399 = vpop.f32.mrf.mxu0
  %v2400 = vadd.f32 0.0, %v2399
  %2401 = vmatmul.f32.gmra.mxu0 %v1806
  %v2402 = vpop.f32.mrf.mxu0
  %v2403 = vadd.f32 0.0, %v2402
  %2404 = vmatmul.f32.gmra.mxu0 %v1809
  %v2405 = vpop.f32.mrf.mxu0
  %v2406 = vadd.f32 0.0, %v2405
  %2407 = vmatmul.f32.gmra.mxu0 %v1812
  %v2408 = vpop.f32.mrf.mxu0
  %v2409 = vadd.f32 0.0, %v2408
  %2410 = vmatmul.f32.gmra.mxu0 %v1815
  %v2411 = vpop.f32.mrf.mxu0
  %v2412 = vadd.f32 0.0, %v2411
  %2413 = vmatmul.f32.gmra.mxu0 %v1818
  %v2414 = vpop.f32.mrf.mxu0
  %v2415 = vadd.f32 0.0, %v2414
  %2416 = vmatmul.f32.gmra.mxu0 %v1821
  %v2417 = vpop.f32.mrf.mxu0
  %v2418 = vadd.f32 0.0, %v2417
  %2419 = vmatmul.f32.gmra.mxu0 %v1824
  %v2420 = vpop.f32.mrf.mxu0
  %v2421 = vadd.f32 0.0, %v2420
  %2422 = vmatmul.f32.gmra.mxu0 %v1827
  %v2423 = vpop.f32.mrf.mxu0
  %v2424 = vadd.f32 0.0, %v2423
  %2425 = vmatmul.f32.gmra.mxu0 %v1830
  %v2426 = vpop.f32.mrf.mxu0
  %v2427 = vadd.f32 0.0, %v2426
  %2428 = vmatmul.f32.gmra.mxu0 %v1833
  %v2429 = vpop.f32.mrf.mxu0
  %v2430 = vadd.f32 0.0, %v2429
  %2431 = vmatmul.f32.gmra.mxu0 %v1836
  %v2432 = vpop.f32.mrf.mxu0
  %v2433 = vadd.f32 0.0, %v2432
  %2434 = vmatmul.f32.gmra.mxu0 %v1839
  %v2435 = vpop.f32.mrf.mxu0
  %v2436 = vadd.f32 0.0, %v2435
  %2437 = vmatmul.f32.gmra.mxu0 %v1842
  %v2438 = vpop.f32.mrf.mxu0
  %v2439 = vadd.f32 0.0, %v2438
  %2440 = vmatmul.f32.gmra.mxu0 %v1845
  %v2441 = vpop.f32.mrf.mxu0
  %v2442 = vadd.f32 0.0, %v2441
  %2443 = vmatmul.f32.gmra.mxu0 %v1848
  %v2444 = vpop.f32.mrf.mxu0
  %v2445 = vadd.f32 0.0, %v2444
  %2446 = vmatmul.f32.gmra.mxu0 %v1851
  %v2447 = vpop.f32.mrf.mxu0
  %v2448 = vadd.f32 0.0, %v2447
  %2449 = vmatmul.f32.gmra.mxu0 %v1854
  %v2450 = vpop.f32.mrf.mxu0
  %v2451 = vadd.f32 0.0, %v2450
  %2452 = vmatmul.f32.gmra.mxu0 %v1857
  %v2453 = vpop.f32.mrf.mxu0
  %v2454 = vadd.f32 0.0, %v2453
  %2455 = vmatmul.f32.gmra.mxu0 %v1860
  %v2456 = vpop.f32.mrf.mxu0
  %v2457 = vadd.f32 0.0, %v2456
  %2458 = vmatmul.f32.gmra.mxu0 %v1863
  %v2459 = vpop.f32.mrf.mxu0
  %v2460 = vadd.f32 0.0, %v2459
  %2461 = vmatmul.f32.gmra.mxu0 %v1866
  %v2462 = vpop.f32.mrf.mxu0
  %v2463 = vadd.f32 0.0, %v2462
  %2464 = vmatmul.f32.gmra.mxu0 %v1869
  %v2465 = vpop.f32.mrf.mxu0
  %v2466 = vadd.f32 0.0, %v2465
  %2467 = vmatmul.f32.gmra.mxu0 %v1872
  %v2468 = vpop.f32.mrf.mxu0
  %v2469 = vadd.f32 0.0, %v2468
  %2470 = vmatmul.f32.gmra.mxu0 %v1875
  %v2471 = vpop.f32.mrf.mxu0
  %v2472 = vadd.f32 0.0, %v2471
  %2473 = vmatmul.f32.gmra.mxu0 %v1878
  %v2474 = vpop.f32.mrf.mxu0
  %v2475 = vadd.f32 0.0, %v2474
  %2476 = vmatmul.f32.gmra.mxu0 %v1881
  %v2477 = vpop.f32.mrf.mxu0
  %v2478 = vadd.f32 0.0, %v2477
  %2479 = vmatmul.f32.gmra.mxu0 %v1884
  %v2480 = vpop.f32.mrf.mxu0
  %v2481 = vadd.f32 0.0, %v2480
  %2482 = vmatmul.f32.gmra.mxu0 %v1887
  %v2483 = vpop.f32.mrf.mxu0
  %v2484 = vadd.f32 0.0, %v2483
  %2485 = vmatmul.f32.gmra.mxu0 %v1890
  %v2486 = vpop.f32.mrf.mxu0
  %v2487 = vadd.f32 0.0, %v2486
  %2488 = vmatmul.f32.gmra.mxu0 %v1893
  %v2489 = vpop.f32.mrf.mxu0
  %v2490 = vadd.f32 0.0, %v2489
  %2491 = vmatmul.f32.gmra.mxu0 %v1896
  %v2492 = vpop.f32.mrf.mxu0
  %v2493 = vadd.f32 0.0, %v2492
  %2494 = vmatmul.f32.gmra.mxu0 %v1899
  %v2495 = vpop.f32.mrf.mxu0
  %v2496 = vadd.f32 0.0, %v2495
  %2497 = vmatmul.f32.gmra.mxu0 %v1902
  %v2498 = vpop.f32.mrf.mxu0
  %v2499 = vadd.f32 0.0, %v2498
  %2500 = vmatmul.f32.gmra.mxu0 %v1905
  %v2501 = vpop.f32.mrf.mxu0
  %v2502 = vadd.f32 0.0, %v2501
  %2503 = vmatmul.f32.gmra.mxu0 %v1908
  %v2504 = vpop.f32.mrf.mxu0
  %v2505 = vadd.f32 0.0, %v2504
  %2506 = vmatmul.f32.gmra.mxu0 %v1911
  %v2507 = vpop.f32.mrf.mxu0
  %v2508 = vadd.f32 0.0, %v2507
  %2509 = vmatmul.f32.gmra.mxu0 %v1914
  %v2510 = vpop.f32.mrf.mxu0
  %v2511 = vadd.f32 0.0, %v2510
  %2512 = vmatmul.f32.gmra.mxu0 %v1917
  %v2513 = vpop.f32.mrf.mxu0
  %v2514 = vadd.f32 0.0, %v2513
  %2515 = vmatmul.f32.gmra.mxu0 %v1920
  %v2516 = vpop.f32.mrf.mxu0
  %v2517 = vadd.f32 0.0, %v2516
  %2518 = vmatmul.f32.gmra.mxu0 %v1923
  %v2519 = vpop.f32.mrf.mxu0
  %v2520 = vadd.f32 0.0, %v2519
  %2521 = vmatmul.f32.gmra.mxu0 %v1926
  %v2522 = vpop.f32.mrf.mxu0
  %v2523 = vadd.f32 0.0, %v2522
  %2524 = vmatmul.f32.gmra.mxu0 %v1929
  %v2525 = vpop.f32.mrf.mxu0
  %v2526 = vadd.f32 0.0, %v2525
  %2527 = vmatmul.f32.gmra.mxu0 %v1932
  %v2528 = vpop.f32.mrf.mxu0
  %v2529 = vadd.f32 0.0, %v2528
  %2530 = vmatmul.f32.gmra.mxu0 %v1935
  %v2531 = vpop.f32.mrf.mxu0
  %v2532 = vadd.f32 0.0, %v2531
  %2533 = vmatmul.f32.gmra.mxu0 %v1938
  %v2534 = vpop.f32.mrf.mxu0
  %v2535 = vadd.f32 0.0, %v2534
  %2536 = vmatmul.f32.gmra.mxu0 %v1941
  %v2537 = vpop.f32.mrf.mxu0
  %v2538 = vadd.f32 0.0, %v2537
  %2539 = vmatmul.f32.gmra.mxu0 %v1944
  %v2540 = vpop.f32.mrf.mxu0
  %v2541 = vadd.f32 0.0, %v2540
  %2542 = vmatmul.f32.gmra.mxu0 %v1947
  %v2543 = vpop.f32.mrf.mxu0
  %v2544 = vadd.f32 0.0, %v2543
  %2545 = vmatmul.f32.gmra.mxu0 %v1950
  %v2546 = vpop.f32.mrf.mxu0
  %v2547 = vadd.f32 0.0, %v2546
  %2548 = vmatmul.f32.gmra.mxu0 %v1953
  %v2549 = vpop.f32.mrf.mxu0
  %v2550 = vadd.f32 0.0, %v2549
  %2551 = vmatmul.f32.gmra.mxu0 %v1956
  %v2552 = vpop.f32.mrf.mxu0
  %v2553 = vadd.f32 0.0, %v2552
  %2554 = vmatmul.f32.gmra.mxu0 %v1959
  %v2555 = vpop.f32.mrf.mxu0
  %v2556 = vadd.f32 0.0, %v2555
  %2557 = vmatmul.f32.gmra.mxu0 %v1962
  %v2558 = vpop.f32.mrf.mxu0
  %v2559 = vadd.f32 0.0, %v2558
  %2560 = vmatmul.f32.gmra.mxu0 %v1965
  %v2561 = vpop.f32.mrf.mxu0
  %v2562 = vadd.f32 0.0, %v2561
  %2563 = vmatmul.f32.gmra.mxu0 %v1968
  %v2564 = vpop.f32.mrf.mxu0
  %v2565 = vadd.f32 0.0, %v2564
  %2566 = vmatmul.f32.gmra.mxu0 %v1971
  %v2567 = vpop.f32.mrf.mxu0
  %v2568 = vadd.f32 0.0, %v2567
  %2569 = vmatmul.f32.gmra.mxu0 %v1974
  %v2570 = vpop.f32.mrf.mxu0
  %v2571 = vadd.f32 0.0, %v2570
  %2572 = vmatmul.f32.gmra.mxu0 %v1977
  %v2573 = vpop.f32.mrf.mxu0
  %v2574 = vadd.f32 0.0, %v2573
  %2575 = vmatmul.f32.gmra.mxu0 %v1980
  %v2576 = vpop.f32.mrf.mxu0
  %v2577 = vadd.f32 0.0, %v2576
  %2578 = vmatmul.f32.gmra.mxu0 %v1983
  %v2579 = vpop.f32.mrf.mxu0
  %v2580 = vadd.f32 0.0, %v2579
  %2581 = vmatmul.f32.gmra.mxu0 %v1986
  %v2582 = vpop.f32.mrf.mxu0
  %v2583 = vadd.f32 0.0, %v2582
  %2584 = vmatmul.f32.gmra.mxu0 %v1989
  %v2585 = vpop.f32.mrf.mxu0
  %v2586 = vadd.f32 0.0, %v2585
  %2587 = vmatmul.f32.gmra.mxu0 %v1992
  %v2588 = vpop.f32.mrf.mxu0
  %v2589 = vadd.f32 0.0, %v2588
  %2590 = vmatmul.f32.gmra.mxu0 %v1995
  %v2591 = vpop.f32.mrf.mxu0
  %v2592 = vadd.f32 0.0, %v2591
  %2593 = vmatmul.f32.gmra.mxu0 %v1998
  %v2594 = vpop.f32.mrf.mxu0
  %v2595 = vadd.f32 0.0, %v2594
  %2596 = vmatmul.f32.gmra.mxu0 %v2001
  %v2597 = vpop.f32.mrf.mxu0
  %v2598 = vadd.f32 0.0, %v2597
  %2599 = vmatmul.f32.gmra.mxu0 %v2004
  %v2600 = vpop.f32.mrf.mxu0
  %v2601 = vadd.f32 0.0, %v2600
  %2602 = vmatmul.f32.gmra.mxu0 %v2007
  %v2603 = vpop.f32.mrf.mxu0
  %v2604 = vadd.f32 0.0, %v2603
  %2605 = vmatmul.f32.gmra.mxu0 %v2010
  %v2606 = vpop.f32.mrf.mxu0
  %v2607 = vadd.f32 0.0, %v2606
  %2608 = vmatmul.f32.gmra.mxu0 %v2013
  %v2609 = vpop.f32.mrf.mxu0
  %v2610 = vadd.f32 0.0, %v2609
  %2611 = vmatmul.f32.gmra.mxu0 %v2016
  %v2612 = vpop.f32.mrf.mxu0
  %v2613 = vadd.f32 0.0, %v2612
  %2614 = vmatmul.f32.gmra.mxu0 %v2019
  %v2615 = vpop.f32.mrf.mxu0
  %v2616 = vadd.f32 0.0, %v2615
  %2617 = vmatmul.f32.gmra.mxu0 %v2022
  %v2618 = vpop.f32.mrf.mxu0
  %v2619 = vadd.f32 0.0, %v2618
  %2620 = vmatmul.f32.gmra.mxu0 %v2025
  %v2621 = vpop.f32.mrf.mxu0
  %v2622 = vadd.f32 0.0, %v2621
  %2623 = vmatmul.f32.gmra.mxu0 %v2028
  %v2624 = vpop.f32.mrf.mxu0
  %v2625 = vadd.f32 0.0, %v2624
  %2626 = vmatmul.f32.gmra.mxu0 %v2031
  %v2627 = vpop.f32.mrf.mxu0
  %v2628 = vadd.f32 0.0, %v2627
  %2629 = vmatmul.f32.gmra.mxu0 %v2034
  %v2630 = vpop.f32.mrf.mxu0
  %v2631 = vadd.f32 0.0, %v2630
  %2632 = vmatmul.f32.gmra.mxu0 %v2037
  %v2633 = vpop.f32.mrf.mxu0
  %v2634 = vadd.f32 0.0, %v2633
  %2635 = vmatmul.f32.gmra.mxu0 %v2040
  %v2636 = vpop.f32.mrf.mxu0
  %v2637 = vadd.f32 0.0, %v2636
  %2638 = vmatmul.f32.gmra.mxu0 %v2043
  %v2639 = vpop.f32.mrf.mxu0
  %v2640 = vadd.f32 0.0, %v2639
  %2641 = vdwg.mxu0
  %v2642 = vmul.f32 %v1276, %v1276
  %v2643 = vmul.f32 %v1277, %v1277
  %v2644 = vmul.f32 %v1278, %v1278
  %v2645 = vmul.f32 %v1279, %v1279
  %v2646 = vmul.f32 %v1280, %v1280
  %v2647 = vmul.f32 %v1281, %v1281
  %v2648 = vmul.f32 %v1282, %v1282
  %v2649 = vmul.f32 %v1283, %v1283
  %v2650 = vmul.f32 %v1284, %v1284
  %v2651 = vmul.f32 %v1285, %v1285
  %v2652 = vmul.f32 %v1286, %v1286
  %v2653 = vmul.f32 %v1287, %v1287
  %v2654 = vmul.f32 %v1288, %v1288
  %v2655 = vmul.f32 %v1289, %v1289
  %v2656 = vmul.f32 %v1290, %v1290
  %v2657 = vmul.f32 %v1291, %v1291
  %v2658 = vmul.f32 %v1292, %v1292
  %v2659 = vmul.f32 %v1293, %v1293
  %v2660 = vmul.f32 %v1294, %v1294
  %v2661 = vmul.f32 %v1295, %v1295
  %v2662 = vmul.f32 %v1296, %v1296
  %v2663 = vmul.f32 %v1297, %v1297
  %v2664 = vmul.f32 %v1298, %v1298
  %v2665 = vmul.f32 %v1299, %v1299
  %v2666 = vmul.f32 %v1300, %v1300
  %v2667 = vmul.f32 %v1301, %v1301
  %v2668 = vmul.f32 %v1302, %v1302
  %v2669 = vmul.f32 %v1303, %v1303
  %v2670 = vmul.f32 %v1304, %v1304
  %v2671 = vmul.f32 %v1305, %v1305
  %v2672 = vmul.f32 %v1306, %v1306
  %v2673 = vmul.f32 %v1307, %v1307
  %v2674 = vmul.f32 %v1308, %v1308
  %v2675 = vmul.f32 %v1309, %v1309
  %v2676 = vmul.f32 %v1310, %v1310
  %v2677 = vmul.f32 %v1311, %v1311
  %v2678 = vmul.f32 %v1312, %v1312
  %v2679 = vmul.f32 %v1313, %v1313
  %v2680 = vmul.f32 %v1314, %v1314
  %v2681 = vmul.f32 %v1315, %v1315
  %v2682 = vmul.f32 %v1316, %v1316
  %v2683 = vmul.f32 %v1317, %v1317
  %v2684 = vmul.f32 %v1318, %v1318
  %v2685 = vmul.f32 %v1319, %v1319
  %v2686 = vmul.f32 %v1320, %v1320
  %v2687 = vmul.f32 %v1321, %v1321
  %v2688 = vmul.f32 %v1322, %v1322
  %v2689 = vmul.f32 %v1323, %v1323
  %v2690 = vmul.f32 %v1324, %v1324
  %v2691 = vmul.f32 %v1325, %v1325
  %v2692 = vmul.f32 %v1326, %v1326
  %v2693 = vmul.f32 %v1327, %v1327
  %v2694 = vmul.f32 %v1328, %v1328
  %v2695 = vmul.f32 %v1329, %v1329
  %v2696 = vmul.f32 %v1330, %v1330
  %v2697 = vmul.f32 %v1331, %v1331
  %v2698 = vmul.f32 %v1332, %v1332
  %v2699 = vmul.f32 %v1333, %v1333
  %v2700 = vmul.f32 %v1334, %v1334
  %v2701 = vmul.f32 %v1335, %v1335
  %v2702 = vmul.f32 %v1336, %v1336
  %v2703 = vmul.f32 %v1337, %v1337
  %v2704 = vmul.f32 %v1338, %v1338
  %v2705 = vmul.f32 %v1339, %v1339
  %v2706 = vmul.f32 %v1340, %v1340
  %v2707 = vmul.f32 %v1341, %v1341
  %v2708 = vmul.f32 %v1342, %v1342
  %v2709 = vmul.f32 %v1343, %v1343
  %v2710 = vmul.f32 %v1344, %v1344
  %v2711 = vmul.f32 %v1345, %v1345
  %v2712 = vmul.f32 %v1346, %v1346
  %v2713 = vmul.f32 %v1347, %v1347
  %v2714 = vmul.f32 %v1348, %v1348
  %v2715 = vmul.f32 %v1349, %v1349
  %v2716 = vmul.f32 %v1350, %v1350
  %v2717 = vmul.f32 %v1351, %v1351
  %v2718 = vmul.f32 %v1352, %v1352
  %v2719 = vmul.f32 %v1353, %v1353
  %v2720 = vmul.f32 %v1354, %v1354
  %v2721 = vmul.f32 %v1355, %v1355
  %v2722 = vmul.f32 %v1356, %v1356
  %v2723 = vmul.f32 %v1357, %v1357
  %v2724 = vmul.f32 %v1358, %v1358
  %v2725 = vmul.f32 %v1359, %v1359
  %v2726 = vmul.f32 %v1360, %v1360
  %v2727 = vmul.f32 %v1361, %v1361
  %v2728 = vmul.f32 %v1362, %v1362
  %v2729 = vmul.f32 %v1363, %v1363
  %v2730 = vmul.f32 %v1364, %v1364
  %v2731 = vmul.f32 %v1365, %v1365
  %v2732 = vmul.f32 %v1366, %v1366
  %v2733 = vmul.f32 %v1367, %v1367
  %v2734 = vmul.f32 %v1368, %v1368
  %v2735 = vmul.f32 %v1369, %v1369
  %v2736 = vmul.f32 %v1370, %v1370
  %v2737 = vmul.f32 %v1371, %v1371
  %v2738 = vmul.f32 %v1372, %v1372
  %v2739 = vmul.f32 %v1373, %v1373
  %v2740 = vmul.f32 %v1374, %v1374
  %v2741 = vmul.f32 %v1375, %v1375
  %v2742 = vmul.f32 %v1376, %v1376
  %v2743 = vmul.f32 %v1377, %v1377
  %v2744 = vmul.f32 %v1378, %v1378
  %v2745 = vmul.f32 %v1379, %v1379
  %v2746 = vmul.f32 %v1380, %v1380
  %v2747 = vmul.f32 %v1381, %v1381
  %v2748 = vmul.f32 %v1382, %v1382
  %v2749 = vmul.f32 %v1383, %v1383
  %v2750 = vmul.f32 %v1384, %v1384
  %v2751 = vmul.f32 %v1385, %v1385
  %v2752 = vmul.f32 %v1386, %v1386
  %v2753 = vmul.f32 %v1387, %v1387
  %v2754 = vmul.f32 %v1388, %v1388
  %v2755 = vmul.f32 %v1389, %v1389
  %v2756 = vmul.f32 %v1390, %v1390
  %v2757 = vmul.f32 %v1391, %v1391
  %v2758 = vmul.f32 %v1392, %v1392
  %v2759 = vmul.f32 %v1393, %v1393
  %v2760 = vmul.f32 %v1394, %v1394
  %v2761 = vmul.f32 %v1395, %v1395
  %v2762 = vmul.f32 %v1396, %v1396
  %v2763 = vmul.f32 %v1397, %v1397
  %v2764 = vmul.f32 %v1398, %v1398
  %v2765 = vmul.f32 %v1399, %v1399
  %v2766 = vmul.f32 %v1400, %v1400
  %v2767 = vmul.f32 %v1401, %v1401
  %v2768 = vmul.f32 %v1402, %v1402
  %v2769 = vmul.f32 %v1403, %v1403
  %v2770 = vmul.f32 %v1404, %v1404
  %v2771 = vmul.f32 %v1405, %v1405
  %v2772 = vmul.f32 %v1406, %v1406
  %v2773 = vmul.f32 %v1407, %v1407
  %v2774 = vmul.f32 %v1408, %v1408
  %v2775 = vmul.f32 %v1409, %v1409
  %v2776 = vmul.f32 %v1410, %v1410
  %v2777 = vmul.f32 %v1411, %v1411
  %v2778 = vmul.f32 %v1412, %v1412
  %v2779 = vmul.f32 %v1413, %v1413
  %v2780 = vmul.f32 %v1414, %v1414
  %v2781 = vmul.f32 %v1415, %v1415
  %v2782 = vmul.f32 %v1416, %v1416
  %v2783 = vmul.f32 %v1417, %v1417
  %v2784 = vmul.f32 %v1418, %v1418
  %v2785 = vmul.f32 %v1419, %v1419
  %v2786 = vmul.f32 %v1420, %v1420
  %v2787 = vmul.f32 %v1421, %v1421
  %v2788 = vmul.f32 %v1422, %v1422
  %v2789 = vmul.f32 %v1423, %v1423
  %v2790 = vmul.f32 %v1424, %v1424
  %v2791 = vmul.f32 %v1425, %v1425
  %v2792 = vmul.f32 %v1426, %v1426
  %v2793 = vmul.f32 %v1427, %v1427
  %v2794 = vmul.f32 %v1428, %v1428
  %v2795 = vmul.f32 %v1429, %v1429
  %v2796 = vmul.f32 %v1430, %v1430
  %v2797 = vmul.f32 %v1431, %v1431
  %v2798 = vmul.f32 %v1432, %v1432
  %v2799 = vmul.f32 %v1433, %v1433
  %v2800 = vmul.f32 %v1434, %v1434
  %v2801 = vmul.f32 %v1435, %v1435
  %v2802 = vmul.f32 %v1436, %v1436
  %v2803 = vmul.f32 %v1437, %v1437
  %v2804 = vmul.f32 %v1438, %v1438
  %v2805 = vmul.f32 %v1439, %v1439
  %v2806 = vmul.f32 %v1440, %v1440
  %v2807 = vmul.f32 %v1441, %v1441
  %v2808 = vmul.f32 %v1442, %v1442
  %v2809 = vmul.f32 %v1443, %v1443
  %v2810 = vmul.f32 %v1444, %v1444
  %v2811 = vmul.f32 %v1445, %v1445
  %v2812 = vmul.f32 %v1446, %v1446
  %v2813 = vmul.f32 %v1447, %v1447
  %v2814 = vmul.f32 %v1448, %v1448
  %v2815 = vmul.f32 %v1449, %v1449
  %v2816 = vmul.f32 %v1450, %v1450
  %v2817 = vmul.f32 %v1451, %v1451
  %v2818 = vmul.f32 %v1452, %v1452
  %v2819 = vmul.f32 %v1453, %v1453
  %v2820 = vmul.f32 %v1454, %v1454
  %v2821 = vmul.f32 %v1455, %v1455
  %v2822 = vmul.f32 %v1456, %v1456
  %v2823 = vmul.f32 %v1457, %v1457
  %v2824 = vmul.f32 %v1458, %v1458
  %v2825 = vmul.f32 %v1459, %v1459
  %v2826 = vmul.f32 %v1460, %v1460
  %v2827 = vmul.f32 %v1461, %v1461
  %v2828 = vmul.f32 %v1462, %v1462
  %v2829 = vmul.f32 %v1463, %v1463
  %v2830 = vmul.f32 %v1464, %v1464
  %v2831 = vmul.f32 %v1465, %v1465
  %v2832 = vmul.f32 %v1466, %v1466
  %v2833 = vmul.f32 %v1467, %v1467
  %v2835 = vsel %vm1468, %v2642, 0
  %v2838 = vsel %vm1468, %v2643, 0
  %v2841 = vsel %vm1468, %v2644, 0
  %v2844 = vsel %vm1468, %v2645, 0
  %v2847 = vsel %vm1468, %v2646, 0
  %v2850 = vsel %vm1468, %v2647, 0
  %v2853 = vsel %vm1468, %v2648, 0
  %v2856 = vsel %vm1468, %v2649, 0
  %v2859 = vsel %vm1468, %v2650, 0
  %v2862 = vsel %vm1468, %v2651, 0
  %v2865 = vsel %vm1468, %v2652, 0
  %v2868 = vsel %vm1468, %v2653, 0
  %v2871 = vsel %vm1468, %v2654, 0
  %v2874 = vsel %vm1468, %v2655, 0
  %v2877 = vsel %vm1468, %v2656, 0
  %v2880 = vsel %vm1468, %v2657, 0
  %v2883 = vsel %vm1468, %v2658, 0
  %v2886 = vsel %vm1468, %v2659, 0
  %v2889 = vsel %vm1468, %v2660, 0
  %v2892 = vsel %vm1468, %v2661, 0
  %v2895 = vsel %vm1468, %v2662, 0
  %v2898 = vsel %vm1468, %v2663, 0
  %v2901 = vsel %vm1468, %v2664, 0
  %v2904 = vsel %vm1468, %v2665, 0
  %v2907 = vsel %vm1468, %v2666, 0
  %v2910 = vsel %vm1468, %v2667, 0
  %v2913 = vsel %vm1468, %v2668, 0
  %v2916 = vsel %vm1468, %v2669, 0
  %v2919 = vsel %vm1468, %v2670, 0
  %v2922 = vsel %vm1468, %v2671, 0
  %v2925 = vsel %vm1468, %v2672, 0
  %v2928 = vsel %vm1468, %v2673, 0
  %v2931 = vsel %vm1468, %v2674, 0
  %v2934 = vsel %vm1468, %v2675, 0
  %v2937 = vsel %vm1468, %v2676, 0
  %v2940 = vsel %vm1468, %v2677, 0
  %v2943 = vsel %vm1468, %v2678, 0
  %v2946 = vsel %vm1468, %v2679, 0
  %v2949 = vsel %vm1468, %v2680, 0
  %v2952 = vsel %vm1468, %v2681, 0
  %v2955 = vsel %vm1468, %v2682, 0
  %v2958 = vsel %vm1468, %v2683, 0
  %v2961 = vsel %vm1468, %v2684, 0
  %v2964 = vsel %vm1468, %v2685, 0
  %v2967 = vsel %vm1468, %v2686, 0
  %v2970 = vsel %vm1468, %v2687, 0
  %v2973 = vsel %vm1468, %v2688, 0
  %v2976 = vsel %vm1468, %v2689, 0
  %v2979 = vsel %vm1468, %v2690, 0
  %v2982 = vsel %vm1468, %v2691, 0
  %v2985 = vsel %vm1468, %v2692, 0
  %v2988 = vsel %vm1468, %v2693, 0
  %v2991 = vsel %vm1468, %v2694, 0
  %v2994 = vsel %vm1468, %v2695, 0
  %v2997 = vsel %vm1468, %v2696, 0
  %v3000 = vsel %vm1468, %v2697, 0
  %v3003 = vsel %vm1468, %v2698, 0
  %v3006 = vsel %vm1468, %v2699, 0
  %v3009 = vsel %vm1468, %v2700, 0
  %v3012 = vsel %vm1468, %v2701, 0
  %v3015 = vsel %vm1468, %v2702, 0
  %v3018 = vsel %vm1468, %v2703, 0
  %v3021 = vsel %vm1468, %v2704, 0
  %v3024 = vsel %vm1468, %v2705, 0
  %v3027 = vsel %vm1468, %v2706, 0
  %v3030 = vsel %vm1468, %v2707, 0
  %v3033 = vsel %vm1468, %v2708, 0
  %v3036 = vsel %vm1468, %v2709, 0
  %v3039 = vsel %vm1468, %v2710, 0
  %v3042 = vsel %vm1468, %v2711, 0
  %v3045 = vsel %vm1468, %v2712, 0
  %v3048 = vsel %vm1468, %v2713, 0
  %v3051 = vsel %vm1468, %v2714, 0
  %v3054 = vsel %vm1468, %v2715, 0
  %v3057 = vsel %vm1468, %v2716, 0
  %v3060 = vsel %vm1468, %v2717, 0
  %v3063 = vsel %vm1468, %v2718, 0
  %v3066 = vsel %vm1468, %v2719, 0
  %v3069 = vsel %vm1468, %v2720, 0
  %v3072 = vsel %vm1468, %v2721, 0
  %v3075 = vsel %vm1468, %v2722, 0
  %v3078 = vsel %vm1468, %v2723, 0
  %v3081 = vsel %vm1468, %v2724, 0
  %v3084 = vsel %vm1468, %v2725, 0
  %v3087 = vsel %vm1468, %v2726, 0
  %v3090 = vsel %vm1468, %v2727, 0
  %v3093 = vsel %vm1468, %v2728, 0
  %v3096 = vsel %vm1468, %v2729, 0
  %v3099 = vsel %vm1468, %v2730, 0
  %v3102 = vsel %vm1468, %v2731, 0
  %v3105 = vsel %vm1468, %v2732, 0
  %v3108 = vsel %vm1468, %v2733, 0
  %v3111 = vsel %vm1468, %v2734, 0
  %v3114 = vsel %vm1468, %v2735, 0
  %v3117 = vsel %vm1468, %v2736, 0
  %v3120 = vsel %vm1468, %v2737, 0
  %v3123 = vsel %vm1468, %v2738, 0
  %v3126 = vsel %vm1468, %v2739, 0
  %v3129 = vsel %vm1468, %v2740, 0
  %v3132 = vsel %vm1468, %v2741, 0
  %v3135 = vsel %vm1468, %v2742, 0
  %v3138 = vsel %vm1468, %v2743, 0
  %v3141 = vsel %vm1468, %v2744, 0
  %v3144 = vsel %vm1468, %v2745, 0
  %v3147 = vsel %vm1468, %v2746, 0
  %v3150 = vsel %vm1468, %v2747, 0
  %v3153 = vsel %vm1468, %v2748, 0
  %v3156 = vsel %vm1468, %v2749, 0
  %v3159 = vsel %vm1468, %v2750, 0
  %v3162 = vsel %vm1468, %v2751, 0
  %v3165 = vsel %vm1468, %v2752, 0
  %v3168 = vsel %vm1468, %v2753, 0
  %v3171 = vsel %vm1468, %v2754, 0
  %v3174 = vsel %vm1468, %v2755, 0
  %v3177 = vsel %vm1468, %v2756, 0
  %v3180 = vsel %vm1468, %v2757, 0
  %v3183 = vsel %vm1468, %v2758, 0
  %v3186 = vsel %vm1468, %v2759, 0
  %v3189 = vsel %vm1468, %v2760, 0
  %v3192 = vsel %vm1468, %v2761, 0
  %v3195 = vsel %vm1468, %v2762, 0
  %v3198 = vsel %vm1468, %v2763, 0
  %v3201 = vsel %vm1468, %v2764, 0
  %v3204 = vsel %vm1468, %v2765, 0
  %v3207 = vsel %vm1468, %v2766, 0
  %v3210 = vsel %vm1468, %v2767, 0
  %v3213 = vsel %vm1468, %v2768, 0
  %v3216 = vsel %vm1468, %v2769, 0
  %v3219 = vsel %vm1468, %v2770, 0
  %v3222 = vsel %vm1468, %v2771, 0
  %v3225 = vsel %vm1468, %v2772, 0
  %v3228 = vsel %vm1468, %v2773, 0
  %v3231 = vsel %vm1468, %v2774, 0
  %v3234 = vsel %vm1468, %v2775, 0
  %v3237 = vsel %vm1468, %v2776, 0
  %v3240 = vsel %vm1468, %v2777, 0
  %v3243 = vsel %vm1468, %v2778, 0
  %v3246 = vsel %vm1468, %v2779, 0
  %v3249 = vsel %vm1468, %v2780, 0
  %v3252 = vsel %vm1468, %v2781, 0
  %v3255 = vsel %vm1468, %v2782, 0
  %v3258 = vsel %vm1468, %v2783, 0
  %v3261 = vsel %vm1468, %v2784, 0
  %v3264 = vsel %vm1468, %v2785, 0
  %v3267 = vsel %vm1468, %v2786, 0
  %v3270 = vsel %vm1468, %v2787, 0
  %v3273 = vsel %vm1468, %v2788, 0
  %v3276 = vsel %vm1468, %v2789, 0
  %v3279 = vsel %vm1468, %v2790, 0
  %v3282 = vsel %vm1468, %v2791, 0
  %v3285 = vsel %vm1468, %v2792, 0
  %v3288 = vsel %vm1468, %v2793, 0
  %v3291 = vsel %vm1468, %v2794, 0
  %v3294 = vsel %vm1468, %v2795, 0
  %v3297 = vsel %vm1468, %v2796, 0
  %v3300 = vsel %vm1468, %v2797, 0
  %v3303 = vsel %vm1468, %v2798, 0
  %v3306 = vsel %vm1468, %v2799, 0
  %v3309 = vsel %vm1468, %v2800, 0
  %v3312 = vsel %vm1468, %v2801, 0
  %v3315 = vsel %vm1468, %v2802, 0
  %v3318 = vsel %vm1468, %v2803, 0
  %v3321 = vsel %vm1468, %v2804, 0
  %v3324 = vsel %vm1468, %v2805, 0
  %v3327 = vsel %vm1468, %v2806, 0
  %v3330 = vsel %vm1468, %v2807, 0
  %v3333 = vsel %vm1468, %v2808, 0
  %v3336 = vsel %vm1468, %v2809, 0
  %v3339 = vsel %vm1468, %v2810, 0
  %v3342 = vsel %vm1468, %v2811, 0
  %v3345 = vsel %vm1468, %v2812, 0
  %v3348 = vsel %vm1468, %v2813, 0
  %v3351 = vsel %vm1468, %v2814, 0
  %v3354 = vsel %vm1468, %v2815, 0
  %v3357 = vsel %vm1468, %v2816, 0
  %v3360 = vsel %vm1468, %v2817, 0
  %v3363 = vsel %vm1468, %v2818, 0
  %v3366 = vsel %vm1468, %v2819, 0
  %v3369 = vsel %vm1468, %v2820, 0
  %v3372 = vsel %vm1468, %v2821, 0
  %v3375 = vsel %vm1468, %v2822, 0
  %v3378 = vsel %vm1468, %v2823, 0
  %v3381 = vsel %vm1468, %v2824, 0
  %v3384 = vsel %vm1468, %v2825, 0
  %v3387 = vsel %vm1468, %v2826, 0
  %v3390 = vsel %vm1468, %v2827, 0
  %v3393 = vsel %vm1468, %v2828, 0
  %v3396 = vsel %vm1468, %v2829, 0
  %v3399 = vsel %vm1468, %v2830, 0
  %v3402 = vsel %vm1468, %v2831, 0
  %v3405 = vsel %vm1468, %v2832, 0
  %v3408 = vsel %vm1468, %v2833, 0
  %3410 = vmatpush.msra.mxu0 0.0
  %3411 = vmatpush.msra.mxu0 0.0
  %3412 = vmatpush.msra.mxu0 0.0
  %3413 = vmatpush.msra.mxu0 0.0
  %3414 = vmatpush.msra.mxu0 0.0
  %3415 = vmatpush.msra.mxu0 0.0
  %3416 = vmatpush.msra.mxu0 0.0
  %3417 = vmatpush.msra.mxu0 0.0
  %3418 = vmatpush.msra.mxu0 0.0
  %3419 = vmatpush.msra.mxu0 %v2047
  %3420 = vmatpush.msra.mxu0 1.0
  %3421 = vmatpush.msra.mxu0 1.0
  %3422 = vmatpush.msra.mxu0 1.0
  %3423 = vmatpush.msra.mxu0 1.0
  %3424 = vmatpush.msra.mxu0 1.0
  %3425 = vmatpush.msra.mxu0 1.0
  %3426 = vmatmul.f32.gmra.mxu0 %v2835
  %v3427 = vpop.f32.mrf.mxu0
  %v3428 = vadd.f32 0.0, %v3427
  %3429 = vmatmul.f32.gmra.mxu0 %v2838
  %v3430 = vpop.f32.mrf.mxu0
  %v3431 = vadd.f32 0.0, %v3430
  %3432 = vmatmul.f32.gmra.mxu0 %v2841
  %v3433 = vpop.f32.mrf.mxu0
  %v3434 = vadd.f32 0.0, %v3433
  %3435 = vmatmul.f32.gmra.mxu0 %v2844
  %v3436 = vpop.f32.mrf.mxu0
  %v3437 = vadd.f32 0.0, %v3436
  %3438 = vmatmul.f32.gmra.mxu0 %v2847
  %v3439 = vpop.f32.mrf.mxu0
  %v3440 = vadd.f32 0.0, %v3439
  %3441 = vmatmul.f32.gmra.mxu0 %v2850
  %v3442 = vpop.f32.mrf.mxu0
  %v3443 = vadd.f32 0.0, %v3442
  %3444 = vmatmul.f32.gmra.mxu0 %v2853
  %v3445 = vpop.f32.mrf.mxu0
  %v3446 = vadd.f32 0.0, %v3445
  %3447 = vmatmul.f32.gmra.mxu0 %v2856
  %v3448 = vpop.f32.mrf.mxu0
  %v3449 = vadd.f32 0.0, %v3448
  %3450 = vmatmul.f32.gmra.mxu0 %v2859
  %v3451 = vpop.f32.mrf.mxu0
  %v3452 = vadd.f32 0.0, %v3451
  %3453 = vmatmul.f32.gmra.mxu0 %v2862
  %v3454 = vpop.f32.mrf.mxu0
  %v3455 = vadd.f32 0.0, %v3454
  %3456 = vmatmul.f32.gmra.mxu0 %v2865
  %v3457 = vpop.f32.mrf.mxu0
  %v3458 = vadd.f32 0.0, %v3457
  %3459 = vmatmul.f32.gmra.mxu0 %v2868
  %v3460 = vpop.f32.mrf.mxu0
  %v3461 = vadd.f32 0.0, %v3460
  %3462 = vmatmul.f32.gmra.mxu0 %v2871
  %v3463 = vpop.f32.mrf.mxu0
  %v3464 = vadd.f32 0.0, %v3463
  %3465 = vmatmul.f32.gmra.mxu0 %v2874
  %v3466 = vpop.f32.mrf.mxu0
  %v3467 = vadd.f32 0.0, %v3466
  %3468 = vmatmul.f32.gmra.mxu0 %v2877
  %v3469 = vpop.f32.mrf.mxu0
  %v3470 = vadd.f32 0.0, %v3469
  %3471 = vmatmul.f32.gmra.mxu0 %v2880
  %v3472 = vpop.f32.mrf.mxu0
  %v3473 = vadd.f32 0.0, %v3472
  %3474 = vmatmul.f32.gmra.mxu0 %v2883
  %v3475 = vpop.f32.mrf.mxu0
  %v3476 = vadd.f32 0.0, %v3475
  %3477 = vmatmul.f32.gmra.mxu0 %v2886
  %v3478 = vpop.f32.mrf.mxu0
  %v3479 = vadd.f32 0.0, %v3478
  %3480 = vmatmul.f32.gmra.mxu0 %v2889
  %v3481 = vpop.f32.mrf.mxu0
  %v3482 = vadd.f32 0.0, %v3481
  %3483 = vmatmul.f32.gmra.mxu0 %v2892
  %v3484 = vpop.f32.mrf.mxu0
  %v3485 = vadd.f32 0.0, %v3484
  %3486 = vmatmul.f32.gmra.mxu0 %v2895
  %v3487 = vpop.f32.mrf.mxu0
  %v3488 = vadd.f32 0.0, %v3487
  %3489 = vmatmul.f32.gmra.mxu0 %v2898
  %v3490 = vpop.f32.mrf.mxu0
  %v3491 = vadd.f32 0.0, %v3490
  %3492 = vmatmul.f32.gmra.mxu0 %v2901
  %v3493 = vpop.f32.mrf.mxu0
  %v3494 = vadd.f32 0.0, %v3493
  %3495 = vmatmul.f32.gmra.mxu0 %v2904
  %v3496 = vpop.f32.mrf.mxu0
  %v3497 = vadd.f32 0.0, %v3496
  %3498 = vmatmul.f32.gmra.mxu0 %v2907
  %v3499 = vpop.f32.mrf.mxu0
  %v3500 = vadd.f32 0.0, %v3499
  %3501 = vmatmul.f32.gmra.mxu0 %v2910
  %v3502 = vpop.f32.mrf.mxu0
  %v3503 = vadd.f32 0.0, %v3502
  %3504 = vmatmul.f32.gmra.mxu0 %v2913
  %v3505 = vpop.f32.mrf.mxu0
  %v3506 = vadd.f32 0.0, %v3505
  %3507 = vmatmul.f32.gmra.mxu0 %v2916
  %v3508 = vpop.f32.mrf.mxu0
  %v3509 = vadd.f32 0.0, %v3508
  %3510 = vmatmul.f32.gmra.mxu0 %v2919
  %v3511 = vpop.f32.mrf.mxu0
  %v3512 = vadd.f32 0.0, %v3511
  %3513 = vmatmul.f32.gmra.mxu0 %v2922
  %v3514 = vpop.f32.mrf.mxu0
  %v3515 = vadd.f32 0.0, %v3514
  %3516 = vmatmul.f32.gmra.mxu0 %v2925
  %v3517 = vpop.f32.mrf.mxu0
  %v3518 = vadd.f32 0.0, %v3517
  %3519 = vmatmul.f32.gmra.mxu0 %v2928
  %v3520 = vpop.f32.mrf.mxu0
  %v3521 = vadd.f32 0.0, %v3520
  %3522 = vmatmul.f32.gmra.mxu0 %v2931
  %v3523 = vpop.f32.mrf.mxu0
  %v3524 = vadd.f32 0.0, %v3523
  %3525 = vmatmul.f32.gmra.mxu0 %v2934
  %v3526 = vpop.f32.mrf.mxu0
  %v3527 = vadd.f32 0.0, %v3526
  %3528 = vmatmul.f32.gmra.mxu0 %v2937
  %v3529 = vpop.f32.mrf.mxu0
  %v3530 = vadd.f32 0.0, %v3529
  %3531 = vmatmul.f32.gmra.mxu0 %v2940
  %v3532 = vpop.f32.mrf.mxu0
  %v3533 = vadd.f32 0.0, %v3532
  %3534 = vmatmul.f32.gmra.mxu0 %v2943
  %v3535 = vpop.f32.mrf.mxu0
  %v3536 = vadd.f32 0.0, %v3535
  %3537 = vmatmul.f32.gmra.mxu0 %v2946
  %v3538 = vpop.f32.mrf.mxu0
  %v3539 = vadd.f32 0.0, %v3538
  %3540 = vmatmul.f32.gmra.mxu0 %v2949
  %v3541 = vpop.f32.mrf.mxu0
  %v3542 = vadd.f32 0.0, %v3541
  %3543 = vmatmul.f32.gmra.mxu0 %v2952
  %v3544 = vpop.f32.mrf.mxu0
  %v3545 = vadd.f32 0.0, %v3544
  %3546 = vmatmul.f32.gmra.mxu0 %v2955
  %v3547 = vpop.f32.mrf.mxu0
  %v3548 = vadd.f32 0.0, %v3547
  %3549 = vmatmul.f32.gmra.mxu0 %v2958
  %v3550 = vpop.f32.mrf.mxu0
  %v3551 = vadd.f32 0.0, %v3550
  %3552 = vmatmul.f32.gmra.mxu0 %v2961
  %v3553 = vpop.f32.mrf.mxu0
  %v3554 = vadd.f32 0.0, %v3553
  %3555 = vmatmul.f32.gmra.mxu0 %v2964
  %v3556 = vpop.f32.mrf.mxu0
  %v3557 = vadd.f32 0.0, %v3556
  %3558 = vmatmul.f32.gmra.mxu0 %v2967
  %v3559 = vpop.f32.mrf.mxu0
  %v3560 = vadd.f32 0.0, %v3559
  %3561 = vmatmul.f32.gmra.mxu0 %v2970
  %v3562 = vpop.f32.mrf.mxu0
  %v3563 = vadd.f32 0.0, %v3562
  %3564 = vmatmul.f32.gmra.mxu0 %v2973
  %v3565 = vpop.f32.mrf.mxu0
  %v3566 = vadd.f32 0.0, %v3565
  %3567 = vmatmul.f32.gmra.mxu0 %v2976
  %v3568 = vpop.f32.mrf.mxu0
  %v3569 = vadd.f32 0.0, %v3568
  %3570 = vmatmul.f32.gmra.mxu0 %v2979
  %v3571 = vpop.f32.mrf.mxu0
  %v3572 = vadd.f32 0.0, %v3571
  %3573 = vmatmul.f32.gmra.mxu0 %v2982
  %v3574 = vpop.f32.mrf.mxu0
  %v3575 = vadd.f32 0.0, %v3574
  %3576 = vmatmul.f32.gmra.mxu0 %v2985
  %v3577 = vpop.f32.mrf.mxu0
  %v3578 = vadd.f32 0.0, %v3577
  %3579 = vmatmul.f32.gmra.mxu0 %v2988
  %v3580 = vpop.f32.mrf.mxu0
  %v3581 = vadd.f32 0.0, %v3580
  %3582 = vmatmul.f32.gmra.mxu0 %v2991
  %v3583 = vpop.f32.mrf.mxu0
  %v3584 = vadd.f32 0.0, %v3583
  %3585 = vmatmul.f32.gmra.mxu0 %v2994
  %v3586 = vpop.f32.mrf.mxu0
  %v3587 = vadd.f32 0.0, %v3586
  %3588 = vmatmul.f32.gmra.mxu0 %v2997
  %v3589 = vpop.f32.mrf.mxu0
  %v3590 = vadd.f32 0.0, %v3589
  %3591 = vmatmul.f32.gmra.mxu0 %v3000
  %v3592 = vpop.f32.mrf.mxu0
  %v3593 = vadd.f32 0.0, %v3592
  %3594 = vmatmul.f32.gmra.mxu0 %v3003
  %v3595 = vpop.f32.mrf.mxu0
  %v3596 = vadd.f32 0.0, %v3595
  %3597 = vmatmul.f32.gmra.mxu0 %v3006
  %v3598 = vpop.f32.mrf.mxu0
  %v3599 = vadd.f32 0.0, %v3598
  %3600 = vmatmul.f32.gmra.mxu0 %v3009
  %v3601 = vpop.f32.mrf.mxu0
  %v3602 = vadd.f32 0.0, %v3601
  %3603 = vmatmul.f32.gmra.mxu0 %v3012
  %v3604 = vpop.f32.mrf.mxu0
  %v3605 = vadd.f32 0.0, %v3604
  %3606 = vmatmul.f32.gmra.mxu0 %v3015
  %v3607 = vpop.f32.mrf.mxu0
  %v3608 = vadd.f32 0.0, %v3607
  %3609 = vmatmul.f32.gmra.mxu0 %v3018
  %v3610 = vpop.f32.mrf.mxu0
  %v3611 = vadd.f32 0.0, %v3610
  %3612 = vmatmul.f32.gmra.mxu0 %v3021
  %v3613 = vpop.f32.mrf.mxu0
  %v3614 = vadd.f32 0.0, %v3613
  %3615 = vmatmul.f32.gmra.mxu0 %v3024
  %v3616 = vpop.f32.mrf.mxu0
  %v3617 = vadd.f32 0.0, %v3616
  %3618 = vmatmul.f32.gmra.mxu0 %v3027
  %v3619 = vpop.f32.mrf.mxu0
  %v3620 = vadd.f32 0.0, %v3619
  %3621 = vmatmul.f32.gmra.mxu0 %v3030
  %v3622 = vpop.f32.mrf.mxu0
  %v3623 = vadd.f32 0.0, %v3622
  %3624 = vmatmul.f32.gmra.mxu0 %v3033
  %v3625 = vpop.f32.mrf.mxu0
  %v3626 = vadd.f32 0.0, %v3625
  %3627 = vmatmul.f32.gmra.mxu0 %v3036
  %v3628 = vpop.f32.mrf.mxu0
  %v3629 = vadd.f32 0.0, %v3628
  %3630 = vmatmul.f32.gmra.mxu0 %v3039
  %v3631 = vpop.f32.mrf.mxu0
  %v3632 = vadd.f32 0.0, %v3631
  %3633 = vmatmul.f32.gmra.mxu0 %v3042
  %v3634 = vpop.f32.mrf.mxu0
  %v3635 = vadd.f32 0.0, %v3634
  %3636 = vmatmul.f32.gmra.mxu0 %v3045
  %v3637 = vpop.f32.mrf.mxu0
  %v3638 = vadd.f32 0.0, %v3637
  %3639 = vmatmul.f32.gmra.mxu0 %v3048
  %v3640 = vpop.f32.mrf.mxu0
  %v3641 = vadd.f32 0.0, %v3640
  %3642 = vmatmul.f32.gmra.mxu0 %v3051
  %v3643 = vpop.f32.mrf.mxu0
  %v3644 = vadd.f32 0.0, %v3643
  %3645 = vmatmul.f32.gmra.mxu0 %v3054
  %v3646 = vpop.f32.mrf.mxu0
  %v3647 = vadd.f32 0.0, %v3646
  %3648 = vmatmul.f32.gmra.mxu0 %v3057
  %v3649 = vpop.f32.mrf.mxu0
  %v3650 = vadd.f32 0.0, %v3649
  %3651 = vmatmul.f32.gmra.mxu0 %v3060
  %v3652 = vpop.f32.mrf.mxu0
  %v3653 = vadd.f32 0.0, %v3652
  %3654 = vmatmul.f32.gmra.mxu0 %v3063
  %v3655 = vpop.f32.mrf.mxu0
  %v3656 = vadd.f32 0.0, %v3655
  %3657 = vmatmul.f32.gmra.mxu0 %v3066
  %v3658 = vpop.f32.mrf.mxu0
  %v3659 = vadd.f32 0.0, %v3658
  %3660 = vmatmul.f32.gmra.mxu0 %v3069
  %v3661 = vpop.f32.mrf.mxu0
  %v3662 = vadd.f32 0.0, %v3661
  %3663 = vmatmul.f32.gmra.mxu0 %v3072
  %v3664 = vpop.f32.mrf.mxu0
  %v3665 = vadd.f32 0.0, %v3664
  %3666 = vmatmul.f32.gmra.mxu0 %v3075
  %v3667 = vpop.f32.mrf.mxu0
  %v3668 = vadd.f32 0.0, %v3667
  %3669 = vmatmul.f32.gmra.mxu0 %v3078
  %v3670 = vpop.f32.mrf.mxu0
  %v3671 = vadd.f32 0.0, %v3670
  %3672 = vmatmul.f32.gmra.mxu0 %v3081
  %v3673 = vpop.f32.mrf.mxu0
  %v3674 = vadd.f32 0.0, %v3673
  %3675 = vmatmul.f32.gmra.mxu0 %v3084
  %v3676 = vpop.f32.mrf.mxu0
  %v3677 = vadd.f32 0.0, %v3676
  %3678 = vmatmul.f32.gmra.mxu0 %v3087
  %v3679 = vpop.f32.mrf.mxu0
  %v3680 = vadd.f32 0.0, %v3679
  %3681 = vmatmul.f32.gmra.mxu0 %v3090
  %v3682 = vpop.f32.mrf.mxu0
  %v3683 = vadd.f32 0.0, %v3682
  %3684 = vmatmul.f32.gmra.mxu0 %v3093
  %v3685 = vpop.f32.mrf.mxu0
  %v3686 = vadd.f32 0.0, %v3685
  %3687 = vmatmul.f32.gmra.mxu0 %v3096
  %v3688 = vpop.f32.mrf.mxu0
  %v3689 = vadd.f32 0.0, %v3688
  %3690 = vmatmul.f32.gmra.mxu0 %v3099
  %v3691 = vpop.f32.mrf.mxu0
  %v3692 = vadd.f32 0.0, %v3691
  %3693 = vmatmul.f32.gmra.mxu0 %v3102
  %v3694 = vpop.f32.mrf.mxu0
  %v3695 = vadd.f32 0.0, %v3694
  %3696 = vmatmul.f32.gmra.mxu0 %v3105
  %v3697 = vpop.f32.mrf.mxu0
  %v3698 = vadd.f32 0.0, %v3697
  %3699 = vmatmul.f32.gmra.mxu0 %v3108
  %v3700 = vpop.f32.mrf.mxu0
  %v3701 = vadd.f32 0.0, %v3700
  %3702 = vmatmul.f32.gmra.mxu0 %v3111
  %v3703 = vpop.f32.mrf.mxu0
  %v3704 = vadd.f32 0.0, %v3703
  %3705 = vmatmul.f32.gmra.mxu0 %v3114
  %v3706 = vpop.f32.mrf.mxu0
  %v3707 = vadd.f32 0.0, %v3706
  %3708 = vmatmul.f32.gmra.mxu0 %v3117
  %v3709 = vpop.f32.mrf.mxu0
  %v3710 = vadd.f32 0.0, %v3709
  %3711 = vmatmul.f32.gmra.mxu0 %v3120
  %v3712 = vpop.f32.mrf.mxu0
  %v3713 = vadd.f32 0.0, %v3712
  %3714 = vmatmul.f32.gmra.mxu0 %v3123
  %v3715 = vpop.f32.mrf.mxu0
  %v3716 = vadd.f32 0.0, %v3715
  %3717 = vmatmul.f32.gmra.mxu0 %v3126
  %v3718 = vpop.f32.mrf.mxu0
  %v3719 = vadd.f32 0.0, %v3718
  %3720 = vmatmul.f32.gmra.mxu0 %v3129
  %v3721 = vpop.f32.mrf.mxu0
  %v3722 = vadd.f32 0.0, %v3721
  %3723 = vmatmul.f32.gmra.mxu0 %v3132
  %v3724 = vpop.f32.mrf.mxu0
  %v3725 = vadd.f32 0.0, %v3724
  %3726 = vmatmul.f32.gmra.mxu0 %v3135
  %v3727 = vpop.f32.mrf.mxu0
  %v3728 = vadd.f32 0.0, %v3727
  %3729 = vmatmul.f32.gmra.mxu0 %v3138
  %v3730 = vpop.f32.mrf.mxu0
  %v3731 = vadd.f32 0.0, %v3730
  %3732 = vmatmul.f32.gmra.mxu0 %v3141
  %v3733 = vpop.f32.mrf.mxu0
  %v3734 = vadd.f32 0.0, %v3733
  %3735 = vmatmul.f32.gmra.mxu0 %v3144
  %v3736 = vpop.f32.mrf.mxu0
  %v3737 = vadd.f32 0.0, %v3736
  %3738 = vmatmul.f32.gmra.mxu0 %v3147
  %v3739 = vpop.f32.mrf.mxu0
  %v3740 = vadd.f32 0.0, %v3739
  %3741 = vmatmul.f32.gmra.mxu0 %v3150
  %v3742 = vpop.f32.mrf.mxu0
  %v3743 = vadd.f32 0.0, %v3742
  %3744 = vmatmul.f32.gmra.mxu0 %v3153
  %v3745 = vpop.f32.mrf.mxu0
  %v3746 = vadd.f32 0.0, %v3745
  %3747 = vmatmul.f32.gmra.mxu0 %v3156
  %v3748 = vpop.f32.mrf.mxu0
  %v3749 = vadd.f32 0.0, %v3748
  %3750 = vmatmul.f32.gmra.mxu0 %v3159
  %v3751 = vpop.f32.mrf.mxu0
  %v3752 = vadd.f32 0.0, %v3751
  %3753 = vmatmul.f32.gmra.mxu0 %v3162
  %v3754 = vpop.f32.mrf.mxu0
  %v3755 = vadd.f32 0.0, %v3754
  %3756 = vmatmul.f32.gmra.mxu0 %v3165
  %v3757 = vpop.f32.mrf.mxu0
  %v3758 = vadd.f32 0.0, %v3757
  %3759 = vmatmul.f32.gmra.mxu0 %v3168
  %v3760 = vpop.f32.mrf.mxu0
  %v3761 = vadd.f32 0.0, %v3760
  %3762 = vmatmul.f32.gmra.mxu0 %v3171
  %v3763 = vpop.f32.mrf.mxu0
  %v3764 = vadd.f32 0.0, %v3763
  %3765 = vmatmul.f32.gmra.mxu0 %v3174
  %v3766 = vpop.f32.mrf.mxu0
  %v3767 = vadd.f32 0.0, %v3766
  %3768 = vmatmul.f32.gmra.mxu0 %v3177
  %v3769 = vpop.f32.mrf.mxu0
  %v3770 = vadd.f32 0.0, %v3769
  %3771 = vmatmul.f32.gmra.mxu0 %v3180
  %v3772 = vpop.f32.mrf.mxu0
  %v3773 = vadd.f32 0.0, %v3772
  %3774 = vmatmul.f32.gmra.mxu0 %v3183
  %v3775 = vpop.f32.mrf.mxu0
  %v3776 = vadd.f32 0.0, %v3775
  %3777 = vmatmul.f32.gmra.mxu0 %v3186
  %v3778 = vpop.f32.mrf.mxu0
  %v3779 = vadd.f32 0.0, %v3778
  %3780 = vmatmul.f32.gmra.mxu0 %v3189
  %v3781 = vpop.f32.mrf.mxu0
  %v3782 = vadd.f32 0.0, %v3781
  %3783 = vmatmul.f32.gmra.mxu0 %v3192
  %v3784 = vpop.f32.mrf.mxu0
  %v3785 = vadd.f32 0.0, %v3784
  %3786 = vmatmul.f32.gmra.mxu0 %v3195
  %v3787 = vpop.f32.mrf.mxu0
  %v3788 = vadd.f32 0.0, %v3787
  %3789 = vmatmul.f32.gmra.mxu0 %v3198
  %v3790 = vpop.f32.mrf.mxu0
  %v3791 = vadd.f32 0.0, %v3790
  %3792 = vmatmul.f32.gmra.mxu0 %v3201
  %v3793 = vpop.f32.mrf.mxu0
  %v3794 = vadd.f32 0.0, %v3793
  %3795 = vmatmul.f32.gmra.mxu0 %v3204
  %v3796 = vpop.f32.mrf.mxu0
  %v3797 = vadd.f32 0.0, %v3796
  %3798 = vmatmul.f32.gmra.mxu0 %v3207
  %v3799 = vpop.f32.mrf.mxu0
  %v3800 = vadd.f32 0.0, %v3799
  %3801 = vmatmul.f32.gmra.mxu0 %v3210
  %v3802 = vpop.f32.mrf.mxu0
  %v3803 = vadd.f32 0.0, %v3802
  %3804 = vmatmul.f32.gmra.mxu0 %v3213
  %v3805 = vpop.f32.mrf.mxu0
  %v3806 = vadd.f32 0.0, %v3805
  %3807 = vmatmul.f32.gmra.mxu0 %v3216
  %v3808 = vpop.f32.mrf.mxu0
  %v3809 = vadd.f32 0.0, %v3808
  %3810 = vmatmul.f32.gmra.mxu0 %v3219
  %v3811 = vpop.f32.mrf.mxu0
  %v3812 = vadd.f32 0.0, %v3811
  %3813 = vmatmul.f32.gmra.mxu0 %v3222
  %v3814 = vpop.f32.mrf.mxu0
  %v3815 = vadd.f32 0.0, %v3814
  %3816 = vmatmul.f32.gmra.mxu0 %v3225
  %v3817 = vpop.f32.mrf.mxu0
  %v3818 = vadd.f32 0.0, %v3817
  %3819 = vmatmul.f32.gmra.mxu0 %v3228
  %v3820 = vpop.f32.mrf.mxu0
  %v3821 = vadd.f32 0.0, %v3820
  %3822 = vmatmul.f32.gmra.mxu0 %v3231
  %v3823 = vpop.f32.mrf.mxu0
  %v3824 = vadd.f32 0.0, %v3823
  %3825 = vmatmul.f32.gmra.mxu0 %v3234
  %v3826 = vpop.f32.mrf.mxu0
  %v3827 = vadd.f32 0.0, %v3826
  %3828 = vmatmul.f32.gmra.mxu0 %v3237
  %v3829 = vpop.f32.mrf.mxu0
  %v3830 = vadd.f32 0.0, %v3829
  %3831 = vmatmul.f32.gmra.mxu0 %v3240
  %v3832 = vpop.f32.mrf.mxu0
  %v3833 = vadd.f32 0.0, %v3832
  %3834 = vmatmul.f32.gmra.mxu0 %v3243
  %v3835 = vpop.f32.mrf.mxu0
  %v3836 = vadd.f32 0.0, %v3835
  %3837 = vmatmul.f32.gmra.mxu0 %v3246
  %v3838 = vpop.f32.mrf.mxu0
  %v3839 = vadd.f32 0.0, %v3838
  %3840 = vmatmul.f32.gmra.mxu0 %v3249
  %v3841 = vpop.f32.mrf.mxu0
  %v3842 = vadd.f32 0.0, %v3841
  %3843 = vmatmul.f32.gmra.mxu0 %v3252
  %v3844 = vpop.f32.mrf.mxu0
  %v3845 = vadd.f32 0.0, %v3844
  %3846 = vmatmul.f32.gmra.mxu0 %v3255
  %v3847 = vpop.f32.mrf.mxu0
  %v3848 = vadd.f32 0.0, %v3847
  %3849 = vmatmul.f32.gmra.mxu0 %v3258
  %v3850 = vpop.f32.mrf.mxu0
  %v3851 = vadd.f32 0.0, %v3850
  %3852 = vmatmul.f32.gmra.mxu0 %v3261
  %v3853 = vpop.f32.mrf.mxu0
  %v3854 = vadd.f32 0.0, %v3853
  %3855 = vmatmul.f32.gmra.mxu0 %v3264
  %v3856 = vpop.f32.mrf.mxu0
  %v3857 = vadd.f32 0.0, %v3856
  %3858 = vmatmul.f32.gmra.mxu0 %v3267
  %v3859 = vpop.f32.mrf.mxu0
  %v3860 = vadd.f32 0.0, %v3859
  %3861 = vmatmul.f32.gmra.mxu0 %v3270
  %v3862 = vpop.f32.mrf.mxu0
  %v3863 = vadd.f32 0.0, %v3862
  %3864 = vmatmul.f32.gmra.mxu0 %v3273
  %v3865 = vpop.f32.mrf.mxu0
  %v3866 = vadd.f32 0.0, %v3865
  %3867 = vmatmul.f32.gmra.mxu0 %v3276
  %v3868 = vpop.f32.mrf.mxu0
  %v3869 = vadd.f32 0.0, %v3868
  %3870 = vmatmul.f32.gmra.mxu0 %v3279
  %v3871 = vpop.f32.mrf.mxu0
  %v3872 = vadd.f32 0.0, %v3871
  %3873 = vmatmul.f32.gmra.mxu0 %v3282
  %v3874 = vpop.f32.mrf.mxu0
  %v3875 = vadd.f32 0.0, %v3874
  %3876 = vmatmul.f32.gmra.mxu0 %v3285
  %v3877 = vpop.f32.mrf.mxu0
  %v3878 = vadd.f32 0.0, %v3877
  %3879 = vmatmul.f32.gmra.mxu0 %v3288
  %v3880 = vpop.f32.mrf.mxu0
  %v3881 = vadd.f32 0.0, %v3880
  %3882 = vmatmul.f32.gmra.mxu0 %v3291
  %v3883 = vpop.f32.mrf.mxu0
  %v3884 = vadd.f32 0.0, %v3883
  %3885 = vmatmul.f32.gmra.mxu0 %v3294
  %v3886 = vpop.f32.mrf.mxu0
  %v3887 = vadd.f32 0.0, %v3886
  %3888 = vmatmul.f32.gmra.mxu0 %v3297
  %v3889 = vpop.f32.mrf.mxu0
  %v3890 = vadd.f32 0.0, %v3889
  %3891 = vmatmul.f32.gmra.mxu0 %v3300
  %v3892 = vpop.f32.mrf.mxu0
  %v3893 = vadd.f32 0.0, %v3892
  %3894 = vmatmul.f32.gmra.mxu0 %v3303
  %v3895 = vpop.f32.mrf.mxu0
  %v3896 = vadd.f32 0.0, %v3895
  %3897 = vmatmul.f32.gmra.mxu0 %v3306
  %v3898 = vpop.f32.mrf.mxu0
  %v3899 = vadd.f32 0.0, %v3898
  %3900 = vmatmul.f32.gmra.mxu0 %v3309
  %v3901 = vpop.f32.mrf.mxu0
  %v3902 = vadd.f32 0.0, %v3901
  %3903 = vmatmul.f32.gmra.mxu0 %v3312
  %v3904 = vpop.f32.mrf.mxu0
  %v3905 = vadd.f32 0.0, %v3904
  %3906 = vmatmul.f32.gmra.mxu0 %v3315
  %v3907 = vpop.f32.mrf.mxu0
  %v3908 = vadd.f32 0.0, %v3907
  %3909 = vmatmul.f32.gmra.mxu0 %v3318
  %v3910 = vpop.f32.mrf.mxu0
  %v3911 = vadd.f32 0.0, %v3910
  %3912 = vmatmul.f32.gmra.mxu0 %v3321
  %v3913 = vpop.f32.mrf.mxu0
  %v3914 = vadd.f32 0.0, %v3913
  %3915 = vmatmul.f32.gmra.mxu0 %v3324
  %v3916 = vpop.f32.mrf.mxu0
  %v3917 = vadd.f32 0.0, %v3916
  %3918 = vmatmul.f32.gmra.mxu0 %v3327
  %v3919 = vpop.f32.mrf.mxu0
  %v3920 = vadd.f32 0.0, %v3919
  %3921 = vmatmul.f32.gmra.mxu0 %v3330
  %v3922 = vpop.f32.mrf.mxu0
  %v3923 = vadd.f32 0.0, %v3922
  %3924 = vmatmul.f32.gmra.mxu0 %v3333
  %v3925 = vpop.f32.mrf.mxu0
  %v3926 = vadd.f32 0.0, %v3925
  %3927 = vmatmul.f32.gmra.mxu0 %v3336
  %v3928 = vpop.f32.mrf.mxu0
  %v3929 = vadd.f32 0.0, %v3928
  %3930 = vmatmul.f32.gmra.mxu0 %v3339
  %v3931 = vpop.f32.mrf.mxu0
  %v3932 = vadd.f32 0.0, %v3931
  %3933 = vmatmul.f32.gmra.mxu0 %v3342
  %v3934 = vpop.f32.mrf.mxu0
  %v3935 = vadd.f32 0.0, %v3934
  %3936 = vmatmul.f32.gmra.mxu0 %v3345
  %v3937 = vpop.f32.mrf.mxu0
  %v3938 = vadd.f32 0.0, %v3937
  %3939 = vmatmul.f32.gmra.mxu0 %v3348
  %v3940 = vpop.f32.mrf.mxu0
  %v3941 = vadd.f32 0.0, %v3940
  %3942 = vmatmul.f32.gmra.mxu0 %v3351
  %v3943 = vpop.f32.mrf.mxu0
  %v3944 = vadd.f32 0.0, %v3943
  %3945 = vmatmul.f32.gmra.mxu0 %v3354
  %v3946 = vpop.f32.mrf.mxu0
  %v3947 = vadd.f32 0.0, %v3946
  %3948 = vmatmul.f32.gmra.mxu0 %v3357
  %v3949 = vpop.f32.mrf.mxu0
  %v3950 = vadd.f32 0.0, %v3949
  %3951 = vmatmul.f32.gmra.mxu0 %v3360
  %v3952 = vpop.f32.mrf.mxu0
  %v3953 = vadd.f32 0.0, %v3952
  %3954 = vmatmul.f32.gmra.mxu0 %v3363
  %v3955 = vpop.f32.mrf.mxu0
  %v3956 = vadd.f32 0.0, %v3955
  %3957 = vmatmul.f32.gmra.mxu0 %v3366
  %v3958 = vpop.f32.mrf.mxu0
  %v3959 = vadd.f32 0.0, %v3958
  %3960 = vmatmul.f32.gmra.mxu0 %v3369
  %v3961 = vpop.f32.mrf.mxu0
  %v3962 = vadd.f32 0.0, %v3961
  %3963 = vmatmul.f32.gmra.mxu0 %v3372
  %v3964 = vpop.f32.mrf.mxu0
  %v3965 = vadd.f32 0.0, %v3964
  %3966 = vmatmul.f32.gmra.mxu0 %v3375
  %v3967 = vpop.f32.mrf.mxu0
  %v3968 = vadd.f32 0.0, %v3967
  %3969 = vmatmul.f32.gmra.mxu0 %v3378
  %v3970 = vpop.f32.mrf.mxu0
  %v3971 = vadd.f32 0.0, %v3970
  %3972 = vmatmul.f32.gmra.mxu0 %v3381
  %v3973 = vpop.f32.mrf.mxu0
  %v3974 = vadd.f32 0.0, %v3973
  %3975 = vmatmul.f32.gmra.mxu0 %v3384
  %v3976 = vpop.f32.mrf.mxu0
  %v3977 = vadd.f32 0.0, %v3976
  %3978 = vmatmul.f32.gmra.mxu0 %v3387
  %v3979 = vpop.f32.mrf.mxu0
  %v3980 = vadd.f32 0.0, %v3979
  %3981 = vmatmul.f32.gmra.mxu0 %v3390
  %v3982 = vpop.f32.mrf.mxu0
  %v3983 = vadd.f32 0.0, %v3982
  %3984 = vmatmul.f32.gmra.mxu0 %v3393
  %v3985 = vpop.f32.mrf.mxu0
  %v3986 = vadd.f32 0.0, %v3985
  %3987 = vmatmul.f32.gmra.mxu0 %v3396
  %v3988 = vpop.f32.mrf.mxu0
  %v3989 = vadd.f32 0.0, %v3988
  %3990 = vmatmul.f32.gmra.mxu0 %v3399
  %v3991 = vpop.f32.mrf.mxu0
  %v3992 = vadd.f32 0.0, %v3991
  %3993 = vmatmul.f32.gmra.mxu0 %v3402
  %v3994 = vpop.f32.mrf.mxu0
  %v3995 = vadd.f32 0.0, %v3994
  %3996 = vmatmul.f32.gmra.mxu0 %v3405
  %v3997 = vpop.f32.mrf.mxu0
  %v3998 = vadd.f32 0.0, %v3997
  %3999 = vmatmul.f32.gmra.mxu0 %v3408
  %v4000 = vpop.f32.mrf.mxu0
  %v4001 = vadd.f32 0.0, %v4000
  %4002 = vdwg.mxu0
  %v4003 = vmul.f32 %v2067, 0.020408163
  %v4004 = vmul.f32 %v2070, 0.020408163
  %v4005 = vmul.f32 %v2073, 0.020408163
  %v4006 = vmul.f32 %v2076, 0.020408163
  %v4007 = vmul.f32 %v2079, 0.020408163
  %v4008 = vmul.f32 %v2082, 0.020408163
  %v4009 = vmul.f32 %v2085, 0.020408163
  %v4010 = vmul.f32 %v2088, 0.020408163
  %v4011 = vmul.f32 %v2091, 0.020408163
  %v4012 = vmul.f32 %v2094, 0.020408163
  %v4013 = vmul.f32 %v2097, 0.020408163
  %v4014 = vmul.f32 %v2100, 0.020408163
  %v4015 = vmul.f32 %v2103, 0.020408163
  %v4016 = vmul.f32 %v2106, 0.020408163
  %v4017 = vmul.f32 %v2109, 0.020408163
  %v4018 = vmul.f32 %v2112, 0.020408163
  %v4019 = vmul.f32 %v2115, 0.020408163
  %v4020 = vmul.f32 %v2118, 0.020408163
  %v4021 = vmul.f32 %v2121, 0.020408163
  %v4022 = vmul.f32 %v2124, 0.020408163
  %v4023 = vmul.f32 %v2127, 0.020408163
  %v4024 = vmul.f32 %v2130, 0.020408163
  %v4025 = vmul.f32 %v2133, 0.020408163
  %v4026 = vmul.f32 %v2136, 0.020408163
  %v4027 = vmul.f32 %v2139, 0.020408163
  %v4028 = vmul.f32 %v2142, 0.020408163
  %v4029 = vmul.f32 %v2145, 0.020408163
  %v4030 = vmul.f32 %v2148, 0.020408163
  %v4031 = vmul.f32 %v2151, 0.020408163
  %v4032 = vmul.f32 %v2154, 0.020408163
  %v4033 = vmul.f32 %v2157, 0.020408163
  %v4034 = vmul.f32 %v2160, 0.020408163
  %v4035 = vmul.f32 %v2163, 0.020408163
  %v4036 = vmul.f32 %v2166, 0.020408163
  %v4037 = vmul.f32 %v2169, 0.020408163
  %v4038 = vmul.f32 %v2172, 0.020408163
  %v4039 = vmul.f32 %v2175, 0.020408163
  %v4040 = vmul.f32 %v2178, 0.020408163
  %v4041 = vmul.f32 %v2181, 0.020408163
  %v4042 = vmul.f32 %v2184, 0.020408163
  %v4043 = vmul.f32 %v2187, 0.020408163
  %v4044 = vmul.f32 %v2190, 0.020408163
  %v4045 = vmul.f32 %v2193, 0.020408163
  %v4046 = vmul.f32 %v2196, 0.020408163
  %v4047 = vmul.f32 %v2199, 0.020408163
  %v4048 = vmul.f32 %v2202, 0.020408163
  %v4049 = vmul.f32 %v2205, 0.020408163
  %v4050 = vmul.f32 %v2208, 0.020408163
  %v4051 = vmul.f32 %v2211, 0.020408163
  %v4052 = vmul.f32 %v2214, 0.020408163
  %v4053 = vmul.f32 %v2217, 0.020408163
  %v4054 = vmul.f32 %v2220, 0.020408163
  %v4055 = vmul.f32 %v2223, 0.020408163
  %v4056 = vmul.f32 %v2226, 0.020408163
  %v4057 = vmul.f32 %v2229, 0.020408163
  %v4058 = vmul.f32 %v2232, 0.020408163
  %v4059 = vmul.f32 %v2235, 0.020408163
  %v4060 = vmul.f32 %v2238, 0.020408163
  %v4061 = vmul.f32 %v2241, 0.020408163
  %v4062 = vmul.f32 %v2244, 0.020408163
  %v4063 = vmul.f32 %v2247, 0.020408163
  %v4064 = vmul.f32 %v2250, 0.020408163
  %v4065 = vmul.f32 %v2253, 0.020408163
  %v4066 = vmul.f32 %v2256, 0.020408163
  %v4067 = vmul.f32 %v2259, 0.020408163
  %v4068 = vmul.f32 %v2262, 0.020408163
  %v4069 = vmul.f32 %v2265, 0.020408163
  %v4070 = vmul.f32 %v2268, 0.020408163
  %v4071 = vmul.f32 %v2271, 0.020408163
  %v4072 = vmul.f32 %v2274, 0.020408163
  %v4073 = vmul.f32 %v2277, 0.020408163
  %v4074 = vmul.f32 %v2280, 0.020408163
  %v4075 = vmul.f32 %v2283, 0.020408163
  %v4076 = vmul.f32 %v2286, 0.020408163
  %v4077 = vmul.f32 %v2289, 0.020408163
  %v4078 = vmul.f32 %v2292, 0.020408163
  %v4079 = vmul.f32 %v2295, 0.020408163
  %v4080 = vmul.f32 %v2298, 0.020408163
  %v4081 = vmul.f32 %v2301, 0.020408163
  %v4082 = vmul.f32 %v2304, 0.020408163
  %v4083 = vmul.f32 %v2307, 0.020408163
  %v4084 = vmul.f32 %v2310, 0.020408163
  %v4085 = vmul.f32 %v2313, 0.020408163
  %v4086 = vmul.f32 %v2316, 0.020408163
  %v4087 = vmul.f32 %v2319, 0.020408163
  %v4088 = vmul.f32 %v2322, 0.020408163
  %v4089 = vmul.f32 %v2325, 0.020408163
  %v4090 = vmul.f32 %v2328, 0.020408163
  %v4091 = vmul.f32 %v2331, 0.020408163
  %v4092 = vmul.f32 %v2334, 0.020408163
  %v4093 = vmul.f32 %v2337, 0.020408163
  %v4094 = vmul.f32 %v2340, 0.020408163
  %v4095 = vmul.f32 %v2343, 0.020408163
  %v4096 = vmul.f32 %v2346, 0.020408163
  %v4097 = vmul.f32 %v2349, 0.020408163
  %v4098 = vmul.f32 %v2352, 0.020408163
  %v4099 = vmul.f32 %v2355, 0.020408163
  %v4100 = vmul.f32 %v2358, 0.020408163
  %v4101 = vmul.f32 %v2361, 0.020408163
  %v4102 = vmul.f32 %v2364, 0.020408163
  %v4103 = vmul.f32 %v2367, 0.020408163
  %v4104 = vmul.f32 %v2370, 0.020408163
  %v4105 = vmul.f32 %v2373, 0.020408163
  %v4106 = vmul.f32 %v2376, 0.020408163
  %v4107 = vmul.f32 %v2379, 0.020408163
  %v4108 = vmul.f32 %v2382, 0.020408163
  %v4109 = vmul.f32 %v2385, 0.020408163
  %v4110 = vmul.f32 %v2388, 0.020408163
  %v4111 = vmul.f32 %v2391, 0.020408163
  %v4112 = vmul.f32 %v2394, 0.020408163
  %v4113 = vmul.f32 %v2397, 0.020408163
  %v4114 = vmul.f32 %v2400, 0.020408163
  %v4115 = vmul.f32 %v2403, 0.020408163
  %v4116 = vmul.f32 %v2406, 0.020408163
  %v4117 = vmul.f32 %v2409, 0.020408163
  %v4118 = vmul.f32 %v2412, 0.020408163
  %v4119 = vmul.f32 %v2415, 0.020408163
  %v4120 = vmul.f32 %v2418, 0.020408163
  %v4121 = vmul.f32 %v2421, 0.020408163
  %v4122 = vmul.f32 %v2424, 0.020408163
  %v4123 = vmul.f32 %v2427, 0.020408163
  %v4124 = vmul.f32 %v2430, 0.020408163
  %v4125 = vmul.f32 %v2433, 0.020408163
  %v4126 = vmul.f32 %v2436, 0.020408163
  %v4127 = vmul.f32 %v2439, 0.020408163
  %v4128 = vmul.f32 %v2442, 0.020408163
  %v4129 = vmul.f32 %v2445, 0.020408163
  %v4130 = vmul.f32 %v2448, 0.020408163
  %v4131 = vmul.f32 %v2451, 0.020408163
  %v4132 = vmul.f32 %v2454, 0.020408163
  %v4133 = vmul.f32 %v2457, 0.020408163
  %v4134 = vmul.f32 %v2460, 0.020408163
  %v4135 = vmul.f32 %v2463, 0.020408163
  %v4136 = vmul.f32 %v2466, 0.020408163
  %v4137 = vmul.f32 %v2469, 0.020408163
  %v4138 = vmul.f32 %v2472, 0.020408163
  %v4139 = vmul.f32 %v2475, 0.020408163
  %v4140 = vmul.f32 %v2478, 0.020408163
  %v4141 = vmul.f32 %v2481, 0.020408163
  %v4142 = vmul.f32 %v2484, 0.020408163
  %v4143 = vmul.f32 %v2487, 0.020408163
  %v4144 = vmul.f32 %v2490, 0.020408163
  %v4145 = vmul.f32 %v2493, 0.020408163
  %v4146 = vmul.f32 %v2496, 0.020408163
  %v4147 = vmul.f32 %v2499, 0.020408163
  %v4148 = vmul.f32 %v2502, 0.020408163
  %v4149 = vmul.f32 %v2505, 0.020408163
  %v4150 = vmul.f32 %v2508, 0.020408163
  %v4151 = vmul.f32 %v2511, 0.020408163
  %v4152 = vmul.f32 %v2514, 0.020408163
  %v4153 = vmul.f32 %v2517, 0.020408163
  %v4154 = vmul.f32 %v2520, 0.020408163
  %v4155 = vmul.f32 %v2523, 0.020408163
  %v4156 = vmul.f32 %v2526, 0.020408163
  %v4157 = vmul.f32 %v2529, 0.020408163
  %v4158 = vmul.f32 %v2532, 0.020408163
  %v4159 = vmul.f32 %v2535, 0.020408163
  %v4160 = vmul.f32 %v2538, 0.020408163
  %v4161 = vmul.f32 %v2541, 0.020408163
  %v4162 = vmul.f32 %v2544, 0.020408163
  %v4163 = vmul.f32 %v2547, 0.020408163
  %v4164 = vmul.f32 %v2550, 0.020408163
  %v4165 = vmul.f32 %v2553, 0.020408163
  %v4166 = vmul.f32 %v2556, 0.020408163
  %v4167 = vmul.f32 %v2559, 0.020408163
  %v4168 = vmul.f32 %v2562, 0.020408163
  %v4169 = vmul.f32 %v2565, 0.020408163
  %v4170 = vmul.f32 %v2568, 0.020408163
  %v4171 = vmul.f32 %v2571, 0.020408163
  %v4172 = vmul.f32 %v2574, 0.020408163
  %v4173 = vmul.f32 %v2577, 0.020408163
  %v4174 = vmul.f32 %v2580, 0.020408163
  %v4175 = vmul.f32 %v2583, 0.020408163
  %v4176 = vmul.f32 %v2586, 0.020408163
  %v4177 = vmul.f32 %v2589, 0.020408163
  %v4178 = vmul.f32 %v2592, 0.020408163
  %v4179 = vmul.f32 %v2595, 0.020408163
  %v4180 = vmul.f32 %v2598, 0.020408163
  %v4181 = vmul.f32 %v2601, 0.020408163
  %v4182 = vmul.f32 %v2604, 0.020408163
  %v4183 = vmul.f32 %v2607, 0.020408163
  %v4184 = vmul.f32 %v2610, 0.020408163
  %v4185 = vmul.f32 %v2613, 0.020408163
  %v4186 = vmul.f32 %v2616, 0.020408163
  %v4187 = vmul.f32 %v2619, 0.020408163
  %v4188 = vmul.f32 %v2622, 0.020408163
  %v4189 = vmul.f32 %v2625, 0.020408163
  %v4190 = vmul.f32 %v2628, 0.020408163
  %v4191 = vmul.f32 %v2631, 0.020408163
  %v4192 = vmul.f32 %v2634, 0.020408163
  %v4193 = vmul.f32 %v2637, 0.020408163
  %v4194 = vmul.f32 %v2640, 0.020408163
  %v4195 = vmul.f32 %v3428, 0.020408163
  %v4196 = vmul.f32 %v3431, 0.020408163
  %v4197 = vmul.f32 %v3434, 0.020408163
  %v4198 = vmul.f32 %v3437, 0.020408163
  %v4199 = vmul.f32 %v3440, 0.020408163
  %v4200 = vmul.f32 %v3443, 0.020408163
  %v4201 = vmul.f32 %v3446, 0.020408163
  %v4202 = vmul.f32 %v3449, 0.020408163
  %v4203 = vmul.f32 %v3452, 0.020408163
  %v4204 = vmul.f32 %v3455, 0.020408163
  %v4205 = vmul.f32 %v3458, 0.020408163
  %v4206 = vmul.f32 %v3461, 0.020408163
  %v4207 = vmul.f32 %v3464, 0.020408163
  %v4208 = vmul.f32 %v3467, 0.020408163
  %v4209 = vmul.f32 %v3470, 0.020408163
  %v4210 = vmul.f32 %v3473, 0.020408163
  %v4211 = vmul.f32 %v3476, 0.020408163
  %v4212 = vmul.f32 %v3479, 0.020408163
  %v4213 = vmul.f32 %v3482, 0.020408163
  %v4214 = vmul.f32 %v3485, 0.020408163
  %v4215 = vmul.f32 %v3488, 0.020408163
  %v4216 = vmul.f32 %v3491, 0.020408163
  %v4217 = vmul.f32 %v3494, 0.020408163
  %v4218 = vmul.f32 %v3497, 0.020408163
  %v4219 = vmul.f32 %v3500, 0.020408163
  %v4220 = vmul.f32 %v3503, 0.020408163
  %v4221 = vmul.f32 %v3506, 0.020408163
  %v4222 = vmul.f32 %v3509, 0.020408163
  %v4223 = vmul.f32 %v3512, 0.020408163
  %v4224 = vmul.f32 %v3515, 0.020408163
  %v4225 = vmul.f32 %v3518, 0.020408163
  %v4226 = vmul.f32 %v3521, 0.020408163
  %v4227 = vmul.f32 %v3524, 0.020408163
  %v4228 = vmul.f32 %v3527, 0.020408163
  %v4229 = vmul.f32 %v3530, 0.020408163
  %v4230 = vmul.f32 %v3533, 0.020408163
  %v4231 = vmul.f32 %v3536, 0.020408163
  %v4232 = vmul.f32 %v3539, 0.020408163
  %v4233 = vmul.f32 %v3542, 0.020408163
  %v4234 = vmul.f32 %v3545, 0.020408163
  %v4235 = vmul.f32 %v3548, 0.020408163
  %v4236 = vmul.f32 %v3551, 0.020408163
  %v4237 = vmul.f32 %v3554, 0.020408163
  %v4238 = vmul.f32 %v3557, 0.020408163
  %v4239 = vmul.f32 %v3560, 0.020408163
  %v4240 = vmul.f32 %v3563, 0.020408163
  %v4241 = vmul.f32 %v3566, 0.020408163
  %v4242 = vmul.f32 %v3569, 0.020408163
  %v4243 = vmul.f32 %v3572, 0.020408163
  %v4244 = vmul.f32 %v3575, 0.020408163
  %v4245 = vmul.f32 %v3578, 0.020408163
  %v4246 = vmul.f32 %v3581, 0.020408163
  %v4247 = vmul.f32 %v3584, 0.020408163
  %v4248 = vmul.f32 %v3587, 0.020408163
  %v4249 = vmul.f32 %v3590, 0.020408163
  %v4250 = vmul.f32 %v3593, 0.020408163
  %v4251 = vmul.f32 %v3596, 0.020408163
  %v4252 = vmul.f32 %v3599, 0.020408163
  %v4253 = vmul.f32 %v3602, 0.020408163
  %v4254 = vmul.f32 %v3605, 0.020408163
  %v4255 = vmul.f32 %v3608, 0.020408163
  %v4256 = vmul.f32 %v3611, 0.020408163
  %v4257 = vmul.f32 %v3614, 0.020408163
  %v4258 = vmul.f32 %v3617, 0.020408163
  %v4259 = vmul.f32 %v3620, 0.020408163
  %v4260 = vmul.f32 %v3623, 0.020408163
  %v4261 = vmul.f32 %v3626, 0.020408163
  %v4262 = vmul.f32 %v3629, 0.020408163
  %v4263 = vmul.f32 %v3632, 0.020408163
  %v4264 = vmul.f32 %v3635, 0.020408163
  %v4265 = vmul.f32 %v3638, 0.020408163
  %v4266 = vmul.f32 %v3641, 0.020408163
  %v4267 = vmul.f32 %v3644, 0.020408163
  %v4268 = vmul.f32 %v3647, 0.020408163
  %v4269 = vmul.f32 %v3650, 0.020408163
  %v4270 = vmul.f32 %v3653, 0.020408163
  %v4271 = vmul.f32 %v3656, 0.020408163
  %v4272 = vmul.f32 %v3659, 0.020408163
  %v4273 = vmul.f32 %v3662, 0.020408163
  %v4274 = vmul.f32 %v3665, 0.020408163
  %v4275 = vmul.f32 %v3668, 0.020408163
  %v4276 = vmul.f32 %v3671, 0.020408163
  %v4277 = vmul.f32 %v3674, 0.020408163
  %v4278 = vmul.f32 %v3677, 0.020408163
  %v4279 = vmul.f32 %v3680, 0.020408163
  %v4280 = vmul.f32 %v3683, 0.020408163
  %v4281 = vmul.f32 %v3686, 0.020408163
  %v4282 = vmul.f32 %v3689, 0.020408163
  %v4283 = vmul.f32 %v3692, 0.020408163
  %v4284 = vmul.f32 %v3695, 0.020408163
  %v4285 = vmul.f32 %v3698, 0.020408163
  %v4286 = vmul.f32 %v3701, 0.020408163
  %v4287 = vmul.f32 %v3704, 0.020408163
  %v4288 = vmul.f32 %v3707, 0.020408163
  %v4289 = vmul.f32 %v3710, 0.020408163
  %v4290 = vmul.f32 %v3713, 0.020408163
  %v4291 = vmul.f32 %v3716, 0.020408163
  %v4292 = vmul.f32 %v3719, 0.020408163
  %v4293 = vmul.f32 %v3722, 0.020408163
  %v4294 = vmul.f32 %v3725, 0.020408163
  %v4295 = vmul.f32 %v3728, 0.020408163
  %v4296 = vmul.f32 %v3731, 0.020408163
  %v4297 = vmul.f32 %v3734, 0.020408163
  %v4298 = vmul.f32 %v3737, 0.020408163
  %v4299 = vmul.f32 %v3740, 0.020408163
  %v4300 = vmul.f32 %v3743, 0.020408163
  %v4301 = vmul.f32 %v3746, 0.020408163
  %v4302 = vmul.f32 %v3749, 0.020408163
  %v4303 = vmul.f32 %v3752, 0.020408163
  %v4304 = vmul.f32 %v3755, 0.020408163
  %v4305 = vmul.f32 %v3758, 0.020408163
  %v4306 = vmul.f32 %v3761, 0.020408163
  %v4307 = vmul.f32 %v3764, 0.020408163
  %v4308 = vmul.f32 %v3767, 0.020408163
  %v4309 = vmul.f32 %v3770, 0.020408163
  %v4310 = vmul.f32 %v3773, 0.020408163
  %v4311 = vmul.f32 %v3776, 0.020408163
  %v4312 = vmul.f32 %v3779, 0.020408163
  %v4313 = vmul.f32 %v3782, 0.020408163
  %v4314 = vmul.f32 %v3785, 0.020408163
  %v4315 = vmul.f32 %v3788, 0.020408163
  %v4316 = vmul.f32 %v3791, 0.020408163
  %v4317 = vmul.f32 %v3794, 0.020408163
  %v4318 = vmul.f32 %v3797, 0.020408163
  %v4319 = vmul.f32 %v3800, 0.020408163
  %v4320 = vmul.f32 %v3803, 0.020408163
  %v4321 = vmul.f32 %v3806, 0.020408163
  %v4322 = vmul.f32 %v3809, 0.020408163
  %v4323 = vmul.f32 %v3812, 0.020408163
  %v4324 = vmul.f32 %v3815, 0.020408163
  %v4325 = vmul.f32 %v3818, 0.020408163
  %v4326 = vmul.f32 %v3821, 0.020408163
  %v4327 = vmul.f32 %v3824, 0.020408163
  %v4328 = vmul.f32 %v3827, 0.020408163
  %v4329 = vmul.f32 %v3830, 0.020408163
  %v4330 = vmul.f32 %v3833, 0.020408163
  %v4331 = vmul.f32 %v3836, 0.020408163
  %v4332 = vmul.f32 %v3839, 0.020408163
  %v4333 = vmul.f32 %v3842, 0.020408163
  %v4334 = vmul.f32 %v3845, 0.020408163
  %v4335 = vmul.f32 %v3848, 0.020408163
  %v4336 = vmul.f32 %v3851, 0.020408163
  %v4337 = vmul.f32 %v3854, 0.020408163
  %v4338 = vmul.f32 %v3857, 0.020408163
  %v4339 = vmul.f32 %v3860, 0.020408163
  %v4340 = vmul.f32 %v3863, 0.020408163
  %v4341 = vmul.f32 %v3866, 0.020408163
  %v4342 = vmul.f32 %v3869, 0.020408163
  %v4343 = vmul.f32 %v3872, 0.020408163
  %v4344 = vmul.f32 %v3875, 0.020408163
  %v4345 = vmul.f32 %v3878, 0.020408163
  %v4346 = vmul.f32 %v3881, 0.020408163
  %v4347 = vmul.f32 %v3884, 0.020408163
  %v4348 = vmul.f32 %v3887, 0.020408163
  %v4349 = vmul.f32 %v3890, 0.020408163
  %v4350 = vmul.f32 %v3893, 0.020408163
  %v4351 = vmul.f32 %v3896, 0.020408163
  %v4352 = vmul.f32 %v3899, 0.020408163
  %v4353 = vmul.f32 %v3902, 0.020408163
  %v4354 = vmul.f32 %v3905, 0.020408163
  %v4355 = vmul.f32 %v3908, 0.020408163
  %v4356 = vmul.f32 %v3911, 0.020408163
  %v4357 = vmul.f32 %v3914, 0.020408163
  %v4358 = vmul.f32 %v3917, 0.020408163
  %v4359 = vmul.f32 %v3920, 0.020408163
  %v4360 = vmul.f32 %v3923, 0.020408163
  %v4361 = vmul.f32 %v3926, 0.020408163
  %v4362 = vmul.f32 %v3929, 0.020408163
  %v4363 = vmul.f32 %v3932, 0.020408163
  %v4364 = vmul.f32 %v3935, 0.020408163
  %v4365 = vmul.f32 %v3938, 0.020408163
  %v4366 = vmul.f32 %v3941, 0.020408163
  %v4367 = vmul.f32 %v3944, 0.020408163
  %v4368 = vmul.f32 %v3947, 0.020408163
  %v4369 = vmul.f32 %v3950, 0.020408163
  %v4370 = vmul.f32 %v3953, 0.020408163
  %v4371 = vmul.f32 %v3956, 0.020408163
  %v4372 = vmul.f32 %v3959, 0.020408163
  %v4373 = vmul.f32 %v3962, 0.020408163
  %v4374 = vmul.f32 %v3965, 0.020408163
  %v4375 = vmul.f32 %v3968, 0.020408163
  %v4376 = vmul.f32 %v3971, 0.020408163
  %v4377 = vmul.f32 %v3974, 0.020408163
  %v4378 = vmul.f32 %v3977, 0.020408163
  %v4379 = vmul.f32 %v3980, 0.020408163
  %v4380 = vmul.f32 %v3983, 0.020408163
  %v4381 = vmul.f32 %v3986, 0.020408163
  %v4382 = vmul.f32 %v3989, 0.020408163
  %v4383 = vmul.f32 %v3992, 0.020408163
  %v4384 = vmul.f32 %v3995, 0.020408163
  %v4385 = vmul.f32 %v3998, 0.020408163
  %v4386 = vmul.f32 %v4001, 0.020408163
  %v4387 = vmul.f32 %v4003, %v4003
  %v4388 = vmul.f32 %v4004, %v4004
  %v4389 = vmul.f32 %v4005, %v4005
  %v4390 = vmul.f32 %v4006, %v4006
  %v4391 = vmul.f32 %v4007, %v4007
  %v4392 = vmul.f32 %v4008, %v4008
  %v4393 = vmul.f32 %v4009, %v4009
  %v4394 = vmul.f32 %v4010, %v4010
  %v4395 = vmul.f32 %v4011, %v4011
  %v4396 = vmul.f32 %v4012, %v4012
  %v4397 = vmul.f32 %v4013, %v4013
  %v4398 = vmul.f32 %v4014, %v4014
  %v4399 = vmul.f32 %v4015, %v4015
  %v4400 = vmul.f32 %v4016, %v4016
  %v4401 = vmul.f32 %v4017, %v4017
  %v4402 = vmul.f32 %v4018, %v4018
  %v4403 = vmul.f32 %v4019, %v4019
  %v4404 = vmul.f32 %v4020, %v4020
  %v4405 = vmul.f32 %v4021, %v4021
  %v4406 = vmul.f32 %v4022, %v4022
  %v4407 = vmul.f32 %v4023, %v4023
  %v4408 = vmul.f32 %v4024, %v4024
  %v4409 = vmul.f32 %v4025, %v4025
  %v4410 = vmul.f32 %v4026, %v4026
  %v4411 = vmul.f32 %v4027, %v4027
  %v4412 = vmul.f32 %v4028, %v4028
  %v4413 = vmul.f32 %v4029, %v4029
  %v4414 = vmul.f32 %v4030, %v4030
  %v4415 = vmul.f32 %v4031, %v4031
  %v4416 = vmul.f32 %v4032, %v4032
  %v4417 = vmul.f32 %v4033, %v4033
  %v4418 = vmul.f32 %v4034, %v4034
  %v4419 = vmul.f32 %v4035, %v4035
  %v4420 = vmul.f32 %v4036, %v4036
  %v4421 = vmul.f32 %v4037, %v4037
  %v4422 = vmul.f32 %v4038, %v4038
  %v4423 = vmul.f32 %v4039, %v4039
  %v4424 = vmul.f32 %v4040, %v4040
  %v4425 = vmul.f32 %v4041, %v4041
  %v4426 = vmul.f32 %v4042, %v4042
  %v4427 = vmul.f32 %v4043, %v4043
  %v4428 = vmul.f32 %v4044, %v4044
  %v4429 = vmul.f32 %v4045, %v4045
  %v4430 = vmul.f32 %v4046, %v4046
  %v4431 = vmul.f32 %v4047, %v4047
  %v4432 = vmul.f32 %v4048, %v4048
  %v4433 = vmul.f32 %v4049, %v4049
  %v4434 = vmul.f32 %v4050, %v4050
  %v4435 = vmul.f32 %v4051, %v4051
  %v4436 = vmul.f32 %v4052, %v4052
  %v4437 = vmul.f32 %v4053, %v4053
  %v4438 = vmul.f32 %v4054, %v4054
  %v4439 = vmul.f32 %v4055, %v4055
  %v4440 = vmul.f32 %v4056, %v4056
  %v4441 = vmul.f32 %v4057, %v4057
  %v4442 = vmul.f32 %v4058, %v4058
  %v4443 = vmul.f32 %v4059, %v4059
  %v4444 = vmul.f32 %v4060, %v4060
  %v4445 = vmul.f32 %v4061, %v4061
  %v4446 = vmul.f32 %v4062, %v4062
  %v4447 = vmul.f32 %v4063, %v4063
  %v4448 = vmul.f32 %v4064, %v4064
  %v4449 = vmul.f32 %v4065, %v4065
  %v4450 = vmul.f32 %v4066, %v4066
  %v4451 = vmul.f32 %v4067, %v4067
  %v4452 = vmul.f32 %v4068, %v4068
  %v4453 = vmul.f32 %v4069, %v4069
  %v4454 = vmul.f32 %v4070, %v4070
  %v4455 = vmul.f32 %v4071, %v4071
  %v4456 = vmul.f32 %v4072, %v4072
  %v4457 = vmul.f32 %v4073, %v4073
  %v4458 = vmul.f32 %v4074, %v4074
  %v4459 = vmul.f32 %v4075, %v4075
  %v4460 = vmul.f32 %v4076, %v4076
  %v4461 = vmul.f32 %v4077, %v4077
  %v4462 = vmul.f32 %v4078, %v4078
  %v4463 = vmul.f32 %v4079, %v4079
  %v4464 = vmul.f32 %v4080, %v4080
  %v4465 = vmul.f32 %v4081, %v4081
  %v4466 = vmul.f32 %v4082, %v4082
  %v4467 = vmul.f32 %v4083, %v4083
  %v4468 = vmul.f32 %v4084, %v4084
  %v4469 = vmul.f32 %v4085, %v4085
  %v4470 = vmul.f32 %v4086, %v4086
  %v4471 = vmul.f32 %v4087, %v4087
  %v4472 = vmul.f32 %v4088, %v4088
  %v4473 = vmul.f32 %v4089, %v4089
  %v4474 = vmul.f32 %v4090, %v4090
  %v4475 = vmul.f32 %v4091, %v4091
  %v4476 = vmul.f32 %v4092, %v4092
  %v4477 = vmul.f32 %v4093, %v4093
  %v4478 = vmul.f32 %v4094, %v4094
  %v4479 = vmul.f32 %v4095, %v4095
  %v4480 = vmul.f32 %v4096, %v4096
  %v4481 = vmul.f32 %v4097, %v4097
  %v4482 = vmul.f32 %v4098, %v4098
  %v4483 = vmul.f32 %v4099, %v4099
  %v4484 = vmul.f32 %v4100, %v4100
  %v4485 = vmul.f32 %v4101, %v4101
  %v4486 = vmul.f32 %v4102, %v4102
  %v4487 = vmul.f32 %v4103, %v4103
  %v4488 = vmul.f32 %v4104, %v4104
  %v4489 = vmul.f32 %v4105, %v4105
  %v4490 = vmul.f32 %v4106, %v4106
  %v4491 = vmul.f32 %v4107, %v4107
  %v4492 = vmul.f32 %v4108, %v4108
  %v4493 = vmul.f32 %v4109, %v4109
  %v4494 = vmul.f32 %v4110, %v4110
  %v4495 = vmul.f32 %v4111, %v4111
  %v4496 = vmul.f32 %v4112, %v4112
  %v4497 = vmul.f32 %v4113, %v4113
  %v4498 = vmul.f32 %v4114, %v4114
  %v4499 = vmul.f32 %v4115, %v4115
  %v4500 = vmul.f32 %v4116, %v4116
  %v4501 = vmul.f32 %v4117, %v4117
  %v4502 = vmul.f32 %v4118, %v4118
  %v4503 = vmul.f32 %v4119, %v4119
  %v4504 = vmul.f32 %v4120, %v4120
  %v4505 = vmul.f32 %v4121, %v4121
  %v4506 = vmul.f32 %v4122, %v4122
  %v4507 = vmul.f32 %v4123, %v4123
  %v4508 = vmul.f32 %v4124, %v4124
  %v4509 = vmul.f32 %v4125, %v4125
  %v4510 = vmul.f32 %v4126, %v4126
  %v4511 = vmul.f32 %v4127, %v4127
  %v4512 = vmul.f32 %v4128, %v4128
  %v4513 = vmul.f32 %v4129, %v4129
  %v4514 = vmul.f32 %v4130, %v4130
  %v4515 = vmul.f32 %v4131, %v4131
  %v4516 = vmul.f32 %v4132, %v4132
  %v4517 = vmul.f32 %v4133, %v4133
  %v4518 = vmul.f32 %v4134, %v4134
  %v4519 = vmul.f32 %v4135, %v4135
  %v4520 = vmul.f32 %v4136, %v4136
  %v4521 = vmul.f32 %v4137, %v4137
  %v4522 = vmul.f32 %v4138, %v4138
  %v4523 = vmul.f32 %v4139, %v4139
  %v4524 = vmul.f32 %v4140, %v4140
  %v4525 = vmul.f32 %v4141, %v4141
  %v4526 = vmul.f32 %v4142, %v4142
  %v4527 = vmul.f32 %v4143, %v4143
  %v4528 = vmul.f32 %v4144, %v4144
  %v4529 = vmul.f32 %v4145, %v4145
  %v4530 = vmul.f32 %v4146, %v4146
  %v4531 = vmul.f32 %v4147, %v4147
  %v4532 = vmul.f32 %v4148, %v4148
  %v4533 = vmul.f32 %v4149, %v4149
  %v4534 = vmul.f32 %v4150, %v4150
  %v4535 = vmul.f32 %v4151, %v4151
  %v4536 = vmul.f32 %v4152, %v4152
  %v4537 = vmul.f32 %v4153, %v4153
  %v4538 = vmul.f32 %v4154, %v4154
  %v4539 = vmul.f32 %v4155, %v4155
  %v4540 = vmul.f32 %v4156, %v4156
  %v4541 = vmul.f32 %v4157, %v4157
  %v4542 = vmul.f32 %v4158, %v4158
  %v4543 = vmul.f32 %v4159, %v4159
  %v4544 = vmul.f32 %v4160, %v4160
  %v4545 = vmul.f32 %v4161, %v4161
  %v4546 = vmul.f32 %v4162, %v4162
  %v4547 = vmul.f32 %v4163, %v4163
  %v4548 = vmul.f32 %v4164, %v4164
  %v4549 = vmul.f32 %v4165, %v4165
  %v4550 = vmul.f32 %v4166, %v4166
  %v4551 = vmul.f32 %v4167, %v4167
  %v4552 = vmul.f32 %v4168, %v4168
  %v4553 = vmul.f32 %v4169, %v4169
  %v4554 = vmul.f32 %v4170, %v4170
  %v4555 = vmul.f32 %v4171, %v4171
  %v4556 = vmul.f32 %v4172, %v4172
  %v4557 = vmul.f32 %v4173, %v4173
  %v4558 = vmul.f32 %v4174, %v4174
  %v4559 = vmul.f32 %v4175, %v4175
  %v4560 = vmul.f32 %v4176, %v4176
  %v4561 = vmul.f32 %v4177, %v4177
  %v4562 = vmul.f32 %v4178, %v4178
  %v4563 = vmul.f32 %v4179, %v4179
  %v4564 = vmul.f32 %v4180, %v4180
  %v4565 = vmul.f32 %v4181, %v4181
  %v4566 = vmul.f32 %v4182, %v4182
  %v4567 = vmul.f32 %v4183, %v4183
  %v4568 = vmul.f32 %v4184, %v4184
  %v4569 = vmul.f32 %v4185, %v4185
  %v4570 = vmul.f32 %v4186, %v4186
  %v4571 = vmul.f32 %v4187, %v4187
  %v4572 = vmul.f32 %v4188, %v4188
  %v4573 = vmul.f32 %v4189, %v4189
  %v4574 = vmul.f32 %v4190, %v4190
  %v4575 = vmul.f32 %v4191, %v4191
  %v4576 = vmul.f32 %v4192, %v4192
  %v4577 = vmul.f32 %v4193, %v4193
  %v4578 = vmul.f32 %v4194, %v4194
  %v4579 = vsub.f32 %v4195, %v4387
  %v4580 = vsub.f32 %v4196, %v4388
  %v4581 = vsub.f32 %v4197, %v4389
  %v4582 = vsub.f32 %v4198, %v4390
  %v4583 = vsub.f32 %v4199, %v4391
  %v4584 = vsub.f32 %v4200, %v4392
  %v4585 = vsub.f32 %v4201, %v4393
  %v4586 = vsub.f32 %v4202, %v4394
  %v4587 = vsub.f32 %v4203, %v4395
  %v4588 = vsub.f32 %v4204, %v4396
  %v4589 = vsub.f32 %v4205, %v4397
  %v4590 = vsub.f32 %v4206, %v4398
  %v4591 = vsub.f32 %v4207, %v4399
  %v4592 = vsub.f32 %v4208, %v4400
  %v4593 = vsub.f32 %v4209, %v4401
  %v4594 = vsub.f32 %v4210, %v4402
  %v4595 = vsub.f32 %v4211, %v4403
  %v4596 = vsub.f32 %v4212, %v4404
  %v4597 = vsub.f32 %v4213, %v4405
  %v4598 = vsub.f32 %v4214, %v4406
  %v4599 = vsub.f32 %v4215, %v4407
  %v4600 = vsub.f32 %v4216, %v4408
  %v4601 = vsub.f32 %v4217, %v4409
  %v4602 = vsub.f32 %v4218, %v4410
  %v4603 = vsub.f32 %v4219, %v4411
  %v4604 = vsub.f32 %v4220, %v4412
  %v4605 = vsub.f32 %v4221, %v4413
  %v4606 = vsub.f32 %v4222, %v4414
  %v4607 = vsub.f32 %v4223, %v4415
  %v4608 = vsub.f32 %v4224, %v4416
  %v4609 = vsub.f32 %v4225, %v4417
  %v4610 = vsub.f32 %v4226, %v4418
  %v4611 = vsub.f32 %v4227, %v4419
  %v4612 = vsub.f32 %v4228, %v4420
  %v4613 = vsub.f32 %v4229, %v4421
  %v4614 = vsub.f32 %v4230, %v4422
  %v4615 = vsub.f32 %v4231, %v4423
  %v4616 = vsub.f32 %v4232, %v4424
  %v4617 = vsub.f32 %v4233, %v4425
  %v4618 = vsub.f32 %v4234, %v4426
  %v4619 = vsub.f32 %v4235, %v4427
  %v4620 = vsub.f32 %v4236, %v4428
  %v4621 = vsub.f32 %v4237, %v4429
  %v4622 = vsub.f32 %v4238, %v4430
  %v4623 = vsub.f32 %v4239, %v4431
  %v4624 = vsub.f32 %v4240, %v4432
  %v4625 = vsub.f32 %v4241, %v4433
  %v4626 = vsub.f32 %v4242, %v4434
  %v4627 = vsub.f32 %v4243, %v4435
  %v4628 = vsub.f32 %v4244, %v4436
  %v4629 = vsub.f32 %v4245, %v4437
  %v4630 = vsub.f32 %v4246, %v4438
  %v4631 = vsub.f32 %v4247, %v4439
  %v4632 = vsub.f32 %v4248, %v4440
  %v4633 = vsub.f32 %v4249, %v4441
  %v4634 = vsub.f32 %v4250, %v4442
  %v4635 = vsub.f32 %v4251, %v4443
  %v4636 = vsub.f32 %v4252, %v4444
  %v4637 = vsub.f32 %v4253, %v4445
  %v4638 = vsub.f32 %v4254, %v4446
  %v4639 = vsub.f32 %v4255, %v4447
  %v4640 = vsub.f32 %v4256, %v4448
  %v4641 = vsub.f32 %v4257, %v4449
  %v4642 = vsub.f32 %v4258, %v4450
  %v4643 = vsub.f32 %v4259, %v4451
  %v4644 = vsub.f32 %v4260, %v4452
  %v4645 = vsub.f32 %v4261, %v4453
  %v4646 = vsub.f32 %v4262, %v4454
  %v4647 = vsub.f32 %v4263, %v4455
  %v4648 = vsub.f32 %v4264, %v4456
  %v4649 = vsub.f32 %v4265, %v4457
  %v4650 = vsub.f32 %v4266, %v4458
  %v4651 = vsub.f32 %v4267, %v4459
  %v4652 = vsub.f32 %v4268, %v4460
  %v4653 = vsub.f32 %v4269, %v4461
  %v4654 = vsub.f32 %v4270, %v4462
  %v4655 = vsub.f32 %v4271, %v4463
  %v4656 = vsub.f32 %v4272, %v4464
  %v4657 = vsub.f32 %v4273, %v4465
  %v4658 = vsub.f32 %v4274, %v4466
  %v4659 = vsub.f32 %v4275, %v4467
  %v4660 = vsub.f32 %v4276, %v4468
  %v4661 = vsub.f32 %v4277, %v4469
  %v4662 = vsub.f32 %v4278, %v4470
  %v4663 = vsub.f32 %v4279, %v4471
  %v4664 = vsub.f32 %v4280, %v4472
  %v4665 = vsub.f32 %v4281, %v4473
  %v4666 = vsub.f32 %v4282, %v4474
  %v4667 = vsub.f32 %v4283, %v4475
  %v4668 = vsub.f32 %v4284, %v4476
  %v4669 = vsub.f32 %v4285, %v4477
  %v4670 = vsub.f32 %v4286, %v4478
  %v4671 = vsub.f32 %v4287, %v4479
  %v4672 = vsub.f32 %v4288, %v4480
  %v4673 = vsub.f32 %v4289, %v4481
  %v4674 = vsub.f32 %v4290, %v4482
  %v4675 = vsub.f32 %v4291, %v4483
  %v4676 = vsub.f32 %v4292, %v4484
  %v4677 = vsub.f32 %v4293, %v4485
  %v4678 = vsub.f32 %v4294, %v4486
  %v4679 = vsub.f32 %v4295, %v4487
  %v4680 = vsub.f32 %v4296, %v4488
  %v4681 = vsub.f32 %v4297, %v4489
  %v4682 = vsub.f32 %v4298, %v4490
  %v4683 = vsub.f32 %v4299, %v4491
  %v4684 = vsub.f32 %v4300, %v4492
  %v4685 = vsub.f32 %v4301, %v4493
  %v4686 = vsub.f32 %v4302, %v4494
  %v4687 = vsub.f32 %v4303, %v4495
  %v4688 = vsub.f32 %v4304, %v4496
  %v4689 = vsub.f32 %v4305, %v4497
  %v4690 = vsub.f32 %v4306, %v4498
  %v4691 = vsub.f32 %v4307, %v4499
  %v4692 = vsub.f32 %v4308, %v4500
  %v4693 = vsub.f32 %v4309, %v4501
  %v4694 = vsub.f32 %v4310, %v4502
  %v4695 = vsub.f32 %v4311, %v4503
  %v4696 = vsub.f32 %v4312, %v4504
  %v4697 = vsub.f32 %v4313, %v4505
  %v4698 = vsub.f32 %v4314, %v4506
  %v4699 = vsub.f32 %v4315, %v4507
  %v4700 = vsub.f32 %v4316, %v4508
  %v4701 = vsub.f32 %v4317, %v4509
  %v4702 = vsub.f32 %v4318, %v4510
  %v4703 = vsub.f32 %v4319, %v4511
  %v4704 = vsub.f32 %v4320, %v4512
  %v4705 = vsub.f32 %v4321, %v4513
  %v4706 = vsub.f32 %v4322, %v4514
  %v4707 = vsub.f32 %v4323, %v4515
  %v4708 = vsub.f32 %v4324, %v4516
  %v4709 = vsub.f32 %v4325, %v4517
  %v4710 = vsub.f32 %v4326, %v4518
  %v4711 = vsub.f32 %v4327, %v4519
  %v4712 = vsub.f32 %v4328, %v4520
  %v4713 = vsub.f32 %v4329, %v4521
  %v4714 = vsub.f32 %v4330, %v4522
  %v4715 = vsub.f32 %v4331, %v4523
  %v4716 = vsub.f32 %v4332, %v4524
  %v4717 = vsub.f32 %v4333, %v4525
  %v4718 = vsub.f32 %v4334, %v4526
  %v4719 = vsub.f32 %v4335, %v4527
  %v4720 = vsub.f32 %v4336, %v4528
  %v4721 = vsub.f32 %v4337, %v4529
  %v4722 = vsub.f32 %v4338, %v4530
  %v4723 = vsub.f32 %v4339, %v4531
  %v4724 = vsub.f32 %v4340, %v4532
  %v4725 = vsub.f32 %v4341, %v4533
  %v4726 = vsub.f32 %v4342, %v4534
  %v4727 = vsub.f32 %v4343, %v4535
  %v4728 = vsub.f32 %v4344, %v4536
  %v4729 = vsub.f32 %v4345, %v4537
  %v4730 = vsub.f32 %v4346, %v4538
  %v4731 = vsub.f32 %v4347, %v4539
  %v4732 = vsub.f32 %v4348, %v4540
  %v4733 = vsub.f32 %v4349, %v4541
  %v4734 = vsub.f32 %v4350, %v4542
  %v4735 = vsub.f32 %v4351, %v4543
  %v4736 = vsub.f32 %v4352, %v4544
  %v4737 = vsub.f32 %v4353, %v4545
  %v4738 = vsub.f32 %v4354, %v4546
  %v4739 = vsub.f32 %v4355, %v4547
  %v4740 = vsub.f32 %v4356, %v4548
  %v4741 = vsub.f32 %v4357, %v4549
  %v4742 = vsub.f32 %v4358, %v4550
  %v4743 = vsub.f32 %v4359, %v4551
  %v4744 = vsub.f32 %v4360, %v4552
  %v4745 = vsub.f32 %v4361, %v4553
  %v4746 = vsub.f32 %v4362, %v4554
  %v4747 = vsub.f32 %v4363, %v4555
  %v4748 = vsub.f32 %v4364, %v4556
  %v4749 = vsub.f32 %v4365, %v4557
  %v4750 = vsub.f32 %v4366, %v4558
  %v4751 = vsub.f32 %v4367, %v4559
  %v4752 = vsub.f32 %v4368, %v4560
  %v4753 = vsub.f32 %v4369, %v4561
  %v4754 = vsub.f32 %v4370, %v4562
  %v4755 = vsub.f32 %v4371, %v4563
  %v4756 = vsub.f32 %v4372, %v4564
  %v4757 = vsub.f32 %v4373, %v4565
  %v4758 = vsub.f32 %v4374, %v4566
  %v4759 = vsub.f32 %v4375, %v4567
  %v4760 = vsub.f32 %v4376, %v4568
  %v4761 = vsub.f32 %v4377, %v4569
  %v4762 = vsub.f32 %v4378, %v4570
  %v4763 = vsub.f32 %v4379, %v4571
  %v4764 = vsub.f32 %v4380, %v4572
  %v4765 = vsub.f32 %v4381, %v4573
  %v4766 = vsub.f32 %v4382, %v4574
  %v4767 = vsub.f32 %v4383, %v4575
  %v4768 = vsub.f32 %v4384, %v4576
  %v4769 = vsub.f32 %v4385, %v4577
  %v4770 = vsub.f32 %v4386, %v4578
  %v4771 = vmax.f32 %v4579, 0.0
  %v4772 = vmax.f32 %v4580, 0.0
  %v4773 = vmax.f32 %v4581, 0.0
  %v4774 = vmax.f32 %v4582, 0.0
  %v4775 = vmax.f32 %v4583, 0.0
  %v4776 = vmax.f32 %v4584, 0.0
  %v4777 = vmax.f32 %v4585, 0.0
  %v4778 = vmax.f32 %v4586, 0.0
  %v4779 = vmax.f32 %v4587, 0.0
  %v4780 = vmax.f32 %v4588, 0.0
  %v4781 = vmax.f32 %v4589, 0.0
  %v4782 = vmax.f32 %v4590, 0.0
  %v4783 = vmax.f32 %v4591, 0.0
  %v4784 = vmax.f32 %v4592, 0.0
  %v4785 = vmax.f32 %v4593, 0.0
  %v4786 = vmax.f32 %v4594, 0.0
  %v4787 = vmax.f32 %v4595, 0.0
  %v4788 = vmax.f32 %v4596, 0.0
  %v4789 = vmax.f32 %v4597, 0.0
  %v4790 = vmax.f32 %v4598, 0.0
  %v4791 = vmax.f32 %v4599, 0.0
  %v4792 = vmax.f32 %v4600, 0.0
  %v4793 = vmax.f32 %v4601, 0.0
  %v4794 = vmax.f32 %v4602, 0.0
  %v4795 = vmax.f32 %v4603, 0.0
  %v4796 = vmax.f32 %v4604, 0.0
  %v4797 = vmax.f32 %v4605, 0.0
  %v4798 = vmax.f32 %v4606, 0.0
  %v4799 = vmax.f32 %v4607, 0.0
  %v4800 = vmax.f32 %v4608, 0.0
  %v4801 = vmax.f32 %v4609, 0.0
  %v4802 = vmax.f32 %v4610, 0.0
  %v4803 = vmax.f32 %v4611, 0.0
  %v4804 = vmax.f32 %v4612, 0.0
  %v4805 = vmax.f32 %v4613, 0.0
  %v4806 = vmax.f32 %v4614, 0.0
  %v4807 = vmax.f32 %v4615, 0.0
  %v4808 = vmax.f32 %v4616, 0.0
  %v4809 = vmax.f32 %v4617, 0.0
  %v4810 = vmax.f32 %v4618, 0.0
  %v4811 = vmax.f32 %v4619, 0.0
  %v4812 = vmax.f32 %v4620, 0.0
  %v4813 = vmax.f32 %v4621, 0.0
  %v4814 = vmax.f32 %v4622, 0.0
  %v4815 = vmax.f32 %v4623, 0.0
  %v4816 = vmax.f32 %v4624, 0.0
  %v4817 = vmax.f32 %v4625, 0.0
  %v4818 = vmax.f32 %v4626, 0.0
  %v4819 = vmax.f32 %v4627, 0.0
  %v4820 = vmax.f32 %v4628, 0.0
  %v4821 = vmax.f32 %v4629, 0.0
  %v4822 = vmax.f32 %v4630, 0.0
  %v4823 = vmax.f32 %v4631, 0.0
  %v4824 = vmax.f32 %v4632, 0.0
  %v4825 = vmax.f32 %v4633, 0.0
  %v4826 = vmax.f32 %v4634, 0.0
  %v4827 = vmax.f32 %v4635, 0.0
  %v4828 = vmax.f32 %v4636, 0.0
  %v4829 = vmax.f32 %v4637, 0.0
  %v4830 = vmax.f32 %v4638, 0.0
  %v4831 = vmax.f32 %v4639, 0.0
  %v4832 = vmax.f32 %v4640, 0.0
  %v4833 = vmax.f32 %v4641, 0.0
  %v4834 = vmax.f32 %v4642, 0.0
  %v4835 = vmax.f32 %v4643, 0.0
  %v4836 = vmax.f32 %v4644, 0.0
  %v4837 = vmax.f32 %v4645, 0.0
  %v4838 = vmax.f32 %v4646, 0.0
  %v4839 = vmax.f32 %v4647, 0.0
  %v4840 = vmax.f32 %v4648, 0.0
  %v4841 = vmax.f32 %v4649, 0.0
  %v4842 = vmax.f32 %v4650, 0.0
  %v4843 = vmax.f32 %v4651, 0.0
  %v4844 = vmax.f32 %v4652, 0.0
  %v4845 = vmax.f32 %v4653, 0.0
  %v4846 = vmax.f32 %v4654, 0.0
  %v4847 = vmax.f32 %v4655, 0.0
  %v4848 = vmax.f32 %v4656, 0.0
  %v4849 = vmax.f32 %v4657, 0.0
  %v4850 = vmax.f32 %v4658, 0.0
  %v4851 = vmax.f32 %v4659, 0.0
  %v4852 = vmax.f32 %v4660, 0.0
  %v4853 = vmax.f32 %v4661, 0.0
  %v4854 = vmax.f32 %v4662, 0.0
  %v4855 = vmax.f32 %v4663, 0.0
  %v4856 = vmax.f32 %v4664, 0.0
  %v4857 = vmax.f32 %v4665, 0.0
  %v4858 = vmax.f32 %v4666, 0.0
  %v4859 = vmax.f32 %v4667, 0.0
  %v4860 = vmax.f32 %v4668, 0.0
  %v4861 = vmax.f32 %v4669, 0.0
  %v4862 = vmax.f32 %v4670, 0.0
  %v4863 = vmax.f32 %v4671, 0.0
  %v4864 = vmax.f32 %v4672, 0.0
  %v4865 = vmax.f32 %v4673, 0.0
  %v4866 = vmax.f32 %v4674, 0.0
  %v4867 = vmax.f32 %v4675, 0.0
  %v4868 = vmax.f32 %v4676, 0.0
  %v4869 = vmax.f32 %v4677, 0.0
  %v4870 = vmax.f32 %v4678, 0.0
  %v4871 = vmax.f32 %v4679, 0.0
  %v4872 = vmax.f32 %v4680, 0.0
  %v4873 = vmax.f32 %v4681, 0.0
  %v4874 = vmax.f32 %v4682, 0.0
  %v4875 = vmax.f32 %v4683, 0.0
  %v4876 = vmax.f32 %v4684, 0.0
  %v4877 = vmax.f32 %v4685, 0.0
  %v4878 = vmax.f32 %v4686, 0.0
  %v4879 = vmax.f32 %v4687, 0.0
  %v4880 = vmax.f32 %v4688, 0.0
  %v4881 = vmax.f32 %v4689, 0.0
  %v4882 = vmax.f32 %v4690, 0.0
  %v4883 = vmax.f32 %v4691, 0.0
  %v4884 = vmax.f32 %v4692, 0.0
  %v4885 = vmax.f32 %v4693, 0.0
  %v4886 = vmax.f32 %v4694, 0.0
  %v4887 = vmax.f32 %v4695, 0.0
  %v4888 = vmax.f32 %v4696, 0.0
  %v4889 = vmax.f32 %v4697, 0.0
  %v4890 = vmax.f32 %v4698, 0.0
  %v4891 = vmax.f32 %v4699, 0.0
  %v4892 = vmax.f32 %v4700, 0.0
  %v4893 = vmax.f32 %v4701, 0.0
  %v4894 = vmax.f32 %v4702, 0.0
  %v4895 = vmax.f32 %v4703, 0.0
  %v4896 = vmax.f32 %v4704, 0.0
  %v4897 = vmax.f32 %v4705, 0.0
  %v4898 = vmax.f32 %v4706, 0.0
  %v4899 = vmax.f32 %v4707, 0.0
  %v4900 = vmax.f32 %v4708, 0.0
  %v4901 = vmax.f32 %v4709, 0.0
  %v4902 = vmax.f32 %v4710, 0.0
  %v4903 = vmax.f32 %v4711, 0.0
  %v4904 = vmax.f32 %v4712, 0.0
  %v4905 = vmax.f32 %v4713, 0.0
  %v4906 = vmax.f32 %v4714, 0.0
  %v4907 = vmax.f32 %v4715, 0.0
  %v4908 = vmax.f32 %v4716, 0.0
  %v4909 = vmax.f32 %v4717, 0.0
  %v4910 = vmax.f32 %v4718, 0.0
  %v4911 = vmax.f32 %v4719, 0.0
  %v4912 = vmax.f32 %v4720, 0.0
  %v4913 = vmax.f32 %v4721, 0.0
  %v4914 = vmax.f32 %v4722, 0.0
  %v4915 = vmax.f32 %v4723, 0.0
  %v4916 = vmax.f32 %v4724, 0.0
  %v4917 = vmax.f32 %v4725, 0.0
  %v4918 = vmax.f32 %v4726, 0.0
  %v4919 = vmax.f32 %v4727, 0.0
  %v4920 = vmax.f32 %v4728, 0.0
  %v4921 = vmax.f32 %v4729, 0.0
  %v4922 = vmax.f32 %v4730, 0.0
  %v4923 = vmax.f32 %v4731, 0.0
  %v4924 = vmax.f32 %v4732, 0.0
  %v4925 = vmax.f32 %v4733, 0.0
  %v4926 = vmax.f32 %v4734, 0.0
  %v4927 = vmax.f32 %v4735, 0.0
  %v4928 = vmax.f32 %v4736, 0.0
  %v4929 = vmax.f32 %v4737, 0.0
  %v4930 = vmax.f32 %v4738, 0.0
  %v4931 = vmax.f32 %v4739, 0.0
  %v4932 = vmax.f32 %v4740, 0.0
  %v4933 = vmax.f32 %v4741, 0.0
  %v4934 = vmax.f32 %v4742, 0.0
  %v4935 = vmax.f32 %v4743, 0.0
  %v4936 = vmax.f32 %v4744, 0.0
  %v4937 = vmax.f32 %v4745, 0.0
  %v4938 = vmax.f32 %v4746, 0.0
  %v4939 = vmax.f32 %v4747, 0.0
  %v4940 = vmax.f32 %v4748, 0.0
  %v4941 = vmax.f32 %v4749, 0.0
  %v4942 = vmax.f32 %v4750, 0.0
  %v4943 = vmax.f32 %v4751, 0.0
  %v4944 = vmax.f32 %v4752, 0.0
  %v4945 = vmax.f32 %v4753, 0.0
  %v4946 = vmax.f32 %v4754, 0.0
  %v4947 = vmax.f32 %v4755, 0.0
  %v4948 = vmax.f32 %v4756, 0.0
  %v4949 = vmax.f32 %v4757, 0.0
  %v4950 = vmax.f32 %v4758, 0.0
  %v4951 = vmax.f32 %v4759, 0.0
  %v4952 = vmax.f32 %v4760, 0.0
  %v4953 = vmax.f32 %v4761, 0.0
  %v4954 = vmax.f32 %v4762, 0.0
  %v4955 = vmax.f32 %v4763, 0.0
  %v4956 = vmax.f32 %v4764, 0.0
  %v4957 = vmax.f32 %v4765, 0.0
  %v4958 = vmax.f32 %v4766, 0.0
  %v4959 = vmax.f32 %v4767, 0.0
  %v4960 = vmax.f32 %v4768, 0.0
  %v4961 = vmax.f32 %v4769, 0.0
  %v4962 = vmax.f32 %v4770, 0.0
  %v4963 = vadd.f32 %v4771, 0.001
  %v4964 = vadd.f32 %v4772, 0.001
  %v4965 = vadd.f32 %v4773, 0.001
  %v4966 = vadd.f32 %v4774, 0.001
  %v4967 = vadd.f32 %v4775, 0.001
  %v4968 = vadd.f32 %v4776, 0.001
  %v4969 = vadd.f32 %v4777, 0.001
  %v4970 = vadd.f32 %v4778, 0.001
  %v4971 = vadd.f32 %v4779, 0.001
  %v4972 = vadd.f32 %v4780, 0.001
  %v4973 = vadd.f32 %v4781, 0.001
  %v4974 = vadd.f32 %v4782, 0.001
  %v4975 = vadd.f32 %v4783, 0.001
  %v4976 = vadd.f32 %v4784, 0.001
  %v4977 = vadd.f32 %v4785, 0.001
  %v4978 = vadd.f32 %v4786, 0.001
  %v4979 = vadd.f32 %v4787, 0.001
  %v4980 = vadd.f32 %v4788, 0.001
  %v4981 = vadd.f32 %v4789, 0.001
  %v4982 = vadd.f32 %v4790, 0.001
  %v4983 = vadd.f32 %v4791, 0.001
  %v4984 = vadd.f32 %v4792, 0.001
  %v4985 = vadd.f32 %v4793, 0.001
  %v4986 = vadd.f32 %v4794, 0.001
  %v4987 = vadd.f32 %v4795, 0.001
  %v4988 = vadd.f32 %v4796, 0.001
  %v4989 = vadd.f32 %v4797, 0.001
  %v4990 = vadd.f32 %v4798, 0.001
  %v4991 = vadd.f32 %v4799, 0.001
  %v4992 = vadd.f32 %v4800, 0.001
  %v4993 = vadd.f32 %v4801, 0.001
  %v4994 = vadd.f32 %v4802, 0.001
  %v4995 = vadd.f32 %v4803, 0.001
  %v4996 = vadd.f32 %v4804, 0.001
  %v4997 = vadd.f32 %v4805, 0.001
  %v4998 = vadd.f32 %v4806, 0.001
  %v4999 = vadd.f32 %v4807, 0.001
  %v5000 = vadd.f32 %v4808, 0.001
  %v5001 = vadd.f32 %v4809, 0.001
  %v5002 = vadd.f32 %v4810, 0.001
  %v5003 = vadd.f32 %v4811, 0.001
  %v5004 = vadd.f32 %v4812, 0.001
  %v5005 = vadd.f32 %v4813, 0.001
  %v5006 = vadd.f32 %v4814, 0.001
  %v5007 = vadd.f32 %v4815, 0.001
  %v5008 = vadd.f32 %v4816, 0.001
  %v5009 = vadd.f32 %v4817, 0.001
  %v5010 = vadd.f32 %v4818, 0.001
  %v5011 = vadd.f32 %v4819, 0.001
  %v5012 = vadd.f32 %v4820, 0.001
  %v5013 = vadd.f32 %v4821, 0.001
  %v5014 = vadd.f32 %v4822, 0.001
  %v5015 = vadd.f32 %v4823, 0.001
  %v5016 = vadd.f32 %v4824, 0.001
  %v5017 = vadd.f32 %v4825, 0.001
  %v5018 = vadd.f32 %v4826, 0.001
  %v5019 = vadd.f32 %v4827, 0.001
  %v5020 = vadd.f32 %v4828, 0.001
  %v5021 = vadd.f32 %v4829, 0.001
  %v5022 = vadd.f32 %v4830, 0.001
  %v5023 = vadd.f32 %v4831, 0.001
  %v5024 = vadd.f32 %v4832, 0.001
  %v5025 = vadd.f32 %v4833, 0.001
  %v5026 = vadd.f32 %v4834, 0.001
  %v5027 = vadd.f32 %v4835, 0.001
  %v5028 = vadd.f32 %v4836, 0.001
  %v5029 = vadd.f32 %v4837, 0.001
  %v5030 = vadd.f32 %v4838, 0.001
  %v5031 = vadd.f32 %v4839, 0.001
  %v5032 = vadd.f32 %v4840, 0.001
  %v5033 = vadd.f32 %v4841, 0.001
  %v5034 = vadd.f32 %v4842, 0.001
  %v5035 = vadd.f32 %v4843, 0.001
  %v5036 = vadd.f32 %v4844, 0.001
  %v5037 = vadd.f32 %v4845, 0.001
  %v5038 = vadd.f32 %v4846, 0.001
  %v5039 = vadd.f32 %v4847, 0.001
  %v5040 = vadd.f32 %v4848, 0.001
  %v5041 = vadd.f32 %v4849, 0.001
  %v5042 = vadd.f32 %v4850, 0.001
  %v5043 = vadd.f32 %v4851, 0.001
  %v5044 = vadd.f32 %v4852, 0.001
  %v5045 = vadd.f32 %v4853, 0.001
  %v5046 = vadd.f32 %v4854, 0.001
  %v5047 = vadd.f32 %v4855, 0.001
  %v5048 = vadd.f32 %v4856, 0.001
  %v5049 = vadd.f32 %v4857, 0.001
  %v5050 = vadd.f32 %v4858, 0.001
  %v5051 = vadd.f32 %v4859, 0.001
  %v5052 = vadd.f32 %v4860, 0.001
  %v5053 = vadd.f32 %v4861, 0.001
  %v5054 = vadd.f32 %v4862, 0.001
  %v5055 = vadd.f32 %v4863, 0.001
  %v5056 = vadd.f32 %v4864, 0.001
  %v5057 = vadd.f32 %v4865, 0.001
  %v5058 = vadd.f32 %v4866, 0.001
  %v5059 = vadd.f32 %v4867, 0.001
  %v5060 = vadd.f32 %v4868, 0.001
  %v5061 = vadd.f32 %v4869, 0.001
  %v5062 = vadd.f32 %v4870, 0.001
  %v5063 = vadd.f32 %v4871, 0.001
  %v5064 = vadd.f32 %v4872, 0.001
  %v5065 = vadd.f32 %v4873, 0.001
  %v5066 = vadd.f32 %v4874, 0.001
  %v5067 = vadd.f32 %v4875, 0.001
  %v5068 = vadd.f32 %v4876, 0.001
  %v5069 = vadd.f32 %v4877, 0.001
  %v5070 = vadd.f32 %v4878, 0.001
  %v5071 = vadd.f32 %v4879, 0.001
  %v5072 = vadd.f32 %v4880, 0.001
  %v5073 = vadd.f32 %v4881, 0.001
  %v5074 = vadd.f32 %v4882, 0.001
  %v5075 = vadd.f32 %v4883, 0.001
  %v5076 = vadd.f32 %v4884, 0.001
  %v5077 = vadd.f32 %v4885, 0.001
  %v5078 = vadd.f32 %v4886, 0.001
  %v5079 = vadd.f32 %v4887, 0.001
  %v5080 = vadd.f32 %v4888, 0.001
  %v5081 = vadd.f32 %v4889, 0.001
  %v5082 = vadd.f32 %v4890, 0.001
  %v5083 = vadd.f32 %v4891, 0.001
  %v5084 = vadd.f32 %v4892, 0.001
  %v5085 = vadd.f32 %v4893, 0.001
  %v5086 = vadd.f32 %v4894, 0.001
  %v5087 = vadd.f32 %v4895, 0.001
  %v5088 = vadd.f32 %v4896, 0.001
  %v5089 = vadd.f32 %v4897, 0.001
  %v5090 = vadd.f32 %v4898, 0.001
  %v5091 = vadd.f32 %v4899, 0.001
  %v5092 = vadd.f32 %v4900, 0.001
  %v5093 = vadd.f32 %v4901, 0.001
  %v5094 = vadd.f32 %v4902, 0.001
  %v5095 = vadd.f32 %v4903, 0.001
  %v5096 = vadd.f32 %v4904, 0.001
  %v5097 = vadd.f32 %v4905, 0.001
  %v5098 = vadd.f32 %v4906, 0.001
  %v5099 = vadd.f32 %v4907, 0.001
  %v5100 = vadd.f32 %v4908, 0.001
  %v5101 = vadd.f32 %v4909, 0.001
  %v5102 = vadd.f32 %v4910, 0.001
  %v5103 = vadd.f32 %v4911, 0.001
  %v5104 = vadd.f32 %v4912, 0.001
  %v5105 = vadd.f32 %v4913, 0.001
  %v5106 = vadd.f32 %v4914, 0.001
  %v5107 = vadd.f32 %v4915, 0.001
  %v5108 = vadd.f32 %v4916, 0.001
  %v5109 = vadd.f32 %v4917, 0.001
  %v5110 = vadd.f32 %v4918, 0.001
  %v5111 = vadd.f32 %v4919, 0.001
  %v5112 = vadd.f32 %v4920, 0.001
  %v5113 = vadd.f32 %v4921, 0.001
  %v5114 = vadd.f32 %v4922, 0.001
  %v5115 = vadd.f32 %v4923, 0.001
  %v5116 = vadd.f32 %v4924, 0.001
  %v5117 = vadd.f32 %v4925, 0.001
  %v5118 = vadd.f32 %v4926, 0.001
  %v5119 = vadd.f32 %v4927, 0.001
  %v5120 = vadd.f32 %v4928, 0.001
  %v5121 = vadd.f32 %v4929, 0.001
  %v5122 = vadd.f32 %v4930, 0.001
  %v5123 = vadd.f32 %v4931, 0.001
  %v5124 = vadd.f32 %v4932, 0.001
  %v5125 = vadd.f32 %v4933, 0.001
  %v5126 = vadd.f32 %v4934, 0.001
  %v5127 = vadd.f32 %v4935, 0.001
  %v5128 = vadd.f32 %v4936, 0.001
  %v5129 = vadd.f32 %v4937, 0.001
  %v5130 = vadd.f32 %v4938, 0.001
  %v5131 = vadd.f32 %v4939, 0.001
  %v5132 = vadd.f32 %v4940, 0.001
  %v5133 = vadd.f32 %v4941, 0.001
  %v5134 = vadd.f32 %v4942, 0.001
  %v5135 = vadd.f32 %v4943, 0.001
  %v5136 = vadd.f32 %v4944, 0.001
  %v5137 = vadd.f32 %v4945, 0.001
  %v5138 = vadd.f32 %v4946, 0.001
  %v5139 = vadd.f32 %v4947, 0.001
  %v5140 = vadd.f32 %v4948, 0.001
  %v5141 = vadd.f32 %v4949, 0.001
  %v5142 = vadd.f32 %v4950, 0.001
  %v5143 = vadd.f32 %v4951, 0.001
  %v5144 = vadd.f32 %v4952, 0.001
  %v5145 = vadd.f32 %v4953, 0.001
  %v5146 = vadd.f32 %v4954, 0.001
  %v5147 = vadd.f32 %v4955, 0.001
  %v5148 = vadd.f32 %v4956, 0.001
  %v5149 = vadd.f32 %v4957, 0.001
  %v5150 = vadd.f32 %v4958, 0.001
  %v5151 = vadd.f32 %v4959, 0.001
  %v5152 = vadd.f32 %v4960, 0.001
  %v5153 = vadd.f32 %v4961, 0.001
  %v5154 = vadd.f32 %v4962, 0.001
  %v5155 = vrsqrt.pop %v4963
  %v5156 = vmul.f32 %v5155, %v4963
  %v5157 = vmul.f32 %v5156, %v5155
  %v5158 = vmul.f32 0.5, %v5157
  %v5159 = vsub.f32 1.5, %v5158
  %v5160 = vmul.f32 %v5155, %v5159
  %vm5161 = vweird.f32 %v4963
  %vm5162 = vweird.f32 %v5155
  %vm5163 = vmor %vm5161, %vm5162
  %v5164 = vsel %vm5163, %v5155, %v5160
  %v5165 = vrsqrt.pop %v4964
  %v5166 = vmul.f32 %v5165, %v4964
  %v5167 = vmul.f32 %v5166, %v5165
  %v5168 = vmul.f32 0.5, %v5167
  %v5169 = vsub.f32 1.5, %v5168
  %v5170 = vmul.f32 %v5165, %v5169
  %vm5171 = vweird.f32 %v4964
  %vm5172 = vweird.f32 %v5165
  %vm5173 = vmor %vm5171, %vm5172
  %v5174 = vsel %vm5173, %v5165, %v5170
  %v5175 = vrsqrt.pop %v4965
  %v5176 = vmul.f32 %v5175, %v4965
  %v5177 = vmul.f32 %v5176, %v5175
  %v5178 = vmul.f32 0.5, %v5177
  %v5179 = vsub.f32 1.5, %v5178
  %v5180 = vmul.f32 %v5175, %v5179
  %vm5181 = vweird.f32 %v4965
  %vm5182 = vweird.f32 %v5175
  %vm5183 = vmor %vm5181, %vm5182
  %v5184 = vsel %vm5183, %v5175, %v5180
  %v5185 = vrsqrt.pop %v4966
  %v5186 = vmul.f32 %v5185, %v4966
  %v5187 = vmul.f32 %v5186, %v5185
  %v5188 = vmul.f32 0.5, %v5187
  %v5189 = vsub.f32 1.5, %v5188
  %v5190 = vmul.f32 %v5185, %v5189
  %vm5191 = vweird.f32 %v4966
  %vm5192 = vweird.f32 %v5185
  %vm5193 = vmor %vm5191, %vm5192
  %v5194 = vsel %vm5193, %v5185, %v5190
  %v5195 = vrsqrt.pop %v4967
  %v5196 = vmul.f32 %v5195, %v4967
  %v5197 = vmul.f32 %v5196, %v5195
  %v5198 = vmul.f32 0.5, %v5197
  %v5199 = vsub.f32 1.5, %v5198
  %v5200 = vmul.f32 %v5195, %v5199
  %vm5201 = vweird.f32 %v4967
  %vm5202 = vweird.f32 %v5195
  %vm5203 = vmor %vm5201, %vm5202
  %v5204 = vsel %vm5203, %v5195, %v5200
  %v5205 = vrsqrt.pop %v4968
  %v5206 = vmul.f32 %v5205, %v4968
  %v5207 = vmul.f32 %v5206, %v5205
  %v5208 = vmul.f32 0.5, %v5207
  %v5209 = vsub.f32 1.5, %v5208
  %v5210 = vmul.f32 %v5205, %v5209
  %vm5211 = vweird.f32 %v4968
  %vm5212 = vweird.f32 %v5205
  %vm5213 = vmor %vm5211, %vm5212
  %v5214 = vsel %vm5213, %v5205, %v5210
  %v5215 = vrsqrt.pop %v4969
  %v5216 = vmul.f32 %v5215, %v4969
  %v5217 = vmul.f32 %v5216, %v5215
  %v5218 = vmul.f32 0.5, %v5217
  %v5219 = vsub.f32 1.5, %v5218
  %v5220 = vmul.f32 %v5215, %v5219
  %vm5221 = vweird.f32 %v4969
  %vm5222 = vweird.f32 %v5215
  %vm5223 = vmor %vm5221, %vm5222
  %v5224 = vsel %vm5223, %v5215, %v5220
  %v5225 = vrsqrt.pop %v4970
  %v5226 = vmul.f32 %v5225, %v4970
  %v5227 = vmul.f32 %v5226, %v5225
  %v5228 = vmul.f32 0.5, %v5227
  %v5229 = vsub.f32 1.5, %v5228
  %v5230 = vmul.f32 %v5225, %v5229
  %vm5231 = vweird.f32 %v4970
  %vm5232 = vweird.f32 %v5225
  %vm5233 = vmor %vm5231, %vm5232
  %v5234 = vsel %vm5233, %v5225, %v5230
  %v5235 = vrsqrt.pop %v4971
  %v5236 = vmul.f32 %v5235, %v4971
  %v5237 = vmul.f32 %v5236, %v5235
  %v5238 = vmul.f32 0.5, %v5237
  %v5239 = vsub.f32 1.5, %v5238
  %v5240 = vmul.f32 %v5235, %v5239
  %vm5241 = vweird.f32 %v4971
  %vm5242 = vweird.f32 %v5235
  %vm5243 = vmor %vm5241, %vm5242
  %v5244 = vsel %vm5243, %v5235, %v5240
  %v5245 = vrsqrt.pop %v4972
  %v5246 = vmul.f32 %v5245, %v4972
  %v5247 = vmul.f32 %v5246, %v5245
  %v5248 = vmul.f32 0.5, %v5247
  %v5249 = vsub.f32 1.5, %v5248
  %v5250 = vmul.f32 %v5245, %v5249
  %vm5251 = vweird.f32 %v4972
  %vm5252 = vweird.f32 %v5245
  %vm5253 = vmor %vm5251, %vm5252
  %v5254 = vsel %vm5253, %v5245, %v5250
  %v5255 = vrsqrt.pop %v4973
  %v5256 = vmul.f32 %v5255, %v4973
  %v5257 = vmul.f32 %v5256, %v5255
  %v5258 = vmul.f32 0.5, %v5257
  %v5259 = vsub.f32 1.5, %v5258
  %v5260 = vmul.f32 %v5255, %v5259
  %vm5261 = vweird.f32 %v4973
  %vm5262 = vweird.f32 %v5255
  %vm5263 = vmor %vm5261, %vm5262
  %v5264 = vsel %vm5263, %v5255, %v5260
  %v5265 = vrsqrt.pop %v4974
  %v5266 = vmul.f32 %v5265, %v4974
  %v5267 = vmul.f32 %v5266, %v5265
  %v5268 = vmul.f32 0.5, %v5267
  %v5269 = vsub.f32 1.5, %v5268
  %v5270 = vmul.f32 %v5265, %v5269
  %vm5271 = vweird.f32 %v4974
  %vm5272 = vweird.f32 %v5265
  %vm5273 = vmor %vm5271, %vm5272
  %v5274 = vsel %vm5273, %v5265, %v5270
  %v5275 = vrsqrt.pop %v4975
  %v5276 = vmul.f32 %v5275, %v4975
  %v5277 = vmul.f32 %v5276, %v5275
  %v5278 = vmul.f32 0.5, %v5277
  %v5279 = vsub.f32 1.5, %v5278
  %v5280 = vmul.f32 %v5275, %v5279
  %vm5281 = vweird.f32 %v4975
  %vm5282 = vweird.f32 %v5275
  %vm5283 = vmor %vm5281, %vm5282
  %v5284 = vsel %vm5283, %v5275, %v5280
  %v5285 = vrsqrt.pop %v4976
  %v5286 = vmul.f32 %v5285, %v4976
  %v5287 = vmul.f32 %v5286, %v5285
  %v5288 = vmul.f32 0.5, %v5287
  %v5289 = vsub.f32 1.5, %v5288
  %v5290 = vmul.f32 %v5285, %v5289
  %vm5291 = vweird.f32 %v4976
  %vm5292 = vweird.f32 %v5285
  %vm5293 = vmor %vm5291, %vm5292
  %v5294 = vsel %vm5293, %v5285, %v5290
  %v5295 = vrsqrt.pop %v4977
  %v5296 = vmul.f32 %v5295, %v4977
  %v5297 = vmul.f32 %v5296, %v5295
  %v5298 = vmul.f32 0.5, %v5297
  %v5299 = vsub.f32 1.5, %v5298
  %v5300 = vmul.f32 %v5295, %v5299
  %vm5301 = vweird.f32 %v4977
  %vm5302 = vweird.f32 %v5295
  %vm5303 = vmor %vm5301, %vm5302
  %v5304 = vsel %vm5303, %v5295, %v5300
  %v5305 = vrsqrt.pop %v4978
  %v5306 = vmul.f32 %v5305, %v4978
  %v5307 = vmul.f32 %v5306, %v5305
  %v5308 = vmul.f32 0.5, %v5307
  %v5309 = vsub.f32 1.5, %v5308
  %v5310 = vmul.f32 %v5305, %v5309
  %vm5311 = vweird.f32 %v4978
  %vm5312 = vweird.f32 %v5305
  %vm5313 = vmor %vm5311, %vm5312
  %v5314 = vsel %vm5313, %v5305, %v5310
  %v5315 = vrsqrt.pop %v4979
  %v5316 = vmul.f32 %v5315, %v4979
  %v5317 = vmul.f32 %v5316, %v5315
  %v5318 = vmul.f32 0.5, %v5317
  %v5319 = vsub.f32 1.5, %v5318
  %v5320 = vmul.f32 %v5315, %v5319
  %vm5321 = vweird.f32 %v4979
  %vm5322 = vweird.f32 %v5315
  %vm5323 = vmor %vm5321, %vm5322
  %v5324 = vsel %vm5323, %v5315, %v5320
  %v5325 = vrsqrt.pop %v4980
  %v5326 = vmul.f32 %v5325, %v4980
  %v5327 = vmul.f32 %v5326, %v5325
  %v5328 = vmul.f32 0.5, %v5327
  %v5329 = vsub.f32 1.5, %v5328
  %v5330 = vmul.f32 %v5325, %v5329
  %vm5331 = vweird.f32 %v4980
  %vm5332 = vweird.f32 %v5325
  %vm5333 = vmor %vm5331, %vm5332
  %v5334 = vsel %vm5333, %v5325, %v5330
  %v5335 = vrsqrt.pop %v4981
  %v5336 = vmul.f32 %v5335, %v4981
  %v5337 = vmul.f32 %v5336, %v5335
  %v5338 = vmul.f32 0.5, %v5337
  %v5339 = vsub.f32 1.5, %v5338
  %v5340 = vmul.f32 %v5335, %v5339
  %vm5341 = vweird.f32 %v4981
  %vm5342 = vweird.f32 %v5335
  %vm5343 = vmor %vm5341, %vm5342
  %v5344 = vsel %vm5343, %v5335, %v5340
  %v5345 = vrsqrt.pop %v4982
  %v5346 = vmul.f32 %v5345, %v4982
  %v5347 = vmul.f32 %v5346, %v5345
  %v5348 = vmul.f32 0.5, %v5347
  %v5349 = vsub.f32 1.5, %v5348
  %v5350 = vmul.f32 %v5345, %v5349
  %vm5351 = vweird.f32 %v4982
  %vm5352 = vweird.f32 %v5345
  %vm5353 = vmor %vm5351, %vm5352
  %v5354 = vsel %vm5353, %v5345, %v5350
  %v5355 = vrsqrt.pop %v4983
  %v5356 = vmul.f32 %v5355, %v4983
  %v5357 = vmul.f32 %v5356, %v5355
  %v5358 = vmul.f32 0.5, %v5357
  %v5359 = vsub.f32 1.5, %v5358
  %v5360 = vmul.f32 %v5355, %v5359
  %vm5361 = vweird.f32 %v4983
  %vm5362 = vweird.f32 %v5355
  %vm5363 = vmor %vm5361, %vm5362
  %v5364 = vsel %vm5363, %v5355, %v5360
  %v5365 = vrsqrt.pop %v4984
  %v5366 = vmul.f32 %v5365, %v4984
  %v5367 = vmul.f32 %v5366, %v5365
  %v5368 = vmul.f32 0.5, %v5367
  %v5369 = vsub.f32 1.5, %v5368
  %v5370 = vmul.f32 %v5365, %v5369
  %vm5371 = vweird.f32 %v4984
  %vm5372 = vweird.f32 %v5365
  %vm5373 = vmor %vm5371, %vm5372
  %v5374 = vsel %vm5373, %v5365, %v5370
  %v5375 = vrsqrt.pop %v4985
  %v5376 = vmul.f32 %v5375, %v4985
  %v5377 = vmul.f32 %v5376, %v5375
  %v5378 = vmul.f32 0.5, %v5377
  %v5379 = vsub.f32 1.5, %v5378
  %v5380 = vmul.f32 %v5375, %v5379
  %vm5381 = vweird.f32 %v4985
  %vm5382 = vweird.f32 %v5375
  %vm5383 = vmor %vm5381, %vm5382
  %v5384 = vsel %vm5383, %v5375, %v5380
  %v5385 = vrsqrt.pop %v4986
  %v5386 = vmul.f32 %v5385, %v4986
  %v5387 = vmul.f32 %v5386, %v5385
  %v5388 = vmul.f32 0.5, %v5387
  %v5389 = vsub.f32 1.5, %v5388
  %v5390 = vmul.f32 %v5385, %v5389
  %vm5391 = vweird.f32 %v4986
  %vm5392 = vweird.f32 %v5385
  %vm5393 = vmor %vm5391, %vm5392
  %v5394 = vsel %vm5393, %v5385, %v5390
  %v5395 = vrsqrt.pop %v4987
  %v5396 = vmul.f32 %v5395, %v4987
  %v5397 = vmul.f32 %v5396, %v5395
  %v5398 = vmul.f32 0.5, %v5397
  %v5399 = vsub.f32 1.5, %v5398
  %v5400 = vmul.f32 %v5395, %v5399
  %vm5401 = vweird.f32 %v4987
  %vm5402 = vweird.f32 %v5395
  %vm5403 = vmor %vm5401, %vm5402
  %v5404 = vsel %vm5403, %v5395, %v5400
  %v5405 = vrsqrt.pop %v4988
  %v5406 = vmul.f32 %v5405, %v4988
  %v5407 = vmul.f32 %v5406, %v5405
  %v5408 = vmul.f32 0.5, %v5407
  %v5409 = vsub.f32 1.5, %v5408
  %v5410 = vmul.f32 %v5405, %v5409
  %vm5411 = vweird.f32 %v4988
  %vm5412 = vweird.f32 %v5405
  %vm5413 = vmor %vm5411, %vm5412
  %v5414 = vsel %vm5413, %v5405, %v5410
  %v5415 = vrsqrt.pop %v4989
  %v5416 = vmul.f32 %v5415, %v4989
  %v5417 = vmul.f32 %v5416, %v5415
  %v5418 = vmul.f32 0.5, %v5417
  %v5419 = vsub.f32 1.5, %v5418
  %v5420 = vmul.f32 %v5415, %v5419
  %vm5421 = vweird.f32 %v4989
  %vm5422 = vweird.f32 %v5415
  %vm5423 = vmor %vm5421, %vm5422
  %v5424 = vsel %vm5423, %v5415, %v5420
  %v5425 = vrsqrt.pop %v4990
  %v5426 = vmul.f32 %v5425, %v4990
  %v5427 = vmul.f32 %v5426, %v5425
  %v5428 = vmul.f32 0.5, %v5427
  %v5429 = vsub.f32 1.5, %v5428
  %v5430 = vmul.f32 %v5425, %v5429
  %vm5431 = vweird.f32 %v4990
  %vm5432 = vweird.f32 %v5425
  %vm5433 = vmor %vm5431, %vm5432
  %v5434 = vsel %vm5433, %v5425, %v5430
  %v5435 = vrsqrt.pop %v4991
  %v5436 = vmul.f32 %v5435, %v4991
  %v5437 = vmul.f32 %v5436, %v5435
  %v5438 = vmul.f32 0.5, %v5437
  %v5439 = vsub.f32 1.5, %v5438
  %v5440 = vmul.f32 %v5435, %v5439
  %vm5441 = vweird.f32 %v4991
  %vm5442 = vweird.f32 %v5435
  %vm5443 = vmor %vm5441, %vm5442
  %v5444 = vsel %vm5443, %v5435, %v5440
  %v5445 = vrsqrt.pop %v4992
  %v5446 = vmul.f32 %v5445, %v4992
  %v5447 = vmul.f32 %v5446, %v5445
  %v5448 = vmul.f32 0.5, %v5447
  %v5449 = vsub.f32 1.5, %v5448
  %v5450 = vmul.f32 %v5445, %v5449
  %vm5451 = vweird.f32 %v4992
  %vm5452 = vweird.f32 %v5445
  %vm5453 = vmor %vm5451, %vm5452
  %v5454 = vsel %vm5453, %v5445, %v5450
  %v5455 = vrsqrt.pop %v4993
  %v5456 = vmul.f32 %v5455, %v4993
  %v5457 = vmul.f32 %v5456, %v5455
  %v5458 = vmul.f32 0.5, %v5457
  %v5459 = vsub.f32 1.5, %v5458
  %v5460 = vmul.f32 %v5455, %v5459
  %vm5461 = vweird.f32 %v4993
  %vm5462 = vweird.f32 %v5455
  %vm5463 = vmor %vm5461, %vm5462
  %v5464 = vsel %vm5463, %v5455, %v5460
  %v5465 = vrsqrt.pop %v4994
  %v5466 = vmul.f32 %v5465, %v4994
  %v5467 = vmul.f32 %v5466, %v5465
  %v5468 = vmul.f32 0.5, %v5467
  %v5469 = vsub.f32 1.5, %v5468
  %v5470 = vmul.f32 %v5465, %v5469
  %vm5471 = vweird.f32 %v4994
  %vm5472 = vweird.f32 %v5465
  %vm5473 = vmor %vm5471, %vm5472
  %v5474 = vsel %vm5473, %v5465, %v5470
  %v5475 = vrsqrt.pop %v4995
  %v5476 = vmul.f32 %v5475, %v4995
  %v5477 = vmul.f32 %v5476, %v5475
  %v5478 = vmul.f32 0.5, %v5477
  %v5479 = vsub.f32 1.5, %v5478
  %v5480 = vmul.f32 %v5475, %v5479
  %vm5481 = vweird.f32 %v4995
  %vm5482 = vweird.f32 %v5475
  %vm5483 = vmor %vm5481, %vm5482
  %v5484 = vsel %vm5483, %v5475, %v5480
  %v5485 = vrsqrt.pop %v4996
  %v5486 = vmul.f32 %v5485, %v4996
  %v5487 = vmul.f32 %v5486, %v5485
  %v5488 = vmul.f32 0.5, %v5487
  %v5489 = vsub.f32 1.5, %v5488
  %v5490 = vmul.f32 %v5485, %v5489
  %vm5491 = vweird.f32 %v4996
  %vm5492 = vweird.f32 %v5485
  %vm5493 = vmor %vm5491, %vm5492
  %v5494 = vsel %vm5493, %v5485, %v5490
  %v5495 = vrsqrt.pop %v4997
  %v5496 = vmul.f32 %v5495, %v4997
  %v5497 = vmul.f32 %v5496, %v5495
  %v5498 = vmul.f32 0.5, %v5497
  %v5499 = vsub.f32 1.5, %v5498
  %v5500 = vmul.f32 %v5495, %v5499
  %vm5501 = vweird.f32 %v4997
  %vm5502 = vweird.f32 %v5495
  %vm5503 = vmor %vm5501, %vm5502
  %v5504 = vsel %vm5503, %v5495, %v5500
  %v5505 = vrsqrt.pop %v4998
  %v5506 = vmul.f32 %v5505, %v4998
  %v5507 = vmul.f32 %v5506, %v5505
  %v5508 = vmul.f32 0.5, %v5507
  %v5509 = vsub.f32 1.5, %v5508
  %v5510 = vmul.f32 %v5505, %v5509
  %vm5511 = vweird.f32 %v4998
  %vm5512 = vweird.f32 %v5505
  %vm5513 = vmor %vm5511, %vm5512
  %v5514 = vsel %vm5513, %v5505, %v5510
  %v5515 = vrsqrt.pop %v4999
  %v5516 = vmul.f32 %v5515, %v4999
  %v5517 = vmul.f32 %v5516, %v5515
  %v5518 = vmul.f32 0.5, %v5517
  %v5519 = vsub.f32 1.5, %v5518
  %v5520 = vmul.f32 %v5515, %v5519
  %vm5521 = vweird.f32 %v4999
  %vm5522 = vweird.f32 %v5515
  %vm5523 = vmor %vm5521, %vm5522
  %v5524 = vsel %vm5523, %v5515, %v5520
  %v5525 = vrsqrt.pop %v5000
  %v5526 = vmul.f32 %v5525, %v5000
  %v5527 = vmul.f32 %v5526, %v5525
  %v5528 = vmul.f32 0.5, %v5527
  %v5529 = vsub.f32 1.5, %v5528
  %v5530 = vmul.f32 %v5525, %v5529
  %vm5531 = vweird.f32 %v5000
  %vm5532 = vweird.f32 %v5525
  %vm5533 = vmor %vm5531, %vm5532
  %v5534 = vsel %vm5533, %v5525, %v5530
  %v5535 = vrsqrt.pop %v5001
  %v5536 = vmul.f32 %v5535, %v5001
  %v5537 = vmul.f32 %v5536, %v5535
  %v5538 = vmul.f32 0.5, %v5537
  %v5539 = vsub.f32 1.5, %v5538
  %v5540 = vmul.f32 %v5535, %v5539
  %vm5541 = vweird.f32 %v5001
  %vm5542 = vweird.f32 %v5535
  %vm5543 = vmor %vm5541, %vm5542
  %v5544 = vsel %vm5543, %v5535, %v5540
  %v5545 = vrsqrt.pop %v5002
  %v5546 = vmul.f32 %v5545, %v5002
  %v5547 = vmul.f32 %v5546, %v5545
  %v5548 = vmul.f32 0.5, %v5547
  %v5549 = vsub.f32 1.5, %v5548
  %v5550 = vmul.f32 %v5545, %v5549
  %vm5551 = vweird.f32 %v5002
  %vm5552 = vweird.f32 %v5545
  %vm5553 = vmor %vm5551, %vm5552
  %v5554 = vsel %vm5553, %v5545, %v5550
  %v5555 = vrsqrt.pop %v5003
  %v5556 = vmul.f32 %v5555, %v5003
  %v5557 = vmul.f32 %v5556, %v5555
  %v5558 = vmul.f32 0.5, %v5557
  %v5559 = vsub.f32 1.5, %v5558
  %v5560 = vmul.f32 %v5555, %v5559
  %vm5561 = vweird.f32 %v5003
  %vm5562 = vweird.f32 %v5555
  %vm5563 = vmor %vm5561, %vm5562
  %v5564 = vsel %vm5563, %v5555, %v5560
  %v5565 = vrsqrt.pop %v5004
  %v5566 = vmul.f32 %v5565, %v5004
  %v5567 = vmul.f32 %v5566, %v5565
  %v5568 = vmul.f32 0.5, %v5567
  %v5569 = vsub.f32 1.5, %v5568
  %v5570 = vmul.f32 %v5565, %v5569
  %vm5571 = vweird.f32 %v5004
  %vm5572 = vweird.f32 %v5565
  %vm5573 = vmor %vm5571, %vm5572
  %v5574 = vsel %vm5573, %v5565, %v5570
  %v5575 = vrsqrt.pop %v5005
  %v5576 = vmul.f32 %v5575, %v5005
  %v5577 = vmul.f32 %v5576, %v5575
  %v5578 = vmul.f32 0.5, %v5577
  %v5579 = vsub.f32 1.5, %v5578
  %v5580 = vmul.f32 %v5575, %v5579
  %vm5581 = vweird.f32 %v5005
  %vm5582 = vweird.f32 %v5575
  %vm5583 = vmor %vm5581, %vm5582
  %v5584 = vsel %vm5583, %v5575, %v5580
  %v5585 = vrsqrt.pop %v5006
  %v5586 = vmul.f32 %v5585, %v5006
  %v5587 = vmul.f32 %v5586, %v5585
  %v5588 = vmul.f32 0.5, %v5587
  %v5589 = vsub.f32 1.5, %v5588
  %v5590 = vmul.f32 %v5585, %v5589
  %vm5591 = vweird.f32 %v5006
  %vm5592 = vweird.f32 %v5585
  %vm5593 = vmor %vm5591, %vm5592
  %v5594 = vsel %vm5593, %v5585, %v5590
  %v5595 = vrsqrt.pop %v5007
  %v5596 = vmul.f32 %v5595, %v5007
  %v5597 = vmul.f32 %v5596, %v5595
  %v5598 = vmul.f32 0.5, %v5597
  %v5599 = vsub.f32 1.5, %v5598
  %v5600 = vmul.f32 %v5595, %v5599
  %vm5601 = vweird.f32 %v5007
  %vm5602 = vweird.f32 %v5595
  %vm5603 = vmor %vm5601, %vm5602
  %v5604 = vsel %vm5603, %v5595, %v5600
  %v5605 = vrsqrt.pop %v5008
  %v5606 = vmul.f32 %v5605, %v5008
  %v5607 = vmul.f32 %v5606, %v5605
  %v5608 = vmul.f32 0.5, %v5607
  %v5609 = vsub.f32 1.5, %v5608
  %v5610 = vmul.f32 %v5605, %v5609
  %vm5611 = vweird.f32 %v5008
  %vm5612 = vweird.f32 %v5605
  %vm5613 = vmor %vm5611, %vm5612
  %v5614 = vsel %vm5613, %v5605, %v5610
  %v5615 = vrsqrt.pop %v5009
  %v5616 = vmul.f32 %v5615, %v5009
  %v5617 = vmul.f32 %v5616, %v5615
  %v5618 = vmul.f32 0.5, %v5617
  %v5619 = vsub.f32 1.5, %v5618
  %v5620 = vmul.f32 %v5615, %v5619
  %vm5621 = vweird.f32 %v5009
  %vm5622 = vweird.f32 %v5615
  %vm5623 = vmor %vm5621, %vm5622
  %v5624 = vsel %vm5623, %v5615, %v5620
  %v5625 = vrsqrt.pop %v5010
  %v5626 = vmul.f32 %v5625, %v5010
  %v5627 = vmul.f32 %v5626, %v5625
  %v5628 = vmul.f32 0.5, %v5627
  %v5629 = vsub.f32 1.5, %v5628
  %v5630 = vmul.f32 %v5625, %v5629
  %vm5631 = vweird.f32 %v5010
  %vm5632 = vweird.f32 %v5625
  %vm5633 = vmor %vm5631, %vm5632
  %v5634 = vsel %vm5633, %v5625, %v5630
  %v5635 = vrsqrt.pop %v5011
  %v5636 = vmul.f32 %v5635, %v5011
  %v5637 = vmul.f32 %v5636, %v5635
  %v5638 = vmul.f32 0.5, %v5637
  %v5639 = vsub.f32 1.5, %v5638
  %v5640 = vmul.f32 %v5635, %v5639
  %vm5641 = vweird.f32 %v5011
  %vm5642 = vweird.f32 %v5635
  %vm5643 = vmor %vm5641, %vm5642
  %v5644 = vsel %vm5643, %v5635, %v5640
  %v5645 = vrsqrt.pop %v5012
  %v5646 = vmul.f32 %v5645, %v5012
  %v5647 = vmul.f32 %v5646, %v5645
  %v5648 = vmul.f32 0.5, %v5647
  %v5649 = vsub.f32 1.5, %v5648
  %v5650 = vmul.f32 %v5645, %v5649
  %vm5651 = vweird.f32 %v5012
  %vm5652 = vweird.f32 %v5645
  %vm5653 = vmor %vm5651, %vm5652
  %v5654 = vsel %vm5653, %v5645, %v5650
  %v5655 = vrsqrt.pop %v5013
  %v5656 = vmul.f32 %v5655, %v5013
  %v5657 = vmul.f32 %v5656, %v5655
  %v5658 = vmul.f32 0.5, %v5657
  %v5659 = vsub.f32 1.5, %v5658
  %v5660 = vmul.f32 %v5655, %v5659
  %vm5661 = vweird.f32 %v5013
  %vm5662 = vweird.f32 %v5655
  %vm5663 = vmor %vm5661, %vm5662
  %v5664 = vsel %vm5663, %v5655, %v5660
  %v5665 = vrsqrt.pop %v5014
  %v5666 = vmul.f32 %v5665, %v5014
  %v5667 = vmul.f32 %v5666, %v5665
  %v5668 = vmul.f32 0.5, %v5667
  %v5669 = vsub.f32 1.5, %v5668
  %v5670 = vmul.f32 %v5665, %v5669
  %vm5671 = vweird.f32 %v5014
  %vm5672 = vweird.f32 %v5665
  %vm5673 = vmor %vm5671, %vm5672
  %v5674 = vsel %vm5673, %v5665, %v5670
  %v5675 = vrsqrt.pop %v5015
  %v5676 = vmul.f32 %v5675, %v5015
  %v5677 = vmul.f32 %v5676, %v5675
  %v5678 = vmul.f32 0.5, %v5677
  %v5679 = vsub.f32 1.5, %v5678
  %v5680 = vmul.f32 %v5675, %v5679
  %vm5681 = vweird.f32 %v5015
  %vm5682 = vweird.f32 %v5675
  %vm5683 = vmor %vm5681, %vm5682
  %v5684 = vsel %vm5683, %v5675, %v5680
  %v5685 = vrsqrt.pop %v5016
  %v5686 = vmul.f32 %v5685, %v5016
  %v5687 = vmul.f32 %v5686, %v5685
  %v5688 = vmul.f32 0.5, %v5687
  %v5689 = vsub.f32 1.5, %v5688
  %v5690 = vmul.f32 %v5685, %v5689
  %vm5691 = vweird.f32 %v5016
  %vm5692 = vweird.f32 %v5685
  %vm5693 = vmor %vm5691, %vm5692
  %v5694 = vsel %vm5693, %v5685, %v5690
  %v5695 = vrsqrt.pop %v5017
  %v5696 = vmul.f32 %v5695, %v5017
  %v5697 = vmul.f32 %v5696, %v5695
  %v5698 = vmul.f32 0.5, %v5697
  %v5699 = vsub.f32 1.5, %v5698
  %v5700 = vmul.f32 %v5695, %v5699
  %vm5701 = vweird.f32 %v5017
  %vm5702 = vweird.f32 %v5695
  %vm5703 = vmor %vm5701, %vm5702
  %v5704 = vsel %vm5703, %v5695, %v5700
  %v5705 = vrsqrt.pop %v5018
  %v5706 = vmul.f32 %v5705, %v5018
  %v5707 = vmul.f32 %v5706, %v5705
  %v5708 = vmul.f32 0.5, %v5707
  %v5709 = vsub.f32 1.5, %v5708
  %v5710 = vmul.f32 %v5705, %v5709
  %vm5711 = vweird.f32 %v5018
  %vm5712 = vweird.f32 %v5705
  %vm5713 = vmor %vm5711, %vm5712
  %v5714 = vsel %vm5713, %v5705, %v5710
  %v5715 = vrsqrt.pop %v5019
  %v5716 = vmul.f32 %v5715, %v5019
  %v5717 = vmul.f32 %v5716, %v5715
  %v5718 = vmul.f32 0.5, %v5717
  %v5719 = vsub.f32 1.5, %v5718
  %v5720 = vmul.f32 %v5715, %v5719
  %vm5721 = vweird.f32 %v5019
  %vm5722 = vweird.f32 %v5715
  %vm5723 = vmor %vm5721, %vm5722
  %v5724 = vsel %vm5723, %v5715, %v5720
  %v5725 = vrsqrt.pop %v5020
  %v5726 = vmul.f32 %v5725, %v5020
  %v5727 = vmul.f32 %v5726, %v5725
  %v5728 = vmul.f32 0.5, %v5727
  %v5729 = vsub.f32 1.5, %v5728
  %v5730 = vmul.f32 %v5725, %v5729
  %vm5731 = vweird.f32 %v5020
  %vm5732 = vweird.f32 %v5725
  %vm5733 = vmor %vm5731, %vm5732
  %v5734 = vsel %vm5733, %v5725, %v5730
  %v5735 = vrsqrt.pop %v5021
  %v5736 = vmul.f32 %v5735, %v5021
  %v5737 = vmul.f32 %v5736, %v5735
  %v5738 = vmul.f32 0.5, %v5737
  %v5739 = vsub.f32 1.5, %v5738
  %v5740 = vmul.f32 %v5735, %v5739
  %vm5741 = vweird.f32 %v5021
  %vm5742 = vweird.f32 %v5735
  %vm5743 = vmor %vm5741, %vm5742
  %v5744 = vsel %vm5743, %v5735, %v5740
  %v5745 = vrsqrt.pop %v5022
  %v5746 = vmul.f32 %v5745, %v5022
  %v5747 = vmul.f32 %v5746, %v5745
  %v5748 = vmul.f32 0.5, %v5747
  %v5749 = vsub.f32 1.5, %v5748
  %v5750 = vmul.f32 %v5745, %v5749
  %vm5751 = vweird.f32 %v5022
  %vm5752 = vweird.f32 %v5745
  %vm5753 = vmor %vm5751, %vm5752
  %v5754 = vsel %vm5753, %v5745, %v5750
  %v5755 = vrsqrt.pop %v5023
  %v5756 = vmul.f32 %v5755, %v5023
  %v5757 = vmul.f32 %v5756, %v5755
  %v5758 = vmul.f32 0.5, %v5757
  %v5759 = vsub.f32 1.5, %v5758
  %v5760 = vmul.f32 %v5755, %v5759
  %vm5761 = vweird.f32 %v5023
  %vm5762 = vweird.f32 %v5755
  %vm5763 = vmor %vm5761, %vm5762
  %v5764 = vsel %vm5763, %v5755, %v5760
  %v5765 = vrsqrt.pop %v5024
  %v5766 = vmul.f32 %v5765, %v5024
  %v5767 = vmul.f32 %v5766, %v5765
  %v5768 = vmul.f32 0.5, %v5767
  %v5769 = vsub.f32 1.5, %v5768
  %v5770 = vmul.f32 %v5765, %v5769
  %vm5771 = vweird.f32 %v5024
  %vm5772 = vweird.f32 %v5765
  %vm5773 = vmor %vm5771, %vm5772
  %v5774 = vsel %vm5773, %v5765, %v5770
  %v5775 = vrsqrt.pop %v5025
  %v5776 = vmul.f32 %v5775, %v5025
  %v5777 = vmul.f32 %v5776, %v5775
  %v5778 = vmul.f32 0.5, %v5777
  %v5779 = vsub.f32 1.5, %v5778
  %v5780 = vmul.f32 %v5775, %v5779
  %vm5781 = vweird.f32 %v5025
  %vm5782 = vweird.f32 %v5775
  %vm5783 = vmor %vm5781, %vm5782
  %v5784 = vsel %vm5783, %v5775, %v5780
  %v5785 = vrsqrt.pop %v5026
  %v5786 = vmul.f32 %v5785, %v5026
  %v5787 = vmul.f32 %v5786, %v5785
  %v5788 = vmul.f32 0.5, %v5787
  %v5789 = vsub.f32 1.5, %v5788
  %v5790 = vmul.f32 %v5785, %v5789
  %vm5791 = vweird.f32 %v5026
  %vm5792 = vweird.f32 %v5785
  %vm5793 = vmor %vm5791, %vm5792
  %v5794 = vsel %vm5793, %v5785, %v5790
  %v5795 = vrsqrt.pop %v5027
  %v5796 = vmul.f32 %v5795, %v5027
  %v5797 = vmul.f32 %v5796, %v5795
  %v5798 = vmul.f32 0.5, %v5797
  %v5799 = vsub.f32 1.5, %v5798
  %v5800 = vmul.f32 %v5795, %v5799
  %vm5801 = vweird.f32 %v5027
  %vm5802 = vweird.f32 %v5795
  %vm5803 = vmor %vm5801, %vm5802
  %v5804 = vsel %vm5803, %v5795, %v5800
  %v5805 = vrsqrt.pop %v5028
  %v5806 = vmul.f32 %v5805, %v5028
  %v5807 = vmul.f32 %v5806, %v5805
  %v5808 = vmul.f32 0.5, %v5807
  %v5809 = vsub.f32 1.5, %v5808
  %v5810 = vmul.f32 %v5805, %v5809
  %vm5811 = vweird.f32 %v5028
  %vm5812 = vweird.f32 %v5805
  %vm5813 = vmor %vm5811, %vm5812
  %v5814 = vsel %vm5813, %v5805, %v5810
  %v5815 = vrsqrt.pop %v5029
  %v5816 = vmul.f32 %v5815, %v5029
  %v5817 = vmul.f32 %v5816, %v5815
  %v5818 = vmul.f32 0.5, %v5817
  %v5819 = vsub.f32 1.5, %v5818
  %v5820 = vmul.f32 %v5815, %v5819
  %vm5821 = vweird.f32 %v5029
  %vm5822 = vweird.f32 %v5815
  %vm5823 = vmor %vm5821, %vm5822
  %v5824 = vsel %vm5823, %v5815, %v5820
  %v5825 = vrsqrt.pop %v5030
  %v5826 = vmul.f32 %v5825, %v5030
  %v5827 = vmul.f32 %v5826, %v5825
  %v5828 = vmul.f32 0.5, %v5827
  %v5829 = vsub.f32 1.5, %v5828
  %v5830 = vmul.f32 %v5825, %v5829
  %vm5831 = vweird.f32 %v5030
  %vm5832 = vweird.f32 %v5825
  %vm5833 = vmor %vm5831, %vm5832
  %v5834 = vsel %vm5833, %v5825, %v5830
  %v5835 = vrsqrt.pop %v5031
  %v5836 = vmul.f32 %v5835, %v5031
  %v5837 = vmul.f32 %v5836, %v5835
  %v5838 = vmul.f32 0.5, %v5837
  %v5839 = vsub.f32 1.5, %v5838
  %v5840 = vmul.f32 %v5835, %v5839
  %vm5841 = vweird.f32 %v5031
  %vm5842 = vweird.f32 %v5835
  %vm5843 = vmor %vm5841, %vm5842
  %v5844 = vsel %vm5843, %v5835, %v5840
  %v5845 = vrsqrt.pop %v5032
  %v5846 = vmul.f32 %v5845, %v5032
  %v5847 = vmul.f32 %v5846, %v5845
  %v5848 = vmul.f32 0.5, %v5847
  %v5849 = vsub.f32 1.5, %v5848
  %v5850 = vmul.f32 %v5845, %v5849
  %vm5851 = vweird.f32 %v5032
  %vm5852 = vweird.f32 %v5845
  %vm5853 = vmor %vm5851, %vm5852
  %v5854 = vsel %vm5853, %v5845, %v5850
  %v5855 = vrsqrt.pop %v5033
  %v5856 = vmul.f32 %v5855, %v5033
  %v5857 = vmul.f32 %v5856, %v5855
  %v5858 = vmul.f32 0.5, %v5857
  %v5859 = vsub.f32 1.5, %v5858
  %v5860 = vmul.f32 %v5855, %v5859
  %vm5861 = vweird.f32 %v5033
  %vm5862 = vweird.f32 %v5855
  %vm5863 = vmor %vm5861, %vm5862
  %v5864 = vsel %vm5863, %v5855, %v5860
  %v5865 = vrsqrt.pop %v5034
  %v5866 = vmul.f32 %v5865, %v5034
  %v5867 = vmul.f32 %v5866, %v5865
  %v5868 = vmul.f32 0.5, %v5867
  %v5869 = vsub.f32 1.5, %v5868
  %v5870 = vmul.f32 %v5865, %v5869
  %vm5871 = vweird.f32 %v5034
  %vm5872 = vweird.f32 %v5865
  %vm5873 = vmor %vm5871, %vm5872
  %v5874 = vsel %vm5873, %v5865, %v5870
  %v5875 = vrsqrt.pop %v5035
  %v5876 = vmul.f32 %v5875, %v5035
  %v5877 = vmul.f32 %v5876, %v5875
  %v5878 = vmul.f32 0.5, %v5877
  %v5879 = vsub.f32 1.5, %v5878
  %v5880 = vmul.f32 %v5875, %v5879
  %vm5881 = vweird.f32 %v5035
  %vm5882 = vweird.f32 %v5875
  %vm5883 = vmor %vm5881, %vm5882
  %v5884 = vsel %vm5883, %v5875, %v5880
  %v5885 = vrsqrt.pop %v5036
  %v5886 = vmul.f32 %v5885, %v5036
  %v5887 = vmul.f32 %v5886, %v5885
  %v5888 = vmul.f32 0.5, %v5887
  %v5889 = vsub.f32 1.5, %v5888
  %v5890 = vmul.f32 %v5885, %v5889
  %vm5891 = vweird.f32 %v5036
  %vm5892 = vweird.f32 %v5885
  %vm5893 = vmor %vm5891, %vm5892
  %v5894 = vsel %vm5893, %v5885, %v5890
  %v5895 = vrsqrt.pop %v5037
  %v5896 = vmul.f32 %v5895, %v5037
  %v5897 = vmul.f32 %v5896, %v5895
  %v5898 = vmul.f32 0.5, %v5897
  %v5899 = vsub.f32 1.5, %v5898
  %v5900 = vmul.f32 %v5895, %v5899
  %vm5901 = vweird.f32 %v5037
  %vm5902 = vweird.f32 %v5895
  %vm5903 = vmor %vm5901, %vm5902
  %v5904 = vsel %vm5903, %v5895, %v5900
  %v5905 = vrsqrt.pop %v5038
  %v5906 = vmul.f32 %v5905, %v5038
  %v5907 = vmul.f32 %v5906, %v5905
  %v5908 = vmul.f32 0.5, %v5907
  %v5909 = vsub.f32 1.5, %v5908
  %v5910 = vmul.f32 %v5905, %v5909
  %vm5911 = vweird.f32 %v5038
  %vm5912 = vweird.f32 %v5905
  %vm5913 = vmor %vm5911, %vm5912
  %v5914 = vsel %vm5913, %v5905, %v5910
  %v5915 = vrsqrt.pop %v5039
  %v5916 = vmul.f32 %v5915, %v5039
  %v5917 = vmul.f32 %v5916, %v5915
  %v5918 = vmul.f32 0.5, %v5917
  %v5919 = vsub.f32 1.5, %v5918
  %v5920 = vmul.f32 %v5915, %v5919
  %vm5921 = vweird.f32 %v5039
  %vm5922 = vweird.f32 %v5915
  %vm5923 = vmor %vm5921, %vm5922
  %v5924 = vsel %vm5923, %v5915, %v5920
  %v5925 = vrsqrt.pop %v5040
  %v5926 = vmul.f32 %v5925, %v5040
  %v5927 = vmul.f32 %v5926, %v5925
  %v5928 = vmul.f32 0.5, %v5927
  %v5929 = vsub.f32 1.5, %v5928
  %v5930 = vmul.f32 %v5925, %v5929
  %vm5931 = vweird.f32 %v5040
  %vm5932 = vweird.f32 %v5925
  %vm5933 = vmor %vm5931, %vm5932
  %v5934 = vsel %vm5933, %v5925, %v5930
  %v5935 = vrsqrt.pop %v5041
  %v5936 = vmul.f32 %v5935, %v5041
  %v5937 = vmul.f32 %v5936, %v5935
  %v5938 = vmul.f32 0.5, %v5937
  %v5939 = vsub.f32 1.5, %v5938
  %v5940 = vmul.f32 %v5935, %v5939
  %vm5941 = vweird.f32 %v5041
  %vm5942 = vweird.f32 %v5935
  %vm5943 = vmor %vm5941, %vm5942
  %v5944 = vsel %vm5943, %v5935, %v5940
  %v5945 = vrsqrt.pop %v5042
  %v5946 = vmul.f32 %v5945, %v5042
  %v5947 = vmul.f32 %v5946, %v5945
  %v5948 = vmul.f32 0.5, %v5947
  %v5949 = vsub.f32 1.5, %v5948
  %v5950 = vmul.f32 %v5945, %v5949
  %vm5951 = vweird.f32 %v5042
  %vm5952 = vweird.f32 %v5945
  %vm5953 = vmor %vm5951, %vm5952
  %v5954 = vsel %vm5953, %v5945, %v5950
  %v5955 = vrsqrt.pop %v5043
  %v5956 = vmul.f32 %v5955, %v5043
  %v5957 = vmul.f32 %v5956, %v5955
  %v5958 = vmul.f32 0.5, %v5957
  %v5959 = vsub.f32 1.5, %v5958
  %v5960 = vmul.f32 %v5955, %v5959
  %vm5961 = vweird.f32 %v5043
  %vm5962 = vweird.f32 %v5955
  %vm5963 = vmor %vm5961, %vm5962
  %v5964 = vsel %vm5963, %v5955, %v5960
  %v5965 = vrsqrt.pop %v5044
  %v5966 = vmul.f32 %v5965, %v5044
  %v5967 = vmul.f32 %v5966, %v5965
  %v5968 = vmul.f32 0.5, %v5967
  %v5969 = vsub.f32 1.5, %v5968
  %v5970 = vmul.f32 %v5965, %v5969
  %vm5971 = vweird.f32 %v5044
  %vm5972 = vweird.f32 %v5965
  %vm5973 = vmor %vm5971, %vm5972
  %v5974 = vsel %vm5973, %v5965, %v5970
  %v5975 = vrsqrt.pop %v5045
  %v5976 = vmul.f32 %v5975, %v5045
  %v5977 = vmul.f32 %v5976, %v5975
  %v5978 = vmul.f32 0.5, %v5977
  %v5979 = vsub.f32 1.5, %v5978
  %v5980 = vmul.f32 %v5975, %v5979
  %vm5981 = vweird.f32 %v5045
  %vm5982 = vweird.f32 %v5975
  %vm5983 = vmor %vm5981, %vm5982
  %v5984 = vsel %vm5983, %v5975, %v5980
  %v5985 = vrsqrt.pop %v5046
  %v5986 = vmul.f32 %v5985, %v5046
  %v5987 = vmul.f32 %v5986, %v5985
  %v5988 = vmul.f32 0.5, %v5987
  %v5989 = vsub.f32 1.5, %v5988
  %v5990 = vmul.f32 %v5985, %v5989
  %vm5991 = vweird.f32 %v5046
  %vm5992 = vweird.f32 %v5985
  %vm5993 = vmor %vm5991, %vm5992
  %v5994 = vsel %vm5993, %v5985, %v5990
  %v5995 = vrsqrt.pop %v5047
  %v5996 = vmul.f32 %v5995, %v5047
  %v5997 = vmul.f32 %v5996, %v5995
  %v5998 = vmul.f32 0.5, %v5997
  %v5999 = vsub.f32 1.5, %v5998
  %v6000 = vmul.f32 %v5995, %v5999
  %vm6001 = vweird.f32 %v5047
  %vm6002 = vweird.f32 %v5995
  %vm6003 = vmor %vm6001, %vm6002
  %v6004 = vsel %vm6003, %v5995, %v6000
  %v6005 = vrsqrt.pop %v5048
  %v6006 = vmul.f32 %v6005, %v5048
  %v6007 = vmul.f32 %v6006, %v6005
  %v6008 = vmul.f32 0.5, %v6007
  %v6009 = vsub.f32 1.5, %v6008
  %v6010 = vmul.f32 %v6005, %v6009
  %vm6011 = vweird.f32 %v5048
  %vm6012 = vweird.f32 %v6005
  %vm6013 = vmor %vm6011, %vm6012
  %v6014 = vsel %vm6013, %v6005, %v6010
  %v6015 = vrsqrt.pop %v5049
  %v6016 = vmul.f32 %v6015, %v5049
  %v6017 = vmul.f32 %v6016, %v6015
  %v6018 = vmul.f32 0.5, %v6017
  %v6019 = vsub.f32 1.5, %v6018
  %v6020 = vmul.f32 %v6015, %v6019
  %vm6021 = vweird.f32 %v5049
  %vm6022 = vweird.f32 %v6015
  %vm6023 = vmor %vm6021, %vm6022
  %v6024 = vsel %vm6023, %v6015, %v6020
  %v6025 = vrsqrt.pop %v5050
  %v6026 = vmul.f32 %v6025, %v5050
  %v6027 = vmul.f32 %v6026, %v6025
  %v6028 = vmul.f32 0.5, %v6027
  %v6029 = vsub.f32 1.5, %v6028
  %v6030 = vmul.f32 %v6025, %v6029
  %vm6031 = vweird.f32 %v5050
  %vm6032 = vweird.f32 %v6025
  %vm6033 = vmor %vm6031, %vm6032
  %v6034 = vsel %vm6033, %v6025, %v6030
  %v6035 = vrsqrt.pop %v5051
  %v6036 = vmul.f32 %v6035, %v5051
  %v6037 = vmul.f32 %v6036, %v6035
  %v6038 = vmul.f32 0.5, %v6037
  %v6039 = vsub.f32 1.5, %v6038
  %v6040 = vmul.f32 %v6035, %v6039
  %vm6041 = vweird.f32 %v5051
  %vm6042 = vweird.f32 %v6035
  %vm6043 = vmor %vm6041, %vm6042
  %v6044 = vsel %vm6043, %v6035, %v6040
  %v6045 = vrsqrt.pop %v5052
  %v6046 = vmul.f32 %v6045, %v5052
  %v6047 = vmul.f32 %v6046, %v6045
  %v6048 = vmul.f32 0.5, %v6047
  %v6049 = vsub.f32 1.5, %v6048
  %v6050 = vmul.f32 %v6045, %v6049
  %vm6051 = vweird.f32 %v5052
  %vm6052 = vweird.f32 %v6045
  %vm6053 = vmor %vm6051, %vm6052
  %v6054 = vsel %vm6053, %v6045, %v6050
  %v6055 = vrsqrt.pop %v5053
  %v6056 = vmul.f32 %v6055, %v5053
  %v6057 = vmul.f32 %v6056, %v6055
  %v6058 = vmul.f32 0.5, %v6057
  %v6059 = vsub.f32 1.5, %v6058
  %v6060 = vmul.f32 %v6055, %v6059
  %vm6061 = vweird.f32 %v5053
  %vm6062 = vweird.f32 %v6055
  %vm6063 = vmor %vm6061, %vm6062
  %v6064 = vsel %vm6063, %v6055, %v6060
  %v6065 = vrsqrt.pop %v5054
  %v6066 = vmul.f32 %v6065, %v5054
  %v6067 = vmul.f32 %v6066, %v6065
  %v6068 = vmul.f32 0.5, %v6067
  %v6069 = vsub.f32 1.5, %v6068
  %v6070 = vmul.f32 %v6065, %v6069
  %vm6071 = vweird.f32 %v5054
  %vm6072 = vweird.f32 %v6065
  %vm6073 = vmor %vm6071, %vm6072
  %v6074 = vsel %vm6073, %v6065, %v6070
  %v6075 = vrsqrt.pop %v5055
  %v6076 = vmul.f32 %v6075, %v5055
  %v6077 = vmul.f32 %v6076, %v6075
  %v6078 = vmul.f32 0.5, %v6077
  %v6079 = vsub.f32 1.5, %v6078
  %v6080 = vmul.f32 %v6075, %v6079
  %vm6081 = vweird.f32 %v5055
  %vm6082 = vweird.f32 %v6075
  %vm6083 = vmor %vm6081, %vm6082
  %v6084 = vsel %vm6083, %v6075, %v6080
  %v6085 = vrsqrt.pop %v5056
  %v6086 = vmul.f32 %v6085, %v5056
  %v6087 = vmul.f32 %v6086, %v6085
  %v6088 = vmul.f32 0.5, %v6087
  %v6089 = vsub.f32 1.5, %v6088
  %v6090 = vmul.f32 %v6085, %v6089
  %vm6091 = vweird.f32 %v5056
  %vm6092 = vweird.f32 %v6085
  %vm6093 = vmor %vm6091, %vm6092
  %v6094 = vsel %vm6093, %v6085, %v6090
  %v6095 = vrsqrt.pop %v5057
  %v6096 = vmul.f32 %v6095, %v5057
  %v6097 = vmul.f32 %v6096, %v6095
  %v6098 = vmul.f32 0.5, %v6097
  %v6099 = vsub.f32 1.5, %v6098
  %v6100 = vmul.f32 %v6095, %v6099
  %vm6101 = vweird.f32 %v5057
  %vm6102 = vweird.f32 %v6095
  %vm6103 = vmor %vm6101, %vm6102
  %v6104 = vsel %vm6103, %v6095, %v6100
  %v6105 = vrsqrt.pop %v5058
  %v6106 = vmul.f32 %v6105, %v5058
  %v6107 = vmul.f32 %v6106, %v6105
  %v6108 = vmul.f32 0.5, %v6107
  %v6109 = vsub.f32 1.5, %v6108
  %v6110 = vmul.f32 %v6105, %v6109
  %vm6111 = vweird.f32 %v5058
  %vm6112 = vweird.f32 %v6105
  %vm6113 = vmor %vm6111, %vm6112
  %v6114 = vsel %vm6113, %v6105, %v6110
  %v6115 = vrsqrt.pop %v5059
  %v6116 = vmul.f32 %v6115, %v5059
  %v6117 = vmul.f32 %v6116, %v6115
  %v6118 = vmul.f32 0.5, %v6117
  %v6119 = vsub.f32 1.5, %v6118
  %v6120 = vmul.f32 %v6115, %v6119
  %vm6121 = vweird.f32 %v5059
  %vm6122 = vweird.f32 %v6115
  %vm6123 = vmor %vm6121, %vm6122
  %v6124 = vsel %vm6123, %v6115, %v6120
  %v6125 = vrsqrt.pop %v5060
  %v6126 = vmul.f32 %v6125, %v5060
  %v6127 = vmul.f32 %v6126, %v6125
  %v6128 = vmul.f32 0.5, %v6127
  %v6129 = vsub.f32 1.5, %v6128
  %v6130 = vmul.f32 %v6125, %v6129
  %vm6131 = vweird.f32 %v5060
  %vm6132 = vweird.f32 %v6125
  %vm6133 = vmor %vm6131, %vm6132
  %v6134 = vsel %vm6133, %v6125, %v6130
  %v6135 = vrsqrt.pop %v5061
  %v6136 = vmul.f32 %v6135, %v5061
  %v6137 = vmul.f32 %v6136, %v6135
  %v6138 = vmul.f32 0.5, %v6137
  %v6139 = vsub.f32 1.5, %v6138
  %v6140 = vmul.f32 %v6135, %v6139
  %vm6141 = vweird.f32 %v5061
  %vm6142 = vweird.f32 %v6135
  %vm6143 = vmor %vm6141, %vm6142
  %v6144 = vsel %vm6143, %v6135, %v6140
  %v6145 = vrsqrt.pop %v5062
  %v6146 = vmul.f32 %v6145, %v5062
  %v6147 = vmul.f32 %v6146, %v6145
  %v6148 = vmul.f32 0.5, %v6147
  %v6149 = vsub.f32 1.5, %v6148
  %v6150 = vmul.f32 %v6145, %v6149
  %vm6151 = vweird.f32 %v5062
  %vm6152 = vweird.f32 %v6145
  %vm6153 = vmor %vm6151, %vm6152
  %v6154 = vsel %vm6153, %v6145, %v6150
  %v6155 = vrsqrt.pop %v5063
  %v6156 = vmul.f32 %v6155, %v5063
  %v6157 = vmul.f32 %v6156, %v6155
  %v6158 = vmul.f32 0.5, %v6157
  %v6159 = vsub.f32 1.5, %v6158
  %v6160 = vmul.f32 %v6155, %v6159
  %vm6161 = vweird.f32 %v5063
  %vm6162 = vweird.f32 %v6155
  %vm6163 = vmor %vm6161, %vm6162
  %v6164 = vsel %vm6163, %v6155, %v6160
  %v6165 = vrsqrt.pop %v5064
  %v6166 = vmul.f32 %v6165, %v5064
  %v6167 = vmul.f32 %v6166, %v6165
  %v6168 = vmul.f32 0.5, %v6167
  %v6169 = vsub.f32 1.5, %v6168
  %v6170 = vmul.f32 %v6165, %v6169
  %vm6171 = vweird.f32 %v5064
  %vm6172 = vweird.f32 %v6165
  %vm6173 = vmor %vm6171, %vm6172
  %v6174 = vsel %vm6173, %v6165, %v6170
  %v6175 = vrsqrt.pop %v5065
  %v6176 = vmul.f32 %v6175, %v5065
  %v6177 = vmul.f32 %v6176, %v6175
  %v6178 = vmul.f32 0.5, %v6177
  %v6179 = vsub.f32 1.5, %v6178
  %v6180 = vmul.f32 %v6175, %v6179
  %vm6181 = vweird.f32 %v5065
  %vm6182 = vweird.f32 %v6175
  %vm6183 = vmor %vm6181, %vm6182
  %v6184 = vsel %vm6183, %v6175, %v6180
  %v6185 = vrsqrt.pop %v5066
  %v6186 = vmul.f32 %v6185, %v5066
  %v6187 = vmul.f32 %v6186, %v6185
  %v6188 = vmul.f32 0.5, %v6187
  %v6189 = vsub.f32 1.5, %v6188
  %v6190 = vmul.f32 %v6185, %v6189
  %vm6191 = vweird.f32 %v5066
  %vm6192 = vweird.f32 %v6185
  %vm6193 = vmor %vm6191, %vm6192
  %v6194 = vsel %vm6193, %v6185, %v6190
  %v6195 = vrsqrt.pop %v5067
  %v6196 = vmul.f32 %v6195, %v5067
  %v6197 = vmul.f32 %v6196, %v6195
  %v6198 = vmul.f32 0.5, %v6197
  %v6199 = vsub.f32 1.5, %v6198
  %v6200 = vmul.f32 %v6195, %v6199
  %vm6201 = vweird.f32 %v5067
  %vm6202 = vweird.f32 %v6195
  %vm6203 = vmor %vm6201, %vm6202
  %v6204 = vsel %vm6203, %v6195, %v6200
  %v6205 = vrsqrt.pop %v5068
  %v6206 = vmul.f32 %v6205, %v5068
  %v6207 = vmul.f32 %v6206, %v6205
  %v6208 = vmul.f32 0.5, %v6207
  %v6209 = vsub.f32 1.5, %v6208
  %v6210 = vmul.f32 %v6205, %v6209
  %vm6211 = vweird.f32 %v5068
  %vm6212 = vweird.f32 %v6205
  %vm6213 = vmor %vm6211, %vm6212
  %v6214 = vsel %vm6213, %v6205, %v6210
  %v6215 = vrsqrt.pop %v5069
  %v6216 = vmul.f32 %v6215, %v5069
  %v6217 = vmul.f32 %v6216, %v6215
  %v6218 = vmul.f32 0.5, %v6217
  %v6219 = vsub.f32 1.5, %v6218
  %v6220 = vmul.f32 %v6215, %v6219
  %vm6221 = vweird.f32 %v5069
  %vm6222 = vweird.f32 %v6215
  %vm6223 = vmor %vm6221, %vm6222
  %v6224 = vsel %vm6223, %v6215, %v6220
  %v6225 = vrsqrt.pop %v5070
  %v6226 = vmul.f32 %v6225, %v5070
  %v6227 = vmul.f32 %v6226, %v6225
  %v6228 = vmul.f32 0.5, %v6227
  %v6229 = vsub.f32 1.5, %v6228
  %v6230 = vmul.f32 %v6225, %v6229
  %vm6231 = vweird.f32 %v5070
  %vm6232 = vweird.f32 %v6225
  %vm6233 = vmor %vm6231, %vm6232
  %v6234 = vsel %vm6233, %v6225, %v6230
  %v6235 = vrsqrt.pop %v5071
  %v6236 = vmul.f32 %v6235, %v5071
  %v6237 = vmul.f32 %v6236, %v6235
  %v6238 = vmul.f32 0.5, %v6237
  %v6239 = vsub.f32 1.5, %v6238
  %v6240 = vmul.f32 %v6235, %v6239
  %vm6241 = vweird.f32 %v5071
  %vm6242 = vweird.f32 %v6235
  %vm6243 = vmor %vm6241, %vm6242
  %v6244 = vsel %vm6243, %v6235, %v6240
  %v6245 = vrsqrt.pop %v5072
  %v6246 = vmul.f32 %v6245, %v5072
  %v6247 = vmul.f32 %v6246, %v6245
  %v6248 = vmul.f32 0.5, %v6247
  %v6249 = vsub.f32 1.5, %v6248
  %v6250 = vmul.f32 %v6245, %v6249
  %vm6251 = vweird.f32 %v5072
  %vm6252 = vweird.f32 %v6245
  %vm6253 = vmor %vm6251, %vm6252
  %v6254 = vsel %vm6253, %v6245, %v6250
  %v6255 = vrsqrt.pop %v5073
  %v6256 = vmul.f32 %v6255, %v5073
  %v6257 = vmul.f32 %v6256, %v6255
  %v6258 = vmul.f32 0.5, %v6257
  %v6259 = vsub.f32 1.5, %v6258
  %v6260 = vmul.f32 %v6255, %v6259
  %vm6261 = vweird.f32 %v5073
  %vm6262 = vweird.f32 %v6255
  %vm6263 = vmor %vm6261, %vm6262
  %v6264 = vsel %vm6263, %v6255, %v6260
  %v6265 = vrsqrt.pop %v5074
  %v6266 = vmul.f32 %v6265, %v5074
  %v6267 = vmul.f32 %v6266, %v6265
  %v6268 = vmul.f32 0.5, %v6267
  %v6269 = vsub.f32 1.5, %v6268
  %v6270 = vmul.f32 %v6265, %v6269
  %vm6271 = vweird.f32 %v5074
  %vm6272 = vweird.f32 %v6265
  %vm6273 = vmor %vm6271, %vm6272
  %v6274 = vsel %vm6273, %v6265, %v6270
  %v6275 = vrsqrt.pop %v5075
  %v6276 = vmul.f32 %v6275, %v5075
  %v6277 = vmul.f32 %v6276, %v6275
  %v6278 = vmul.f32 0.5, %v6277
  %v6279 = vsub.f32 1.5, %v6278
  %v6280 = vmul.f32 %v6275, %v6279
  %vm6281 = vweird.f32 %v5075
  %vm6282 = vweird.f32 %v6275
  %vm6283 = vmor %vm6281, %vm6282
  %v6284 = vsel %vm6283, %v6275, %v6280
  %v6285 = vrsqrt.pop %v5076
  %v6286 = vmul.f32 %v6285, %v5076
  %v6287 = vmul.f32 %v6286, %v6285
  %v6288 = vmul.f32 0.5, %v6287
  %v6289 = vsub.f32 1.5, %v6288
  %v6290 = vmul.f32 %v6285, %v6289
  %vm6291 = vweird.f32 %v5076
  %vm6292 = vweird.f32 %v6285
  %vm6293 = vmor %vm6291, %vm6292
  %v6294 = vsel %vm6293, %v6285, %v6290
  %v6295 = vrsqrt.pop %v5077
  %v6296 = vmul.f32 %v6295, %v5077
  %v6297 = vmul.f32 %v6296, %v6295
  %v6298 = vmul.f32 0.5, %v6297
  %v6299 = vsub.f32 1.5, %v6298
  %v6300 = vmul.f32 %v6295, %v6299
  %vm6301 = vweird.f32 %v5077
  %vm6302 = vweird.f32 %v6295
  %vm6303 = vmor %vm6301, %vm6302
  %v6304 = vsel %vm6303, %v6295, %v6300
  %v6305 = vrsqrt.pop %v5078
  %v6306 = vmul.f32 %v6305, %v5078
  %v6307 = vmul.f32 %v6306, %v6305
  %v6308 = vmul.f32 0.5, %v6307
  %v6309 = vsub.f32 1.5, %v6308
  %v6310 = vmul.f32 %v6305, %v6309
  %vm6311 = vweird.f32 %v5078
  %vm6312 = vweird.f32 %v6305
  %vm6313 = vmor %vm6311, %vm6312
  %v6314 = vsel %vm6313, %v6305, %v6310
  %v6315 = vrsqrt.pop %v5079
  %v6316 = vmul.f32 %v6315, %v5079
  %v6317 = vmul.f32 %v6316, %v6315
  %v6318 = vmul.f32 0.5, %v6317
  %v6319 = vsub.f32 1.5, %v6318
  %v6320 = vmul.f32 %v6315, %v6319
  %vm6321 = vweird.f32 %v5079
  %vm6322 = vweird.f32 %v6315
  %vm6323 = vmor %vm6321, %vm6322
  %v6324 = vsel %vm6323, %v6315, %v6320
  %v6325 = vrsqrt.pop %v5080
  %v6326 = vmul.f32 %v6325, %v5080
  %v6327 = vmul.f32 %v6326, %v6325
  %v6328 = vmul.f32 0.5, %v6327
  %v6329 = vsub.f32 1.5, %v6328
  %v6330 = vmul.f32 %v6325, %v6329
  %vm6331 = vweird.f32 %v5080
  %vm6332 = vweird.f32 %v6325
  %vm6333 = vmor %vm6331, %vm6332
  %v6334 = vsel %vm6333, %v6325, %v6330
  %v6335 = vrsqrt.pop %v5081
  %v6336 = vmul.f32 %v6335, %v5081
  %v6337 = vmul.f32 %v6336, %v6335
  %v6338 = vmul.f32 0.5, %v6337
  %v6339 = vsub.f32 1.5, %v6338
  %v6340 = vmul.f32 %v6335, %v6339
  %vm6341 = vweird.f32 %v5081
  %vm6342 = vweird.f32 %v6335
  %vm6343 = vmor %vm6341, %vm6342
  %v6344 = vsel %vm6343, %v6335, %v6340
  %v6345 = vrsqrt.pop %v5082
  %v6346 = vmul.f32 %v6345, %v5082
  %v6347 = vmul.f32 %v6346, %v6345
  %v6348 = vmul.f32 0.5, %v6347
  %v6349 = vsub.f32 1.5, %v6348
  %v6350 = vmul.f32 %v6345, %v6349
  %vm6351 = vweird.f32 %v5082
  %vm6352 = vweird.f32 %v6345
  %vm6353 = vmor %vm6351, %vm6352
  %v6354 = vsel %vm6353, %v6345, %v6350
  %v6355 = vrsqrt.pop %v5083
  %v6356 = vmul.f32 %v6355, %v5083
  %v6357 = vmul.f32 %v6356, %v6355
  %v6358 = vmul.f32 0.5, %v6357
  %v6359 = vsub.f32 1.5, %v6358
  %v6360 = vmul.f32 %v6355, %v6359
  %vm6361 = vweird.f32 %v5083
  %vm6362 = vweird.f32 %v6355
  %vm6363 = vmor %vm6361, %vm6362
  %v6364 = vsel %vm6363, %v6355, %v6360
  %v6365 = vrsqrt.pop %v5084
  %v6366 = vmul.f32 %v6365, %v5084
  %v6367 = vmul.f32 %v6366, %v6365
  %v6368 = vmul.f32 0.5, %v6367
  %v6369 = vsub.f32 1.5, %v6368
  %v6370 = vmul.f32 %v6365, %v6369
  %vm6371 = vweird.f32 %v5084
  %vm6372 = vweird.f32 %v6365
  %vm6373 = vmor %vm6371, %vm6372
  %v6374 = vsel %vm6373, %v6365, %v6370
  %v6375 = vrsqrt.pop %v5085
  %v6376 = vmul.f32 %v6375, %v5085
  %v6377 = vmul.f32 %v6376, %v6375
  %v6378 = vmul.f32 0.5, %v6377
  %v6379 = vsub.f32 1.5, %v6378
  %v6380 = vmul.f32 %v6375, %v6379
  %vm6381 = vweird.f32 %v5085
  %vm6382 = vweird.f32 %v6375
  %vm6383 = vmor %vm6381, %vm6382
  %v6384 = vsel %vm6383, %v6375, %v6380
  %v6385 = vrsqrt.pop %v5086
  %v6386 = vmul.f32 %v6385, %v5086
  %v6387 = vmul.f32 %v6386, %v6385
  %v6388 = vmul.f32 0.5, %v6387
  %v6389 = vsub.f32 1.5, %v6388
  %v6390 = vmul.f32 %v6385, %v6389
  %vm6391 = vweird.f32 %v5086
  %vm6392 = vweird.f32 %v6385
  %vm6393 = vmor %vm6391, %vm6392
  %v6394 = vsel %vm6393, %v6385, %v6390
  %v6395 = vrsqrt.pop %v5087
  %v6396 = vmul.f32 %v6395, %v5087
  %v6397 = vmul.f32 %v6396, %v6395
  %v6398 = vmul.f32 0.5, %v6397
  %v6399 = vsub.f32 1.5, %v6398
  %v6400 = vmul.f32 %v6395, %v6399
  %vm6401 = vweird.f32 %v5087
  %vm6402 = vweird.f32 %v6395
  %vm6403 = vmor %vm6401, %vm6402
  %v6404 = vsel %vm6403, %v6395, %v6400
  %v6405 = vrsqrt.pop %v5088
  %v6406 = vmul.f32 %v6405, %v5088
  %v6407 = vmul.f32 %v6406, %v6405
  %v6408 = vmul.f32 0.5, %v6407
  %v6409 = vsub.f32 1.5, %v6408
  %v6410 = vmul.f32 %v6405, %v6409
  %vm6411 = vweird.f32 %v5088
  %vm6412 = vweird.f32 %v6405
  %vm6413 = vmor %vm6411, %vm6412
  %v6414 = vsel %vm6413, %v6405, %v6410
  %v6415 = vrsqrt.pop %v5089
  %v6416 = vmul.f32 %v6415, %v5089
  %v6417 = vmul.f32 %v6416, %v6415
  %v6418 = vmul.f32 0.5, %v6417
  %v6419 = vsub.f32 1.5, %v6418
  %v6420 = vmul.f32 %v6415, %v6419
  %vm6421 = vweird.f32 %v5089
  %vm6422 = vweird.f32 %v6415
  %vm6423 = vmor %vm6421, %vm6422
  %v6424 = vsel %vm6423, %v6415, %v6420
  %v6425 = vrsqrt.pop %v5090
  %v6426 = vmul.f32 %v6425, %v5090
  %v6427 = vmul.f32 %v6426, %v6425
  %v6428 = vmul.f32 0.5, %v6427
  %v6429 = vsub.f32 1.5, %v6428
  %v6430 = vmul.f32 %v6425, %v6429
  %vm6431 = vweird.f32 %v5090
  %vm6432 = vweird.f32 %v6425
  %vm6433 = vmor %vm6431, %vm6432
  %v6434 = vsel %vm6433, %v6425, %v6430
  %v6435 = vrsqrt.pop %v5091
  %v6436 = vmul.f32 %v6435, %v5091
  %v6437 = vmul.f32 %v6436, %v6435
  %v6438 = vmul.f32 0.5, %v6437
  %v6439 = vsub.f32 1.5, %v6438
  %v6440 = vmul.f32 %v6435, %v6439
  %vm6441 = vweird.f32 %v5091
  %vm6442 = vweird.f32 %v6435
  %vm6443 = vmor %vm6441, %vm6442
  %v6444 = vsel %vm6443, %v6435, %v6440
  %v6445 = vrsqrt.pop %v5092
  %v6446 = vmul.f32 %v6445, %v5092
  %v6447 = vmul.f32 %v6446, %v6445
  %v6448 = vmul.f32 0.5, %v6447
  %v6449 = vsub.f32 1.5, %v6448
  %v6450 = vmul.f32 %v6445, %v6449
  %vm6451 = vweird.f32 %v5092
  %vm6452 = vweird.f32 %v6445
  %vm6453 = vmor %vm6451, %vm6452
  %v6454 = vsel %vm6453, %v6445, %v6450
  %v6455 = vrsqrt.pop %v5093
  %v6456 = vmul.f32 %v6455, %v5093
  %v6457 = vmul.f32 %v6456, %v6455
  %v6458 = vmul.f32 0.5, %v6457
  %v6459 = vsub.f32 1.5, %v6458
  %v6460 = vmul.f32 %v6455, %v6459
  %vm6461 = vweird.f32 %v5093
  %vm6462 = vweird.f32 %v6455
  %vm6463 = vmor %vm6461, %vm6462
  %v6464 = vsel %vm6463, %v6455, %v6460
  %v6465 = vrsqrt.pop %v5094
  %v6466 = vmul.f32 %v6465, %v5094
  %v6467 = vmul.f32 %v6466, %v6465
  %v6468 = vmul.f32 0.5, %v6467
  %v6469 = vsub.f32 1.5, %v6468
  %v6470 = vmul.f32 %v6465, %v6469
  %vm6471 = vweird.f32 %v5094
  %vm6472 = vweird.f32 %v6465
  %vm6473 = vmor %vm6471, %vm6472
  %v6474 = vsel %vm6473, %v6465, %v6470
  %v6475 = vrsqrt.pop %v5095
  %v6476 = vmul.f32 %v6475, %v5095
  %v6477 = vmul.f32 %v6476, %v6475
  %v6478 = vmul.f32 0.5, %v6477
  %v6479 = vsub.f32 1.5, %v6478
  %v6480 = vmul.f32 %v6475, %v6479
  %vm6481 = vweird.f32 %v5095
  %vm6482 = vweird.f32 %v6475
  %vm6483 = vmor %vm6481, %vm6482
  %v6484 = vsel %vm6483, %v6475, %v6480
  %v6485 = vrsqrt.pop %v5096
  %v6486 = vmul.f32 %v6485, %v5096
  %v6487 = vmul.f32 %v6486, %v6485
  %v6488 = vmul.f32 0.5, %v6487
  %v6489 = vsub.f32 1.5, %v6488
  %v6490 = vmul.f32 %v6485, %v6489
  %vm6491 = vweird.f32 %v5096
  %vm6492 = vweird.f32 %v6485
  %vm6493 = vmor %vm6491, %vm6492
  %v6494 = vsel %vm6493, %v6485, %v6490
  %v6495 = vrsqrt.pop %v5097
  %v6496 = vmul.f32 %v6495, %v5097
  %v6497 = vmul.f32 %v6496, %v6495
  %v6498 = vmul.f32 0.5, %v6497
  %v6499 = vsub.f32 1.5, %v6498
  %v6500 = vmul.f32 %v6495, %v6499
  %vm6501 = vweird.f32 %v5097
  %vm6502 = vweird.f32 %v6495
  %vm6503 = vmor %vm6501, %vm6502
  %v6504 = vsel %vm6503, %v6495, %v6500
  %v6505 = vrsqrt.pop %v5098
  %v6506 = vmul.f32 %v6505, %v5098
  %v6507 = vmul.f32 %v6506, %v6505
  %v6508 = vmul.f32 0.5, %v6507
  %v6509 = vsub.f32 1.5, %v6508
  %v6510 = vmul.f32 %v6505, %v6509
  %vm6511 = vweird.f32 %v5098
  %vm6512 = vweird.f32 %v6505
  %vm6513 = vmor %vm6511, %vm6512
  %v6514 = vsel %vm6513, %v6505, %v6510
  %v6515 = vrsqrt.pop %v5099
  %v6516 = vmul.f32 %v6515, %v5099
  %v6517 = vmul.f32 %v6516, %v6515
  %v6518 = vmul.f32 0.5, %v6517
  %v6519 = vsub.f32 1.5, %v6518
  %v6520 = vmul.f32 %v6515, %v6519
  %vm6521 = vweird.f32 %v5099
  %vm6522 = vweird.f32 %v6515
  %vm6523 = vmor %vm6521, %vm6522
  %v6524 = vsel %vm6523, %v6515, %v6520
  %v6525 = vrsqrt.pop %v5100
  %v6526 = vmul.f32 %v6525, %v5100
  %v6527 = vmul.f32 %v6526, %v6525
  %v6528 = vmul.f32 0.5, %v6527
  %v6529 = vsub.f32 1.5, %v6528
  %v6530 = vmul.f32 %v6525, %v6529
  %vm6531 = vweird.f32 %v5100
  %vm6532 = vweird.f32 %v6525
  %vm6533 = vmor %vm6531, %vm6532
  %v6534 = vsel %vm6533, %v6525, %v6530
  %v6535 = vrsqrt.pop %v5101
  %v6536 = vmul.f32 %v6535, %v5101
  %v6537 = vmul.f32 %v6536, %v6535
  %v6538 = vmul.f32 0.5, %v6537
  %v6539 = vsub.f32 1.5, %v6538
  %v6540 = vmul.f32 %v6535, %v6539
  %vm6541 = vweird.f32 %v5101
  %vm6542 = vweird.f32 %v6535
  %vm6543 = vmor %vm6541, %vm6542
  %v6544 = vsel %vm6543, %v6535, %v6540
  %v6545 = vrsqrt.pop %v5102
  %v6546 = vmul.f32 %v6545, %v5102
  %v6547 = vmul.f32 %v6546, %v6545
  %v6548 = vmul.f32 0.5, %v6547
  %v6549 = vsub.f32 1.5, %v6548
  %v6550 = vmul.f32 %v6545, %v6549
  %vm6551 = vweird.f32 %v5102
  %vm6552 = vweird.f32 %v6545
  %vm6553 = vmor %vm6551, %vm6552
  %v6554 = vsel %vm6553, %v6545, %v6550
  %v6555 = vrsqrt.pop %v5103
  %v6556 = vmul.f32 %v6555, %v5103
  %v6557 = vmul.f32 %v6556, %v6555
  %v6558 = vmul.f32 0.5, %v6557
  %v6559 = vsub.f32 1.5, %v6558
  %v6560 = vmul.f32 %v6555, %v6559
  %vm6561 = vweird.f32 %v5103
  %vm6562 = vweird.f32 %v6555
  %vm6563 = vmor %vm6561, %vm6562
  %v6564 = vsel %vm6563, %v6555, %v6560
  %v6565 = vrsqrt.pop %v5104
  %v6566 = vmul.f32 %v6565, %v5104
  %v6567 = vmul.f32 %v6566, %v6565
  %v6568 = vmul.f32 0.5, %v6567
  %v6569 = vsub.f32 1.5, %v6568
  %v6570 = vmul.f32 %v6565, %v6569
  %vm6571 = vweird.f32 %v5104
  %vm6572 = vweird.f32 %v6565
  %vm6573 = vmor %vm6571, %vm6572
  %v6574 = vsel %vm6573, %v6565, %v6570
  %v6575 = vrsqrt.pop %v5105
  %v6576 = vmul.f32 %v6575, %v5105
  %v6577 = vmul.f32 %v6576, %v6575
  %v6578 = vmul.f32 0.5, %v6577
  %v6579 = vsub.f32 1.5, %v6578
  %v6580 = vmul.f32 %v6575, %v6579
  %vm6581 = vweird.f32 %v5105
  %vm6582 = vweird.f32 %v6575
  %vm6583 = vmor %vm6581, %vm6582
  %v6584 = vsel %vm6583, %v6575, %v6580
  %v6585 = vrsqrt.pop %v5106
  %v6586 = vmul.f32 %v6585, %v5106
  %v6587 = vmul.f32 %v6586, %v6585
  %v6588 = vmul.f32 0.5, %v6587
  %v6589 = vsub.f32 1.5, %v6588
  %v6590 = vmul.f32 %v6585, %v6589
  %vm6591 = vweird.f32 %v5106
  %vm6592 = vweird.f32 %v6585
  %vm6593 = vmor %vm6591, %vm6592
  %v6594 = vsel %vm6593, %v6585, %v6590
  %v6595 = vrsqrt.pop %v5107
  %v6596 = vmul.f32 %v6595, %v5107
  %v6597 = vmul.f32 %v6596, %v6595
  %v6598 = vmul.f32 0.5, %v6597
  %v6599 = vsub.f32 1.5, %v6598
  %v6600 = vmul.f32 %v6595, %v6599
  %vm6601 = vweird.f32 %v5107
  %vm6602 = vweird.f32 %v6595
  %vm6603 = vmor %vm6601, %vm6602
  %v6604 = vsel %vm6603, %v6595, %v6600
  %v6605 = vrsqrt.pop %v5108
  %v6606 = vmul.f32 %v6605, %v5108
  %v6607 = vmul.f32 %v6606, %v6605
  %v6608 = vmul.f32 0.5, %v6607
  %v6609 = vsub.f32 1.5, %v6608
  %v6610 = vmul.f32 %v6605, %v6609
  %vm6611 = vweird.f32 %v5108
  %vm6612 = vweird.f32 %v6605
  %vm6613 = vmor %vm6611, %vm6612
  %v6614 = vsel %vm6613, %v6605, %v6610
  %v6615 = vrsqrt.pop %v5109
  %v6616 = vmul.f32 %v6615, %v5109
  %v6617 = vmul.f32 %v6616, %v6615
  %v6618 = vmul.f32 0.5, %v6617
  %v6619 = vsub.f32 1.5, %v6618
  %v6620 = vmul.f32 %v6615, %v6619
  %vm6621 = vweird.f32 %v5109
  %vm6622 = vweird.f32 %v6615
  %vm6623 = vmor %vm6621, %vm6622
  %v6624 = vsel %vm6623, %v6615, %v6620
  %v6625 = vrsqrt.pop %v5110
  %v6626 = vmul.f32 %v6625, %v5110
  %v6627 = vmul.f32 %v6626, %v6625
  %v6628 = vmul.f32 0.5, %v6627
  %v6629 = vsub.f32 1.5, %v6628
  %v6630 = vmul.f32 %v6625, %v6629
  %vm6631 = vweird.f32 %v5110
  %vm6632 = vweird.f32 %v6625
  %vm6633 = vmor %vm6631, %vm6632
  %v6634 = vsel %vm6633, %v6625, %v6630
  %v6635 = vrsqrt.pop %v5111
  %v6636 = vmul.f32 %v6635, %v5111
  %v6637 = vmul.f32 %v6636, %v6635
  %v6638 = vmul.f32 0.5, %v6637
  %v6639 = vsub.f32 1.5, %v6638
  %v6640 = vmul.f32 %v6635, %v6639
  %vm6641 = vweird.f32 %v5111
  %vm6642 = vweird.f32 %v6635
  %vm6643 = vmor %vm6641, %vm6642
  %v6644 = vsel %vm6643, %v6635, %v6640
  %v6645 = vrsqrt.pop %v5112
  %v6646 = vmul.f32 %v6645, %v5112
  %v6647 = vmul.f32 %v6646, %v6645
  %v6648 = vmul.f32 0.5, %v6647
  %v6649 = vsub.f32 1.5, %v6648
  %v6650 = vmul.f32 %v6645, %v6649
  %vm6651 = vweird.f32 %v5112
  %vm6652 = vweird.f32 %v6645
  %vm6653 = vmor %vm6651, %vm6652
  %v6654 = vsel %vm6653, %v6645, %v6650
  %v6655 = vrsqrt.pop %v5113
  %v6656 = vmul.f32 %v6655, %v5113
  %v6657 = vmul.f32 %v6656, %v6655
  %v6658 = vmul.f32 0.5, %v6657
  %v6659 = vsub.f32 1.5, %v6658
  %v6660 = vmul.f32 %v6655, %v6659
  %vm6661 = vweird.f32 %v5113
  %vm6662 = vweird.f32 %v6655
  %vm6663 = vmor %vm6661, %vm6662
  %v6664 = vsel %vm6663, %v6655, %v6660
  %v6665 = vrsqrt.pop %v5114
  %v6666 = vmul.f32 %v6665, %v5114
  %v6667 = vmul.f32 %v6666, %v6665
  %v6668 = vmul.f32 0.5, %v6667
  %v6669 = vsub.f32 1.5, %v6668
  %v6670 = vmul.f32 %v6665, %v6669
  %vm6671 = vweird.f32 %v5114
  %vm6672 = vweird.f32 %v6665
  %vm6673 = vmor %vm6671, %vm6672
  %v6674 = vsel %vm6673, %v6665, %v6670
  %v6675 = vrsqrt.pop %v5115
  %v6676 = vmul.f32 %v6675, %v5115
  %v6677 = vmul.f32 %v6676, %v6675
  %v6678 = vmul.f32 0.5, %v6677
  %v6679 = vsub.f32 1.5, %v6678
  %v6680 = vmul.f32 %v6675, %v6679
  %vm6681 = vweird.f32 %v5115
  %vm6682 = vweird.f32 %v6675
  %vm6683 = vmor %vm6681, %vm6682
  %v6684 = vsel %vm6683, %v6675, %v6680
  %v6685 = vrsqrt.pop %v5116
  %v6686 = vmul.f32 %v6685, %v5116
  %v6687 = vmul.f32 %v6686, %v6685
  %v6688 = vmul.f32 0.5, %v6687
  %v6689 = vsub.f32 1.5, %v6688
  %v6690 = vmul.f32 %v6685, %v6689
  %vm6691 = vweird.f32 %v5116
  %vm6692 = vweird.f32 %v6685
  %vm6693 = vmor %vm6691, %vm6692
  %v6694 = vsel %vm6693, %v6685, %v6690
  %v6695 = vrsqrt.pop %v5117
  %v6696 = vmul.f32 %v6695, %v5117
  %v6697 = vmul.f32 %v6696, %v6695
  %v6698 = vmul.f32 0.5, %v6697
  %v6699 = vsub.f32 1.5, %v6698
  %v6700 = vmul.f32 %v6695, %v6699
  %vm6701 = vweird.f32 %v5117
  %vm6702 = vweird.f32 %v6695
  %vm6703 = vmor %vm6701, %vm6702
  %v6704 = vsel %vm6703, %v6695, %v6700
  %v6705 = vrsqrt.pop %v5118
  %v6706 = vmul.f32 %v6705, %v5118
  %v6707 = vmul.f32 %v6706, %v6705
  %v6708 = vmul.f32 0.5, %v6707
  %v6709 = vsub.f32 1.5, %v6708
  %v6710 = vmul.f32 %v6705, %v6709
  %vm6711 = vweird.f32 %v5118
  %vm6712 = vweird.f32 %v6705
  %vm6713 = vmor %vm6711, %vm6712
  %v6714 = vsel %vm6713, %v6705, %v6710
  %v6715 = vrsqrt.pop %v5119
  %v6716 = vmul.f32 %v6715, %v5119
  %v6717 = vmul.f32 %v6716, %v6715
  %v6718 = vmul.f32 0.5, %v6717
  %v6719 = vsub.f32 1.5, %v6718
  %v6720 = vmul.f32 %v6715, %v6719
  %vm6721 = vweird.f32 %v5119
  %vm6722 = vweird.f32 %v6715
  %vm6723 = vmor %vm6721, %vm6722
  %v6724 = vsel %vm6723, %v6715, %v6720
  %v6725 = vrsqrt.pop %v5120
  %v6726 = vmul.f32 %v6725, %v5120
  %v6727 = vmul.f32 %v6726, %v6725
  %v6728 = vmul.f32 0.5, %v6727
  %v6729 = vsub.f32 1.5, %v6728
  %v6730 = vmul.f32 %v6725, %v6729
  %vm6731 = vweird.f32 %v5120
  %vm6732 = vweird.f32 %v6725
  %vm6733 = vmor %vm6731, %vm6732
  %v6734 = vsel %vm6733, %v6725, %v6730
  %v6735 = vrsqrt.pop %v5121
  %v6736 = vmul.f32 %v6735, %v5121
  %v6737 = vmul.f32 %v6736, %v6735
  %v6738 = vmul.f32 0.5, %v6737
  %v6739 = vsub.f32 1.5, %v6738
  %v6740 = vmul.f32 %v6735, %v6739
  %vm6741 = vweird.f32 %v5121
  %vm6742 = vweird.f32 %v6735
  %vm6743 = vmor %vm6741, %vm6742
  %v6744 = vsel %vm6743, %v6735, %v6740
  %v6745 = vrsqrt.pop %v5122
  %v6746 = vmul.f32 %v6745, %v5122
  %v6747 = vmul.f32 %v6746, %v6745
  %v6748 = vmul.f32 0.5, %v6747
  %v6749 = vsub.f32 1.5, %v6748
  %v6750 = vmul.f32 %v6745, %v6749
  %vm6751 = vweird.f32 %v5122
  %vm6752 = vweird.f32 %v6745
  %vm6753 = vmor %vm6751, %vm6752
  %v6754 = vsel %vm6753, %v6745, %v6750
  %v6755 = vrsqrt.pop %v5123
  %v6756 = vmul.f32 %v6755, %v5123
  %v6757 = vmul.f32 %v6756, %v6755
  %v6758 = vmul.f32 0.5, %v6757
  %v6759 = vsub.f32 1.5, %v6758
  %v6760 = vmul.f32 %v6755, %v6759
  %vm6761 = vweird.f32 %v5123
  %vm6762 = vweird.f32 %v6755
  %vm6763 = vmor %vm6761, %vm6762
  %v6764 = vsel %vm6763, %v6755, %v6760
  %v6765 = vrsqrt.pop %v5124
  %v6766 = vmul.f32 %v6765, %v5124
  %v6767 = vmul.f32 %v6766, %v6765
  %v6768 = vmul.f32 0.5, %v6767
  %v6769 = vsub.f32 1.5, %v6768
  %v6770 = vmul.f32 %v6765, %v6769
  %vm6771 = vweird.f32 %v5124
  %vm6772 = vweird.f32 %v6765
  %vm6773 = vmor %vm6771, %vm6772
  %v6774 = vsel %vm6773, %v6765, %v6770
  %v6775 = vrsqrt.pop %v5125
  %v6776 = vmul.f32 %v6775, %v5125
  %v6777 = vmul.f32 %v6776, %v6775
  %v6778 = vmul.f32 0.5, %v6777
  %v6779 = vsub.f32 1.5, %v6778
  %v6780 = vmul.f32 %v6775, %v6779
  %vm6781 = vweird.f32 %v5125
  %vm6782 = vweird.f32 %v6775
  %vm6783 = vmor %vm6781, %vm6782
  %v6784 = vsel %vm6783, %v6775, %v6780
  %v6785 = vrsqrt.pop %v5126
  %v6786 = vmul.f32 %v6785, %v5126
  %v6787 = vmul.f32 %v6786, %v6785
  %v6788 = vmul.f32 0.5, %v6787
  %v6789 = vsub.f32 1.5, %v6788
  %v6790 = vmul.f32 %v6785, %v6789
  %vm6791 = vweird.f32 %v5126
  %vm6792 = vweird.f32 %v6785
  %vm6793 = vmor %vm6791, %vm6792
  %v6794 = vsel %vm6793, %v6785, %v6790
  %v6795 = vrsqrt.pop %v5127
  %v6796 = vmul.f32 %v6795, %v5127
  %v6797 = vmul.f32 %v6796, %v6795
  %v6798 = vmul.f32 0.5, %v6797
  %v6799 = vsub.f32 1.5, %v6798
  %v6800 = vmul.f32 %v6795, %v6799
  %vm6801 = vweird.f32 %v5127
  %vm6802 = vweird.f32 %v6795
  %vm6803 = vmor %vm6801, %vm6802
  %v6804 = vsel %vm6803, %v6795, %v6800
  %v6805 = vrsqrt.pop %v5128
  %v6806 = vmul.f32 %v6805, %v5128
  %v6807 = vmul.f32 %v6806, %v6805
  %v6808 = vmul.f32 0.5, %v6807
  %v6809 = vsub.f32 1.5, %v6808
  %v6810 = vmul.f32 %v6805, %v6809
  %vm6811 = vweird.f32 %v5128
  %vm6812 = vweird.f32 %v6805
  %vm6813 = vmor %vm6811, %vm6812
  %v6814 = vsel %vm6813, %v6805, %v6810
  %v6815 = vrsqrt.pop %v5129
  %v6816 = vmul.f32 %v6815, %v5129
  %v6817 = vmul.f32 %v6816, %v6815
  %v6818 = vmul.f32 0.5, %v6817
  %v6819 = vsub.f32 1.5, %v6818
  %v6820 = vmul.f32 %v6815, %v6819
  %vm6821 = vweird.f32 %v5129
  %vm6822 = vweird.f32 %v6815
  %vm6823 = vmor %vm6821, %vm6822
  %v6824 = vsel %vm6823, %v6815, %v6820
  %v6825 = vrsqrt.pop %v5130
  %v6826 = vmul.f32 %v6825, %v5130
  %v6827 = vmul.f32 %v6826, %v6825
  %v6828 = vmul.f32 0.5, %v6827
  %v6829 = vsub.f32 1.5, %v6828
  %v6830 = vmul.f32 %v6825, %v6829
  %vm6831 = vweird.f32 %v5130
  %vm6832 = vweird.f32 %v6825
  %vm6833 = vmor %vm6831, %vm6832
  %v6834 = vsel %vm6833, %v6825, %v6830
  %v6835 = vrsqrt.pop %v5131
  %v6836 = vmul.f32 %v6835, %v5131
  %v6837 = vmul.f32 %v6836, %v6835
  %v6838 = vmul.f32 0.5, %v6837
  %v6839 = vsub.f32 1.5, %v6838
  %v6840 = vmul.f32 %v6835, %v6839
  %vm6841 = vweird.f32 %v5131
  %vm6842 = vweird.f32 %v6835
  %vm6843 = vmor %vm6841, %vm6842
  %v6844 = vsel %vm6843, %v6835, %v6840
  %v6845 = vrsqrt.pop %v5132
  %v6846 = vmul.f32 %v6845, %v5132
  %v6847 = vmul.f32 %v6846, %v6845
  %v6848 = vmul.f32 0.5, %v6847
  %v6849 = vsub.f32 1.5, %v6848
  %v6850 = vmul.f32 %v6845, %v6849
  %vm6851 = vweird.f32 %v5132
  %vm6852 = vweird.f32 %v6845
  %vm6853 = vmor %vm6851, %vm6852
  %v6854 = vsel %vm6853, %v6845, %v6850
  %v6855 = vrsqrt.pop %v5133
  %v6856 = vmul.f32 %v6855, %v5133
  %v6857 = vmul.f32 %v6856, %v6855
  %v6858 = vmul.f32 0.5, %v6857
  %v6859 = vsub.f32 1.5, %v6858
  %v6860 = vmul.f32 %v6855, %v6859
  %vm6861 = vweird.f32 %v5133
  %vm6862 = vweird.f32 %v6855
  %vm6863 = vmor %vm6861, %vm6862
  %v6864 = vsel %vm6863, %v6855, %v6860
  %v6865 = vrsqrt.pop %v5134
  %v6866 = vmul.f32 %v6865, %v5134
  %v6867 = vmul.f32 %v6866, %v6865
  %v6868 = vmul.f32 0.5, %v6867
  %v6869 = vsub.f32 1.5, %v6868
  %v6870 = vmul.f32 %v6865, %v6869
  %vm6871 = vweird.f32 %v5134
  %vm6872 = vweird.f32 %v6865
  %vm6873 = vmor %vm6871, %vm6872
  %v6874 = vsel %vm6873, %v6865, %v6870
  %v6875 = vrsqrt.pop %v5135
  %v6876 = vmul.f32 %v6875, %v5135
  %v6877 = vmul.f32 %v6876, %v6875
  %v6878 = vmul.f32 0.5, %v6877
  %v6879 = vsub.f32 1.5, %v6878
  %v6880 = vmul.f32 %v6875, %v6879
  %vm6881 = vweird.f32 %v5135
  %vm6882 = vweird.f32 %v6875
  %vm6883 = vmor %vm6881, %vm6882
  %v6884 = vsel %vm6883, %v6875, %v6880
  %v6885 = vrsqrt.pop %v5136
  %v6886 = vmul.f32 %v6885, %v5136
  %v6887 = vmul.f32 %v6886, %v6885
  %v6888 = vmul.f32 0.5, %v6887
  %v6889 = vsub.f32 1.5, %v6888
  %v6890 = vmul.f32 %v6885, %v6889
  %vm6891 = vweird.f32 %v5136
  %vm6892 = vweird.f32 %v6885
  %vm6893 = vmor %vm6891, %vm6892
  %v6894 = vsel %vm6893, %v6885, %v6890
  %v6895 = vrsqrt.pop %v5137
  %v6896 = vmul.f32 %v6895, %v5137
  %v6897 = vmul.f32 %v6896, %v6895
  %v6898 = vmul.f32 0.5, %v6897
  %v6899 = vsub.f32 1.5, %v6898
  %v6900 = vmul.f32 %v6895, %v6899
  %vm6901 = vweird.f32 %v5137
  %vm6902 = vweird.f32 %v6895
  %vm6903 = vmor %vm6901, %vm6902
  %v6904 = vsel %vm6903, %v6895, %v6900
  %v6905 = vrsqrt.pop %v5138
  %v6906 = vmul.f32 %v6905, %v5138
  %v6907 = vmul.f32 %v6906, %v6905
  %v6908 = vmul.f32 0.5, %v6907
  %v6909 = vsub.f32 1.5, %v6908
  %v6910 = vmul.f32 %v6905, %v6909
  %vm6911 = vweird.f32 %v5138
  %vm6912 = vweird.f32 %v6905
  %vm6913 = vmor %vm6911, %vm6912
  %v6914 = vsel %vm6913, %v6905, %v6910
  %v6915 = vrsqrt.pop %v5139
  %v6916 = vmul.f32 %v6915, %v5139
  %v6917 = vmul.f32 %v6916, %v6915
  %v6918 = vmul.f32 0.5, %v6917
  %v6919 = vsub.f32 1.5, %v6918
  %v6920 = vmul.f32 %v6915, %v6919
  %vm6921 = vweird.f32 %v5139
  %vm6922 = vweird.f32 %v6915
  %vm6923 = vmor %vm6921, %vm6922
  %v6924 = vsel %vm6923, %v6915, %v6920
  %v6925 = vrsqrt.pop %v5140
  %v6926 = vmul.f32 %v6925, %v5140
  %v6927 = vmul.f32 %v6926, %v6925
  %v6928 = vmul.f32 0.5, %v6927
  %v6929 = vsub.f32 1.5, %v6928
  %v6930 = vmul.f32 %v6925, %v6929
  %vm6931 = vweird.f32 %v5140
  %vm6932 = vweird.f32 %v6925
  %vm6933 = vmor %vm6931, %vm6932
  %v6934 = vsel %vm6933, %v6925, %v6930
  %v6935 = vrsqrt.pop %v5141
  %v6936 = vmul.f32 %v6935, %v5141
  %v6937 = vmul.f32 %v6936, %v6935
  %v6938 = vmul.f32 0.5, %v6937
  %v6939 = vsub.f32 1.5, %v6938
  %v6940 = vmul.f32 %v6935, %v6939
  %vm6941 = vweird.f32 %v5141
  %vm6942 = vweird.f32 %v6935
  %vm6943 = vmor %vm6941, %vm6942
  %v6944 = vsel %vm6943, %v6935, %v6940
  %v6945 = vrsqrt.pop %v5142
  %v6946 = vmul.f32 %v6945, %v5142
  %v6947 = vmul.f32 %v6946, %v6945
  %v6948 = vmul.f32 0.5, %v6947
  %v6949 = vsub.f32 1.5, %v6948
  %v6950 = vmul.f32 %v6945, %v6949
  %vm6951 = vweird.f32 %v5142
  %vm6952 = vweird.f32 %v6945
  %vm6953 = vmor %vm6951, %vm6952
  %v6954 = vsel %vm6953, %v6945, %v6950
  %v6955 = vrsqrt.pop %v5143
  %v6956 = vmul.f32 %v6955, %v5143
  %v6957 = vmul.f32 %v6956, %v6955
  %v6958 = vmul.f32 0.5, %v6957
  %v6959 = vsub.f32 1.5, %v6958
  %v6960 = vmul.f32 %v6955, %v6959
  %vm6961 = vweird.f32 %v5143
  %vm6962 = vweird.f32 %v6955
  %vm6963 = vmor %vm6961, %vm6962
  %v6964 = vsel %vm6963, %v6955, %v6960
  %v6965 = vrsqrt.pop %v5144
  %v6966 = vmul.f32 %v6965, %v5144
  %v6967 = vmul.f32 %v6966, %v6965
  %v6968 = vmul.f32 0.5, %v6967
  %v6969 = vsub.f32 1.5, %v6968
  %v6970 = vmul.f32 %v6965, %v6969
  %vm6971 = vweird.f32 %v5144
  %vm6972 = vweird.f32 %v6965
  %vm6973 = vmor %vm6971, %vm6972
  %v6974 = vsel %vm6973, %v6965, %v6970
  %v6975 = vrsqrt.pop %v5145
  %v6976 = vmul.f32 %v6975, %v5145
  %v6977 = vmul.f32 %v6976, %v6975
  %v6978 = vmul.f32 0.5, %v6977
  %v6979 = vsub.f32 1.5, %v6978
  %v6980 = vmul.f32 %v6975, %v6979
  %vm6981 = vweird.f32 %v5145
  %vm6982 = vweird.f32 %v6975
  %vm6983 = vmor %vm6981, %vm6982
  %v6984 = vsel %vm6983, %v6975, %v6980
  %v6985 = vrsqrt.pop %v5146
  %v6986 = vmul.f32 %v6985, %v5146
  %v6987 = vmul.f32 %v6986, %v6985
  %v6988 = vmul.f32 0.5, %v6987
  %v6989 = vsub.f32 1.5, %v6988
  %v6990 = vmul.f32 %v6985, %v6989
  %vm6991 = vweird.f32 %v5146
  %vm6992 = vweird.f32 %v6985
  %vm6993 = vmor %vm6991, %vm6992
  %v6994 = vsel %vm6993, %v6985, %v6990
  %v6995 = vrsqrt.pop %v5147
  %v6996 = vmul.f32 %v6995, %v5147
  %v6997 = vmul.f32 %v6996, %v6995
  %v6998 = vmul.f32 0.5, %v6997
  %v6999 = vsub.f32 1.5, %v6998
  %v7000 = vmul.f32 %v6995, %v6999
  %vm7001 = vweird.f32 %v5147
  %vm7002 = vweird.f32 %v6995
  %vm7003 = vmor %vm7001, %vm7002
  %v7004 = vsel %vm7003, %v6995, %v7000
  %v7005 = vrsqrt.pop %v5148
  %v7006 = vmul.f32 %v7005, %v5148
  %v7007 = vmul.f32 %v7006, %v7005
  %v7008 = vmul.f32 0.5, %v7007
  %v7009 = vsub.f32 1.5, %v7008
  %v7010 = vmul.f32 %v7005, %v7009
  %vm7011 = vweird.f32 %v5148
  %vm7012 = vweird.f32 %v7005
  %vm7013 = vmor %vm7011, %vm7012
  %v7014 = vsel %vm7013, %v7005, %v7010
  %v7015 = vrsqrt.pop %v5149
  %v7016 = vmul.f32 %v7015, %v5149
  %v7017 = vmul.f32 %v7016, %v7015
  %v7018 = vmul.f32 0.5, %v7017
  %v7019 = vsub.f32 1.5, %v7018
  %v7020 = vmul.f32 %v7015, %v7019
  %vm7021 = vweird.f32 %v5149
  %vm7022 = vweird.f32 %v7015
  %vm7023 = vmor %vm7021, %vm7022
  %v7024 = vsel %vm7023, %v7015, %v7020
  %v7025 = vrsqrt.pop %v5150
  %v7026 = vmul.f32 %v7025, %v5150
  %v7027 = vmul.f32 %v7026, %v7025
  %v7028 = vmul.f32 0.5, %v7027
  %v7029 = vsub.f32 1.5, %v7028
  %v7030 = vmul.f32 %v7025, %v7029
  %vm7031 = vweird.f32 %v5150
  %vm7032 = vweird.f32 %v7025
  %vm7033 = vmor %vm7031, %vm7032
  %v7034 = vsel %vm7033, %v7025, %v7030
  %v7035 = vrsqrt.pop %v5151
  %v7036 = vmul.f32 %v7035, %v5151
  %v7037 = vmul.f32 %v7036, %v7035
  %v7038 = vmul.f32 0.5, %v7037
  %v7039 = vsub.f32 1.5, %v7038
  %v7040 = vmul.f32 %v7035, %v7039
  %vm7041 = vweird.f32 %v5151
  %vm7042 = vweird.f32 %v7035
  %vm7043 = vmor %vm7041, %vm7042
  %v7044 = vsel %vm7043, %v7035, %v7040
  %v7045 = vrsqrt.pop %v5152
  %v7046 = vmul.f32 %v7045, %v5152
  %v7047 = vmul.f32 %v7046, %v7045
  %v7048 = vmul.f32 0.5, %v7047
  %v7049 = vsub.f32 1.5, %v7048
  %v7050 = vmul.f32 %v7045, %v7049
  %vm7051 = vweird.f32 %v5152
  %vm7052 = vweird.f32 %v7045
  %vm7053 = vmor %vm7051, %vm7052
  %v7054 = vsel %vm7053, %v7045, %v7050
  %v7055 = vrsqrt.pop %v5153
  %v7056 = vmul.f32 %v7055, %v5153
  %v7057 = vmul.f32 %v7056, %v7055
  %v7058 = vmul.f32 0.5, %v7057
  %v7059 = vsub.f32 1.5, %v7058
  %v7060 = vmul.f32 %v7055, %v7059
  %vm7061 = vweird.f32 %v5153
  %vm7062 = vweird.f32 %v7055
  %vm7063 = vmor %vm7061, %vm7062
  %v7064 = vsel %vm7063, %v7055, %v7060
  %v7065 = vrsqrt.pop %v5154
  %v7066 = vmul.f32 %v7065, %v5154
  %v7067 = vmul.f32 %v7066, %v7065
  %v7068 = vmul.f32 0.5, %v7067
  %v7069 = vsub.f32 1.5, %v7068
  %v7070 = vmul.f32 %v7065, %v7069
  %vm7071 = vweird.f32 %v5154
  %vm7072 = vweird.f32 %v7065
  %vm7073 = vmor %vm7071, %vm7072
  %v7074 = vsel %vm7073, %v7065, %v7070
  %v7075 = vmul.f32 %v5164, %v1084
  %v7076 = vmul.f32 %v5174, %v1085
  %v7077 = vmul.f32 %v5184, %v1086
  %v7078 = vmul.f32 %v5194, %v1087
  %v7079 = vmul.f32 %v5204, %v1088
  %v7080 = vmul.f32 %v5214, %v1089
  %v7081 = vmul.f32 %v5224, %v1090
  %v7082 = vmul.f32 %v5234, %v1091
  %v7083 = vmul.f32 %v5244, %v1092
  %v7084 = vmul.f32 %v5254, %v1093
  %v7085 = vmul.f32 %v5264, %v1094
  %v7086 = vmul.f32 %v5274, %v1095
  %v7087 = vmul.f32 %v5284, %v1096
  %v7088 = vmul.f32 %v5294, %v1097
  %v7089 = vmul.f32 %v5304, %v1098
  %v7090 = vmul.f32 %v5314, %v1099
  %v7091 = vmul.f32 %v5324, %v1100
  %v7092 = vmul.f32 %v5334, %v1101
  %v7093 = vmul.f32 %v5344, %v1102
  %v7094 = vmul.f32 %v5354, %v1103
  %v7095 = vmul.f32 %v5364, %v1104
  %v7096 = vmul.f32 %v5374, %v1105
  %v7097 = vmul.f32 %v5384, %v1106
  %v7098 = vmul.f32 %v5394, %v1107
  %v7099 = vmul.f32 %v5404, %v1108
  %v7100 = vmul.f32 %v5414, %v1109
  %v7101 = vmul.f32 %v5424, %v1110
  %v7102 = vmul.f32 %v5434, %v1111
  %v7103 = vmul.f32 %v5444, %v1112
  %v7104 = vmul.f32 %v5454, %v1113
  %v7105 = vmul.f32 %v5464, %v1114
  %v7106 = vmul.f32 %v5474, %v1115
  %v7107 = vmul.f32 %v5484, %v1116
  %v7108 = vmul.f32 %v5494, %v1117
  %v7109 = vmul.f32 %v5504, %v1118
  %v7110 = vmul.f32 %v5514, %v1119
  %v7111 = vmul.f32 %v5524, %v1120
  %v7112 = vmul.f32 %v5534, %v1121
  %v7113 = vmul.f32 %v5544, %v1122
  %v7114 = vmul.f32 %v5554, %v1123
  %v7115 = vmul.f32 %v5564, %v1124
  %v7116 = vmul.f32 %v5574, %v1125
  %v7117 = vmul.f32 %v5584, %v1126
  %v7118 = vmul.f32 %v5594, %v1127
  %v7119 = vmul.f32 %v5604, %v1128
  %v7120 = vmul.f32 %v5614, %v1129
  %v7121 = vmul.f32 %v5624, %v1130
  %v7122 = vmul.f32 %v5634, %v1131
  %v7123 = vmul.f32 %v5644, %v1132
  %v7124 = vmul.f32 %v5654, %v1133
  %v7125 = vmul.f32 %v5664, %v1134
  %v7126 = vmul.f32 %v5674, %v1135
  %v7127 = vmul.f32 %v5684, %v1136
  %v7128 = vmul.f32 %v5694, %v1137
  %v7129 = vmul.f32 %v5704, %v1138
  %v7130 = vmul.f32 %v5714, %v1139
  %v7131 = vmul.f32 %v5724, %v1140
  %v7132 = vmul.f32 %v5734, %v1141
  %v7133 = vmul.f32 %v5744, %v1142
  %v7134 = vmul.f32 %v5754, %v1143
  %v7135 = vmul.f32 %v5764, %v1144
  %v7136 = vmul.f32 %v5774, %v1145
  %v7137 = vmul.f32 %v5784, %v1146
  %v7138 = vmul.f32 %v5794, %v1147
  %v7139 = vmul.f32 %v5804, %v1148
  %v7140 = vmul.f32 %v5814, %v1149
  %v7141 = vmul.f32 %v5824, %v1150
  %v7142 = vmul.f32 %v5834, %v1151
  %v7143 = vmul.f32 %v5844, %v1152
  %v7144 = vmul.f32 %v5854, %v1153
  %v7145 = vmul.f32 %v5864, %v1154
  %v7146 = vmul.f32 %v5874, %v1155
  %v7147 = vmul.f32 %v5884, %v1156
  %v7148 = vmul.f32 %v5894, %v1157
  %v7149 = vmul.f32 %v5904, %v1158
  %v7150 = vmul.f32 %v5914, %v1159
  %v7151 = vmul.f32 %v5924, %v1160
  %v7152 = vmul.f32 %v5934, %v1161
  %v7153 = vmul.f32 %v5944, %v1162
  %v7154 = vmul.f32 %v5954, %v1163
  %v7155 = vmul.f32 %v5964, %v1164
  %v7156 = vmul.f32 %v5974, %v1165
  %v7157 = vmul.f32 %v5984, %v1166
  %v7158 = vmul.f32 %v5994, %v1167
  %v7159 = vmul.f32 %v6004, %v1168
  %v7160 = vmul.f32 %v6014, %v1169
  %v7161 = vmul.f32 %v6024, %v1170
  %v7162 = vmul.f32 %v6034, %v1171
  %v7163 = vmul.f32 %v6044, %v1172
  %v7164 = vmul.f32 %v6054, %v1173
  %v7165 = vmul.f32 %v6064, %v1174
  %v7166 = vmul.f32 %v6074, %v1175
  %v7167 = vmul.f32 %v6084, %v1176
  %v7168 = vmul.f32 %v6094, %v1177
  %v7169 = vmul.f32 %v6104, %v1178
  %v7170 = vmul.f32 %v6114, %v1179
  %v7171 = vmul.f32 %v6124, %v1180
  %v7172 = vmul.f32 %v6134, %v1181
  %v7173 = vmul.f32 %v6144, %v1182
  %v7174 = vmul.f32 %v6154, %v1183
  %v7175 = vmul.f32 %v6164, %v1184
  %v7176 = vmul.f32 %v6174, %v1185
  %v7177 = vmul.f32 %v6184, %v1186
  %v7178 = vmul.f32 %v6194, %v1187
  %v7179 = vmul.f32 %v6204, %v1188
  %v7180 = vmul.f32 %v6214, %v1189
  %v7181 = vmul.f32 %v6224, %v1190
  %v7182 = vmul.f32 %v6234, %v1191
  %v7183 = vmul.f32 %v6244, %v1192
  %v7184 = vmul.f32 %v6254, %v1193
  %v7185 = vmul.f32 %v6264, %v1194
  %v7186 = vmul.f32 %v6274, %v1195
  %v7187 = vmul.f32 %v6284, %v1196
  %v7188 = vmul.f32 %v6294, %v1197
  %v7189 = vmul.f32 %v6304, %v1198
  %v7190 = vmul.f32 %v6314, %v1199
  %v7191 = vmul.f32 %v6324, %v1200
  %v7192 = vmul.f32 %v6334, %v1201
  %v7193 = vmul.f32 %v6344, %v1202
  %v7194 = vmul.f32 %v6354, %v1203
  %v7195 = vmul.f32 %v6364, %v1204
  %v7196 = vmul.f32 %v6374, %v1205
  %v7197 = vmul.f32 %v6384, %v1206
  %v7198 = vmul.f32 %v6394, %v1207
  %v7199 = vmul.f32 %v6404, %v1208
  %v7200 = vmul.f32 %v6414, %v1209
  %v7201 = vmul.f32 %v6424, %v1210
  %v7202 = vmul.f32 %v6434, %v1211
  %v7203 = vmul.f32 %v6444, %v1212
  %v7204 = vmul.f32 %v6454, %v1213
  %v7205 = vmul.f32 %v6464, %v1214
  %v7206 = vmul.f32 %v6474, %v1215
  %v7207 = vmul.f32 %v6484, %v1216
  %v7208 = vmul.f32 %v6494, %v1217
  %v7209 = vmul.f32 %v6504, %v1218
  %v7210 = vmul.f32 %v6514, %v1219
  %v7211 = vmul.f32 %v6524, %v1220
  %v7212 = vmul.f32 %v6534, %v1221
  %v7213 = vmul.f32 %v6544, %v1222
  %v7214 = vmul.f32 %v6554, %v1223
  %v7215 = vmul.f32 %v6564, %v1224
  %v7216 = vmul.f32 %v6574, %v1225
  %v7217 = vmul.f32 %v6584, %v1226
  %v7218 = vmul.f32 %v6594, %v1227
  %v7219 = vmul.f32 %v6604, %v1228
  %v7220 = vmul.f32 %v6614, %v1229
  %v7221 = vmul.f32 %v6624, %v1230
  %v7222 = vmul.f32 %v6634, %v1231
  %v7223 = vmul.f32 %v6644, %v1232
  %v7224 = vmul.f32 %v6654, %v1233
  %v7225 = vmul.f32 %v6664, %v1234
  %v7226 = vmul.f32 %v6674, %v1235
  %v7227 = vmul.f32 %v6684, %v1236
  %v7228 = vmul.f32 %v6694, %v1237
  %v7229 = vmul.f32 %v6704, %v1238
  %v7230 = vmul.f32 %v6714, %v1239
  %v7231 = vmul.f32 %v6724, %v1240
  %v7232 = vmul.f32 %v6734, %v1241
  %v7233 = vmul.f32 %v6744, %v1242
  %v7234 = vmul.f32 %v6754, %v1243
  %v7235 = vmul.f32 %v6764, %v1244
  %v7236 = vmul.f32 %v6774, %v1245
  %v7237 = vmul.f32 %v6784, %v1246
  %v7238 = vmul.f32 %v6794, %v1247
  %v7239 = vmul.f32 %v6804, %v1248
  %v7240 = vmul.f32 %v6814, %v1249
  %v7241 = vmul.f32 %v6824, %v1250
  %v7242 = vmul.f32 %v6834, %v1251
  %v7243 = vmul.f32 %v6844, %v1252
  %v7244 = vmul.f32 %v6854, %v1253
  %v7245 = vmul.f32 %v6864, %v1254
  %v7246 = vmul.f32 %v6874, %v1255
  %v7247 = vmul.f32 %v6884, %v1256
  %v7248 = vmul.f32 %v6894, %v1257
  %v7249 = vmul.f32 %v6904, %v1258
  %v7250 = vmul.f32 %v6914, %v1259
  %v7251 = vmul.f32 %v6924, %v1260
  %v7252 = vmul.f32 %v6934, %v1261
  %v7253 = vmul.f32 %v6944, %v1262
  %v7254 = vmul.f32 %v6954, %v1263
  %v7255 = vmul.f32 %v6964, %v1264
  %v7256 = vmul.f32 %v6974, %v1265
  %v7257 = vmul.f32 %v6984, %v1266
  %v7258 = vmul.f32 %v6994, %v1267
  %v7259 = vmul.f32 %v7004, %v1268
  %v7260 = vmul.f32 %v7014, %v1269
  %v7261 = vmul.f32 %v7024, %v1270
  %v7262 = vmul.f32 %v7034, %v1271
  %v7263 = vmul.f32 %v7044, %v1272
  %v7264 = vmul.f32 %v7054, %v1273
  %v7265 = vmul.f32 %v7064, %v1274
  %v7266 = vmul.f32 %v7074, %v1275
  %v7267 = vmul.f32 %v4003, %v7075
  %v7268 = vmul.f32 %v4004, %v7076
  %v7269 = vmul.f32 %v4005, %v7077
  %v7270 = vmul.f32 %v4006, %v7078
  %v7271 = vmul.f32 %v4007, %v7079
  %v7272 = vmul.f32 %v4008, %v7080
  %v7273 = vmul.f32 %v4009, %v7081
  %v7274 = vmul.f32 %v4010, %v7082
  %v7275 = vmul.f32 %v4011, %v7083
  %v7276 = vmul.f32 %v4012, %v7084
  %v7277 = vmul.f32 %v4013, %v7085
  %v7278 = vmul.f32 %v4014, %v7086
  %v7279 = vmul.f32 %v4015, %v7087
  %v7280 = vmul.f32 %v4016, %v7088
  %v7281 = vmul.f32 %v4017, %v7089
  %v7282 = vmul.f32 %v4018, %v7090
  %v7283 = vmul.f32 %v4019, %v7091
  %v7284 = vmul.f32 %v4020, %v7092
  %v7285 = vmul.f32 %v4021, %v7093
  %v7286 = vmul.f32 %v4022, %v7094
  %v7287 = vmul.f32 %v4023, %v7095
  %v7288 = vmul.f32 %v4024, %v7096
  %v7289 = vmul.f32 %v4025, %v7097
  %v7290 = vmul.f32 %v4026, %v7098
  %v7291 = vmul.f32 %v4027, %v7099
  %v7292 = vmul.f32 %v4028, %v7100
  %v7293 = vmul.f32 %v4029, %v7101
  %v7294 = vmul.f32 %v4030, %v7102
  %v7295 = vmul.f32 %v4031, %v7103
  %v7296 = vmul.f32 %v4032, %v7104
  %v7297 = vmul.f32 %v4033, %v7105
  %v7298 = vmul.f32 %v4034, %v7106
  %v7299 = vmul.f32 %v4035, %v7107
  %v7300 = vmul.f32 %v4036, %v7108
  %v7301 = vmul.f32 %v4037, %v7109
  %v7302 = vmul.f32 %v4038, %v7110
  %v7303 = vmul.f32 %v4039, %v7111
  %v7304 = vmul.f32 %v4040, %v7112
  %v7305 = vmul.f32 %v4041, %v7113
  %v7306 = vmul.f32 %v4042, %v7114
  %v7307 = vmul.f32 %v4043, %v7115
  %v7308 = vmul.f32 %v4044, %v7116
  %v7309 = vmul.f32 %v4045, %v7117
  %v7310 = vmul.f32 %v4046, %v7118
  %v7311 = vmul.f32 %v4047, %v7119
  %v7312 = vmul.f32 %v4048, %v7120
  %v7313 = vmul.f32 %v4049, %v7121
  %v7314 = vmul.f32 %v4050, %v7122
  %v7315 = vmul.f32 %v4051, %v7123
  %v7316 = vmul.f32 %v4052, %v7124
  %v7317 = vmul.f32 %v4053, %v7125
  %v7318 = vmul.f32 %v4054, %v7126
  %v7319 = vmul.f32 %v4055, %v7127
  %v7320 = vmul.f32 %v4056, %v7128
  %v7321 = vmul.f32 %v4057, %v7129
  %v7322 = vmul.f32 %v4058, %v7130
  %v7323 = vmul.f32 %v4059, %v7131
  %v7324 = vmul.f32 %v4060, %v7132
  %v7325 = vmul.f32 %v4061, %v7133
  %v7326 = vmul.f32 %v4062, %v7134
  %v7327 = vmul.f32 %v4063, %v7135
  %v7328 = vmul.f32 %v4064, %v7136
  %v7329 = vmul.f32 %v4065, %v7137
  %v7330 = vmul.f32 %v4066, %v7138
  %v7331 = vmul.f32 %v4067, %v7139
  %v7332 = vmul.f32 %v4068, %v7140
  %v7333 = vmul.f32 %v4069, %v7141
  %v7334 = vmul.f32 %v4070, %v7142
  %v7335 = vmul.f32 %v4071, %v7143
  %v7336 = vmul.f32 %v4072, %v7144
  %v7337 = vmul.f32 %v4073, %v7145
  %v7338 = vmul.f32 %v4074, %v7146
  %v7339 = vmul.f32 %v4075, %v7147
  %v7340 = vmul.f32 %v4076, %v7148
  %v7341 = vmul.f32 %v4077, %v7149
  %v7342 = vmul.f32 %v4078, %v7150
  %v7343 = vmul.f32 %v4079, %v7151
  %v7344 = vmul.f32 %v4080, %v7152
  %v7345 = vmul.f32 %v4081, %v7153
  %v7346 = vmul.f32 %v4082, %v7154
  %v7347 = vmul.f32 %v4083, %v7155
  %v7348 = vmul.f32 %v4084, %v7156
  %v7349 = vmul.f32 %v4085, %v7157
  %v7350 = vmul.f32 %v4086, %v7158
  %v7351 = vmul.f32 %v4087, %v7159
  %v7352 = vmul.f32 %v4088, %v7160
  %v7353 = vmul.f32 %v4089, %v7161
  %v7354 = vmul.f32 %v4090, %v7162
  %v7355 = vmul.f32 %v4091, %v7163
  %v7356 = vmul.f32 %v4092, %v7164
  %v7357 = vmul.f32 %v4093, %v7165
  %v7358 = vmul.f32 %v4094, %v7166
  %v7359 = vmul.f32 %v4095, %v7167
  %v7360 = vmul.f32 %v4096, %v7168
  %v7361 = vmul.f32 %v4097, %v7169
  %v7362 = vmul.f32 %v4098, %v7170
  %v7363 = vmul.f32 %v4099, %v7171
  %v7364 = vmul.f32 %v4100, %v7172
  %v7365 = vmul.f32 %v4101, %v7173
  %v7366 = vmul.f32 %v4102, %v7174
  %v7367 = vmul.f32 %v4103, %v7175
  %v7368 = vmul.f32 %v4104, %v7176
  %v7369 = vmul.f32 %v4105, %v7177
  %v7370 = vmul.f32 %v4106, %v7178
  %v7371 = vmul.f32 %v4107, %v7179
  %v7372 = vmul.f32 %v4108, %v7180
  %v7373 = vmul.f32 %v4109, %v7181
  %v7374 = vmul.f32 %v4110, %v7182
  %v7375 = vmul.f32 %v4111, %v7183
  %v7376 = vmul.f32 %v4112, %v7184
  %v7377 = vmul.f32 %v4113, %v7185
  %v7378 = vmul.f32 %v4114, %v7186
  %v7379 = vmul.f32 %v4115, %v7187
  %v7380 = vmul.f32 %v4116, %v7188
  %v7381 = vmul.f32 %v4117, %v7189
  %v7382 = vmul.f32 %v4118, %v7190
  %v7383 = vmul.f32 %v4119, %v7191
  %v7384 = vmul.f32 %v4120, %v7192
  %v7385 = vmul.f32 %v4121, %v7193
  %v7386 = vmul.f32 %v4122, %v7194
  %v7387 = vmul.f32 %v4123, %v7195
  %v7388 = vmul.f32 %v4124, %v7196
  %v7389 = vmul.f32 %v4125, %v7197
  %v7390 = vmul.f32 %v4126, %v7198
  %v7391 = vmul.f32 %v4127, %v7199
  %v7392 = vmul.f32 %v4128, %v7200
  %v7393 = vmul.f32 %v4129, %v7201
  %v7394 = vmul.f32 %v4130, %v7202
  %v7395 = vmul.f32 %v4131, %v7203
  %v7396 = vmul.f32 %v4132, %v7204
  %v7397 = vmul.f32 %v4133, %v7205
  %v7398 = vmul.f32 %v4134, %v7206
  %v7399 = vmul.f32 %v4135, %v7207
  %v7400 = vmul.f32 %v4136, %v7208
  %v7401 = vmul.f32 %v4137, %v7209
  %v7402 = vmul.f32 %v4138, %v7210
  %v7403 = vmul.f32 %v4139, %v7211
  %v7404 = vmul.f32 %v4140, %v7212
  %v7405 = vmul.f32 %v4141, %v7213
  %v7406 = vmul.f32 %v4142, %v7214
  %v7407 = vmul.f32 %v4143, %v7215
  %v7408 = vmul.f32 %v4144, %v7216
  %v7409 = vmul.f32 %v4145, %v7217
  %v7410 = vmul.f32 %v4146, %v7218
  %v7411 = vmul.f32 %v4147, %v7219
  %v7412 = vmul.f32 %v4148, %v7220
  %v7413 = vmul.f32 %v4149, %v7221
  %v7414 = vmul.f32 %v4150, %v7222
  %v7415 = vmul.f32 %v4151, %v7223
  %v7416 = vmul.f32 %v4152, %v7224
  %v7417 = vmul.f32 %v4153, %v7225
  %v7418 = vmul.f32 %v4154, %v7226
  %v7419 = vmul.f32 %v4155, %v7227
  %v7420 = vmul.f32 %v4156, %v7228
  %v7421 = vmul.f32 %v4157, %v7229
  %v7422 = vmul.f32 %v4158, %v7230
  %v7423 = vmul.f32 %v4159, %v7231
  %v7424 = vmul.f32 %v4160, %v7232
  %v7425 = vmul.f32 %v4161, %v7233
  %v7426 = vmul.f32 %v4162, %v7234
  %v7427 = vmul.f32 %v4163, %v7235
  %v7428 = vmul.f32 %v4164, %v7236
  %v7429 = vmul.f32 %v4165, %v7237
  %v7430 = vmul.f32 %v4166, %v7238
  %v7431 = vmul.f32 %v4167, %v7239
  %v7432 = vmul.f32 %v4168, %v7240
  %v7433 = vmul.f32 %v4169, %v7241
  %v7434 = vmul.f32 %v4170, %v7242
  %v7435 = vmul.f32 %v4171, %v7243
  %v7436 = vmul.f32 %v4172, %v7244
  %v7437 = vmul.f32 %v4173, %v7245
  %v7438 = vmul.f32 %v4174, %v7246
  %v7439 = vmul.f32 %v4175, %v7247
  %v7440 = vmul.f32 %v4176, %v7248
  %v7441 = vmul.f32 %v4177, %v7249
  %v7442 = vmul.f32 %v4178, %v7250
  %v7443 = vmul.f32 %v4179, %v7251
  %v7444 = vmul.f32 %v4180, %v7252
  %v7445 = vmul.f32 %v4181, %v7253
  %v7446 = vmul.f32 %v4182, %v7254
  %v7447 = vmul.f32 %v4183, %v7255
  %v7448 = vmul.f32 %v4184, %v7256
  %v7449 = vmul.f32 %v4185, %v7257
  %v7450 = vmul.f32 %v4186, %v7258
  %v7451 = vmul.f32 %v4187, %v7259
  %v7452 = vmul.f32 %v4188, %v7260
  %v7453 = vmul.f32 %v4189, %v7261
  %v7454 = vmul.f32 %v4190, %v7262
  %v7455 = vmul.f32 %v4191, %v7263
  %v7456 = vmul.f32 %v4192, %v7264
  %v7457 = vmul.f32 %v4193, %v7265
  %v7458 = vmul.f32 %v4194, %v7266
  %7651 = vrot.lane.b32.xlu0 %v7267, 1
  %v7652 = vpop.permute.xlu0 %7651
  %7653 = vrot.lane.b32.xlu0 %v7268, 1
  %v7654 = vpop.permute.xlu0 %7653
  %7655 = vrot.lane.b32.xlu0 %v7269, 1
  %v7656 = vpop.permute.xlu0 %7655
  %7657 = vrot.lane.b32.xlu0 %v7270, 1
  %v7658 = vpop.permute.xlu0 %7657
  %7659 = vrot.lane.b32.xlu0 %v7271, 1
  %v7660 = vpop.permute.xlu0 %7659
  %7661 = vrot.lane.b32.xlu0 %v7272, 1
  %v7662 = vpop.permute.xlu0 %7661
  %7663 = vrot.lane.b32.xlu0 %v7273, 1
  %v7664 = vpop.permute.xlu0 %7663
  %7665 = vrot.lane.b32.xlu0 %v7274, 1
  %v7666 = vpop.permute.xlu0 %7665
  %7667 = vrot.lane.b32.xlu0 %v7275, 1
  %v7668 = vpop.permute.xlu0 %7667
  %7669 = vrot.lane.b32.xlu0 %v7276, 1
  %v7670 = vpop.permute.xlu0 %7669
  %7671 = vrot.lane.b32.xlu0 %v7277, 1
  %v7672 = vpop.permute.xlu0 %7671
  %7673 = vrot.lane.b32.xlu0 %v7278, 1
  %v7674 = vpop.permute.xlu0 %7673
  %7675 = vrot.lane.b32.xlu0 %v7279, 1
  %v7676 = vpop.permute.xlu0 %7675
  %7677 = vrot.lane.b32.xlu0 %v7280, 1
  %v7678 = vpop.permute.xlu0 %7677
  %7679 = vrot.lane.b32.xlu0 %v7281, 1
  %v7680 = vpop.permute.xlu0 %7679
  %7681 = vrot.lane.b32.xlu0 %v7282, 1
  %v7682 = vpop.permute.xlu0 %7681
  %7683 = vrot.lane.b32.xlu0 %v7283, 1
  %v7684 = vpop.permute.xlu0 %7683
  %7685 = vrot.lane.b32.xlu0 %v7284, 1
  %v7686 = vpop.permute.xlu0 %7685
  %7687 = vrot.lane.b32.xlu0 %v7285, 1
  %v7688 = vpop.permute.xlu0 %7687
  %7689 = vrot.lane.b32.xlu0 %v7286, 1
  %v7690 = vpop.permute.xlu0 %7689
  %7691 = vrot.lane.b32.xlu0 %v7287, 1
  %v7692 = vpop.permute.xlu0 %7691
  %7693 = vrot.lane.b32.xlu0 %v7288, 1
  %v7694 = vpop.permute.xlu0 %7693
  %7695 = vrot.lane.b32.xlu0 %v7289, 1
  %v7696 = vpop.permute.xlu0 %7695
  %7697 = vrot.lane.b32.xlu0 %v7290, 1
  %v7698 = vpop.permute.xlu0 %7697
  %7699 = vrot.lane.b32.xlu0 %v7291, 1
  %v7700 = vpop.permute.xlu0 %7699
  %7701 = vrot.lane.b32.xlu0 %v7292, 1
  %v7702 = vpop.permute.xlu0 %7701
  %7703 = vrot.lane.b32.xlu0 %v7293, 1
  %v7704 = vpop.permute.xlu0 %7703
  %7705 = vrot.lane.b32.xlu0 %v7294, 1
  %v7706 = vpop.permute.xlu0 %7705
  %7707 = vrot.lane.b32.xlu0 %v7295, 1
  %v7708 = vpop.permute.xlu0 %7707
  %7709 = vrot.lane.b32.xlu0 %v7296, 1
  %v7710 = vpop.permute.xlu0 %7709
  %7711 = vrot.lane.b32.xlu0 %v7297, 1
  %v7712 = vpop.permute.xlu0 %7711
  %7713 = vrot.lane.b32.xlu0 %v7298, 1
  %v7714 = vpop.permute.xlu0 %7713
  %7715 = vrot.lane.b32.xlu0 %v7299, 1
  %v7716 = vpop.permute.xlu0 %7715
  %7717 = vrot.lane.b32.xlu0 %v7300, 1
  %v7718 = vpop.permute.xlu0 %7717
  %7719 = vrot.lane.b32.xlu0 %v7301, 1
  %v7720 = vpop.permute.xlu0 %7719
  %7721 = vrot.lane.b32.xlu0 %v7302, 1
  %v7722 = vpop.permute.xlu0 %7721
  %7723 = vrot.lane.b32.xlu0 %v7303, 1
  %v7724 = vpop.permute.xlu0 %7723
  %7725 = vrot.lane.b32.xlu0 %v7304, 1
  %v7726 = vpop.permute.xlu0 %7725
  %7727 = vrot.lane.b32.xlu0 %v7305, 1
  %v7728 = vpop.permute.xlu0 %7727
  %7729 = vrot.lane.b32.xlu0 %v7306, 1
  %v7730 = vpop.permute.xlu0 %7729
  %7731 = vrot.lane.b32.xlu0 %v7307, 1
  %v7732 = vpop.permute.xlu0 %7731
  %7733 = vrot.lane.b32.xlu0 %v7308, 1
  %v7734 = vpop.permute.xlu0 %7733
  %7735 = vrot.lane.b32.xlu0 %v7309, 1
  %v7736 = vpop.permute.xlu0 %7735
  %7737 = vrot.lane.b32.xlu0 %v7310, 1
  %v7738 = vpop.permute.xlu0 %7737
  %7739 = vrot.lane.b32.xlu0 %v7311, 1
  %v7740 = vpop.permute.xlu0 %7739
  %7741 = vrot.lane.b32.xlu0 %v7312, 1
  %v7742 = vpop.permute.xlu0 %7741
  %7743 = vrot.lane.b32.xlu0 %v7313, 1
  %v7744 = vpop.permute.xlu0 %7743
  %7745 = vrot.lane.b32.xlu0 %v7314, 1
  %v7746 = vpop.permute.xlu0 %7745
  %7747 = vrot.lane.b32.xlu0 %v7315, 1
  %v7748 = vpop.permute.xlu0 %7747
  %7749 = vrot.lane.b32.xlu0 %v7316, 1
  %v7750 = vpop.permute.xlu0 %7749
  %7751 = vrot.lane.b32.xlu0 %v7317, 1
  %v7752 = vpop.permute.xlu0 %7751
  %7753 = vrot.lane.b32.xlu0 %v7318, 1
  %v7754 = vpop.permute.xlu0 %7753
  %7755 = vrot.lane.b32.xlu0 %v7319, 1
  %v7756 = vpop.permute.xlu0 %7755
  %7757 = vrot.lane.b32.xlu0 %v7320, 1
  %v7758 = vpop.permute.xlu0 %7757
  %7759 = vrot.lane.b32.xlu0 %v7321, 1
  %v7760 = vpop.permute.xlu0 %7759
  %7761 = vrot.lane.b32.xlu0 %v7322, 1
  %v7762 = vpop.permute.xlu0 %7761
  %7763 = vrot.lane.b32.xlu0 %v7323, 1
  %v7764 = vpop.permute.xlu0 %7763
  %7765 = vrot.lane.b32.xlu0 %v7324, 1
  %v7766 = vpop.permute.xlu0 %7765
  %7767 = vrot.lane.b32.xlu0 %v7325, 1
  %v7768 = vpop.permute.xlu0 %7767
  %7769 = vrot.lane.b32.xlu0 %v7326, 1
  %v7770 = vpop.permute.xlu0 %7769
  %7771 = vrot.lane.b32.xlu0 %v7327, 1
  %v7772 = vpop.permute.xlu0 %7771
  %7773 = vrot.lane.b32.xlu0 %v7328, 1
  %v7774 = vpop.permute.xlu0 %7773
  %7775 = vrot.lane.b32.xlu0 %v7329, 1
  %v7776 = vpop.permute.xlu0 %7775
  %7777 = vrot.lane.b32.xlu0 %v7330, 1
  %v7778 = vpop.permute.xlu0 %7777
  %7779 = vrot.lane.b32.xlu0 %v7331, 1
  %v7780 = vpop.permute.xlu0 %7779
  %7781 = vrot.lane.b32.xlu0 %v7332, 1
  %v7782 = vpop.permute.xlu0 %7781
  %7783 = vrot.lane.b32.xlu0 %v7333, 1
  %v7784 = vpop.permute.xlu0 %7783
  %7785 = vrot.lane.b32.xlu0 %v7334, 1
  %v7786 = vpop.permute.xlu0 %7785
  %7787 = vrot.lane.b32.xlu0 %v7335, 1
  %v7788 = vpop.permute.xlu0 %7787
  %7789 = vrot.lane.b32.xlu0 %v7336, 1
  %v7790 = vpop.permute.xlu0 %7789
  %7791 = vrot.lane.b32.xlu0 %v7337, 1
  %v7792 = vpop.permute.xlu0 %7791
  %7793 = vrot.lane.b32.xlu0 %v7338, 1
  %v7794 = vpop.permute.xlu0 %7793
  %7795 = vrot.lane.b32.xlu0 %v7339, 1
  %v7796 = vpop.permute.xlu0 %7795
  %7797 = vrot.lane.b32.xlu0 %v7340, 1
  %v7798 = vpop.permute.xlu0 %7797
  %7799 = vrot.lane.b32.xlu0 %v7341, 1
  %v7800 = vpop.permute.xlu0 %7799
  %7801 = vrot.lane.b32.xlu0 %v7342, 1
  %v7802 = vpop.permute.xlu0 %7801
  %7803 = vrot.lane.b32.xlu0 %v7343, 1
  %v7804 = vpop.permute.xlu0 %7803
  %7805 = vrot.lane.b32.xlu0 %v7344, 1
  %v7806 = vpop.permute.xlu0 %7805
  %7807 = vrot.lane.b32.xlu0 %v7345, 1
  %v7808 = vpop.permute.xlu0 %7807
  %7809 = vrot.lane.b32.xlu0 %v7346, 1
  %v7810 = vpop.permute.xlu0 %7809
  %7811 = vrot.lane.b32.xlu0 %v7347, 1
  %v7812 = vpop.permute.xlu0 %7811
  %7813 = vrot.lane.b32.xlu0 %v7348, 1
  %v7814 = vpop.permute.xlu0 %7813
  %7815 = vrot.lane.b32.xlu0 %v7349, 1
  %v7816 = vpop.permute.xlu0 %7815
  %7817 = vrot.lane.b32.xlu0 %v7350, 1
  %v7818 = vpop.permute.xlu0 %7817
  %7819 = vrot.lane.b32.xlu0 %v7351, 1
  %v7820 = vpop.permute.xlu0 %7819
  %7821 = vrot.lane.b32.xlu0 %v7352, 1
  %v7822 = vpop.permute.xlu0 %7821
  %7823 = vrot.lane.b32.xlu0 %v7353, 1
  %v7824 = vpop.permute.xlu0 %7823
  %7825 = vrot.lane.b32.xlu0 %v7354, 1
  %v7826 = vpop.permute.xlu0 %7825
  %7827 = vrot.lane.b32.xlu0 %v7355, 1
  %v7828 = vpop.permute.xlu0 %7827
  %7829 = vrot.lane.b32.xlu0 %v7356, 1
  %v7830 = vpop.permute.xlu0 %7829
  %7831 = vrot.lane.b32.xlu0 %v7357, 1
  %v7832 = vpop.permute.xlu0 %7831
  %7833 = vrot.lane.b32.xlu0 %v7358, 1
  %v7834 = vpop.permute.xlu0 %7833
  %7835 = vrot.lane.b32.xlu0 %v7359, 1
  %v7836 = vpop.permute.xlu0 %7835
  %7837 = vrot.lane.b32.xlu0 %v7360, 1
  %v7838 = vpop.permute.xlu0 %7837
  %7839 = vrot.lane.b32.xlu0 %v7361, 1
  %v7840 = vpop.permute.xlu0 %7839
  %7841 = vrot.lane.b32.xlu0 %v7362, 1
  %v7842 = vpop.permute.xlu0 %7841
  %7843 = vrot.lane.b32.xlu0 %v7363, 1
  %v7844 = vpop.permute.xlu0 %7843
  %7845 = vrot.lane.b32.xlu0 %v7364, 1
  %v7846 = vpop.permute.xlu0 %7845
  %7847 = vrot.lane.b32.xlu0 %v7365, 1
  %v7848 = vpop.permute.xlu0 %7847
  %7849 = vrot.lane.b32.xlu0 %v7366, 1
  %v7850 = vpop.permute.xlu0 %7849
  %7851 = vrot.lane.b32.xlu0 %v7367, 1
  %v7852 = vpop.permute.xlu0 %7851
  %7853 = vrot.lane.b32.xlu0 %v7368, 1
  %v7854 = vpop.permute.xlu0 %7853
  %7855 = vrot.lane.b32.xlu0 %v7369, 1
  %v7856 = vpop.permute.xlu0 %7855
  %7857 = vrot.lane.b32.xlu0 %v7370, 1
  %v7858 = vpop.permute.xlu0 %7857
  %7859 = vrot.lane.b32.xlu0 %v7371, 1
  %v7860 = vpop.permute.xlu0 %7859
  %7861 = vrot.lane.b32.xlu0 %v7372, 1
  %v7862 = vpop.permute.xlu0 %7861
  %7863 = vrot.lane.b32.xlu0 %v7373, 1
  %v7864 = vpop.permute.xlu0 %7863
  %7865 = vrot.lane.b32.xlu0 %v7374, 1
  %v7866 = vpop.permute.xlu0 %7865
  %7867 = vrot.lane.b32.xlu0 %v7375, 1
  %v7868 = vpop.permute.xlu0 %7867
  %7869 = vrot.lane.b32.xlu0 %v7376, 1
  %v7870 = vpop.permute.xlu0 %7869
  %7871 = vrot.lane.b32.xlu0 %v7377, 1
  %v7872 = vpop.permute.xlu0 %7871
  %7873 = vrot.lane.b32.xlu0 %v7378, 1
  %v7874 = vpop.permute.xlu0 %7873
  %7875 = vrot.lane.b32.xlu0 %v7379, 1
  %v7876 = vpop.permute.xlu0 %7875
  %7877 = vrot.lane.b32.xlu0 %v7380, 1
  %v7878 = vpop.permute.xlu0 %7877
  %7879 = vrot.lane.b32.xlu0 %v7381, 1
  %v7880 = vpop.permute.xlu0 %7879
  %7881 = vrot.lane.b32.xlu0 %v7382, 1
  %v7882 = vpop.permute.xlu0 %7881
  %7883 = vrot.lane.b32.xlu0 %v7383, 1
  %v7884 = vpop.permute.xlu0 %7883
  %7885 = vrot.lane.b32.xlu0 %v7384, 1
  %v7886 = vpop.permute.xlu0 %7885
  %7887 = vrot.lane.b32.xlu0 %v7385, 1
  %v7888 = vpop.permute.xlu0 %7887
  %7889 = vrot.lane.b32.xlu0 %v7386, 1
  %v7890 = vpop.permute.xlu0 %7889
  %7891 = vrot.lane.b32.xlu0 %v7387, 1
  %v7892 = vpop.permute.xlu0 %7891
  %7893 = vrot.lane.b32.xlu0 %v7388, 1
  %v7894 = vpop.permute.xlu0 %7893
  %7895 = vrot.lane.b32.xlu0 %v7389, 1
  %v7896 = vpop.permute.xlu0 %7895
  %7897 = vrot.lane.b32.xlu0 %v7390, 1
  %v7898 = vpop.permute.xlu0 %7897
  %7899 = vrot.lane.b32.xlu0 %v7391, 1
  %v7900 = vpop.permute.xlu0 %7899
  %7901 = vrot.lane.b32.xlu0 %v7392, 1
  %v7902 = vpop.permute.xlu0 %7901
  %7903 = vrot.lane.b32.xlu0 %v7393, 1
  %v7904 = vpop.permute.xlu0 %7903
  %7905 = vrot.lane.b32.xlu0 %v7394, 1
  %v7906 = vpop.permute.xlu0 %7905
  %7907 = vrot.lane.b32.xlu0 %v7395, 1
  %v7908 = vpop.permute.xlu0 %7907
  %7909 = vrot.lane.b32.xlu0 %v7396, 1
  %v7910 = vpop.permute.xlu0 %7909
  %7911 = vrot.lane.b32.xlu0 %v7397, 1
  %v7912 = vpop.permute.xlu0 %7911
  %7913 = vrot.lane.b32.xlu0 %v7398, 1
  %v7914 = vpop.permute.xlu0 %7913
  %7915 = vrot.lane.b32.xlu0 %v7399, 1
  %v7916 = vpop.permute.xlu0 %7915
  %7917 = vrot.lane.b32.xlu0 %v7400, 1
  %v7918 = vpop.permute.xlu0 %7917
  %7919 = vrot.lane.b32.xlu0 %v7401, 1
  %v7920 = vpop.permute.xlu0 %7919
  %7921 = vrot.lane.b32.xlu0 %v7402, 1
  %v7922 = vpop.permute.xlu0 %7921
  %7923 = vrot.lane.b32.xlu0 %v7403, 1
  %v7924 = vpop.permute.xlu0 %7923
  %7925 = vrot.lane.b32.xlu0 %v7404, 1
  %v7926 = vpop.permute.xlu0 %7925
  %7927 = vrot.lane.b32.xlu0 %v7405, 1
  %v7928 = vpop.permute.xlu0 %7927
  %7929 = vrot.lane.b32.xlu0 %v7406, 1
  %v7930 = vpop.permute.xlu0 %7929
  %7931 = vrot.lane.b32.xlu0 %v7407, 1
  %v7932 = vpop.permute.xlu0 %7931
  %7933 = vrot.lane.b32.xlu0 %v7408, 1
  %v7934 = vpop.permute.xlu0 %7933
  %7935 = vrot.lane.b32.xlu0 %v7409, 1
  %v7936 = vpop.permute.xlu0 %7935
  %7937 = vrot.lane.b32.xlu0 %v7410, 1
  %v7938 = vpop.permute.xlu0 %7937
  %7939 = vrot.lane.b32.xlu0 %v7411, 1
  %v7940 = vpop.permute.xlu0 %7939
  %7941 = vrot.lane.b32.xlu0 %v7412, 1
  %v7942 = vpop.permute.xlu0 %7941
  %7943 = vrot.lane.b32.xlu0 %v7413, 1
  %v7944 = vpop.permute.xlu0 %7943
  %7945 = vrot.lane.b32.xlu0 %v7414, 1
  %v7946 = vpop.permute.xlu0 %7945
  %7947 = vrot.lane.b32.xlu0 %v7415, 1
  %v7948 = vpop.permute.xlu0 %7947
  %7949 = vrot.lane.b32.xlu0 %v7416, 1
  %v7950 = vpop.permute.xlu0 %7949
  %7951 = vrot.lane.b32.xlu0 %v7417, 1
  %v7952 = vpop.permute.xlu0 %7951
  %7953 = vrot.lane.b32.xlu0 %v7418, 1
  %v7954 = vpop.permute.xlu0 %7953
  %7955 = vrot.lane.b32.xlu0 %v7419, 1
  %v7956 = vpop.permute.xlu0 %7955
  %7957 = vrot.lane.b32.xlu0 %v7420, 1
  %v7958 = vpop.permute.xlu0 %7957
  %7959 = vrot.lane.b32.xlu0 %v7421, 1
  %v7960 = vpop.permute.xlu0 %7959
  %7961 = vrot.lane.b32.xlu0 %v7422, 1
  %v7962 = vpop.permute.xlu0 %7961
  %7963 = vrot.lane.b32.xlu0 %v7423, 1
  %v7964 = vpop.permute.xlu0 %7963
  %7965 = vrot.lane.b32.xlu0 %v7424, 1
  %v7966 = vpop.permute.xlu0 %7965
  %7967 = vrot.lane.b32.xlu0 %v7425, 1
  %v7968 = vpop.permute.xlu0 %7967
  %7969 = vrot.lane.b32.xlu0 %v7426, 1
  %v7970 = vpop.permute.xlu0 %7969
  %7971 = vrot.lane.b32.xlu0 %v7427, 1
  %v7972 = vpop.permute.xlu0 %7971
  %7973 = vrot.lane.b32.xlu0 %v7428, 1
  %v7974 = vpop.permute.xlu0 %7973
  %7975 = vrot.lane.b32.xlu0 %v7429, 1
  %v7976 = vpop.permute.xlu0 %7975
  %7977 = vrot.lane.b32.xlu0 %v7430, 1
  %v7978 = vpop.permute.xlu0 %7977
  %7979 = vrot.lane.b32.xlu0 %v7431, 1
  %v7980 = vpop.permute.xlu0 %7979
  %7981 = vrot.lane.b32.xlu0 %v7432, 1
  %v7982 = vpop.permute.xlu0 %7981
  %7983 = vrot.lane.b32.xlu0 %v7433, 1
  %v7984 = vpop.permute.xlu0 %7983
  %7985 = vrot.lane.b32.xlu0 %v7434, 1
  %v7986 = vpop.permute.xlu0 %7985
  %7987 = vrot.lane.b32.xlu0 %v7435, 1
  %v7988 = vpop.permute.xlu0 %7987
  %7989 = vrot.lane.b32.xlu0 %v7436, 1
  %v7990 = vpop.permute.xlu0 %7989
  %7991 = vrot.lane.b32.xlu0 %v7437, 1
  %v7992 = vpop.permute.xlu0 %7991
  %7993 = vrot.lane.b32.xlu0 %v7438, 1
  %v7994 = vpop.permute.xlu0 %7993
  %7995 = vrot.lane.b32.xlu0 %v7439, 1
  %v7996 = vpop.permute.xlu0 %7995
  %7997 = vrot.lane.b32.xlu0 %v7440, 1
  %v7998 = vpop.permute.xlu0 %7997
  %7999 = vrot.lane.b32.xlu0 %v7441, 1
  %v8000 = vpop.permute.xlu0 %7999
  %8001 = vrot.lane.b32.xlu0 %v7442, 1
  %v8002 = vpop.permute.xlu0 %8001
  %8003 = vrot.lane.b32.xlu0 %v7443, 1
  %v8004 = vpop.permute.xlu0 %8003
  %8005 = vrot.lane.b32.xlu0 %v7444, 1
  %v8006 = vpop.permute.xlu0 %8005
  %8007 = vrot.lane.b32.xlu0 %v7445, 1
  %v8008 = vpop.permute.xlu0 %8007
  %8009 = vrot.lane.b32.xlu0 %v7446, 1
  %v8010 = vpop.permute.xlu0 %8009
  %8011 = vrot.lane.b32.xlu0 %v7447, 1
  %v8012 = vpop.permute.xlu0 %8011
  %8013 = vrot.lane.b32.xlu0 %v7448, 1
  %v8014 = vpop.permute.xlu0 %8013
  %8015 = vrot.lane.b32.xlu0 %v7449, 1
  %v8016 = vpop.permute.xlu0 %8015
  %8017 = vrot.lane.b32.xlu0 %v7450, 1
  %v8018 = vpop.permute.xlu0 %8017
  %8019 = vrot.lane.b32.xlu0 %v7451, 1
  %v8020 = vpop.permute.xlu0 %8019
  %8021 = vrot.lane.b32.xlu0 %v7452, 1
  %v8022 = vpop.permute.xlu0 %8021
  %8023 = vrot.lane.b32.xlu0 %v7453, 1
  %v8024 = vpop.permute.xlu0 %8023
  %8025 = vrot.lane.b32.xlu0 %v7454, 1
  %v8026 = vpop.permute.xlu0 %8025
  %8027 = vrot.lane.b32.xlu0 %v7455, 1
  %v8028 = vpop.permute.xlu0 %8027
  %8029 = vrot.lane.b32.xlu0 %v7456, 1
  %v8030 = vpop.permute.xlu0 %8029
  %8031 = vrot.lane.b32.xlu0 %v7457, 1
  %v8032 = vpop.permute.xlu0 %8031
  %8033 = vrot.lane.b32.xlu0 %v7458, 1
  %v8034 = vpop.permute.xlu0 %8033
  %v8227 = vsub.f32 %v1084, %v7652
  %v8228 = vsub.f32 %v1085, %v7654
  %v8229 = vsub.f32 %v1086, %v7656
  %v8230 = vsub.f32 %v1087, %v7658
  %v8231 = vsub.f32 %v1088, %v7660
  %v8232 = vsub.f32 %v1089, %v7662
  %v8233 = vsub.f32 %v1090, %v7664
  %v8234 = vsub.f32 %v1091, %v7666
  %v8235 = vsub.f32 %v1092, %v7668
  %v8236 = vsub.f32 %v1093, %v7670
  %v8237 = vsub.f32 %v1094, %v7672
  %v8238 = vsub.f32 %v1095, %v7674
  %v8239 = vsub.f32 %v1096, %v7676
  %v8240 = vsub.f32 %v1097, %v7678
  %v8241 = vsub.f32 %v1098, %v7680
  %v8242 = vsub.f32 %v1099, %v7682
  %v8243 = vsub.f32 %v1100, %v7684
  %v8244 = vsub.f32 %v1101, %v7686
  %v8245 = vsub.f32 %v1102, %v7688
  %v8246 = vsub.f32 %v1103, %v7690
  %v8247 = vsub.f32 %v1104, %v7692
  %v8248 = vsub.f32 %v1105, %v7694
  %v8249 = vsub.f32 %v1106, %v7696
  %v8250 = vsub.f32 %v1107, %v7698
  %v8251 = vsub.f32 %v1108, %v7700
  %v8252 = vsub.f32 %v1109, %v7702
  %v8253 = vsub.f32 %v1110, %v7704
  %v8254 = vsub.f32 %v1111, %v7706
  %v8255 = vsub.f32 %v1112, %v7708
  %v8256 = vsub.f32 %v1113, %v7710
  %v8257 = vsub.f32 %v1114, %v7712
  %v8258 = vsub.f32 %v1115, %v7714
  %v8259 = vsub.f32 %v1116, %v7716
  %v8260 = vsub.f32 %v1117, %v7718
  %v8261 = vsub.f32 %v1118, %v7720
  %v8262 = vsub.f32 %v1119, %v7722
  %v8263 = vsub.f32 %v1120, %v7724
  %v8264 = vsub.f32 %v1121, %v7726
  %v8265 = vsub.f32 %v1122, %v7728
  %v8266 = vsub.f32 %v1123, %v7730
  %v8267 = vsub.f32 %v1124, %v7732
  %v8268 = vsub.f32 %v1125, %v7734
  %v8269 = vsub.f32 %v1126, %v7736
  %v8270 = vsub.f32 %v1127, %v7738
  %v8271 = vsub.f32 %v1128, %v7740
  %v8272 = vsub.f32 %v1129, %v7742
  %v8273 = vsub.f32 %v1130, %v7744
  %v8274 = vsub.f32 %v1131, %v7746
  %v8275 = vsub.f32 %v1132, %v7748
  %v8276 = vsub.f32 %v1133, %v7750
  %v8277 = vsub.f32 %v1134, %v7752
  %v8278 = vsub.f32 %v1135, %v7754
  %v8279 = vsub.f32 %v1136, %v7756
  %v8280 = vsub.f32 %v1137, %v7758
  %v8281 = vsub.f32 %v1138, %v7760
  %v8282 = vsub.f32 %v1139, %v7762
  %v8283 = vsub.f32 %v1140, %v7764
  %v8284 = vsub.f32 %v1141, %v7766
  %v8285 = vsub.f32 %v1142, %v7768
  %v8286 = vsub.f32 %v1143, %v7770
  %v8287 = vsub.f32 %v1144, %v7772
  %v8288 = vsub.f32 %v1145, %v7774
  %v8289 = vsub.f32 %v1146, %v7776
  %v8290 = vsub.f32 %v1147, %v7778
  %v8291 = vsub.f32 %v1148, %v7780
  %v8292 = vsub.f32 %v1149, %v7782
  %v8293 = vsub.f32 %v1150, %v7784
  %v8294 = vsub.f32 %v1151, %v7786
  %v8295 = vsub.f32 %v1152, %v7788
  %v8296 = vsub.f32 %v1153, %v7790
  %v8297 = vsub.f32 %v1154, %v7792
  %v8298 = vsub.f32 %v1155, %v7794
  %v8299 = vsub.f32 %v1156, %v7796
  %v8300 = vsub.f32 %v1157, %v7798
  %v8301 = vsub.f32 %v1158, %v7800
  %v8302 = vsub.f32 %v1159, %v7802
  %v8303 = vsub.f32 %v1160, %v7804
  %v8304 = vsub.f32 %v1161, %v7806
  %v8305 = vsub.f32 %v1162, %v7808
  %v8306 = vsub.f32 %v1163, %v7810
  %v8307 = vsub.f32 %v1164, %v7812
  %v8308 = vsub.f32 %v1165, %v7814
  %v8309 = vsub.f32 %v1166, %v7816
  %v8310 = vsub.f32 %v1167, %v7818
  %v8311 = vsub.f32 %v1168, %v7820
  %v8312 = vsub.f32 %v1169, %v7822
  %v8313 = vsub.f32 %v1170, %v7824
  %v8314 = vsub.f32 %v1171, %v7826
  %v8315 = vsub.f32 %v1172, %v7828
  %v8316 = vsub.f32 %v1173, %v7830
  %v8317 = vsub.f32 %v1174, %v7832
  %v8318 = vsub.f32 %v1175, %v7834
  %v8319 = vsub.f32 %v1176, %v7836
  %v8320 = vsub.f32 %v1177, %v7838
  %v8321 = vsub.f32 %v1178, %v7840
  %v8322 = vsub.f32 %v1179, %v7842
  %v8323 = vsub.f32 %v1180, %v7844
  %v8324 = vsub.f32 %v1181, %v7846
  %v8325 = vsub.f32 %v1182, %v7848
  %v8326 = vsub.f32 %v1183, %v7850
  %v8327 = vsub.f32 %v1184, %v7852
  %v8328 = vsub.f32 %v1185, %v7854
  %v8329 = vsub.f32 %v1186, %v7856
  %v8330 = vsub.f32 %v1187, %v7858
  %v8331 = vsub.f32 %v1188, %v7860
  %v8332 = vsub.f32 %v1189, %v7862
  %v8333 = vsub.f32 %v1190, %v7864
  %v8334 = vsub.f32 %v1191, %v7866
  %v8335 = vsub.f32 %v1192, %v7868
  %v8336 = vsub.f32 %v1193, %v7870
  %v8337 = vsub.f32 %v1194, %v7872
  %v8338 = vsub.f32 %v1195, %v7874
  %v8339 = vsub.f32 %v1196, %v7876
  %v8340 = vsub.f32 %v1197, %v7878
  %v8341 = vsub.f32 %v1198, %v7880
  %v8342 = vsub.f32 %v1199, %v7882
  %v8343 = vsub.f32 %v1200, %v7884
  %v8344 = vsub.f32 %v1201, %v7886
  %v8345 = vsub.f32 %v1202, %v7888
  %v8346 = vsub.f32 %v1203, %v7890
  %v8347 = vsub.f32 %v1204, %v7892
  %v8348 = vsub.f32 %v1205, %v7894
  %v8349 = vsub.f32 %v1206, %v7896
  %v8350 = vsub.f32 %v1207, %v7898
  %v8351 = vsub.f32 %v1208, %v7900
  %v8352 = vsub.f32 %v1209, %v7902
  %v8353 = vsub.f32 %v1210, %v7904
  %v8354 = vsub.f32 %v1211, %v7906
  %v8355 = vsub.f32 %v1212, %v7908
  %v8356 = vsub.f32 %v1213, %v7910
  %v8357 = vsub.f32 %v1214, %v7912
  %v8358 = vsub.f32 %v1215, %v7914
  %v8359 = vsub.f32 %v1216, %v7916
  %v8360 = vsub.f32 %v1217, %v7918
  %v8361 = vsub.f32 %v1218, %v7920
  %v8362 = vsub.f32 %v1219, %v7922
  %v8363 = vsub.f32 %v1220, %v7924
  %v8364 = vsub.f32 %v1221, %v7926
  %v8365 = vsub.f32 %v1222, %v7928
  %v8366 = vsub.f32 %v1223, %v7930
  %v8367 = vsub.f32 %v1224, %v7932
  %v8368 = vsub.f32 %v1225, %v7934
  %v8369 = vsub.f32 %v1226, %v7936
  %v8370 = vsub.f32 %v1227, %v7938
  %v8371 = vsub.f32 %v1228, %v7940
  %v8372 = vsub.f32 %v1229, %v7942
  %v8373 = vsub.f32 %v1230, %v7944
  %v8374 = vsub.f32 %v1231, %v7946
  %v8375 = vsub.f32 %v1232, %v7948
  %v8376 = vsub.f32 %v1233, %v7950
  %v8377 = vsub.f32 %v1234, %v7952
  %v8378 = vsub.f32 %v1235, %v7954
  %v8379 = vsub.f32 %v1236, %v7956
  %v8380 = vsub.f32 %v1237, %v7958
  %v8381 = vsub.f32 %v1238, %v7960
  %v8382 = vsub.f32 %v1239, %v7962
  %v8383 = vsub.f32 %v1240, %v7964
  %v8384 = vsub.f32 %v1241, %v7966
  %v8385 = vsub.f32 %v1242, %v7968
  %v8386 = vsub.f32 %v1243, %v7970
  %v8387 = vsub.f32 %v1244, %v7972
  %v8388 = vsub.f32 %v1245, %v7974
  %v8389 = vsub.f32 %v1246, %v7976
  %v8390 = vsub.f32 %v1247, %v7978
  %v8391 = vsub.f32 %v1248, %v7980
  %v8392 = vsub.f32 %v1249, %v7982
  %v8393 = vsub.f32 %v1250, %v7984
  %v8394 = vsub.f32 %v1251, %v7986
  %v8395 = vsub.f32 %v1252, %v7988
  %v8396 = vsub.f32 %v1253, %v7990
  %v8397 = vsub.f32 %v1254, %v7992
  %v8398 = vsub.f32 %v1255, %v7994
  %v8399 = vsub.f32 %v1256, %v7996
  %v8400 = vsub.f32 %v1257, %v7998
  %v8401 = vsub.f32 %v1258, %v8000
  %v8402 = vsub.f32 %v1259, %v8002
  %v8403 = vsub.f32 %v1260, %v8004
  %v8404 = vsub.f32 %v1261, %v8006
  %v8405 = vsub.f32 %v1262, %v8008
  %v8406 = vsub.f32 %v1263, %v8010
  %v8407 = vsub.f32 %v1264, %v8012
  %v8408 = vsub.f32 %v1265, %v8014
  %v8409 = vsub.f32 %v1266, %v8016
  %v8410 = vsub.f32 %v1267, %v8018
  %v8411 = vsub.f32 %v1268, %v8020
  %v8412 = vsub.f32 %v1269, %v8022
  %v8413 = vsub.f32 %v1270, %v8024
  %v8414 = vsub.f32 %v1271, %v8026
  %v8415 = vsub.f32 %v1272, %v8028
  %v8416 = vsub.f32 %v1273, %v8030
  %v8417 = vsub.f32 %v1274, %v8032
  %v8418 = vsub.f32 %v1275, %v8034
  %8420 = vset.pattern.permute.xlu0 0
  %8421 = vperm.xlu0 %8420, %v7075
  %v8422 = vpop.permute.xlu0 %8421
  %8425 = vset.pattern.permute.xlu0 0
  %8426 = vperm.xlu0 %8425, %v7076
  %v8427 = vpop.permute.xlu0 %8426
  %8430 = vset.pattern.permute.xlu0 0
  %8431 = vperm.xlu0 %8430, %v7077
  %v8432 = vpop.permute.xlu0 %8431
  %8435 = vset.pattern.permute.xlu0 0
  %8436 = vperm.xlu0 %8435, %v7078
  %v8437 = vpop.permute.xlu0 %8436
  %8440 = vset.pattern.permute.xlu0 0
  %8441 = vperm.xlu0 %8440, %v7079
  %v8442 = vpop.permute.xlu0 %8441
  %8445 = vset.pattern.permute.xlu0 0
  %8446 = vperm.xlu0 %8445, %v7080
  %v8447 = vpop.permute.xlu0 %8446
  %8450 = vset.pattern.permute.xlu0 0
  %8451 = vperm.xlu0 %8450, %v7081
  %v8452 = vpop.permute.xlu0 %8451
  %8455 = vset.pattern.permute.xlu0 0
  %8456 = vperm.xlu0 %8455, %v7082
  %v8457 = vpop.permute.xlu0 %8456
  %8460 = vset.pattern.permute.xlu0 0
  %8461 = vperm.xlu0 %8460, %v7083
  %v8462 = vpop.permute.xlu0 %8461
  %8465 = vset.pattern.permute.xlu0 0
  %8466 = vperm.xlu0 %8465, %v7084
  %v8467 = vpop.permute.xlu0 %8466
  %8470 = vset.pattern.permute.xlu0 0
  %8471 = vperm.xlu0 %8470, %v7085
  %v8472 = vpop.permute.xlu0 %8471
  %8475 = vset.pattern.permute.xlu0 0
  %8476 = vperm.xlu0 %8475, %v7086
  %v8477 = vpop.permute.xlu0 %8476
  %8480 = vset.pattern.permute.xlu0 0
  %8481 = vperm.xlu0 %8480, %v7087
  %v8482 = vpop.permute.xlu0 %8481
  %8485 = vset.pattern.permute.xlu0 0
  %8486 = vperm.xlu0 %8485, %v7088
  %v8487 = vpop.permute.xlu0 %8486
  %8490 = vset.pattern.permute.xlu0 0
  %8491 = vperm.xlu0 %8490, %v7089
  %v8492 = vpop.permute.xlu0 %8491
  %8495 = vset.pattern.permute.xlu0 0
  %8496 = vperm.xlu0 %8495, %v7090
  %v8497 = vpop.permute.xlu0 %8496
  %8500 = vset.pattern.permute.xlu0 0
  %8501 = vperm.xlu0 %8500, %v7091
  %v8502 = vpop.permute.xlu0 %8501
  %8505 = vset.pattern.permute.xlu0 0
  %8506 = vperm.xlu0 %8505, %v7092
  %v8507 = vpop.permute.xlu0 %8506
  %8510 = vset.pattern.permute.xlu0 0
  %8511 = vperm.xlu0 %8510, %v7093
  %v8512 = vpop.permute.xlu0 %8511
  %8515 = vset.pattern.permute.xlu0 0
  %8516 = vperm.xlu0 %8515, %v7094
  %v8517 = vpop.permute.xlu0 %8516
  %8520 = vset.pattern.permute.xlu0 0
  %8521 = vperm.xlu0 %8520, %v7095
  %v8522 = vpop.permute.xlu0 %8521
  %8525 = vset.pattern.permute.xlu0 0
  %8526 = vperm.xlu0 %8525, %v7096
  %v8527 = vpop.permute.xlu0 %8526
  %8530 = vset.pattern.permute.xlu0 0
  %8531 = vperm.xlu0 %8530, %v7097
  %v8532 = vpop.permute.xlu0 %8531
  %8535 = vset.pattern.permute.xlu0 0
  %8536 = vperm.xlu0 %8535, %v7098
  %v8537 = vpop.permute.xlu0 %8536
  %8540 = vset.pattern.permute.xlu0 0
  %8541 = vperm.xlu0 %8540, %v7099
  %v8542 = vpop.permute.xlu0 %8541
  %8545 = vset.pattern.permute.xlu0 0
  %8546 = vperm.xlu0 %8545, %v7100
  %v8547 = vpop.permute.xlu0 %8546
  %8550 = vset.pattern.permute.xlu0 0
  %8551 = vperm.xlu0 %8550, %v7101
  %v8552 = vpop.permute.xlu0 %8551
  %8555 = vset.pattern.permute.xlu0 0
  %8556 = vperm.xlu0 %8555, %v7102
  %v8557 = vpop.permute.xlu0 %8556
  %8560 = vset.pattern.permute.xlu0 0
  %8561 = vperm.xlu0 %8560, %v7103
  %v8562 = vpop.permute.xlu0 %8561
  %8565 = vset.pattern.permute.xlu0 0
  %8566 = vperm.xlu0 %8565, %v7104
  %v8567 = vpop.permute.xlu0 %8566
  %8570 = vset.pattern.permute.xlu0 0
  %8571 = vperm.xlu0 %8570, %v7105
  %v8572 = vpop.permute.xlu0 %8571
  %8575 = vset.pattern.permute.xlu0 0
  %8576 = vperm.xlu0 %8575, %v7106
  %v8577 = vpop.permute.xlu0 %8576
  %8580 = vset.pattern.permute.xlu0 0
  %8581 = vperm.xlu0 %8580, %v7107
  %v8582 = vpop.permute.xlu0 %8581
  %8585 = vset.pattern.permute.xlu0 0
  %8586 = vperm.xlu0 %8585, %v7108
  %v8587 = vpop.permute.xlu0 %8586
  %8590 = vset.pattern.permute.xlu0 0
  %8591 = vperm.xlu0 %8590, %v7109
  %v8592 = vpop.permute.xlu0 %8591
  %8595 = vset.pattern.permute.xlu0 0
  %8596 = vperm.xlu0 %8595, %v7110
  %v8597 = vpop.permute.xlu0 %8596
  %8600 = vset.pattern.permute.xlu0 0
  %8601 = vperm.xlu0 %8600, %v7111
  %v8602 = vpop.permute.xlu0 %8601
  %8605 = vset.pattern.permute.xlu0 0
  %8606 = vperm.xlu0 %8605, %v7112
  %v8607 = vpop.permute.xlu0 %8606
  %8610 = vset.pattern.permute.xlu0 0
  %8611 = vperm.xlu0 %8610, %v7113
  %v8612 = vpop.permute.xlu0 %8611
  %8615 = vset.pattern.permute.xlu0 0
  %8616 = vperm.xlu0 %8615, %v7114
  %v8617 = vpop.permute.xlu0 %8616
  %8620 = vset.pattern.permute.xlu0 0
  %8621 = vperm.xlu0 %8620, %v7115
  %v8622 = vpop.permute.xlu0 %8621
  %8625 = vset.pattern.permute.xlu0 0
  %8626 = vperm.xlu0 %8625, %v7116
  %v8627 = vpop.permute.xlu0 %8626
  %8630 = vset.pattern.permute.xlu0 0
  %8631 = vperm.xlu0 %8630, %v7117
  %v8632 = vpop.permute.xlu0 %8631
  %8635 = vset.pattern.permute.xlu0 0
  %8636 = vperm.xlu0 %8635, %v7118
  %v8637 = vpop.permute.xlu0 %8636
  %8640 = vset.pattern.permute.xlu0 0
  %8641 = vperm.xlu0 %8640, %v7119
  %v8642 = vpop.permute.xlu0 %8641
  %8645 = vset.pattern.permute.xlu0 0
  %8646 = vperm.xlu0 %8645, %v7120
  %v8647 = vpop.permute.xlu0 %8646
  %8650 = vset.pattern.permute.xlu0 0
  %8651 = vperm.xlu0 %8650, %v7121
  %v8652 = vpop.permute.xlu0 %8651
  %8655 = vset.pattern.permute.xlu0 0
  %8656 = vperm.xlu0 %8655, %v7122
  %v8657 = vpop.permute.xlu0 %8656
  %8660 = vset.pattern.permute.xlu0 0
  %8661 = vperm.xlu0 %8660, %v7123
  %v8662 = vpop.permute.xlu0 %8661
  %8665 = vset.pattern.permute.xlu0 0
  %8666 = vperm.xlu0 %8665, %v7124
  %v8667 = vpop.permute.xlu0 %8666
  %8670 = vset.pattern.permute.xlu0 0
  %8671 = vperm.xlu0 %8670, %v7125
  %v8672 = vpop.permute.xlu0 %8671
  %8675 = vset.pattern.permute.xlu0 0
  %8676 = vperm.xlu0 %8675, %v7126
  %v8677 = vpop.permute.xlu0 %8676
  %8680 = vset.pattern.permute.xlu0 0
  %8681 = vperm.xlu0 %8680, %v7127
  %v8682 = vpop.permute.xlu0 %8681
  %8685 = vset.pattern.permute.xlu0 0
  %8686 = vperm.xlu0 %8685, %v7128
  %v8687 = vpop.permute.xlu0 %8686
  %8690 = vset.pattern.permute.xlu0 0
  %8691 = vperm.xlu0 %8690, %v7129
  %v8692 = vpop.permute.xlu0 %8691
  %8695 = vset.pattern.permute.xlu0 0
  %8696 = vperm.xlu0 %8695, %v7130
  %v8697 = vpop.permute.xlu0 %8696
  %8700 = vset.pattern.permute.xlu0 0
  %8701 = vperm.xlu0 %8700, %v7131
  %v8702 = vpop.permute.xlu0 %8701
  %8705 = vset.pattern.permute.xlu0 0
  %8706 = vperm.xlu0 %8705, %v7132
  %v8707 = vpop.permute.xlu0 %8706
  %8710 = vset.pattern.permute.xlu0 0
  %8711 = vperm.xlu0 %8710, %v7133
  %v8712 = vpop.permute.xlu0 %8711
  %8715 = vset.pattern.permute.xlu0 0
  %8716 = vperm.xlu0 %8715, %v7134
  %v8717 = vpop.permute.xlu0 %8716
  %8720 = vset.pattern.permute.xlu0 0
  %8721 = vperm.xlu0 %8720, %v7135
  %v8722 = vpop.permute.xlu0 %8721
  %8725 = vset.pattern.permute.xlu0 0
  %8726 = vperm.xlu0 %8725, %v7136
  %v8727 = vpop.permute.xlu0 %8726
  %8730 = vset.pattern.permute.xlu0 0
  %8731 = vperm.xlu0 %8730, %v7137
  %v8732 = vpop.permute.xlu0 %8731
  %8735 = vset.pattern.permute.xlu0 0
  %8736 = vperm.xlu0 %8735, %v7138
  %v8737 = vpop.permute.xlu0 %8736
  %8740 = vset.pattern.permute.xlu0 0
  %8741 = vperm.xlu0 %8740, %v7139
  %v8742 = vpop.permute.xlu0 %8741
  %8745 = vset.pattern.permute.xlu0 0
  %8746 = vperm.xlu0 %8745, %v7140
  %v8747 = vpop.permute.xlu0 %8746
  %8750 = vset.pattern.permute.xlu0 0
  %8751 = vperm.xlu0 %8750, %v7141
  %v8752 = vpop.permute.xlu0 %8751
  %8755 = vset.pattern.permute.xlu0 0
  %8756 = vperm.xlu0 %8755, %v7142
  %v8757 = vpop.permute.xlu0 %8756
  %8760 = vset.pattern.permute.xlu0 0
  %8761 = vperm.xlu0 %8760, %v7143
  %v8762 = vpop.permute.xlu0 %8761
  %8765 = vset.pattern.permute.xlu0 0
  %8766 = vperm.xlu0 %8765, %v7144
  %v8767 = vpop.permute.xlu0 %8766
  %8770 = vset.pattern.permute.xlu0 0
  %8771 = vperm.xlu0 %8770, %v7145
  %v8772 = vpop.permute.xlu0 %8771
  %8775 = vset.pattern.permute.xlu0 0
  %8776 = vperm.xlu0 %8775, %v7146
  %v8777 = vpop.permute.xlu0 %8776
  %8780 = vset.pattern.permute.xlu0 0
  %8781 = vperm.xlu0 %8780, %v7147
  %v8782 = vpop.permute.xlu0 %8781
  %8785 = vset.pattern.permute.xlu0 0
  %8786 = vperm.xlu0 %8785, %v7148
  %v8787 = vpop.permute.xlu0 %8786
  %8790 = vset.pattern.permute.xlu0 0
  %8791 = vperm.xlu0 %8790, %v7149
  %v8792 = vpop.permute.xlu0 %8791
  %8795 = vset.pattern.permute.xlu0 0
  %8796 = vperm.xlu0 %8795, %v7150
  %v8797 = vpop.permute.xlu0 %8796
  %8800 = vset.pattern.permute.xlu0 0
  %8801 = vperm.xlu0 %8800, %v7151
  %v8802 = vpop.permute.xlu0 %8801
  %8805 = vset.pattern.permute.xlu0 0
  %8806 = vperm.xlu0 %8805, %v7152
  %v8807 = vpop.permute.xlu0 %8806
  %8810 = vset.pattern.permute.xlu0 0
  %8811 = vperm.xlu0 %8810, %v7153
  %v8812 = vpop.permute.xlu0 %8811
  %8815 = vset.pattern.permute.xlu0 0
  %8816 = vperm.xlu0 %8815, %v7154
  %v8817 = vpop.permute.xlu0 %8816
  %8820 = vset.pattern.permute.xlu0 0
  %8821 = vperm.xlu0 %8820, %v7155
  %v8822 = vpop.permute.xlu0 %8821
  %8825 = vset.pattern.permute.xlu0 0
  %8826 = vperm.xlu0 %8825, %v7156
  %v8827 = vpop.permute.xlu0 %8826
  %8830 = vset.pattern.permute.xlu0 0
  %8831 = vperm.xlu0 %8830, %v7157
  %v8832 = vpop.permute.xlu0 %8831
  %8835 = vset.pattern.permute.xlu0 0
  %8836 = vperm.xlu0 %8835, %v7158
  %v8837 = vpop.permute.xlu0 %8836
  %8840 = vset.pattern.permute.xlu0 0
  %8841 = vperm.xlu0 %8840, %v7159
  %v8842 = vpop.permute.xlu0 %8841
  %8845 = vset.pattern.permute.xlu0 0
  %8846 = vperm.xlu0 %8845, %v7160
  %v8847 = vpop.permute.xlu0 %8846
  %8850 = vset.pattern.permute.xlu0 0
  %8851 = vperm.xlu0 %8850, %v7161
  %v8852 = vpop.permute.xlu0 %8851
  %8855 = vset.pattern.permute.xlu0 0
  %8856 = vperm.xlu0 %8855, %v7162
  %v8857 = vpop.permute.xlu0 %8856
  %8860 = vset.pattern.permute.xlu0 0
  %8861 = vperm.xlu0 %8860, %v7163
  %v8862 = vpop.permute.xlu0 %8861
  %8865 = vset.pattern.permute.xlu0 0
  %8866 = vperm.xlu0 %8865, %v7164
  %v8867 = vpop.permute.xlu0 %8866
  %8870 = vset.pattern.permute.xlu0 0
  %8871 = vperm.xlu0 %8870, %v7165
  %v8872 = vpop.permute.xlu0 %8871
  %8875 = vset.pattern.permute.xlu0 0
  %8876 = vperm.xlu0 %8875, %v7166
  %v8877 = vpop.permute.xlu0 %8876
  %8880 = vset.pattern.permute.xlu0 0
  %8881 = vperm.xlu0 %8880, %v7167
  %v8882 = vpop.permute.xlu0 %8881
  %8885 = vset.pattern.permute.xlu0 0
  %8886 = vperm.xlu0 %8885, %v7168
  %v8887 = vpop.permute.xlu0 %8886
  %8890 = vset.pattern.permute.xlu0 0
  %8891 = vperm.xlu0 %8890, %v7169
  %v8892 = vpop.permute.xlu0 %8891
  %8895 = vset.pattern.permute.xlu0 0
  %8896 = vperm.xlu0 %8895, %v7170
  %v8897 = vpop.permute.xlu0 %8896
  %8900 = vset.pattern.permute.xlu0 0
  %8901 = vperm.xlu0 %8900, %v7171
  %v8902 = vpop.permute.xlu0 %8901
  %8905 = vset.pattern.permute.xlu0 0
  %8906 = vperm.xlu0 %8905, %v7172
  %v8907 = vpop.permute.xlu0 %8906
  %8910 = vset.pattern.permute.xlu0 0
  %8911 = vperm.xlu0 %8910, %v7173
  %v8912 = vpop.permute.xlu0 %8911
  %8915 = vset.pattern.permute.xlu0 0
  %8916 = vperm.xlu0 %8915, %v7174
  %v8917 = vpop.permute.xlu0 %8916
  %8920 = vset.pattern.permute.xlu0 0
  %8921 = vperm.xlu0 %8920, %v7175
  %v8922 = vpop.permute.xlu0 %8921
  %8925 = vset.pattern.permute.xlu0 0
  %8926 = vperm.xlu0 %8925, %v7176
  %v8927 = vpop.permute.xlu0 %8926
  %8930 = vset.pattern.permute.xlu0 0
  %8931 = vperm.xlu0 %8930, %v7177
  %v8932 = vpop.permute.xlu0 %8931
  %8935 = vset.pattern.permute.xlu0 0
  %8936 = vperm.xlu0 %8935, %v7178
  %v8937 = vpop.permute.xlu0 %8936
  %8940 = vset.pattern.permute.xlu0 0
  %8941 = vperm.xlu0 %8940, %v7179
  %v8942 = vpop.permute.xlu0 %8941
  %8945 = vset.pattern.permute.xlu0 0
  %8946 = vperm.xlu0 %8945, %v7180
  %v8947 = vpop.permute.xlu0 %8946
  %8950 = vset.pattern.permute.xlu0 0
  %8951 = vperm.xlu0 %8950, %v7181
  %v8952 = vpop.permute.xlu0 %8951
  %8955 = vset.pattern.permute.xlu0 0
  %8956 = vperm.xlu0 %8955, %v7182
  %v8957 = vpop.permute.xlu0 %8956
  %8960 = vset.pattern.permute.xlu0 0
  %8961 = vperm.xlu0 %8960, %v7183
  %v8962 = vpop.permute.xlu0 %8961
  %8965 = vset.pattern.permute.xlu0 0
  %8966 = vperm.xlu0 %8965, %v7184
  %v8967 = vpop.permute.xlu0 %8966
  %8970 = vset.pattern.permute.xlu0 0
  %8971 = vperm.xlu0 %8970, %v7185
  %v8972 = vpop.permute.xlu0 %8971
  %8975 = vset.pattern.permute.xlu0 0
  %8976 = vperm.xlu0 %8975, %v7186
  %v8977 = vpop.permute.xlu0 %8976
  %8980 = vset.pattern.permute.xlu0 0
  %8981 = vperm.xlu0 %8980, %v7187
  %v8982 = vpop.permute.xlu0 %8981
  %8985 = vset.pattern.permute.xlu0 0
  %8986 = vperm.xlu0 %8985, %v7188
  %v8987 = vpop.permute.xlu0 %8986
  %8990 = vset.pattern.permute.xlu0 0
  %8991 = vperm.xlu0 %8990, %v7189
  %v8992 = vpop.permute.xlu0 %8991
  %8995 = vset.pattern.permute.xlu0 0
  %8996 = vperm.xlu0 %8995, %v7190
  %v8997 = vpop.permute.xlu0 %8996
  %9000 = vset.pattern.permute.xlu0 0
  %9001 = vperm.xlu0 %9000, %v7191
  %v9002 = vpop.permute.xlu0 %9001
  %9005 = vset.pattern.permute.xlu0 0
  %9006 = vperm.xlu0 %9005, %v7192
  %v9007 = vpop.permute.xlu0 %9006
  %9010 = vset.pattern.permute.xlu0 0
  %9011 = vperm.xlu0 %9010, %v7193
  %v9012 = vpop.permute.xlu0 %9011
  %9015 = vset.pattern.permute.xlu0 0
  %9016 = vperm.xlu0 %9015, %v7194
  %v9017 = vpop.permute.xlu0 %9016
  %9020 = vset.pattern.permute.xlu0 0
  %9021 = vperm.xlu0 %9020, %v7195
  %v9022 = vpop.permute.xlu0 %9021
  %9025 = vset.pattern.permute.xlu0 0
  %9026 = vperm.xlu0 %9025, %v7196
  %v9027 = vpop.permute.xlu0 %9026
  %9030 = vset.pattern.permute.xlu0 0
  %9031 = vperm.xlu0 %9030, %v7197
  %v9032 = vpop.permute.xlu0 %9031
  %9035 = vset.pattern.permute.xlu0 0
  %9036 = vperm.xlu0 %9035, %v7198
  %v9037 = vpop.permute.xlu0 %9036
  %9040 = vset.pattern.permute.xlu0 0
  %9041 = vperm.xlu0 %9040, %v7199
  %v9042 = vpop.permute.xlu0 %9041
  %9045 = vset.pattern.permute.xlu0 0
  %9046 = vperm.xlu0 %9045, %v7200
  %v9047 = vpop.permute.xlu0 %9046
  %9050 = vset.pattern.permute.xlu0 0
  %9051 = vperm.xlu0 %9050, %v7201
  %v9052 = vpop.permute.xlu0 %9051
  %9055 = vset.pattern.permute.xlu0 0
  %9056 = vperm.xlu0 %9055, %v7202
  %v9057 = vpop.permute.xlu0 %9056
  %9060 = vset.pattern.permute.xlu0 0
  %9061 = vperm.xlu0 %9060, %v7203
  %v9062 = vpop.permute.xlu0 %9061
  %9065 = vset.pattern.permute.xlu0 0
  %9066 = vperm.xlu0 %9065, %v7204
  %v9067 = vpop.permute.xlu0 %9066
  %9070 = vset.pattern.permute.xlu0 0
  %9071 = vperm.xlu0 %9070, %v7205
  %v9072 = vpop.permute.xlu0 %9071
  %9075 = vset.pattern.permute.xlu0 0
  %9076 = vperm.xlu0 %9075, %v7206
  %v9077 = vpop.permute.xlu0 %9076
  %9080 = vset.pattern.permute.xlu0 0
  %9081 = vperm.xlu0 %9080, %v7207
  %v9082 = vpop.permute.xlu0 %9081
  %9085 = vset.pattern.permute.xlu0 0
  %9086 = vperm.xlu0 %9085, %v7208
  %v9087 = vpop.permute.xlu0 %9086
  %9090 = vset.pattern.permute.xlu0 0
  %9091 = vperm.xlu0 %9090, %v7209
  %v9092 = vpop.permute.xlu0 %9091
  %9095 = vset.pattern.permute.xlu0 0
  %9096 = vperm.xlu0 %9095, %v7210
  %v9097 = vpop.permute.xlu0 %9096
  %9100 = vset.pattern.permute.xlu0 0
  %9101 = vperm.xlu0 %9100, %v7211
  %v9102 = vpop.permute.xlu0 %9101
  %9105 = vset.pattern.permute.xlu0 0
  %9106 = vperm.xlu0 %9105, %v7212
  %v9107 = vpop.permute.xlu0 %9106
  %9110 = vset.pattern.permute.xlu0 0
  %9111 = vperm.xlu0 %9110, %v7213
  %v9112 = vpop.permute.xlu0 %9111
  %9115 = vset.pattern.permute.xlu0 0
  %9116 = vperm.xlu0 %9115, %v7214
  %v9117 = vpop.permute.xlu0 %9116
  %9120 = vset.pattern.permute.xlu0 0
  %9121 = vperm.xlu0 %9120, %v7215
  %v9122 = vpop.permute.xlu0 %9121
  %9125 = vset.pattern.permute.xlu0 0
  %9126 = vperm.xlu0 %9125, %v7216
  %v9127 = vpop.permute.xlu0 %9126
  %9130 = vset.pattern.permute.xlu0 0
  %9131 = vperm.xlu0 %9130, %v7217
  %v9132 = vpop.permute.xlu0 %9131
  %9135 = vset.pattern.permute.xlu0 0
  %9136 = vperm.xlu0 %9135, %v7218
  %v9137 = vpop.permute.xlu0 %9136
  %9140 = vset.pattern.permute.xlu0 0
  %9141 = vperm.xlu0 %9140, %v7219
  %v9142 = vpop.permute.xlu0 %9141
  %9145 = vset.pattern.permute.xlu0 0
  %9146 = vperm.xlu0 %9145, %v7220
  %v9147 = vpop.permute.xlu0 %9146
  %9150 = vset.pattern.permute.xlu0 0
  %9151 = vperm.xlu0 %9150, %v7221
  %v9152 = vpop.permute.xlu0 %9151
  %9155 = vset.pattern.permute.xlu0 0
  %9156 = vperm.xlu0 %9155, %v7222
  %v9157 = vpop.permute.xlu0 %9156
  %9160 = vset.pattern.permute.xlu0 0
  %9161 = vperm.xlu0 %9160, %v7223
  %v9162 = vpop.permute.xlu0 %9161
  %9165 = vset.pattern.permute.xlu0 0
  %9166 = vperm.xlu0 %9165, %v7224
  %v9167 = vpop.permute.xlu0 %9166
  %9170 = vset.pattern.permute.xlu0 0
  %9171 = vperm.xlu0 %9170, %v7225
  %v9172 = vpop.permute.xlu0 %9171
  %9175 = vset.pattern.permute.xlu0 0
  %9176 = vperm.xlu0 %9175, %v7226
  %v9177 = vpop.permute.xlu0 %9176
  %9180 = vset.pattern.permute.xlu0 0
  %9181 = vperm.xlu0 %9180, %v7227
  %v9182 = vpop.permute.xlu0 %9181
  %9185 = vset.pattern.permute.xlu0 0
  %9186 = vperm.xlu0 %9185, %v7228
  %v9187 = vpop.permute.xlu0 %9186
  %9190 = vset.pattern.permute.xlu0 0
  %9191 = vperm.xlu0 %9190, %v7229
  %v9192 = vpop.permute.xlu0 %9191
  %9195 = vset.pattern.permute.xlu0 0
  %9196 = vperm.xlu0 %9195, %v7230
  %v9197 = vpop.permute.xlu0 %9196
  %9200 = vset.pattern.permute.xlu0 0
  %9201 = vperm.xlu0 %9200, %v7231
  %v9202 = vpop.permute.xlu0 %9201
  %9205 = vset.pattern.permute.xlu0 0
  %9206 = vperm.xlu0 %9205, %v7232
  %v9207 = vpop.permute.xlu0 %9206
  %9210 = vset.pattern.permute.xlu0 0
  %9211 = vperm.xlu0 %9210, %v7233
  %v9212 = vpop.permute.xlu0 %9211
  %9215 = vset.pattern.permute.xlu0 0
  %9216 = vperm.xlu0 %9215, %v7234
  %v9217 = vpop.permute.xlu0 %9216
  %9220 = vset.pattern.permute.xlu0 0
  %9221 = vperm.xlu0 %9220, %v7235
  %v9222 = vpop.permute.xlu0 %9221
  %9225 = vset.pattern.permute.xlu0 0
  %9226 = vperm.xlu0 %9225, %v7236
  %v9227 = vpop.permute.xlu0 %9226
  %9230 = vset.pattern.permute.xlu0 0
  %9231 = vperm.xlu0 %9230, %v7237
  %v9232 = vpop.permute.xlu0 %9231
  %9235 = vset.pattern.permute.xlu0 0
  %9236 = vperm.xlu0 %9235, %v7238
  %v9237 = vpop.permute.xlu0 %9236
  %9240 = vset.pattern.permute.xlu0 0
  %9241 = vperm.xlu0 %9240, %v7239
  %v9242 = vpop.permute.xlu0 %9241
  %9245 = vset.pattern.permute.xlu0 0
  %9246 = vperm.xlu0 %9245, %v7240
  %v9247 = vpop.permute.xlu0 %9246
  %9250 = vset.pattern.permute.xlu0 0
  %9251 = vperm.xlu0 %9250, %v7241
  %v9252 = vpop.permute.xlu0 %9251
  %9255 = vset.pattern.permute.xlu0 0
  %9256 = vperm.xlu0 %9255, %v7242
  %v9257 = vpop.permute.xlu0 %9256
  %9260 = vset.pattern.permute.xlu0 0
  %9261 = vperm.xlu0 %9260, %v7243
  %v9262 = vpop.permute.xlu0 %9261
  %9265 = vset.pattern.permute.xlu0 0
  %9266 = vperm.xlu0 %9265, %v7244
  %v9267 = vpop.permute.xlu0 %9266
  %9270 = vset.pattern.permute.xlu0 0
  %9271 = vperm.xlu0 %9270, %v7245
  %v9272 = vpop.permute.xlu0 %9271
  %9275 = vset.pattern.permute.xlu0 0
  %9276 = vperm.xlu0 %9275, %v7246
  %v9277 = vpop.permute.xlu0 %9276
  %9280 = vset.pattern.permute.xlu0 0
  %9281 = vperm.xlu0 %9280, %v7247
  %v9282 = vpop.permute.xlu0 %9281
  %9285 = vset.pattern.permute.xlu0 0
  %9286 = vperm.xlu0 %9285, %v7248
  %v9287 = vpop.permute.xlu0 %9286
  %9290 = vset.pattern.permute.xlu0 0
  %9291 = vperm.xlu0 %9290, %v7249
  %v9292 = vpop.permute.xlu0 %9291
  %9295 = vset.pattern.permute.xlu0 0
  %9296 = vperm.xlu0 %9295, %v7250
  %v9297 = vpop.permute.xlu0 %9296
  %9300 = vset.pattern.permute.xlu0 0
  %9301 = vperm.xlu0 %9300, %v7251
  %v9302 = vpop.permute.xlu0 %9301
  %9305 = vset.pattern.permute.xlu0 0
  %9306 = vperm.xlu0 %9305, %v7252
  %v9307 = vpop.permute.xlu0 %9306
  %9310 = vset.pattern.permute.xlu0 0
  %9311 = vperm.xlu0 %9310, %v7253
  %v9312 = vpop.permute.xlu0 %9311
  %9315 = vset.pattern.permute.xlu0 0
  %9316 = vperm.xlu0 %9315, %v7254
  %v9317 = vpop.permute.xlu0 %9316
  %9320 = vset.pattern.permute.xlu0 0
  %9321 = vperm.xlu0 %9320, %v7255
  %v9322 = vpop.permute.xlu0 %9321
  %9325 = vset.pattern.permute.xlu0 0
  %9326 = vperm.xlu0 %9325, %v7256
  %v9327 = vpop.permute.xlu0 %9326
  %9330 = vset.pattern.permute.xlu0 0
  %9331 = vperm.xlu0 %9330, %v7257
  %v9332 = vpop.permute.xlu0 %9331
  %9335 = vset.pattern.permute.xlu0 0
  %9336 = vperm.xlu0 %9335, %v7258
  %v9337 = vpop.permute.xlu0 %9336
  %9340 = vset.pattern.permute.xlu0 0
  %9341 = vperm.xlu0 %9340, %v7259
  %v9342 = vpop.permute.xlu0 %9341
  %9345 = vset.pattern.permute.xlu0 0
  %9346 = vperm.xlu0 %9345, %v7260
  %v9347 = vpop.permute.xlu0 %9346
  %9350 = vset.pattern.permute.xlu0 0
  %9351 = vperm.xlu0 %9350, %v7261
  %v9352 = vpop.permute.xlu0 %9351
  %9355 = vset.pattern.permute.xlu0 0
  %9356 = vperm.xlu0 %9355, %v7262
  %v9357 = vpop.permute.xlu0 %9356
  %9360 = vset.pattern.permute.xlu0 0
  %9361 = vperm.xlu0 %9360, %v7263
  %v9362 = vpop.permute.xlu0 %9361
  %9365 = vset.pattern.permute.xlu0 0
  %9366 = vperm.xlu0 %9365, %v7264
  %v9367 = vpop.permute.xlu0 %9366
  %9370 = vset.pattern.permute.xlu0 0
  %9371 = vperm.xlu0 %9370, %v7265
  %v9372 = vpop.permute.xlu0 %9371
  %9375 = vset.pattern.permute.xlu0 0
  %9376 = vperm.xlu0 %9375, %v7266
  %v9377 = vpop.permute.xlu0 %9376
  %v9379 = vmul.f32 %v1276, %v8422
  %v9380 = vmul.f32 %v1277, %v8427
  %v9381 = vmul.f32 %v1278, %v8432
  %v9382 = vmul.f32 %v1279, %v8437
  %v9383 = vmul.f32 %v1280, %v8442
  %v9384 = vmul.f32 %v1281, %v8447
  %v9385 = vmul.f32 %v1282, %v8452
  %v9386 = vmul.f32 %v1283, %v8457
  %v9387 = vmul.f32 %v1284, %v8462
  %v9388 = vmul.f32 %v1285, %v8467
  %v9389 = vmul.f32 %v1286, %v8472
  %v9390 = vmul.f32 %v1287, %v8477
  %v9391 = vmul.f32 %v1288, %v8482
  %v9392 = vmul.f32 %v1289, %v8487
  %v9393 = vmul.f32 %v1290, %v8492
  %v9394 = vmul.f32 %v1291, %v8497
  %v9395 = vmul.f32 %v1292, %v8502
  %v9396 = vmul.f32 %v1293, %v8507
  %v9397 = vmul.f32 %v1294, %v8512
  %v9398 = vmul.f32 %v1295, %v8517
  %v9399 = vmul.f32 %v1296, %v8522
  %v9400 = vmul.f32 %v1297, %v8527
  %v9401 = vmul.f32 %v1298, %v8532
  %v9402 = vmul.f32 %v1299, %v8537
  %v9403 = vmul.f32 %v1300, %v8542
  %v9404 = vmul.f32 %v1301, %v8547
  %v9405 = vmul.f32 %v1302, %v8552
  %v9406 = vmul.f32 %v1303, %v8557
  %v9407 = vmul.f32 %v1304, %v8562
  %v9408 = vmul.f32 %v1305, %v8567
  %v9409 = vmul.f32 %v1306, %v8572
  %v9410 = vmul.f32 %v1307, %v8577
  %v9411 = vmul.f32 %v1308, %v8582
  %v9412 = vmul.f32 %v1309, %v8587
  %v9413 = vmul.f32 %v1310, %v8592
  %v9414 = vmul.f32 %v1311, %v8597
  %v9415 = vmul.f32 %v1312, %v8602
  %v9416 = vmul.f32 %v1313, %v8607
  %v9417 = vmul.f32 %v1314, %v8612
  %v9418 = vmul.f32 %v1315, %v8617
  %v9419 = vmul.f32 %v1316, %v8622
  %v9420 = vmul.f32 %v1317, %v8627
  %v9421 = vmul.f32 %v1318, %v8632
  %v9422 = vmul.f32 %v1319, %v8637
  %v9423 = vmul.f32 %v1320, %v8642
  %v9424 = vmul.f32 %v1321, %v8647
  %v9425 = vmul.f32 %v1322, %v8652
  %v9426 = vmul.f32 %v1323, %v8657
  %v9427 = vmul.f32 %v1324, %v8662
  %v9428 = vmul.f32 %v1325, %v8667
  %v9429 = vmul.f32 %v1326, %v8672
  %v9430 = vmul.f32 %v1327, %v8677
  %v9431 = vmul.f32 %v1328, %v8682
  %v9432 = vmul.f32 %v1329, %v8687
  %v9433 = vmul.f32 %v1330, %v8692
  %v9434 = vmul.f32 %v1331, %v8697
  %v9435 = vmul.f32 %v1332, %v8702
  %v9436 = vmul.f32 %v1333, %v8707
  %v9437 = vmul.f32 %v1334, %v8712
  %v9438 = vmul.f32 %v1335, %v8717
  %v9439 = vmul.f32 %v1336, %v8722
  %v9440 = vmul.f32 %v1337, %v8727
  %v9441 = vmul.f32 %v1338, %v8732
  %v9442 = vmul.f32 %v1339, %v8737
  %v9443 = vmul.f32 %v1340, %v8742
  %v9444 = vmul.f32 %v1341, %v8747
  %v9445 = vmul.f32 %v1342, %v8752
  %v9446 = vmul.f32 %v1343, %v8757
  %v9447 = vmul.f32 %v1344, %v8762
  %v9448 = vmul.f32 %v1345, %v8767
  %v9449 = vmul.f32 %v1346, %v8772
  %v9450 = vmul.f32 %v1347, %v8777
  %v9451 = vmul.f32 %v1348, %v8782
  %v9452 = vmul.f32 %v1349, %v8787
  %v9453 = vmul.f32 %v1350, %v8792
  %v9454 = vmul.f32 %v1351, %v8797
  %v9455 = vmul.f32 %v1352, %v8802
  %v9456 = vmul.f32 %v1353, %v8807
  %v9457 = vmul.f32 %v1354, %v8812
  %v9458 = vmul.f32 %v1355, %v8817
  %v9459 = vmul.f32 %v1356, %v8822
  %v9460 = vmul.f32 %v1357, %v8827
  %v9461 = vmul.f32 %v1358, %v8832
  %v9462 = vmul.f32 %v1359, %v8837
  %v9463 = vmul.f32 %v1360, %v8842
  %v9464 = vmul.f32 %v1361, %v8847
  %v9465 = vmul.f32 %v1362, %v8852
  %v9466 = vmul.f32 %v1363, %v8857
  %v9467 = vmul.f32 %v1364, %v8862
  %v9468 = vmul.f32 %v1365, %v8867
  %v9469 = vmul.f32 %v1366, %v8872
  %v9470 = vmul.f32 %v1367, %v8877
  %v9471 = vmul.f32 %v1368, %v8882
  %v9472 = vmul.f32 %v1369, %v8887
  %v9473 = vmul.f32 %v1370, %v8892
  %v9474 = vmul.f32 %v1371, %v8897
  %v9475 = vmul.f32 %v1372, %v8902
  %v9476 = vmul.f32 %v1373, %v8907
  %v9477 = vmul.f32 %v1374, %v8912
  %v9478 = vmul.f32 %v1375, %v8917
  %v9479 = vmul.f32 %v1376, %v8922
  %v9480 = vmul.f32 %v1377, %v8927
  %v9481 = vmul.f32 %v1378, %v8932
  %v9482 = vmul.f32 %v1379, %v8937
  %v9483 = vmul.f32 %v1380, %v8942
  %v9484 = vmul.f32 %v1381, %v8947
  %v9485 = vmul.f32 %v1382, %v8952
  %v9486 = vmul.f32 %v1383, %v8957
  %v9487 = vmul.f32 %v1384, %v8962
  %v9488 = vmul.f32 %v1385, %v8967
  %v9489 = vmul.f32 %v1386, %v8972
  %v9490 = vmul.f32 %v1387, %v8977
  %v9491 = vmul.f32 %v1388, %v8982
  %v9492 = vmul.f32 %v1389, %v8987
  %v9493 = vmul.f32 %v1390, %v8992
  %v9494 = vmul.f32 %v1391, %v8997
  %v9495 = vmul.f32 %v1392, %v9002
  %v9496 = vmul.f32 %v1393, %v9007
  %v9497 = vmul.f32 %v1394, %v9012
  %v9498 = vmul.f32 %v1395, %v9017
  %v9499 = vmul.f32 %v1396, %v9022
  %v9500 = vmul.f32 %v1397, %v9027
  %v9501 = vmul.f32 %v1398, %v9032
  %v9502 = vmul.f32 %v1399, %v9037
  %v9503 = vmul.f32 %v1400, %v9042
  %v9504 = vmul.f32 %v1401, %v9047
  %v9505 = vmul.f32 %v1402, %v9052
  %v9506 = vmul.f32 %v1403, %v9057
  %v9507 = vmul.f32 %v1404, %v9062
  %v9508 = vmul.f32 %v1405, %v9067
  %v9509 = vmul.f32 %v1406, %v9072
  %v9510 = vmul.f32 %v1407, %v9077
  %v9511 = vmul.f32 %v1408, %v9082
  %v9512 = vmul.f32 %v1409, %v9087
  %v9513 = vmul.f32 %v1410, %v9092
  %v9514 = vmul.f32 %v1411, %v9097
  %v9515 = vmul.f32 %v1412, %v9102
  %v9516 = vmul.f32 %v1413, %v9107
  %v9517 = vmul.f32 %v1414, %v9112
  %v9518 = vmul.f32 %v1415, %v9117
  %v9519 = vmul.f32 %v1416, %v9122
  %v9520 = vmul.f32 %v1417, %v9127
  %v9521 = vmul.f32 %v1418, %v9132
  %v9522 = vmul.f32 %v1419, %v9137
  %v9523 = vmul.f32 %v1420, %v9142
  %v9524 = vmul.f32 %v1421, %v9147
  %v9525 = vmul.f32 %v1422, %v9152
  %v9526 = vmul.f32 %v1423, %v9157
  %v9527 = vmul.f32 %v1424, %v9162
  %v9528 = vmul.f32 %v1425, %v9167
  %v9529 = vmul.f32 %v1426, %v9172
  %v9530 = vmul.f32 %v1427, %v9177
  %v9531 = vmul.f32 %v1428, %v9182
  %v9532 = vmul.f32 %v1429, %v9187
  %v9533 = vmul.f32 %v1430, %v9192
  %v9534 = vmul.f32 %v1431, %v9197
  %v9535 = vmul.f32 %v1432, %v9202
  %v9536 = vmul.f32 %v1433, %v9207
  %v9537 = vmul.f32 %v1434, %v9212
  %v9538 = vmul.f32 %v1435, %v9217
  %v9539 = vmul.f32 %v1436, %v9222
  %v9540 = vmul.f32 %v1437, %v9227
  %v9541 = vmul.f32 %v1438, %v9232
  %v9542 = vmul.f32 %v1439, %v9237
  %v9543 = vmul.f32 %v1440, %v9242
  %v9544 = vmul.f32 %v1441, %v9247
  %v9545 = vmul.f32 %v1442, %v9252
  %v9546 = vmul.f32 %v1443, %v9257
  %v9547 = vmul.f32 %v1444, %v9262
  %v9548 = vmul.f32 %v1445, %v9267
  %v9549 = vmul.f32 %v1446, %v9272
  %v9550 = vmul.f32 %v1447, %v9277
  %v9551 = vmul.f32 %v1448, %v9282
  %v9552 = vmul.f32 %v1449, %v9287
  %v9553 = vmul.f32 %v1450, %v9292
  %v9554 = vmul.f32 %v1451, %v9297
  %v9555 = vmul.f32 %v1452, %v9302
  %v9556 = vmul.f32 %v1453, %v9307
  %v9557 = vmul.f32 %v1454, %v9312
  %v9558 = vmul.f32 %v1455, %v9317
  %v9559 = vmul.f32 %v1456, %v9322
  %v9560 = vmul.f32 %v1457, %v9327
  %v9561 = vmul.f32 %v1458, %v9332
  %v9562 = vmul.f32 %v1459, %v9337
  %v9563 = vmul.f32 %v1460, %v9342
  %v9564 = vmul.f32 %v1461, %v9347
  %v9565 = vmul.f32 %v1462, %v9352
  %v9566 = vmul.f32 %v1463, %v9357
  %v9567 = vmul.f32 %v1464, %v9362
  %v9568 = vmul.f32 %v1465, %v9367
  %v9569 = vmul.f32 %v1466, %v9372
  %v9570 = vmul.f32 %v1467, %v9377
  %9572 = vset.pattern.permute.xlu0 1
  %9573 = vperm.xlu0 %9572, %v8227
  %v9574 = vpop.permute.xlu0 %9573
  %9577 = vset.pattern.permute.xlu0 1
  %9578 = vperm.xlu0 %9577, %v8228
  %v9579 = vpop.permute.xlu0 %9578
  %9582 = vset.pattern.permute.xlu0 1
  %9583 = vperm.xlu0 %9582, %v8229
  %v9584 = vpop.permute.xlu0 %9583
  %9587 = vset.pattern.permute.xlu0 1
  %9588 = vperm.xlu0 %9587, %v8230
  %v9589 = vpop.permute.xlu0 %9588
  %9592 = vset.pattern.permute.xlu0 1
  %9593 = vperm.xlu0 %9592, %v8231
  %v9594 = vpop.permute.xlu0 %9593
  %9597 = vset.pattern.permute.xlu0 1
  %9598 = vperm.xlu0 %9597, %v8232
  %v9599 = vpop.permute.xlu0 %9598
  %9602 = vset.pattern.permute.xlu0 1
  %9603 = vperm.xlu0 %9602, %v8233
  %v9604 = vpop.permute.xlu0 %9603
  %9607 = vset.pattern.permute.xlu0 1
  %9608 = vperm.xlu0 %9607, %v8234
  %v9609 = vpop.permute.xlu0 %9608
  %9612 = vset.pattern.permute.xlu0 1
  %9613 = vperm.xlu0 %9612, %v8235
  %v9614 = vpop.permute.xlu0 %9613
  %9617 = vset.pattern.permute.xlu0 1
  %9618 = vperm.xlu0 %9617, %v8236
  %v9619 = vpop.permute.xlu0 %9618
  %9622 = vset.pattern.permute.xlu0 1
  %9623 = vperm.xlu0 %9622, %v8237
  %v9624 = vpop.permute.xlu0 %9623
  %9627 = vset.pattern.permute.xlu0 1
  %9628 = vperm.xlu0 %9627, %v8238
  %v9629 = vpop.permute.xlu0 %9628
  %9632 = vset.pattern.permute.xlu0 1
  %9633 = vperm.xlu0 %9632, %v8239
  %v9634 = vpop.permute.xlu0 %9633
  %9637 = vset.pattern.permute.xlu0 1
  %9638 = vperm.xlu0 %9637, %v8240
  %v9639 = vpop.permute.xlu0 %9638
  %9642 = vset.pattern.permute.xlu0 1
  %9643 = vperm.xlu0 %9642, %v8241
  %v9644 = vpop.permute.xlu0 %9643
  %9647 = vset.pattern.permute.xlu0 1
  %9648 = vperm.xlu0 %9647, %v8242
  %v9649 = vpop.permute.xlu0 %9648
  %9652 = vset.pattern.permute.xlu0 1
  %9653 = vperm.xlu0 %9652, %v8243
  %v9654 = vpop.permute.xlu0 %9653
  %9657 = vset.pattern.permute.xlu0 1
  %9658 = vperm.xlu0 %9657, %v8244
  %v9659 = vpop.permute.xlu0 %9658
  %9662 = vset.pattern.permute.xlu0 1
  %9663 = vperm.xlu0 %9662, %v8245
  %v9664 = vpop.permute.xlu0 %9663
  %9667 = vset.pattern.permute.xlu0 1
  %9668 = vperm.xlu0 %9667, %v8246
  %v9669 = vpop.permute.xlu0 %9668
  %9672 = vset.pattern.permute.xlu0 1
  %9673 = vperm.xlu0 %9672, %v8247
  %v9674 = vpop.permute.xlu0 %9673
  %9677 = vset.pattern.permute.xlu0 1
  %9678 = vperm.xlu0 %9677, %v8248
  %v9679 = vpop.permute.xlu0 %9678
  %9682 = vset.pattern.permute.xlu0 1
  %9683 = vperm.xlu0 %9682, %v8249
  %v9684 = vpop.permute.xlu0 %9683
  %9687 = vset.pattern.permute.xlu0 1
  %9688 = vperm.xlu0 %9687, %v8250
  %v9689 = vpop.permute.xlu0 %9688
  %9692 = vset.pattern.permute.xlu0 1
  %9693 = vperm.xlu0 %9692, %v8251
  %v9694 = vpop.permute.xlu0 %9693
  %9697 = vset.pattern.permute.xlu0 1
  %9698 = vperm.xlu0 %9697, %v8252
  %v9699 = vpop.permute.xlu0 %9698
  %9702 = vset.pattern.permute.xlu0 1
  %9703 = vperm.xlu0 %9702, %v8253
  %v9704 = vpop.permute.xlu0 %9703
  %9707 = vset.pattern.permute.xlu0 1
  %9708 = vperm.xlu0 %9707, %v8254
  %v9709 = vpop.permute.xlu0 %9708
  %9712 = vset.pattern.permute.xlu0 1
  %9713 = vperm.xlu0 %9712, %v8255
  %v9714 = vpop.permute.xlu0 %9713
  %9717 = vset.pattern.permute.xlu0 1
  %9718 = vperm.xlu0 %9717, %v8256
  %v9719 = vpop.permute.xlu0 %9718
  %9722 = vset.pattern.permute.xlu0 1
  %9723 = vperm.xlu0 %9722, %v8257
  %v9724 = vpop.permute.xlu0 %9723
  %9727 = vset.pattern.permute.xlu0 1
  %9728 = vperm.xlu0 %9727, %v8258
  %v9729 = vpop.permute.xlu0 %9728
  %9732 = vset.pattern.permute.xlu0 1
  %9733 = vperm.xlu0 %9732, %v8259
  %v9734 = vpop.permute.xlu0 %9733
  %9737 = vset.pattern.permute.xlu0 1
  %9738 = vperm.xlu0 %9737, %v8260
  %v9739 = vpop.permute.xlu0 %9738
  %9742 = vset.pattern.permute.xlu0 1
  %9743 = vperm.xlu0 %9742, %v8261
  %v9744 = vpop.permute.xlu0 %9743
  %9747 = vset.pattern.permute.xlu0 1
  %9748 = vperm.xlu0 %9747, %v8262
  %v9749 = vpop.permute.xlu0 %9748
  %9752 = vset.pattern.permute.xlu0 1
  %9753 = vperm.xlu0 %9752, %v8263
  %v9754 = vpop.permute.xlu0 %9753
  %9757 = vset.pattern.permute.xlu0 1
  %9758 = vperm.xlu0 %9757, %v8264
  %v9759 = vpop.permute.xlu0 %9758
  %9762 = vset.pattern.permute.xlu0 1
  %9763 = vperm.xlu0 %9762, %v8265
  %v9764 = vpop.permute.xlu0 %9763
  %9767 = vset.pattern.permute.xlu0 1
  %9768 = vperm.xlu0 %9767, %v8266
  %v9769 = vpop.permute.xlu0 %9768
  %9772 = vset.pattern.permute.xlu0 1
  %9773 = vperm.xlu0 %9772, %v8267
  %v9774 = vpop.permute.xlu0 %9773
  %9777 = vset.pattern.permute.xlu0 1
  %9778 = vperm.xlu0 %9777, %v8268
  %v9779 = vpop.permute.xlu0 %9778
  %9782 = vset.pattern.permute.xlu0 1
  %9783 = vperm.xlu0 %9782, %v8269
  %v9784 = vpop.permute.xlu0 %9783
  %9787 = vset.pattern.permute.xlu0 1
  %9788 = vperm.xlu0 %9787, %v8270
  %v9789 = vpop.permute.xlu0 %9788
  %9792 = vset.pattern.permute.xlu0 1
  %9793 = vperm.xlu0 %9792, %v8271
  %v9794 = vpop.permute.xlu0 %9793
  %9797 = vset.pattern.permute.xlu0 1
  %9798 = vperm.xlu0 %9797, %v8272
  %v9799 = vpop.permute.xlu0 %9798
  %9802 = vset.pattern.permute.xlu0 1
  %9803 = vperm.xlu0 %9802, %v8273
  %v9804 = vpop.permute.xlu0 %9803
  %9807 = vset.pattern.permute.xlu0 1
  %9808 = vperm.xlu0 %9807, %v8274
  %v9809 = vpop.permute.xlu0 %9808
  %9812 = vset.pattern.permute.xlu0 1
  %9813 = vperm.xlu0 %9812, %v8275
  %v9814 = vpop.permute.xlu0 %9813
  %9817 = vset.pattern.permute.xlu0 1
  %9818 = vperm.xlu0 %9817, %v8276
  %v9819 = vpop.permute.xlu0 %9818
  %9822 = vset.pattern.permute.xlu0 1
  %9823 = vperm.xlu0 %9822, %v8277
  %v9824 = vpop.permute.xlu0 %9823
  %9827 = vset.pattern.permute.xlu0 1
  %9828 = vperm.xlu0 %9827, %v8278
  %v9829 = vpop.permute.xlu0 %9828
  %9832 = vset.pattern.permute.xlu0 1
  %9833 = vperm.xlu0 %9832, %v8279
  %v9834 = vpop.permute.xlu0 %9833
  %9837 = vset.pattern.permute.xlu0 1
  %9838 = vperm.xlu0 %9837, %v8280
  %v9839 = vpop.permute.xlu0 %9838
  %9842 = vset.pattern.permute.xlu0 1
  %9843 = vperm.xlu0 %9842, %v8281
  %v9844 = vpop.permute.xlu0 %9843
  %9847 = vset.pattern.permute.xlu0 1
  %9848 = vperm.xlu0 %9847, %v8282
  %v9849 = vpop.permute.xlu0 %9848
  %9852 = vset.pattern.permute.xlu0 1
  %9853 = vperm.xlu0 %9852, %v8283
  %v9854 = vpop.permute.xlu0 %9853
  %9857 = vset.pattern.permute.xlu0 1
  %9858 = vperm.xlu0 %9857, %v8284
  %v9859 = vpop.permute.xlu0 %9858
  %9862 = vset.pattern.permute.xlu0 1
  %9863 = vperm.xlu0 %9862, %v8285
  %v9864 = vpop.permute.xlu0 %9863
  %9867 = vset.pattern.permute.xlu0 1
  %9868 = vperm.xlu0 %9867, %v8286
  %v9869 = vpop.permute.xlu0 %9868
  %9872 = vset.pattern.permute.xlu0 1
  %9873 = vperm.xlu0 %9872, %v8287
  %v9874 = vpop.permute.xlu0 %9873
  %9877 = vset.pattern.permute.xlu0 1
  %9878 = vperm.xlu0 %9877, %v8288
  %v9879 = vpop.permute.xlu0 %9878
  %9882 = vset.pattern.permute.xlu0 1
  %9883 = vperm.xlu0 %9882, %v8289
  %v9884 = vpop.permute.xlu0 %9883
  %9887 = vset.pattern.permute.xlu0 1
  %9888 = vperm.xlu0 %9887, %v8290
  %v9889 = vpop.permute.xlu0 %9888
  %9892 = vset.pattern.permute.xlu0 1
  %9893 = vperm.xlu0 %9892, %v8291
  %v9894 = vpop.permute.xlu0 %9893
  %9897 = vset.pattern.permute.xlu0 1
  %9898 = vperm.xlu0 %9897, %v8292
  %v9899 = vpop.permute.xlu0 %9898
  %9902 = vset.pattern.permute.xlu0 1
  %9903 = vperm.xlu0 %9902, %v8293
  %v9904 = vpop.permute.xlu0 %9903
  %9907 = vset.pattern.permute.xlu0 1
  %9908 = vperm.xlu0 %9907, %v8294
  %v9909 = vpop.permute.xlu0 %9908
  %9912 = vset.pattern.permute.xlu0 1
  %9913 = vperm.xlu0 %9912, %v8295
  %v9914 = vpop.permute.xlu0 %9913
  %9917 = vset.pattern.permute.xlu0 1
  %9918 = vperm.xlu0 %9917, %v8296
  %v9919 = vpop.permute.xlu0 %9918
  %9922 = vset.pattern.permute.xlu0 1
  %9923 = vperm.xlu0 %9922, %v8297
  %v9924 = vpop.permute.xlu0 %9923
  %9927 = vset.pattern.permute.xlu0 1
  %9928 = vperm.xlu0 %9927, %v8298
  %v9929 = vpop.permute.xlu0 %9928
  %9932 = vset.pattern.permute.xlu0 1
  %9933 = vperm.xlu0 %9932, %v8299
  %v9934 = vpop.permute.xlu0 %9933
  %9937 = vset.pattern.permute.xlu0 1
  %9938 = vperm.xlu0 %9937, %v8300
  %v9939 = vpop.permute.xlu0 %9938
  %9942 = vset.pattern.permute.xlu0 1
  %9943 = vperm.xlu0 %9942, %v8301
  %v9944 = vpop.permute.xlu0 %9943
  %9947 = vset.pattern.permute.xlu0 1
  %9948 = vperm.xlu0 %9947, %v8302
  %v9949 = vpop.permute.xlu0 %9948
  %9952 = vset.pattern.permute.xlu0 1
  %9953 = vperm.xlu0 %9952, %v8303
  %v9954 = vpop.permute.xlu0 %9953
  %9957 = vset.pattern.permute.xlu0 1
  %9958 = vperm.xlu0 %9957, %v8304
  %v9959 = vpop.permute.xlu0 %9958
  %9962 = vset.pattern.permute.xlu0 1
  %9963 = vperm.xlu0 %9962, %v8305
  %v9964 = vpop.permute.xlu0 %9963
  %9967 = vset.pattern.permute.xlu0 1
  %9968 = vperm.xlu0 %9967, %v8306
  %v9969 = vpop.permute.xlu0 %9968
  %9972 = vset.pattern.permute.xlu0 1
  %9973 = vperm.xlu0 %9972, %v8307
  %v9974 = vpop.permute.xlu0 %9973
  %9977 = vset.pattern.permute.xlu0 1
  %9978 = vperm.xlu0 %9977, %v8308
  %v9979 = vpop.permute.xlu0 %9978
  %9982 = vset.pattern.permute.xlu0 1
  %9983 = vperm.xlu0 %9982, %v8309
  %v9984 = vpop.permute.xlu0 %9983
  %9987 = vset.pattern.permute.xlu0 1
  %9988 = vperm.xlu0 %9987, %v8310
  %v9989 = vpop.permute.xlu0 %9988
  %9992 = vset.pattern.permute.xlu0 1
  %9993 = vperm.xlu0 %9992, %v8311
  %v9994 = vpop.permute.xlu0 %9993
  %9997 = vset.pattern.permute.xlu0 1
  %9998 = vperm.xlu0 %9997, %v8312
  %v9999 = vpop.permute.xlu0 %9998
  %10002 = vset.pattern.permute.xlu0 1
  %10003 = vperm.xlu0 %10002, %v8313
  %v10004 = vpop.permute.xlu0 %10003
  %10007 = vset.pattern.permute.xlu0 1
  %10008 = vperm.xlu0 %10007, %v8314
  %v10009 = vpop.permute.xlu0 %10008
  %10012 = vset.pattern.permute.xlu0 1
  %10013 = vperm.xlu0 %10012, %v8315
  %v10014 = vpop.permute.xlu0 %10013
  %10017 = vset.pattern.permute.xlu0 1
  %10018 = vperm.xlu0 %10017, %v8316
  %v10019 = vpop.permute.xlu0 %10018
  %10022 = vset.pattern.permute.xlu0 1
  %10023 = vperm.xlu0 %10022, %v8317
  %v10024 = vpop.permute.xlu0 %10023
  %10027 = vset.pattern.permute.xlu0 1
  %10028 = vperm.xlu0 %10027, %v8318
  %v10029 = vpop.permute.xlu0 %10028
  %10032 = vset.pattern.permute.xlu0 1
  %10033 = vperm.xlu0 %10032, %v8319
  %v10034 = vpop.permute.xlu0 %10033
  %10037 = vset.pattern.permute.xlu0 1
  %10038 = vperm.xlu0 %10037, %v8320
  %v10039 = vpop.permute.xlu0 %10038
  %10042 = vset.pattern.permute.xlu0 1
  %10043 = vperm.xlu0 %10042, %v8321
  %v10044 = vpop.permute.xlu0 %10043
  %10047 = vset.pattern.permute.xlu0 1
  %10048 = vperm.xlu0 %10047, %v8322
  %v10049 = vpop.permute.xlu0 %10048
  %10052 = vset.pattern.permute.xlu0 1
  %10053 = vperm.xlu0 %10052, %v8323
  %v10054 = vpop.permute.xlu0 %10053
  %10057 = vset.pattern.permute.xlu0 1
  %10058 = vperm.xlu0 %10057, %v8324
  %v10059 = vpop.permute.xlu0 %10058
  %10062 = vset.pattern.permute.xlu0 1
  %10063 = vperm.xlu0 %10062, %v8325
  %v10064 = vpop.permute.xlu0 %10063
  %10067 = vset.pattern.permute.xlu0 1
  %10068 = vperm.xlu0 %10067, %v8326
  %v10069 = vpop.permute.xlu0 %10068
  %10072 = vset.pattern.permute.xlu0 1
  %10073 = vperm.xlu0 %10072, %v8327
  %v10074 = vpop.permute.xlu0 %10073
  %10077 = vset.pattern.permute.xlu0 1
  %10078 = vperm.xlu0 %10077, %v8328
  %v10079 = vpop.permute.xlu0 %10078
  %10082 = vset.pattern.permute.xlu0 1
  %10083 = vperm.xlu0 %10082, %v8329
  %v10084 = vpop.permute.xlu0 %10083
  %10087 = vset.pattern.permute.xlu0 1
  %10088 = vperm.xlu0 %10087, %v8330
  %v10089 = vpop.permute.xlu0 %10088
  %10092 = vset.pattern.permute.xlu0 1
  %10093 = vperm.xlu0 %10092, %v8331
  %v10094 = vpop.permute.xlu0 %10093
  %10097 = vset.pattern.permute.xlu0 1
  %10098 = vperm.xlu0 %10097, %v8332
  %v10099 = vpop.permute.xlu0 %10098
  %10102 = vset.pattern.permute.xlu0 1
  %10103 = vperm.xlu0 %10102, %v8333
  %v10104 = vpop.permute.xlu0 %10103
  %10107 = vset.pattern.permute.xlu0 1
  %10108 = vperm.xlu0 %10107, %v8334
  %v10109 = vpop.permute.xlu0 %10108
  %10112 = vset.pattern.permute.xlu0 1
  %10113 = vperm.xlu0 %10112, %v8335
  %v10114 = vpop.permute.xlu0 %10113
  %10117 = vset.pattern.permute.xlu0 1
  %10118 = vperm.xlu0 %10117, %v8336
  %v10119 = vpop.permute.xlu0 %10118
  %10122 = vset.pattern.permute.xlu0 1
  %10123 = vperm.xlu0 %10122, %v8337
  %v10124 = vpop.permute.xlu0 %10123
  %10127 = vset.pattern.permute.xlu0 1
  %10128 = vperm.xlu0 %10127, %v8338
  %v10129 = vpop.permute.xlu0 %10128
  %10132 = vset.pattern.permute.xlu0 1
  %10133 = vperm.xlu0 %10132, %v8339
  %v10134 = vpop.permute.xlu0 %10133
  %10137 = vset.pattern.permute.xlu0 1
  %10138 = vperm.xlu0 %10137, %v8340
  %v10139 = vpop.permute.xlu0 %10138
  %10142 = vset.pattern.permute.xlu0 1
  %10143 = vperm.xlu0 %10142, %v8341
  %v10144 = vpop.permute.xlu0 %10143
  %10147 = vset.pattern.permute.xlu0 1
  %10148 = vperm.xlu0 %10147, %v8342
  %v10149 = vpop.permute.xlu0 %10148
  %10152 = vset.pattern.permute.xlu0 1
  %10153 = vperm.xlu0 %10152, %v8343
  %v10154 = vpop.permute.xlu0 %10153
  %10157 = vset.pattern.permute.xlu0 1
  %10158 = vperm.xlu0 %10157, %v8344
  %v10159 = vpop.permute.xlu0 %10158
  %10162 = vset.pattern.permute.xlu0 1
  %10163 = vperm.xlu0 %10162, %v8345
  %v10164 = vpop.permute.xlu0 %10163
  %10167 = vset.pattern.permute.xlu0 1
  %10168 = vperm.xlu0 %10167, %v8346
  %v10169 = vpop.permute.xlu0 %10168
  %10172 = vset.pattern.permute.xlu0 1
  %10173 = vperm.xlu0 %10172, %v8347
  %v10174 = vpop.permute.xlu0 %10173
  %10177 = vset.pattern.permute.xlu0 1
  %10178 = vperm.xlu0 %10177, %v8348
  %v10179 = vpop.permute.xlu0 %10178
  %10182 = vset.pattern.permute.xlu0 1
  %10183 = vperm.xlu0 %10182, %v8349
  %v10184 = vpop.permute.xlu0 %10183
  %10187 = vset.pattern.permute.xlu0 1
  %10188 = vperm.xlu0 %10187, %v8350
  %v10189 = vpop.permute.xlu0 %10188
  %10192 = vset.pattern.permute.xlu0 1
  %10193 = vperm.xlu0 %10192, %v8351
  %v10194 = vpop.permute.xlu0 %10193
  %10197 = vset.pattern.permute.xlu0 1
  %10198 = vperm.xlu0 %10197, %v8352
  %v10199 = vpop.permute.xlu0 %10198
  %10202 = vset.pattern.permute.xlu0 1
  %10203 = vperm.xlu0 %10202, %v8353
  %v10204 = vpop.permute.xlu0 %10203
  %10207 = vset.pattern.permute.xlu0 1
  %10208 = vperm.xlu0 %10207, %v8354
  %v10209 = vpop.permute.xlu0 %10208
  %10212 = vset.pattern.permute.xlu0 1
  %10213 = vperm.xlu0 %10212, %v8355
  %v10214 = vpop.permute.xlu0 %10213
  %10217 = vset.pattern.permute.xlu0 1
  %10218 = vperm.xlu0 %10217, %v8356
  %v10219 = vpop.permute.xlu0 %10218
  %10222 = vset.pattern.permute.xlu0 1
  %10223 = vperm.xlu0 %10222, %v8357
  %v10224 = vpop.permute.xlu0 %10223
  %10227 = vset.pattern.permute.xlu0 1
  %10228 = vperm.xlu0 %10227, %v8358
  %v10229 = vpop.permute.xlu0 %10228
  %10232 = vset.pattern.permute.xlu0 1
  %10233 = vperm.xlu0 %10232, %v8359
  %v10234 = vpop.permute.xlu0 %10233
  %10237 = vset.pattern.permute.xlu0 1
  %10238 = vperm.xlu0 %10237, %v8360
  %v10239 = vpop.permute.xlu0 %10238
  %10242 = vset.pattern.permute.xlu0 1
  %10243 = vperm.xlu0 %10242, %v8361
  %v10244 = vpop.permute.xlu0 %10243
  %10247 = vset.pattern.permute.xlu0 1
  %10248 = vperm.xlu0 %10247, %v8362
  %v10249 = vpop.permute.xlu0 %10248
  %10252 = vset.pattern.permute.xlu0 1
  %10253 = vperm.xlu0 %10252, %v8363
  %v10254 = vpop.permute.xlu0 %10253
  %10257 = vset.pattern.permute.xlu0 1
  %10258 = vperm.xlu0 %10257, %v8364
  %v10259 = vpop.permute.xlu0 %10258
  %10262 = vset.pattern.permute.xlu0 1
  %10263 = vperm.xlu0 %10262, %v8365
  %v10264 = vpop.permute.xlu0 %10263
  %10267 = vset.pattern.permute.xlu0 1
  %10268 = vperm.xlu0 %10267, %v8366
  %v10269 = vpop.permute.xlu0 %10268
  %10272 = vset.pattern.permute.xlu0 1
  %10273 = vperm.xlu0 %10272, %v8367
  %v10274 = vpop.permute.xlu0 %10273
  %10277 = vset.pattern.permute.xlu0 1
  %10278 = vperm.xlu0 %10277, %v8368
  %v10279 = vpop.permute.xlu0 %10278
  %10282 = vset.pattern.permute.xlu0 1
  %10283 = vperm.xlu0 %10282, %v8369
  %v10284 = vpop.permute.xlu0 %10283
  %10287 = vset.pattern.permute.xlu0 1
  %10288 = vperm.xlu0 %10287, %v8370
  %v10289 = vpop.permute.xlu0 %10288
  %10292 = vset.pattern.permute.xlu0 1
  %10293 = vperm.xlu0 %10292, %v8371
  %v10294 = vpop.permute.xlu0 %10293
  %10297 = vset.pattern.permute.xlu0 1
  %10298 = vperm.xlu0 %10297, %v8372
  %v10299 = vpop.permute.xlu0 %10298
  %10302 = vset.pattern.permute.xlu0 1
  %10303 = vperm.xlu0 %10302, %v8373
  %v10304 = vpop.permute.xlu0 %10303
  %10307 = vset.pattern.permute.xlu0 1
  %10308 = vperm.xlu0 %10307, %v8374
  %v10309 = vpop.permute.xlu0 %10308
  %10312 = vset.pattern.permute.xlu0 1
  %10313 = vperm.xlu0 %10312, %v8375
  %v10314 = vpop.permute.xlu0 %10313
  %10317 = vset.pattern.permute.xlu0 1
  %10318 = vperm.xlu0 %10317, %v8376
  %v10319 = vpop.permute.xlu0 %10318
  %10322 = vset.pattern.permute.xlu0 1
  %10323 = vperm.xlu0 %10322, %v8377
  %v10324 = vpop.permute.xlu0 %10323
  %10327 = vset.pattern.permute.xlu0 1
  %10328 = vperm.xlu0 %10327, %v8378
  %v10329 = vpop.permute.xlu0 %10328
  %10332 = vset.pattern.permute.xlu0 1
  %10333 = vperm.xlu0 %10332, %v8379
  %v10334 = vpop.permute.xlu0 %10333
  %10337 = vset.pattern.permute.xlu0 1
  %10338 = vperm.xlu0 %10337, %v8380
  %v10339 = vpop.permute.xlu0 %10338
  %10342 = vset.pattern.permute.xlu0 1
  %10343 = vperm.xlu0 %10342, %v8381
  %v10344 = vpop.permute.xlu0 %10343
  %10347 = vset.pattern.permute.xlu0 1
  %10348 = vperm.xlu0 %10347, %v8382
  %v10349 = vpop.permute.xlu0 %10348
  %10352 = vset.pattern.permute.xlu0 1
  %10353 = vperm.xlu0 %10352, %v8383
  %v10354 = vpop.permute.xlu0 %10353
  %10357 = vset.pattern.permute.xlu0 1
  %10358 = vperm.xlu0 %10357, %v8384
  %v10359 = vpop.permute.xlu0 %10358
  %10362 = vset.pattern.permute.xlu0 1
  %10363 = vperm.xlu0 %10362, %v8385
  %v10364 = vpop.permute.xlu0 %10363
  %10367 = vset.pattern.permute.xlu0 1
  %10368 = vperm.xlu0 %10367, %v8386
  %v10369 = vpop.permute.xlu0 %10368
  %10372 = vset.pattern.permute.xlu0 1
  %10373 = vperm.xlu0 %10372, %v8387
  %v10374 = vpop.permute.xlu0 %10373
  %10377 = vset.pattern.permute.xlu0 1
  %10378 = vperm.xlu0 %10377, %v8388
  %v10379 = vpop.permute.xlu0 %10378
  %10382 = vset.pattern.permute.xlu0 1
  %10383 = vperm.xlu0 %10382, %v8389
  %v10384 = vpop.permute.xlu0 %10383
  %10387 = vset.pattern.permute.xlu0 1
  %10388 = vperm.xlu0 %10387, %v8390
  %v10389 = vpop.permute.xlu0 %10388
  %10392 = vset.pattern.permute.xlu0 1
  %10393 = vperm.xlu0 %10392, %v8391
  %v10394 = vpop.permute.xlu0 %10393
  %10397 = vset.pattern.permute.xlu0 1
  %10398 = vperm.xlu0 %10397, %v8392
  %v10399 = vpop.permute.xlu0 %10398
  %10402 = vset.pattern.permute.xlu0 1
  %10403 = vperm.xlu0 %10402, %v8393
  %v10404 = vpop.permute.xlu0 %10403
  %10407 = vset.pattern.permute.xlu0 1
  %10408 = vperm.xlu0 %10407, %v8394
  %v10409 = vpop.permute.xlu0 %10408
  %10412 = vset.pattern.permute.xlu0 1
  %10413 = vperm.xlu0 %10412, %v8395
  %v10414 = vpop.permute.xlu0 %10413
  %10417 = vset.pattern.permute.xlu0 1
  %10418 = vperm.xlu0 %10417, %v8396
  %v10419 = vpop.permute.xlu0 %10418
  %10422 = vset.pattern.permute.xlu0 1
  %10423 = vperm.xlu0 %10422, %v8397
  %v10424 = vpop.permute.xlu0 %10423
  %10427 = vset.pattern.permute.xlu0 1
  %10428 = vperm.xlu0 %10427, %v8398
  %v10429 = vpop.permute.xlu0 %10428
  %10432 = vset.pattern.permute.xlu0 1
  %10433 = vperm.xlu0 %10432, %v8399
  %v10434 = vpop.permute.xlu0 %10433
  %10437 = vset.pattern.permute.xlu0 1
  %10438 = vperm.xlu0 %10437, %v8400
  %v10439 = vpop.permute.xlu0 %10438
  %10442 = vset.pattern.permute.xlu0 1
  %10443 = vperm.xlu0 %10442, %v8401
  %v10444 = vpop.permute.xlu0 %10443
  %10447 = vset.pattern.permute.xlu0 1
  %10448 = vperm.xlu0 %10447, %v8402
  %v10449 = vpop.permute.xlu0 %10448
  %10452 = vset.pattern.permute.xlu0 1
  %10453 = vperm.xlu0 %10452, %v8403
  %v10454 = vpop.permute.xlu0 %10453
  %10457 = vset.pattern.permute.xlu0 1
  %10458 = vperm.xlu0 %10457, %v8404
  %v10459 = vpop.permute.xlu0 %10458
  %10462 = vset.pattern.permute.xlu0 1
  %10463 = vperm.xlu0 %10462, %v8405
  %v10464 = vpop.permute.xlu0 %10463
  %10467 = vset.pattern.permute.xlu0 1
  %10468 = vperm.xlu0 %10467, %v8406
  %v10469 = vpop.permute.xlu0 %10468
  %10472 = vset.pattern.permute.xlu0 1
  %10473 = vperm.xlu0 %10472, %v8407
  %v10474 = vpop.permute.xlu0 %10473
  %10477 = vset.pattern.permute.xlu0 1
  %10478 = vperm.xlu0 %10477, %v8408
  %v10479 = vpop.permute.xlu0 %10478
  %10482 = vset.pattern.permute.xlu0 1
  %10483 = vperm.xlu0 %10482, %v8409
  %v10484 = vpop.permute.xlu0 %10483
  %10487 = vset.pattern.permute.xlu0 1
  %10488 = vperm.xlu0 %10487, %v8410
  %v10489 = vpop.permute.xlu0 %10488
  %10492 = vset.pattern.permute.xlu0 1
  %10493 = vperm.xlu0 %10492, %v8411
  %v10494 = vpop.permute.xlu0 %10493
  %10497 = vset.pattern.permute.xlu0 1
  %10498 = vperm.xlu0 %10497, %v8412
  %v10499 = vpop.permute.xlu0 %10498
  %10502 = vset.pattern.permute.xlu0 1
  %10503 = vperm.xlu0 %10502, %v8413
  %v10504 = vpop.permute.xlu0 %10503
  %10507 = vset.pattern.permute.xlu0 1
  %10508 = vperm.xlu0 %10507, %v8414
  %v10509 = vpop.permute.xlu0 %10508
  %10512 = vset.pattern.permute.xlu0 1
  %10513 = vperm.xlu0 %10512, %v8415
  %v10514 = vpop.permute.xlu0 %10513
  %10517 = vset.pattern.permute.xlu0 1
  %10518 = vperm.xlu0 %10517, %v8416
  %v10519 = vpop.permute.xlu0 %10518
  %10522 = vset.pattern.permute.xlu0 1
  %10523 = vperm.xlu0 %10522, %v8417
  %v10524 = vpop.permute.xlu0 %10523
  %10527 = vset.pattern.permute.xlu0 1
  %10528 = vperm.xlu0 %10527, %v8418
  %v10529 = vpop.permute.xlu0 %10528
  %v10531 = vadd.f32 %v9379, %v9574
  %v10532 = vadd.f32 %v9380, %v9579
  %v10533 = vadd.f32 %v9381, %v9584
  %v10534 = vadd.f32 %v9382, %v9589
  %v10535 = vadd.f32 %v9383, %v9594
  %v10536 = vadd.f32 %v9384, %v9599
  %v10537 = vadd.f32 %v9385, %v9604
  %v10538 = vadd.f32 %v9386, %v9609
  %v10539 = vadd.f32 %v9387, %v9614
  %v10540 = vadd.f32 %v9388, %v9619
  %v10541 = vadd.f32 %v9389, %v9624
  %v10542 = vadd.f32 %v9390, %v9629
  %v10543 = vadd.f32 %v9391, %v9634
  %v10544 = vadd.f32 %v9392, %v9639
  %v10545 = vadd.f32 %v9393, %v9644
  %v10546 = vadd.f32 %v9394, %v9649
  %v10547 = vadd.f32 %v9395, %v9654
  %v10548 = vadd.f32 %v9396, %v9659
  %v10549 = vadd.f32 %v9397, %v9664
  %v10550 = vadd.f32 %v9398, %v9669
  %v10551 = vadd.f32 %v9399, %v9674
  %v10552 = vadd.f32 %v9400, %v9679
  %v10553 = vadd.f32 %v9401, %v9684
  %v10554 = vadd.f32 %v9402, %v9689
  %v10555 = vadd.f32 %v9403, %v9694
  %v10556 = vadd.f32 %v9404, %v9699
  %v10557 = vadd.f32 %v9405, %v9704
  %v10558 = vadd.f32 %v9406, %v9709
  %v10559 = vadd.f32 %v9407, %v9714
  %v10560 = vadd.f32 %v9408, %v9719
  %v10561 = vadd.f32 %v9409, %v9724
  %v10562 = vadd.f32 %v9410, %v9729
  %v10563 = vadd.f32 %v9411, %v9734
  %v10564 = vadd.f32 %v9412, %v9739
  %v10565 = vadd.f32 %v9413, %v9744
  %v10566 = vadd.f32 %v9414, %v9749
  %v10567 = vadd.f32 %v9415, %v9754
  %v10568 = vadd.f32 %v9416, %v9759
  %v10569 = vadd.f32 %v9417, %v9764
  %v10570 = vadd.f32 %v9418, %v9769
  %v10571 = vadd.f32 %v9419, %v9774
  %v10572 = vadd.f32 %v9420, %v9779
  %v10573 = vadd.f32 %v9421, %v9784
  %v10574 = vadd.f32 %v9422, %v9789
  %v10575 = vadd.f32 %v9423, %v9794
  %v10576 = vadd.f32 %v9424, %v9799
  %v10577 = vadd.f32 %v9425, %v9804
  %v10578 = vadd.f32 %v9426, %v9809
  %v10579 = vadd.f32 %v9427, %v9814
  %v10580 = vadd.f32 %v9428, %v9819
  %v10581 = vadd.f32 %v9429, %v9824
  %v10582 = vadd.f32 %v9430, %v9829
  %v10583 = vadd.f32 %v9431, %v9834
  %v10584 = vadd.f32 %v9432, %v9839
  %v10585 = vadd.f32 %v9433, %v9844
  %v10586 = vadd.f32 %v9434, %v9849
  %v10587 = vadd.f32 %v9435, %v9854
  %v10588 = vadd.f32 %v9436, %v9859
  %v10589 = vadd.f32 %v9437, %v9864
  %v10590 = vadd.f32 %v9438, %v9869
  %v10591 = vadd.f32 %v9439, %v9874
  %v10592 = vadd.f32 %v9440, %v9879
  %v10593 = vadd.f32 %v9441, %v9884
  %v10594 = vadd.f32 %v9442, %v9889
  %v10595 = vadd.f32 %v9443, %v9894
  %v10596 = vadd.f32 %v9444, %v9899
  %v10597 = vadd.f32 %v9445, %v9904
  %v10598 = vadd.f32 %v9446, %v9909
  %v10599 = vadd.f32 %v9447, %v9914
  %v10600 = vadd.f32 %v9448, %v9919
  %v10601 = vadd.f32 %v9449, %v9924
  %v10602 = vadd.f32 %v9450, %v9929
  %v10603 = vadd.f32 %v9451, %v9934
  %v10604 = vadd.f32 %v9452, %v9939
  %v10605 = vadd.f32 %v9453, %v9944
  %v10606 = vadd.f32 %v9454, %v9949
  %v10607 = vadd.f32 %v9455, %v9954
  %v10608 = vadd.f32 %v9456, %v9959
  %v10609 = vadd.f32 %v9457, %v9964
  %v10610 = vadd.f32 %v9458, %v9969
  %v10611 = vadd.f32 %v9459, %v9974
  %v10612 = vadd.f32 %v9460, %v9979
  %v10613 = vadd.f32 %v9461, %v9984
  %v10614 = vadd.f32 %v9462, %v9989
  %v10615 = vadd.f32 %v9463, %v9994
  %v10616 = vadd.f32 %v9464, %v9999
  %v10617 = vadd.f32 %v9465, %v10004
  %v10618 = vadd.f32 %v9466, %v10009
  %v10619 = vadd.f32 %v9467, %v10014
  %v10620 = vadd.f32 %v9468, %v10019
  %v10621 = vadd.f32 %v9469, %v10024
  %v10622 = vadd.f32 %v9470, %v10029
  %v10623 = vadd.f32 %v9471, %v10034
  %v10624 = vadd.f32 %v9472, %v10039
  %v10625 = vadd.f32 %v9473, %v10044
  %v10626 = vadd.f32 %v9474, %v10049
  %v10627 = vadd.f32 %v9475, %v10054
  %v10628 = vadd.f32 %v9476, %v10059
  %v10629 = vadd.f32 %v9477, %v10064
  %v10630 = vadd.f32 %v9478, %v10069
  %v10631 = vadd.f32 %v9479, %v10074
  %v10632 = vadd.f32 %v9480, %v10079
  %v10633 = vadd.f32 %v9481, %v10084
  %v10634 = vadd.f32 %v9482, %v10089
  %v10635 = vadd.f32 %v9483, %v10094
  %v10636 = vadd.f32 %v9484, %v10099
  %v10637 = vadd.f32 %v9485, %v10104
  %v10638 = vadd.f32 %v9486, %v10109
  %v10639 = vadd.f32 %v9487, %v10114
  %v10640 = vadd.f32 %v9488, %v10119
  %v10641 = vadd.f32 %v9489, %v10124
  %v10642 = vadd.f32 %v9490, %v10129
  %v10643 = vadd.f32 %v9491, %v10134
  %v10644 = vadd.f32 %v9492, %v10139
  %v10645 = vadd.f32 %v9493, %v10144
  %v10646 = vadd.f32 %v9494, %v10149
  %v10647 = vadd.f32 %v9495, %v10154
  %v10648 = vadd.f32 %v9496, %v10159
  %v10649 = vadd.f32 %v9497, %v10164
  %v10650 = vadd.f32 %v9498, %v10169
  %v10651 = vadd.f32 %v9499, %v10174
  %v10652 = vadd.f32 %v9500, %v10179
  %v10653 = vadd.f32 %v9501, %v10184
  %v10654 = vadd.f32 %v9502, %v10189
  %v10655 = vadd.f32 %v9503, %v10194
  %v10656 = vadd.f32 %v9504, %v10199
  %v10657 = vadd.f32 %v9505, %v10204
  %v10658 = vadd.f32 %v9506, %v10209
  %v10659 = vadd.f32 %v9507, %v10214
  %v10660 = vadd.f32 %v9508, %v10219
  %v10661 = vadd.f32 %v9509, %v10224
  %v10662 = vadd.f32 %v9510, %v10229
  %v10663 = vadd.f32 %v9511, %v10234
  %v10664 = vadd.f32 %v9512, %v10239
  %v10665 = vadd.f32 %v9513, %v10244
  %v10666 = vadd.f32 %v9514, %v10249
  %v10667 = vadd.f32 %v9515, %v10254
  %v10668 = vadd.f32 %v9516, %v10259
  %v10669 = vadd.f32 %v9517, %v10264
  %v10670 = vadd.f32 %v9518, %v10269
  %v10671 = vadd.f32 %v9519, %v10274
  %v10672 = vadd.f32 %v9520, %v10279
  %v10673 = vadd.f32 %v9521, %v10284
  %v10674 = vadd.f32 %v9522, %v10289
  %v10675 = vadd.f32 %v9523, %v10294
  %v10676 = vadd.f32 %v9524, %v10299
  %v10677 = vadd.f32 %v9525, %v10304
  %v10678 = vadd.f32 %v9526, %v10309
  %v10679 = vadd.f32 %v9527, %v10314
  %v10680 = vadd.f32 %v9528, %v10319
  %v10681 = vadd.f32 %v9529, %v10324
  %v10682 = vadd.f32 %v9530, %v10329
  %v10683 = vadd.f32 %v9531, %v10334
  %v10684 = vadd.f32 %v9532, %v10339
  %v10685 = vadd.f32 %v9533, %v10344
  %v10686 = vadd.f32 %v9534, %v10349
  %v10687 = vadd.f32 %v9535, %v10354
  %v10688 = vadd.f32 %v9536, %v10359
  %v10689 = vadd.f32 %v9537, %v10364
  %v10690 = vadd.f32 %v9538, %v10369
  %v10691 = vadd.f32 %v9539, %v10374
  %v10692 = vadd.f32 %v9540, %v10379
  %v10693 = vadd.f32 %v9541, %v10384
  %v10694 = vadd.f32 %v9542, %v10389
  %v10695 = vadd.f32 %v9543, %v10394
  %v10696 = vadd.f32 %v9544, %v10399
  %v10697 = vadd.f32 %v9545, %v10404
  %v10698 = vadd.f32 %v9546, %v10409
  %v10699 = vadd.f32 %v9547, %v10414
  %v10700 = vadd.f32 %v9548, %v10419
  %v10701 = vadd.f32 %v9549, %v10424
  %v10702 = vadd.f32 %v9550, %v10429
  %v10703 = vadd.f32 %v9551, %v10434
  %v10704 = vadd.f32 %v9552, %v10439
  %v10705 = vadd.f32 %v9553, %v10444
  %v10706 = vadd.f32 %v9554, %v10449
  %v10707 = vadd.f32 %v9555, %v10454
  %v10708 = vadd.f32 %v9556, %v10459
  %v10709 = vadd.f32 %v9557, %v10464
  %v10710 = vadd.f32 %v9558, %v10469
  %v10711 = vadd.f32 %v9559, %v10474
  %v10712 = vadd.f32 %v9560, %v10479
  %v10713 = vadd.f32 %v9561, %v10484
  %v10714 = vadd.f32 %v9562, %v10489
  %v10715 = vadd.f32 %v9563, %v10494
  %v10716 = vadd.f32 %v9564, %v10499
  %v10717 = vadd.f32 %v9565, %v10504
  %v10718 = vadd.f32 %v9566, %v10509
  %v10719 = vadd.f32 %v9567, %v10514
  %v10720 = vadd.f32 %v9568, %v10519
  %v10721 = vadd.f32 %v9569, %v10524
  %v10722 = vadd.f32 %v9570, %v10529
  %10723 = vst.msk [vmem:[%s2] sm:$0xff] %vm1468, %v10531
  %10724 = vst.msk [vmem:[%s2 + $0x8] sm:$0xff] %vm1468, %v10532
  %10725 = vst.msk [vmem:[%s2 + $0x10] sm:$0xff] %vm1468, %v10533
  %10726 = vst.msk [vmem:[%s2 + $0x18] sm:$0xff] %vm1468, %v10534
  %10727 = vst.msk [vmem:[%s2 + $0x20] sm:$0xff] %vm1468, %v10535
  %10728 = vst.msk [vmem:[%s2 + $0x28] sm:$0xff] %vm1468, %v10536
  %10729 = vst.msk [vmem:[%s2 + $0x30] sm:$0xff] %vm1468, %v10537
  %10730 = vst.msk [vmem:[%s2 + $0x38] sm:$0xff] %vm1468, %v10538
  %10731 = vst.msk [vmem:[%s2 + $0x40] sm:$0xff] %vm1468, %v10539
  %10732 = vst.msk [vmem:[%s2 + $0x48] sm:$0xff] %vm1468, %v10540
  %10733 = vst.msk [vmem:[%s2 + $0x50] sm:$0xff] %vm1468, %v10541
  %10734 = vst.msk [vmem:[%s2 + $0x58] sm:$0xff] %vm1468, %v10542
  %10735 = vst.msk [vmem:[%s2 + $0x60] sm:$0xff] %vm1468, %v10543
  %10736 = vst.msk [vmem:[%s2 + $0x68] sm:$0xff] %vm1468, %v10544
  %10737 = vst.msk [vmem:[%s2 + $0x70] sm:$0xff] %vm1468, %v10545
  %10738 = vst.msk [vmem:[%s2 + $0x78] sm:$0xff] %vm1468, %v10546
  %10739 = vst.msk [vmem:[%s2 + $0x80] sm:$0xff] %vm1468, %v10547
  %10740 = vst.msk [vmem:[%s2 + $0x88] sm:$0xff] %vm1468, %v10548
  %10741 = vst.msk [vmem:[%s2 + $0x90] sm:$0xff] %vm1468, %v10549
  %10742 = vst.msk [vmem:[%s2 + $0x98] sm:$0xff] %vm1468, %v10550
  %10743 = vst.msk [vmem:[%s2 + $0xa0] sm:$0xff] %vm1468, %v10551
  %10744 = vst.msk [vmem:[%s2 + $0xa8] sm:$0xff] %vm1468, %v10552
  %10745 = vst.msk [vmem:[%s2 + $0xb0] sm:$0xff] %vm1468, %v10553
  %10746 = vst.msk [vmem:[%s2 + $0xb8] sm:$0xff] %vm1468, %v10554
  %10747 = vst.msk [vmem:[%s2 + $0xc0] sm:$0xff] %vm1468, %v10555
  %10748 = vst.msk [vmem:[%s2 + $0xc8] sm:$0xff] %vm1468, %v10556
  %10749 = vst.msk [vmem:[%s2 + $0xd0] sm:$0xff] %vm1468, %v10557
  %10750 = vst.msk [vmem:[%s2 + $0xd8] sm:$0xff] %vm1468, %v10558
  %10751 = vst.msk [vmem:[%s2 + $0xe0] sm:$0xff] %vm1468, %v10559
  %10752 = vst.msk [vmem:[%s2 + $0xe8] sm:$0xff] %vm1468, %v10560
  %10753 = vst.msk [vmem:[%s2 + $0xf0] sm:$0xff] %vm1468, %v10561
  %10754 = vst.msk [vmem:[%s2 + $0xf8] sm:$0xff] %vm1468, %v10562
  %10755 = vst.msk [vmem:[%s2 + $0x100] sm:$0xff] %vm1468, %v10563
  %10756 = vst.msk [vmem:[%s2 + $0x108] sm:$0xff] %vm1468, %v10564
  %10757 = vst.msk [vmem:[%s2 + $0x110] sm:$0xff] %vm1468, %v10565
  %10758 = vst.msk [vmem:[%s2 + $0x118] sm:$0xff] %vm1468, %v10566
  %10759 = vst.msk [vmem:[%s2 + $0x120] sm:$0xff] %vm1468, %v10567
  %10760 = vst.msk [vmem:[%s2 + $0x128] sm:$0xff] %vm1468, %v10568
  %10761 = vst.msk [vmem:[%s2 + $0x130] sm:$0xff] %vm1468, %v10569
  %10762 = vst.msk [vmem:[%s2 + $0x138] sm:$0xff] %vm1468, %v10570
  %10763 = vst.msk [vmem:[%s2 + $0x140] sm:$0xff] %vm1468, %v10571
  %10764 = vst.msk [vmem:[%s2 + $0x148] sm:$0xff] %vm1468, %v10572
  %10765 = vst.msk [vmem:[%s2 + $0x150] sm:$0xff] %vm1468, %v10573
  %10766 = vst.msk [vmem:[%s2 + $0x158] sm:$0xff] %vm1468, %v10574
  %10767 = vst.msk [vmem:[%s2 + $0x160] sm:$0xff] %vm1468, %v10575
  %10768 = vst.msk [vmem:[%s2 + $0x168] sm:$0xff] %vm1468, %v10576
  %10769 = vst.msk [vmem:[%s2 + $0x170] sm:$0xff] %vm1468, %v10577
  %10770 = vst.msk [vmem:[%s2 + $0x178] sm:$0xff] %vm1468, %v10578
  %10771 = vst.msk [vmem:[%s2 + $0x180] sm:$0xff] %vm1468, %v10579
  %10772 = vst.msk [vmem:[%s2 + $0x188] sm:$0xff] %vm1468, %v10580
  %10773 = vst.msk [vmem:[%s2 + $0x190] sm:$0xff] %vm1468, %v10581
  %10774 = vst.msk [vmem:[%s2 + $0x198] sm:$0xff] %vm1468, %v10582
  %10775 = vst.msk [vmem:[%s2 + $0x1a0] sm:$0xff] %vm1468, %v10583
  %10776 = vst.msk [vmem:[%s2 + $0x1a8] sm:$0xff] %vm1468, %v10584
  %10777 = vst.msk [vmem:[%s2 + $0x1b0] sm:$0xff] %vm1468, %v10585
  %10778 = vst.msk [vmem:[%s2 + $0x1b8] sm:$0xff] %vm1468, %v10586
  %10779 = vst.msk [vmem:[%s2 + $0x1c0] sm:$0xff] %vm1468, %v10587
  %10780 = vst.msk [vmem:[%s2 + $0x1c8] sm:$0xff] %vm1468, %v10588
  %10781 = vst.msk [vmem:[%s2 + $0x1d0] sm:$0xff] %vm1468, %v10589
  %10782 = vst.msk [vmem:[%s2 + $0x1d8] sm:$0xff] %vm1468, %v10590
  %10783 = vst.msk [vmem:[%s2 + $0x1e0] sm:$0xff] %vm1468, %v10591
  %10784 = vst.msk [vmem:[%s2 + $0x1e8] sm:$0xff] %vm1468, %v10592
  %10785 = vst.msk [vmem:[%s2 + $0x1f0] sm:$0xff] %vm1468, %v10593
  %10786 = vst.msk [vmem:[%s2 + $0x1f8] sm:$0xff] %vm1468, %v10594
  %10787 = vst.msk [vmem:[%s2 + $0x200] sm:$0xff] %vm1468, %v10595
  %10788 = vst.msk [vmem:[%s2 + $0x208] sm:$0xff] %vm1468, %v10596
  %10789 = vst.msk [vmem:[%s2 + $0x210] sm:$0xff] %vm1468, %v10597
  %10790 = vst.msk [vmem:[%s2 + $0x218] sm:$0xff] %vm1468, %v10598
  %10791 = vst.msk [vmem:[%s2 + $0x220] sm:$0xff] %vm1468, %v10599
  %10792 = vst.msk [vmem:[%s2 + $0x228] sm:$0xff] %vm1468, %v10600
  %10793 = vst.msk [vmem:[%s2 + $0x230] sm:$0xff] %vm1468, %v10601
  %10794 = vst.msk [vmem:[%s2 + $0x238] sm:$0xff] %vm1468, %v10602
  %10795 = vst.msk [vmem:[%s2 + $0x240] sm:$0xff] %vm1468, %v10603
  %10796 = vst.msk [vmem:[%s2 + $0x248] sm:$0xff] %vm1468, %v10604
  %10797 = vst.msk [vmem:[%s2 + $0x250] sm:$0xff] %vm1468, %v10605
  %10798 = vst.msk [vmem:[%s2 + $0x258] sm:$0xff] %vm1468, %v10606
  %10799 = vst.msk [vmem:[%s2 + $0x260] sm:$0xff] %vm1468, %v10607
  %10800 = vst.msk [vmem:[%s2 + $0x268] sm:$0xff] %vm1468, %v10608
  %10801 = vst.msk [vmem:[%s2 + $0x270] sm:$0xff] %vm1468, %v10609
  %10802 = vst.msk [vmem:[%s2 + $0x278] sm:$0xff] %vm1468, %v10610
  %10803 = vst.msk [vmem:[%s2 + $0x280] sm:$0xff] %vm1468, %v10611
  %10804 = vst.msk [vmem:[%s2 + $0x288] sm:$0xff] %vm1468, %v10612
  %10805 = vst.msk [vmem:[%s2 + $0x290] sm:$0xff] %vm1468, %v10613
  %10806 = vst.msk [vmem:[%s2 + $0x298] sm:$0xff] %vm1468, %v10614
  %10807 = vst.msk [vmem:[%s2 + $0x2a0] sm:$0xff] %vm1468, %v10615
  %10808 = vst.msk [vmem:[%s2 + $0x2a8] sm:$0xff] %vm1468, %v10616
  %10809 = vst.msk [vmem:[%s2 + $0x2b0] sm:$0xff] %vm1468, %v10617
  %10810 = vst.msk [vmem:[%s2 + $0x2b8] sm:$0xff] %vm1468, %v10618
  %10811 = vst.msk [vmem:[%s2 + $0x2c0] sm:$0xff] %vm1468, %v10619
  %10812 = vst.msk [vmem:[%s2 + $0x2c8] sm:$0xff] %vm1468, %v10620
  %10813 = vst.msk [vmem:[%s2 + $0x2d0] sm:$0xff] %vm1468, %v10621
  %10814 = vst.msk [vmem:[%s2 + $0x2d8] sm:$0xff] %vm1468, %v10622
  %10815 = vst.msk [vmem:[%s2 + $0x2e0] sm:$0xff] %vm1468, %v10623
  %10816 = vst.msk [vmem:[%s2 + $0x2e8] sm:$0xff] %vm1468, %v10624
  %10817 = vst.msk [vmem:[%s2 + $0x2f0] sm:$0xff] %vm1468, %v10625
  %10818 = vst.msk [vmem:[%s2 + $0x2f8] sm:$0xff] %vm1468, %v10626
  %10819 = vst.msk [vmem:[%s2 + $0x300] sm:$0xff] %vm1468, %v10627
  %10820 = vst.msk [vmem:[%s2 + $0x308] sm:$0xff] %vm1468, %v10628
  %10821 = vst.msk [vmem:[%s2 + $0x310] sm:$0xff] %vm1468, %v10629
  %10822 = vst.msk [vmem:[%s2 + $0x318] sm:$0xff] %vm1468, %v10630
  %10823 = vst.msk [vmem:[%s2 + $0x320] sm:$0xff] %vm1468, %v10631
  %10824 = vst.msk [vmem:[%s2 + $0x328] sm:$0xff] %vm1468, %v10632
  %10825 = vst.msk [vmem:[%s2 + $0x330] sm:$0xff] %vm1468, %v10633
  %10826 = vst.msk [vmem:[%s2 + $0x338] sm:$0xff] %vm1468, %v10634
  %10827 = vst.msk [vmem:[%s2 + $0x340] sm:$0xff] %vm1468, %v10635
  %10828 = vst.msk [vmem:[%s2 + $0x348] sm:$0xff] %vm1468, %v10636
  %10829 = vst.msk [vmem:[%s2 + $0x350] sm:$0xff] %vm1468, %v10637
  %10830 = vst.msk [vmem:[%s2 + $0x358] sm:$0xff] %vm1468, %v10638
  %10831 = vst.msk [vmem:[%s2 + $0x360] sm:$0xff] %vm1468, %v10639
  %10832 = vst.msk [vmem:[%s2 + $0x368] sm:$0xff] %vm1468, %v10640
  %10833 = vst.msk [vmem:[%s2 + $0x370] sm:$0xff] %vm1468, %v10641
  %10834 = vst.msk [vmem:[%s2 + $0x378] sm:$0xff] %vm1468, %v10642
  %10835 = vst.msk [vmem:[%s2 + $0x380] sm:$0xff] %vm1468, %v10643
  %10836 = vst.msk [vmem:[%s2 + $0x388] sm:$0xff] %vm1468, %v10644
  %10837 = vst.msk [vmem:[%s2 + $0x390] sm:$0xff] %vm1468, %v10645
  %10838 = vst.msk [vmem:[%s2 + $0x398] sm:$0xff] %vm1468, %v10646
  %10839 = vst.msk [vmem:[%s2 + $0x3a0] sm:$0xff] %vm1468, %v10647
  %10840 = vst.msk [vmem:[%s2 + $0x3a8] sm:$0xff] %vm1468, %v10648
  %10841 = vst.msk [vmem:[%s2 + $0x3b0] sm:$0xff] %vm1468, %v10649
  %10842 = vst.msk [vmem:[%s2 + $0x3b8] sm:$0xff] %vm1468, %v10650
  %10843 = vst.msk [vmem:[%s2 + $0x3c0] sm:$0xff] %vm1468, %v10651
  %10844 = vst.msk [vmem:[%s2 + $0x3c8] sm:$0xff] %vm1468, %v10652
  %10845 = vst.msk [vmem:[%s2 + $0x3d0] sm:$0xff] %vm1468, %v10653
  %10846 = vst.msk [vmem:[%s2 + $0x3d8] sm:$0xff] %vm1468, %v10654
  %10847 = vst.msk [vmem:[%s2 + $0x3e0] sm:$0xff] %vm1468, %v10655
  %10848 = vst.msk [vmem:[%s2 + $0x3e8] sm:$0xff] %vm1468, %v10656
  %10849 = vst.msk [vmem:[%s2 + $0x3f0] sm:$0xff] %vm1468, %v10657
  %10850 = vst.msk [vmem:[%s2 + $0x3f8] sm:$0xff] %vm1468, %v10658
  %10851 = vst.msk [vmem:[%s2 + $0x400] sm:$0xff] %vm1468, %v10659
  %10852 = vst.msk [vmem:[%s2 + $0x408] sm:$0xff] %vm1468, %v10660
  %10853 = vst.msk [vmem:[%s2 + $0x410] sm:$0xff] %vm1468, %v10661
  %10854 = vst.msk [vmem:[%s2 + $0x418] sm:$0xff] %vm1468, %v10662
  %10855 = vst.msk [vmem:[%s2 + $0x420] sm:$0xff] %vm1468, %v10663
  %10856 = vst.msk [vmem:[%s2 + $0x428] sm:$0xff] %vm1468, %v10664
  %10857 = vst.msk [vmem:[%s2 + $0x430] sm:$0xff] %vm1468, %v10665
  %10858 = vst.msk [vmem:[%s2 + $0x438] sm:$0xff] %vm1468, %v10666
  %10859 = vst.msk [vmem:[%s2 + $0x440] sm:$0xff] %vm1468, %v10667
  %10860 = vst.msk [vmem:[%s2 + $0x448] sm:$0xff] %vm1468, %v10668
  %10861 = vst.msk [vmem:[%s2 + $0x450] sm:$0xff] %vm1468, %v10669
  %10862 = vst.msk [vmem:[%s2 + $0x458] sm:$0xff] %vm1468, %v10670
  %10863 = vst.msk [vmem:[%s2 + $0x460] sm:$0xff] %vm1468, %v10671
  %10864 = vst.msk [vmem:[%s2 + $0x468] sm:$0xff] %vm1468, %v10672
  %10865 = vst.msk [vmem:[%s2 + $0x470] sm:$0xff] %vm1468, %v10673
  %10866 = vst.msk [vmem:[%s2 + $0x478] sm:$0xff] %vm1468, %v10674
  %10867 = vst.msk [vmem:[%s2 + $0x480] sm:$0xff] %vm1468, %v10675
  %10868 = vst.msk [vmem:[%s2 + $0x488] sm:$0xff] %vm1468, %v10676
  %10869 = vst.msk [vmem:[%s2 + $0x490] sm:$0xff] %vm1468, %v10677
  %10870 = vst.msk [vmem:[%s2 + $0x498] sm:$0xff] %vm1468, %v10678
  %10871 = vst.msk [vmem:[%s2 + $0x4a0] sm:$0xff] %vm1468, %v10679
  %10872 = vst.msk [vmem:[%s2 + $0x4a8] sm:$0xff] %vm1468, %v10680
  %10873 = vst.msk [vmem:[%s2 + $0x4b0] sm:$0xff] %vm1468, %v10681
  %10874 = vst.msk [vmem:[%s2 + $0x4b8] sm:$0xff] %vm1468, %v10682
  %10875 = vst.msk [vmem:[%s2 + $0x4c0] sm:$0xff] %vm1468, %v10683
  %10876 = vst.msk [vmem:[%s2 + $0x4c8] sm:$0xff] %vm1468, %v10684
  %10877 = vst.msk [vmem:[%s2 + $0x4d0] sm:$0xff] %vm1468, %v10685
  %10878 = vst.msk [vmem:[%s2 + $0x4d8] sm:$0xff] %vm1468, %v10686
  %10879 = vst.msk [vmem:[%s2 + $0x4e0] sm:$0xff] %vm1468, %v10687
  %10880 = vst.msk [vmem:[%s2 + $0x4e8] sm:$0xff] %vm1468, %v10688
  %10881 = vst.msk [vmem:[%s2 + $0x4f0] sm:$0xff] %vm1468, %v10689
  %10882 = vst.msk [vmem:[%s2 + $0x4f8] sm:$0xff] %vm1468, %v10690
  %10883 = vst.msk [vmem:[%s2 + $0x500] sm:$0xff] %vm1468, %v10691
  %10884 = vst.msk [vmem:[%s2 + $0x508] sm:$0xff] %vm1468, %v10692
  %10885 = vst.msk [vmem:[%s2 + $0x510] sm:$0xff] %vm1468, %v10693
  %10886 = vst.msk [vmem:[%s2 + $0x518] sm:$0xff] %vm1468, %v10694
  %10887 = vst.msk [vmem:[%s2 + $0x520] sm:$0xff] %vm1468, %v10695
  %10888 = vst.msk [vmem:[%s2 + $0x528] sm:$0xff] %vm1468, %v10696
  %10889 = vst.msk [vmem:[%s2 + $0x530] sm:$0xff] %vm1468, %v10697
  %10890 = vst.msk [vmem:[%s2 + $0x538] sm:$0xff] %vm1468, %v10698
  %10891 = vst.msk [vmem:[%s2 + $0x540] sm:$0xff] %vm1468, %v10699
  %10892 = vst.msk [vmem:[%s2 + $0x548] sm:$0xff] %vm1468, %v10700
  %10893 = vst.msk [vmem:[%s2 + $0x550] sm:$0xff] %vm1468, %v10701
  %10894 = vst.msk [vmem:[%s2 + $0x558] sm:$0xff] %vm1468, %v10702
  %10895 = vst.msk [vmem:[%s2 + $0x560] sm:$0xff] %vm1468, %v10703
  %10896 = vst.msk [vmem:[%s2 + $0x568] sm:$0xff] %vm1468, %v10704
  %10897 = vst.msk [vmem:[%s2 + $0x570] sm:$0xff] %vm1468, %v10705
  %10898 = vst.msk [vmem:[%s2 + $0x578] sm:$0xff] %vm1468, %v10706
  %10899 = vst.msk [vmem:[%s2 + $0x580] sm:$0xff] %vm1468, %v10707
  %10900 = vst.msk [vmem:[%s2 + $0x588] sm:$0xff] %vm1468, %v10708
  %10901 = vst.msk [vmem:[%s2 + $0x590] sm:$0xff] %vm1468, %v10709
  %10902 = vst.msk [vmem:[%s2 + $0x598] sm:$0xff] %vm1468, %v10710
  %10903 = vst.msk [vmem:[%s2 + $0x5a0] sm:$0xff] %vm1468, %v10711
  %10904 = vst.msk [vmem:[%s2 + $0x5a8] sm:$0xff] %vm1468, %v10712
  %10905 = vst.msk [vmem:[%s2 + $0x5b0] sm:$0xff] %vm1468, %v10713
  %10906 = vst.msk [vmem:[%s2 + $0x5b8] sm:$0xff] %vm1468, %v10714
  %10907 = vst.msk [vmem:[%s2 + $0x5c0] sm:$0xff] %vm1468, %v10715
  %10908 = vst.msk [vmem:[%s2 + $0x5c8] sm:$0xff] %vm1468, %v10716
  %10909 = vst.msk [vmem:[%s2 + $0x5d0] sm:$0xff] %vm1468, %v10717
  %10910 = vst.msk [vmem:[%s2 + $0x5d8] sm:$0xff] %vm1468, %v10718
  %10911 = vst.msk [vmem:[%s2 + $0x5e0] sm:$0xff] %vm1468, %v10719
  %10912 = vst.msk [vmem:[%s2 + $0x5e8] sm:$0xff] %vm1468, %v10720
  %10913 = vst.msk [vmem:[%s2 + $0x5f0] sm:$0xff] %vm1468, %v10721
  %10914 = vst.msk [vmem:[%s2 + $0x5f8] sm:$0xff] %vm1468, %v10722
  // Predicated region
  $region10: #{batchnorm2d_pallas.1} parent=0 // pred_check
    _
  $region11: #{batchnorm2d_pallas.1} parent=0 // pred_check_branch
    %10916 = sbr.rel (0) target = $region13
  $region12: #{batchnorm2d_pallas.1} parent=0 // pred_region
    _
  $region13: #{batchnorm2d_pallas.1} parent=0 // pred_fallthru
    _
  // Predicated region
  $region14: #{batchnorm2d_pallas.1} parent=0 // pred_check
    _
  $region15: #{batchnorm2d_pallas.1} parent=0 // pred_check_branch
    %10918 = sbr.rel (0) target = $region17
  $region16: #{batchnorm2d_pallas.1} parent=0 // pred_region
    _
  $region17: #{batchnorm2d_pallas.1} parent=0 // pred_fallthru
    _

</llo_original>
